<compile_context>
chip_gen: v7x
topology: tpu7x:2x2x1
jax: 0.10.0
libtpu: 0.0.40
codegen_flags: <defaults>
</compile_context>

<pallas_src>
import functools
import math

import jax
import jax.numpy as jnp
from jax.experimental import pallas as pl
from jax.experimental.pallas import tpu as pltpu  # noqa: F401  (TPU backend)


# ----------------------------------------------------------- configuration --

D_MODEL = 32
N_HEADS = 4
D_HEAD = D_MODEL // N_HEADS
D_FF = 64
VOCAB = 64
MAX_LEN = 32                      # == D_MODEL (lets pos tables share the w32 slab)
SCALE = 1.0 / math.sqrt(D_HEAD)
EMB_SCALE = math.sqrt(D_MODEL)
EPS = 1e-5

# --- column offsets inside the packed weight slabs ---------------------------
# w32 slab: every [D_MODEL, *] weight + positional tables, lane-concatenated.
OFF_E_WQKV = 0       # [32, 96]
OFF_E_WO = 96        # [32, 32]
OFF_E_W1 = 128       # [32, 64]
OFF_D_WQKV = 192     # [32, 96]
OFF_D_WO = 288       # [32, 32]
OFF_C_WQ = 320       # [32, 32]
OFF_C_WKV = 352      # [32, 64]
OFF_C_WO = 416       # [32, 32]
OFF_D_W1 = 448       # [32, 64]
OFF_W_OUT = 512      # [32, 64]
OFF_SRC_POS = 576    # [32, 32]  (rows = position index)
OFF_TRG_POS = 608    # [32, 32]
W32_COLS = 640       # 5 * 128 lanes, lane-dense

# w64 slab: every [64, D_MODEL] weight (FFN down-proj + token embeddings).
OFF_E_W2 = 0
OFF_D_W2 = 32
OFF_SRC_EMB = 64
OFF_TRG_EMB = 96
W64_COLS = 128       # exactly one lane tile

# bias slab: one (<=128)-wide vector per row, zero-padded -> [24, 128].
ROW_E_BQKV, ROW_E_BO, ROW_E_LN1G, ROW_E_LN1B = 0, 1, 2, 3
ROW_E_B1, ROW_E_B2, ROW_E_LN2G, ROW_E_LN2B = 4, 5, 6, 7
ROW_D_BQKV, ROW_D_BO, ROW_D_LN1G, ROW_D_LN1B = 8, 9, 10, 11
ROW_C_BQ, ROW_C_BKV, ROW_C_BO = 12, 13, 14
ROW_D_LN2G, ROW_D_LN2B = 15, 16
ROW_D_B1, ROW_D_B2, ROW_D_LN3G, ROW_D_LN3B = 17, 18, 19, 20
ROW_B_OUT = 21
BIAS_ROWS = 24


# ------------------------------------------------------- in-kernel helpers --

def _layer_norm(x, g, b):
    """LayerNorm over the last dim (x already contains the residual add)."""
    mu = jnp.mean(x, axis=-1, keepdims=True)
    var = jnp.mean((x - mu) ** 2, axis=-1, keepdims=True)
    return (x - mu) * jax.lax.rsqrt(var + EPS) * g + b


def _linear(x, w, b, relu=False):
    y = jnp.dot(x, w, preferred_element_type=jnp.float32) + b
    if relu:
        y = jnp.maximum(y, 0.0)
    return y


def _mha(q2, k2, v2, wo, bo, B, Sq, Sk, *, causal, want_probs=False):
    """Multi-head attention + output projection.

    q2: [B*Sq, D]; k2, v2: [B*Sk, D].  Heads use static feature-dim slices and
    rank-3 einsums (known-good Mosaic lowering); the per-head outputs are
    concatenated once and projected by a SINGLE [D, D] matmul.  If
    `want_probs`, the softmax weights of all heads are returned as one
    [B, H*Sq, Sk] tensor (row-major identical to [B, H, Sq, Sk]) so the
    caller can store them with a single write.
    """
    q3 = q2.reshape(B, Sq, D_MODEL)
    k3 = k2.reshape(B, Sk, D_MODEL)
    v3 = v2.reshape(B, Sk, D_MODEL)

    if causal:
        row = jax.lax.broadcasted_iota(jnp.int32, (Sq, Sk), 0)
        col = jax.lax.broadcasted_iota(jnp.int32, (Sq, Sk), 1)
        keep = (row >= col)[None, :, :]

    heads, probs = [], []
    for h in range(N_HEADS):                       # static, unrolled at trace time
        lo, hi = h * D_HEAD, (h + 1) * D_HEAD
        s = jnp.einsum('bqd,bkd->bqk', q3[:, :, lo:hi], k3[:, :, lo:hi],
                       preferred_element_type=jnp.float32) * SCALE
        if causal:
            s = jnp.where(keep, s, -1e9)
        m = jnp.max(s, axis=-1, keepdims=True)
        e = jnp.exp(s - m)
        p = e / jnp.sum(e, axis=-1, keepdims=True)            # [B, Sq, Sk]
        if want_probs:
            probs.append(p)
        o_h = jnp.einsum('bqk,bkd->bqd', p, v3[:, :, lo:hi],
                         preferred_element_type=jnp.float32)  # [B, Sq, Dh]
        heads.append(o_h.reshape(B * Sq, D_HEAD))

    out = jnp.dot(jnp.concatenate(heads, axis=-1), wo,
                  preferred_element_type=jnp.float32) + bo    # ONE projection dot
    p_all = jnp.concatenate(probs, axis=1) if want_probs else None
    return out, p_all


# --------------------------------------------------------------- the kernel --

def _fused_transformer_kernel(src_ids_ref, trg_ids_ref, w32_ref, w64_ref, b_ref,
                              logits_ref, attn_ref, *, B, Ss, St):
    D = D_MODEL
    w32 = w32_ref[...]        # [32, 640]  all D-row weights + positional tables
    w64 = w64_ref[...]        # [64, 128]  FFN down-proj + token embedding tables
    bia = b_ref[...]          # [24, 128]  biases / LayerNorm gammas & betas

    def W32(off, n):
        return w32[:, off:off + n]

    def W64(off, n):
        return w64[:, off:off + n]

    def BV(row, n):
        return bia[row:row + 1, :n]            # [1, n], broadcasts over rows

    def embed(ids_ref, emb_off, pos_off, S):
        # Token gather realized as a one-hot MXU matmul (no in-kernel gather),
        # plus the positional-embedding add — all fused into this kernel.
        ids = ids_ref[...]                                            # [B*S, 1]
        hot = (ids == jax.lax.broadcasted_iota(jnp.int32, (B * S, VOCAB), 1)
               ).astype(jnp.float32)
        x = jnp.dot(hot, W64(emb_off, D),
                    preferred_element_type=jnp.float32) * EMB_SCALE
        pos = W32(pos_off, D)[:S, :]                                  # [S, D]
        return x + jnp.concatenate([pos] * B, axis=0)                 # [B*S, D]

    # ------------------------------------------------------------- encoder --
    xs = embed(src_ids_ref, OFF_SRC_EMB, OFF_SRC_POS, Ss)
    qkv = _linear(xs, W32(OFF_E_WQKV, 3 * D), BV(ROW_E_BQKV, 3 * D))
    a, _ = _mha(qkv[:, :D], qkv[:, D:2 * D], qkv[:, 2 * D:],
                W32(OFF_E_WO, D), BV(ROW_E_BO, D), B, Ss, Ss, causal=False)
    xs = _layer_norm(xs + a, BV(ROW_E_LN1G, D), BV(ROW_E_LN1B, D))
    f = _linear(_linear(xs, W32(OFF_E_W1, D_FF), BV(ROW_E_B1, D_FF), relu=True),
                W64(OFF_E_W2, D), BV(ROW_E_B2, D))
    xs = _layer_norm(xs + f, BV(ROW_E_LN2G, D), BV(ROW_E_LN2B, D))    # enc_src

    # ------------------------------------------------------------- decoder --
    xt = embed(trg_ids_ref, OFF_TRG_EMB, OFF_TRG_POS, St)
    # masked self-attention (causal trg mask built in-kernel via iota)
    qkv = _linear(xt, W32(OFF_D_WQKV, 3 * D), BV(ROW_D_BQKV, 3 * D))
    a, _ = _mha(qkv[:, :D], qkv[:, D:2 * D], qkv[:, 2 * D:],
                W32(OFF_D_WO, D), BV(ROW_D_BO, D), B, St, St, causal=True)
    xt = _layer_norm(xt + a, BV(ROW_D_LN1G, D), BV(ROW_D_LN1B, D))
    # cross-attention — its softmax weights are the module's second output
    q = _linear(xt, W32(OFF_C_WQ, D), BV(ROW_C_BQ, D))
    kv = _linear(xs, W32(OFF_C_WKV, 2 * D), BV(ROW_C_BKV, 2 * D))
    a, p_all = _mha(q, kv[:, :D], kv[:, D:],
                    W32(OFF_C_WO, D), BV(ROW_C_BO, D),
                    B, St, Ss, causal=False, want_probs=True)
    attn_ref[...] = p_all              # single store, final row-major layout
    xt = _layer_norm(xt + a, BV(ROW_D_LN2G, D), BV(ROW_D_LN2B, D))
    # feed-forward
    f = _linear(_linear(xt, W32(OFF_D_W1, D_FF), BV(ROW_D_B1, D_FF), relu=True),
                W64(OFF_D_W2, D), BV(ROW_D_B2, D))
    xt = _layer_norm(xt + f, BV(ROW_D_LN3G, D), BV(ROW_D_LN3B, D))
    # output head
    logits_ref[...] = _linear(xt, W32(OFF_W_OUT, VOCAB),
                              BV(ROW_B_OUT, VOCAB)).reshape(B, St, VOCAB)


# ------------------------------------------------------------ model wrapper --

def transformer_forward(params, src, trg):
    """Mirrors Transformer.forward(src, trg) -> (output, attention).

    make_trg_mask (torch.tril) is realized inside the fused kernel via
    broadcasted_iota; encoder / cross attention are unmasked.
    """
    B, Ss = src.shape
    _, St = trg.shape

    kernel = functools.partial(_fused_transformer_kernel, B=B, Ss=Ss, St=St)

    # Advisory cost so XLA schedules sensibly around this tiny custom call.
    tokens = B * (Ss + St)
    flops = int(
        2 * tokens * VOCAB * D_MODEL                                   # one-hot embeds
        + 2 * tokens * D_MODEL * (3 * D_MODEL + D_MODEL + 2 * D_FF)    # qkv / wo / ffn
        + 2 * B * St * D_MODEL * (3 * D_MODEL + VOCAB)                 # cross projs + head
        + 4 * B * N_HEADS * D_HEAD * (Ss * Ss + 2 * St * St + St * Ss) # attention matmuls
    )
    bytes_accessed = int(
        4 * (params["w32"].size + params["w64"].size + params["bias"].size
             + B * (Ss + St) + B * St * VOCAB + B * N_HEADS * St * Ss))
    cost = pl.CostEstimate(flops=flops, transcendentals=2048,
                           bytes_accessed=bytes_accessed)

    logits, attn = pl.pallas_call(
        kernel,
        out_shape=(
            jax.ShapeDtypeStruct((B, St, VOCAB), jnp.float32),
            jax.ShapeDtypeStruct((B, N_HEADS * St, Ss), jnp.float32),
        ),
        cost_estimate=cost,
    )(
        src.reshape(B * Ss, 1).astype(jnp.int32),
        trg.reshape(B * St, 1).astype(jnp.int32),
        params["w32"], params["w64"], params["bias"],
    )
    # Free, layout-preserving metadata reshape (NOT a transpose): row-major
    # [B, H*St, Ss] is bit-identical to [B, H, St, Ss].
    attention = attn.reshape(B, N_HEADS, St, Ss)
    return logits, attention


# ------------------------------------------------------------------- params --

def init_params(key):
    """Initialize and pack all parameters into 3 lane-dense VMEM slabs."""
    assert MAX_LEN == D_MODEL and D_FF == VOCAB  # packing relies on these
    ks = jax.random.split(key, 16)
    n = lambda k, shape: 0.02 * jax.random.normal(k, shape, jnp.float32)

    # Slab 1: every [D_MODEL, *] weight + positional tables -> [32, 640].
    w32 = jnp.concatenate([
        n(ks[0], (D_MODEL, 3 * D_MODEL)),   # OFF_E_WQKV
        n(ks[1], (D_MODEL, D_MODEL)),       # OFF_E_WO
        n(ks[2], (D_MODEL, D_FF)),          # OFF_E_W1
        n(ks[3], (D_MODEL, 3 * D_MODEL)),   # OFF_D_WQKV
        n(ks[4], (D_MODEL, D_MODEL)),       # OFF_D_WO
        n(ks[5], (D_MODEL, D_MODEL)),       # OFF_C_WQ
        n(ks[6], (D_MODEL, 2 * D_MODEL)),   # OFF_C_WKV
        n(ks[7], (D_MODEL, D_MODEL)),       # OFF_C_WO
        n(ks[8], (D_MODEL, D_FF)),          # OFF_D_W1
        n(ks[9], (D_MODEL, VOCAB)),         # OFF_W_OUT
        n(ks[10], (MAX_LEN, D_MODEL)),      # OFF_SRC_POS
        n(ks[11], (MAX_LEN, D_MODEL)),      # OFF_TRG_POS
    ], axis=1)
    assert w32.shape == (D_MODEL, W32_COLS)

    # Slab 2: every [64, D_MODEL] weight (FFN down-proj, token embeddings).
    w64 = jnp.concatenate([
        n(ks[12], (D_FF, D_MODEL)),         # OFF_E_W2
        n(ks[13], (D_FF, D_MODEL)),         # OFF_D_W2
        n(ks[14], (VOCAB, D_MODEL)),        # OFF_SRC_EMB
        n(ks[15], (VOCAB, D_MODEL)),        # OFF_TRG_EMB
    ], axis=1)
    assert w64.shape == (D_FF, W64_COLS)

    # Slab 3: biases + LayerNorm gammas/betas, one vector per 128-lane row.
    def row(vec):
        return jnp.pad(vec, (0, 128 - vec.shape[0]))[None, :]

    z, o = jnp.zeros, jnp.ones
    rows = [
        row(z(3 * D_MODEL)),  # ROW_E_BQKV
        row(z(D_MODEL)),      # ROW_E_BO
        row(o(D_MODEL)),      # ROW_E_LN1G
        row(z(D_MODEL)),      # ROW_E_LN1B
        row(z(D_FF)),         # ROW_E_B1
        row(z(D_MODEL)),      # ROW_E_B2
        row(o(D_MODEL)),      # ROW_E_LN2G
        row(z(D_MODEL)),      # ROW_E_LN2B
        row(z(3 * D_MODEL)),  # ROW_D_BQKV
        row(z(D_MODEL)),      # ROW_D_BO
        row(o(D_MODEL)),      # ROW_D_LN1G
        row(z(D_MODEL)),      # ROW_D_LN1B
        row(z(D_MODEL)),      # ROW_C_BQ
        row(z(2 * D_MODEL)),  # ROW_C_BKV
        row(z(D_MODEL)),      # ROW_C_BO
        row(o(D_MODEL)),      # ROW_D_LN2G
        row(z(D_MODEL)),      # ROW_D_LN2B
        row(z(D_FF)),         # ROW_D_B1
        row(z(D_MODEL)),      # ROW_D_B2
        row(o(D_MODEL)),      # ROW_D_LN3G
        row(z(D_MODEL)),      # ROW_D_LN3B
        row(z(VOCAB)),        # ROW_B_OUT
        row(z(128)),          # padding
        row(z(128)),          # padding
    ]
    bias = jnp.concatenate(rows, axis=0).astype(jnp.float32)
    assert bias.shape == (BIAS_ROWS, 128)

    return dict(w32=w32, w64=w64, bias=bias)


# --------------------------------------------------------------------- main --

if __name__ == "__main__":
    key = jax.random.PRNGKey(0)
    pkey, skey, tkey = jax.random.split(key, 3)

    params = init_params(pkey)

    B, S_SRC, S_TRG = 2, 8, 8
    src = jax.random.randint(skey, (B, S_SRC), 0, VOCAB, dtype=jnp.int32)
    trg = jax.random.randint(tkey, (B, S_TRG), 0, VOCAB, dtype=jnp.int32)

    output, attention = jax.jit(transformer_forward)(params, src, trg)
    jax.block_until_ready((output, attention))

    assert output.shape == (B, S_TRG, VOCAB)
    assert attention.shape == (B, N_HEADS, S_TRG, S_SRC)
    assert bool(jnp.all(jnp.isfinite(output)))
    # cross-attention rows are softmax-normalized
    assert bool(jnp.allclose(attention.sum(-1), 1.0, atol=1e-5))

    print("KERNEL_OK")
</pallas_src>

<mosaic_0001>
module attributes {stable_mosaic.version = 11 : i64} {
  func.func @_fused_transformer_kernel(%arg0: memref<16x1xi32, #tpu.memory_space<vmem>>, %arg1: memref<16x1xi32, #tpu.memory_space<vmem>>, %arg2: memref<32x640xf32, #tpu.memory_space<vmem>>, %arg3: memref<64x128xf32, #tpu.memory_space<vmem>>, %arg4: memref<24x128xf32, #tpu.memory_space<vmem>>, %arg5: memref<2x8x64xf32, #tpu.memory_space<vmem>>, %arg6: memref<2x32x8xf32, #tpu.memory_space<vmem>>) attributes {dimension_semantics = [], scalar_prefetch = 0 : i64, scratch_operands = 0 : i64, tpu.core_type = #tpu.core_type<tc>} {
    %c0 = arith.constant 0 : index
    %c0_0 = arith.constant 0 : index
    %0 = vector.load %arg2[%c0, %c0_0] : memref<32x640xf32, #tpu.memory_space<vmem>>, vector<32x640xf32>
    %c0_1 = arith.constant 0 : index
    %c0_2 = arith.constant 0 : index
    %1 = vector.load %arg3[%c0_1, %c0_2] : memref<64x128xf32, #tpu.memory_space<vmem>>, vector<64x128xf32>
    %c0_3 = arith.constant 0 : index
    %c0_4 = arith.constant 0 : index
    %2 = vector.load %arg4[%c0_3, %c0_4] : memref<24x128xf32, #tpu.memory_space<vmem>>, vector<24x128xf32>
    %c0_5 = arith.constant 0 : index
    %c0_6 = arith.constant 0 : index
    %3 = vector.load %arg0[%c0_5, %c0_6] : memref<16x1xi32, #tpu.memory_space<vmem>>, vector<16x1xi32>
    %4 = tpu.iota {dimensions = array<i32: 1>} : vector<16x64xi32>
    %5 = vector.broadcast %3 : vector<16x1xi32> to vector<16x64xi32>
    %6 = arith.cmpi eq, %5, %4 : vector<16x64xi32>
    %7 = arith.extui %6 : vector<16x64xi1> to vector<16x64xi32>
    %8 = arith.sitofp %7 : vector<16x64xi32> to vector<16x64xf32>
    %9 = vector.extract_strided_slice %1 {offsets = [0, 64], sizes = [64, 32], strides = [1, 1]} : vector<64x128xf32> to vector<64x32xf32>
    %cst = arith.constant dense<0.000000e+00> : vector<16x32xf32>
    %10 = tpu.matmul %8, %9, %cst {dimension_numbers = #tpu.dot_dimension_numbers<[1], [0], [0], [1], [0, 0, 1, 1], [], []>} : vector<16x64xf32>, vector<64x32xf32>, vector<16x32xf32> -> vector<16x32xf32>
    %cst_7 = arith.constant 5.65685415 : f32
    %11 = vector.broadcast %cst_7 : f32 to vector<16x32xf32>
    %12 = arith.mulf %10, %11 : vector<16x32xf32>
    %13 = vector.extract_strided_slice %0 {offsets = [0, 576], sizes = [32, 32], strides = [1, 1]} : vector<32x640xf32> to vector<32x32xf32>
    %14 = vector.extract_strided_slice %13 {offsets = [0, 0], sizes = [8, 32], strides = [1, 1]} : vector<32x32xf32> to vector<8x32xf32>
    %15 = tpu.concatenate %14, %14 in 0 : vector<8x32xf32>, vector<8x32xf32> -> vector<16x32xf32>
    %16 = arith.addf %12, %15 : vector<16x32xf32>
    %17 = vector.extract_strided_slice %0 {offsets = [0, 0], sizes = [32, 96], strides = [1, 1]} : vector<32x640xf32> to vector<32x96xf32>
    %18 = vector.extract_strided_slice %2 {offsets = [0, 0], sizes = [1, 96], strides = [1, 1]} : vector<24x128xf32> to vector<1x96xf32>
    %cst_8 = arith.constant dense<0.000000e+00> : vector<16x96xf32>
    %19 = tpu.matmul %16, %17, %cst_8 {dimension_numbers = #tpu.dot_dimension_numbers<[1], [0], [0], [1], [0, 0, 1, 1], [], []>} : vector<16x32xf32>, vector<32x96xf32>, vector<16x96xf32> -> vector<16x96xf32>
    %20 = vector.broadcast %18 : vector<1x96xf32> to vector<16x96xf32>
    %21 = arith.addf %19, %20 : vector<16x96xf32>
    %22 = vector.extract_strided_slice %21 {offsets = [0, 0], sizes = [16, 32], strides = [1, 1]} : vector<16x96xf32> to vector<16x32xf32>
    %23 = vector.extract_strided_slice %21 {offsets = [0, 32], sizes = [16, 32], strides = [1, 1]} : vector<16x96xf32> to vector<16x32xf32>
    %24 = vector.extract_strided_slice %21 {offsets = [0, 64], sizes = [16, 32], strides = [1, 1]} : vector<16x96xf32> to vector<16x32xf32>
    %25 = vector.extract_strided_slice %0 {offsets = [0, 96], sizes = [32, 32], strides = [1, 1]} : vector<32x640xf32> to vector<32x32xf32>
    %26 = vector.extract_strided_slice %2 {offsets = [1, 0], sizes = [1, 32], strides = [1, 1]} : vector<24x128xf32> to vector<1x32xf32>
    %27 = vector.shape_cast %22 : vector<16x32xf32> to vector<2x8x32xf32>
    %28 = vector.shape_cast %23 : vector<16x32xf32> to vector<2x8x32xf32>
    %29 = vector.shape_cast %24 : vector<16x32xf32> to vector<2x8x32xf32>
    %30 = vector.extract_strided_slice %27 {offsets = [0, 0, 0], sizes = [2, 8, 8], strides = [1, 1, 1]} : vector<2x8x32xf32> to vector<2x8x8xf32>
    %31 = vector.extract_strided_slice %28 {offsets = [0, 0, 0], sizes = [2, 8, 8], strides = [1, 1, 1]} : vector<2x8x32xf32> to vector<2x8x8xf32>
    "tpu.trace_start"() <{level = 10 : i32, message = "bqd,bkd->bqk"}> : () -> ()
    %cst_9 = arith.constant dense<0.000000e+00> : vector<2x8x8xf32>
    %32 = tpu.matmul %30, %31, %cst_9 {dimension_numbers = #tpu.dot_dimension_numbers<[2], [2], [1], [1], [0, 0, 0, 1, 1, 1], [0], [0]>} : vector<2x8x8xf32>, vector<2x8x8xf32>, vector<2x8x8xf32> -> vector<2x8x8xf32>
    "tpu.trace_stop"() : () -> ()
    %cst_10 = arith.constant 0.353553385 : f32
    %33 = vector.broadcast %cst_10 : f32 to vector<2x8x8xf32>
    %34 = arith.mulf %32, %33 : vector<2x8x8xf32>
    %cst_11 = arith.constant dense<0xFF800000> : vector<2x8xf32>
    %35 = vector.multi_reduction <maximumf>, %34, %cst_11 [2] : vector<2x8x8xf32> to vector<2x8xf32>
    %36 = vector.shape_cast %35 : vector<2x8xf32> to vector<2x8x1xf32>
    %37 = vector.broadcast %36 : vector<2x8x1xf32> to vector<2x8x8xf32>
    %38 = arith.subf %34, %37 : vector<2x8x8xf32>
    %39 = math.exp %38 : vector<2x8x8xf32>
    %cst_12 = arith.constant dense<0.000000e+00> : vector<2x8xf32>
    %40 = vector.multi_reduction <add>, %39, %cst_12 [2] : vector<2x8x8xf32> to vector<2x8xf32>
    %41 = vector.shape_cast %40 : vector<2x8xf32> to vector<2x8x1xf32>
    %42 = vector.broadcast %41 : vector<2x8x1xf32> to vector<2x8x8xf32>
    %43 = arith.divf %39, %42 : vector<2x8x8xf32>
    %44 = vector.extract_strided_slice %29 {offsets = [0, 0, 0], sizes = [2, 8, 8], strides = [1, 1, 1]} : vector<2x8x32xf32> to vector<2x8x8xf32>
    "tpu.trace_start"() <{level = 10 : i32, message = "bqk,bkd->bqd"}> : () -> ()
    %cst_13 = arith.constant dense<0.000000e+00> : vector<2x8x8xf32>
    %45 = tpu.matmul %43, %44, %cst_13 {dimension_numbers = #tpu.dot_dimension_numbers<[2], [1], [1], [2], [0, 0, 0, 1, 1, 2], [0], [0]>} : vector<2x8x8xf32>, vector<2x8x8xf32>, vector<2x8x8xf32> -> vector<2x8x8xf32>
    "tpu.trace_stop"() : () -> ()
    %46 = vector.shape_cast %45 : vector<2x8x8xf32> to vector<16x8xf32>
    %47 = vector.extract_strided_slice %27 {offsets = [0, 0, 8], sizes = [2, 8, 8], strides = [1, 1, 1]} : vector<2x8x32xf32> to vector<2x8x8xf32>
    %48 = vector.extract_strided_slice %28 {offsets = [0, 0, 8], sizes = [2, 8, 8], strides = [1, 1, 1]} : vector<2x8x32xf32> to vector<2x8x8xf32>
    "tpu.trace_start"() <{level = 10 : i32, message = "bqd,bkd->bqk"}> : () -> ()
    %cst_14 = arith.constant dense<0.000000e+00> : vector<2x8x8xf32>
    %49 = tpu.matmul %47, %48, %cst_14 {dimension_numbers = #tpu.dot_dimension_numbers<[2], [2], [1], [1], [0, 0, 0, 1, 1, 1], [0], [0]>} : vector<2x8x8xf32>, vector<2x8x8xf32>, vector<2x8x8xf32> -> vector<2x8x8xf32>
    "tpu.trace_stop"() : () -> ()
    %cst_15 = arith.constant 0.353553385 : f32
    %50 = vector.broadcast %cst_15 : f32 to vector<2x8x8xf32>
    %51 = arith.mulf %49, %50 : vector<2x8x8xf32>
    %cst_16 = arith.constant dense<0xFF800000> : vector<2x8xf32>
    %52 = vector.multi_reduction <maximumf>, %51, %cst_16 [2] : vector<2x8x8xf32> to vector<2x8xf32>
    %53 = vector.shape_cast %52 : vector<2x8xf32> to vector<2x8x1xf32>
    %54 = vector.broadcast %53 : vector<2x8x1xf32> to vector<2x8x8xf32>
    %55 = arith.subf %51, %54 : vector<2x8x8xf32>
    %56 = math.exp %55 : vector<2x8x8xf32>
    %cst_17 = arith.constant dense<0.000000e+00> : vector<2x8xf32>
    %57 = vector.multi_reduction <add>, %56, %cst_17 [2] : vector<2x8x8xf32> to vector<2x8xf32>
    %58 = vector.shape_cast %57 : vector<2x8xf32> to vector<2x8x1xf32>
    %59 = vector.broadcast %58 : vector<2x8x1xf32> to vector<2x8x8xf32>
    %60 = arith.divf %56, %59 : vector<2x8x8xf32>
    %61 = vector.extract_strided_slice %29 {offsets = [0, 0, 8], sizes = [2, 8, 8], strides = [1, 1, 1]} : vector<2x8x32xf32> to vector<2x8x8xf32>
    "tpu.trace_start"() <{level = 10 : i32, message = "bqk,bkd->bqd"}> : () -> ()
    %cst_18 = arith.constant dense<0.000000e+00> : vector<2x8x8xf32>
    %62 = tpu.matmul %60, %61, %cst_18 {dimension_numbers = #tpu.dot_dimension_numbers<[2], [1], [1], [2], [0, 0, 0, 1, 1, 2], [0], [0]>} : vector<2x8x8xf32>, vector<2x8x8xf32>, vector<2x8x8xf32> -> vector<2x8x8xf32>
    "tpu.trace_stop"() : () -> ()
    %63 = vector.shape_cast %62 : vector<2x8x8xf32> to vector<16x8xf32>
    %64 = vector.extract_strided_slice %27 {offsets = [0, 0, 16], sizes = [2, 8, 8], strides = [1, 1, 1]} : vector<2x8x32xf32> to vector<2x8x8xf32>
    %65 = vector.extract_strided_slice %28 {offsets = [0, 0, 16], sizes = [2, 8, 8], strides = [1, 1, 1]} : vector<2x8x32xf32> to vector<2x8x8xf32>
    "tpu.trace_start"() <{level = 10 : i32, message = "bqd,bkd->bqk"}> : () -> ()
    %cst_19 = arith.constant dense<0.000000e+00> : vector<2x8x8xf32>
    %66 = tpu.matmul %64, %65, %cst_19 {dimension_numbers = #tpu.dot_dimension_numbers<[2], [2], [1], [1], [0, 0, 0, 1, 1, 1], [0], [0]>} : vector<2x8x8xf32>, vector<2x8x8xf32>, vector<2x8x8xf32> -> vector<2x8x8xf32>
    "tpu.trace_stop"() : () -> ()
    %cst_20 = arith.constant 0.353553385 : f32
    %67 = vector.broadcast %cst_20 : f32 to vector<2x8x8xf32>
    %68 = arith.mulf %66, %67 : vector<2x8x8xf32>
    %cst_21 = arith.constant dense<0xFF800000> : vector<2x8xf32>
    %69 = vector.multi_reduction <maximumf>, %68, %cst_21 [2] : vector<2x8x8xf32> to vector<2x8xf32>
    %70 = vector.shape_cast %69 : vector<2x8xf32> to vector<2x8x1xf32>
    %71 = vector.broadcast %70 : vector<2x8x1xf32> to vector<2x8x8xf32>
    %72 = arith.subf %68, %71 : vector<2x8x8xf32>
    %73 = math.exp %72 : vector<2x8x8xf32>
    %cst_22 = arith.constant dense<0.000000e+00> : vector<2x8xf32>
    %74 = vector.multi_reduction <add>, %73, %cst_22 [2] : vector<2x8x8xf32> to vector<2x8xf32>
    %75 = vector.shape_cast %74 : vector<2x8xf32> to vector<2x8x1xf32>
    %76 = vector.broadcast %75 : vector<2x8x1xf32> to vector<2x8x8xf32>
    %77 = arith.divf %73, %76 : vector<2x8x8xf32>
    %78 = vector.extract_strided_slice %29 {offsets = [0, 0, 16], sizes = [2, 8, 8], strides = [1, 1, 1]} : vector<2x8x32xf32> to vector<2x8x8xf32>
    "tpu.trace_start"() <{level = 10 : i32, message = "bqk,bkd->bqd"}> : () -> ()
    %cst_23 = arith.constant dense<0.000000e+00> : vector<2x8x8xf32>
    %79 = tpu.matmul %77, %78, %cst_23 {dimension_numbers = #tpu.dot_dimension_numbers<[2], [1], [1], [2], [0, 0, 0, 1, 1, 2], [0], [0]>} : vector<2x8x8xf32>, vector<2x8x8xf32>, vector<2x8x8xf32> -> vector<2x8x8xf32>
    "tpu.trace_stop"() : () -> ()
    %80 = vector.shape_cast %79 : vector<2x8x8xf32> to vector<16x8xf32>
    %81 = vector.extract_strided_slice %27 {offsets = [0, 0, 24], sizes = [2, 8, 8], strides = [1, 1, 1]} : vector<2x8x32xf32> to vector<2x8x8xf32>
    %82 = vector.extract_strided_slice %28 {offsets = [0, 0, 24], sizes = [2, 8, 8], strides = [1, 1, 1]} : vector<2x8x32xf32> to vector<2x8x8xf32>
    "tpu.trace_start"() <{level = 10 : i32, message = "bqd,bkd->bqk"}> : () -> ()
    %cst_24 = arith.constant dense<0.000000e+00> : vector<2x8x8xf32>
    %83 = tpu.matmul %81, %82, %cst_24 {dimension_numbers = #tpu.dot_dimension_numbers<[2], [2], [1], [1], [0, 0, 0, 1, 1, 1], [0], [0]>} : vector<2x8x8xf32>, vector<2x8x8xf32>, vector<2x8x8xf32> -> vector<2x8x8xf32>
    "tpu.trace_stop"() : () -> ()
    %cst_25 = arith.constant 0.353553385 : f32
    %84 = vector.broadcast %cst_25 : f32 to vector<2x8x8xf32>
    %85 = arith.mulf %83, %84 : vector<2x8x8xf32>
    %cst_26 = arith.constant dense<0xFF800000> : vector<2x8xf32>
    %86 = vector.multi_reduction <maximumf>, %85, %cst_26 [2] : vector<2x8x8xf32> to vector<2x8xf32>
    %87 = vector.shape_cast %86 : vector<2x8xf32> to vector<2x8x1xf32>
    %88 = vector.broadcast %87 : vector<2x8x1xf32> to vector<2x8x8xf32>
    %89 = arith.subf %85, %88 : vector<2x8x8xf32>
    %90 = math.exp %89 : vector<2x8x8xf32>
    %cst_27 = arith.constant dense<0.000000e+00> : vector<2x8xf32>
    %91 = vector.multi_reduction <add>, %90, %cst_27 [2] : vector<2x8x8xf32> to vector<2x8xf32>
    %92 = vector.shape_cast %91 : vector<2x8xf32> to vector<2x8x1xf32>
    %93 = vector.broadcast %92 : vector<2x8x1xf32> to vector<2x8x8xf32>
    %94 = arith.divf %90, %93 : vector<2x8x8xf32>
    %95 = vector.extract_strided_slice %29 {offsets = [0, 0, 24], sizes = [2, 8, 8], strides = [1, 1, 1]} : vector<2x8x32xf32> to vector<2x8x8xf32>
    "tpu.trace_start"() <{level = 10 : i32, message = "bqk,bkd->bqd"}> : () -> ()
    %cst_28 = arith.constant dense<0.000000e+00> : vector<2x8x8xf32>
    %96 = tpu.matmul %94, %95, %cst_28 {dimension_numbers = #tpu.dot_dimension_numbers<[2], [1], [1], [2], [0, 0, 0, 1, 1, 2], [0], [0]>} : vector<2x8x8xf32>, vector<2x8x8xf32>, vector<2x8x8xf32> -> vector<2x8x8xf32>
    "tpu.trace_stop"() : () -> ()
    %97 = vector.shape_cast %96 : vector<2x8x8xf32> to vector<16x8xf32>
    %98 = tpu.concatenate %46, %63, %80, %97 in 1 : vector<16x8xf32>, vector<16x8xf32>, vector<16x8xf32>, vector<16x8xf32> -> vector<16x32xf32>
    %cst_29 = arith.constant dense<0.000000e+00> : vector<16x32xf32>
    %99 = tpu.matmul %98, %25, %cst_29 {dimension_numbers = #tpu.dot_dimension_numbers<[1], [0], [0], [1], [0, 0, 1, 1], [], []>} : vector<16x32xf32>, vector<32x32xf32>, vector<16x32xf32> -> vector<16x32xf32>
    %100 = vector.broadcast %26 : vector<1x32xf32> to vector<16x32xf32>
    %101 = arith.addf %99, %100 : vector<16x32xf32>
    %102 = arith.addf %16, %101 : vector<16x32xf32>
    %103 = vector.extract_strided_slice %2 {offsets = [2, 0], sizes = [1, 32], strides = [1, 1]} : vector<24x128xf32> to vector<1x32xf32>
    %104 = vector.extract_strided_slice %2 {offsets = [3, 0], sizes = [1, 32], strides = [1, 1]} : vector<24x128xf32> to vector<1x32xf32>
    %cst_30 = arith.constant dense<0.000000e+00> : vector<16xf32>
    %105 = vector.multi_reduction <add>, %102, %cst_30 [1] : vector<16x32xf32> to vector<16xf32>
    %106 = vector.shape_cast %105 : vector<16xf32> to vector<16x1xf32>
    %cst_31 = arith.constant 3.200000e+01 : f32
    %107 = vector.broadcast %cst_31 : f32 to vector<16x1xf32>
    %108 = arith.divf %106, %107 : vector<16x1xf32>
    %109 = vector.broadcast %108 : vector<16x1xf32> to vector<16x32xf32>
    %110 = arith.subf %102, %109 : vector<16x32xf32>
    %111 = arith.mulf %110, %110 : vector<16x32xf32>
    %cst_32 = arith.constant dense<0.000000e+00> : vector<16xf32>
    %112 = vector.multi_reduction <add>, %111, %cst_32 [1] : vector<16x32xf32> to vector<16xf32>
    %113 = vector.shape_cast %112 : vector<16xf32> to vector<16x1xf32>
    %cst_33 = arith.constant 3.200000e+01 : f32
    %114 = vector.broadcast %cst_33 : f32 to vector<16x1xf32>
    %115 = arith.divf %113, %114 : vector<16x1xf32>
    %116 = vector.broadcast %108 : vector<16x1xf32> to vector<16x32xf32>
    %117 = arith.subf %102, %116 : vector<16x32xf32>
    %cst_34 = arith.constant 9.99999974E-6 : f32
    %118 = vector.broadcast %cst_34 : f32 to vector<16x1xf32>
    %119 = arith.addf %115, %118 : vector<16x1xf32>
    %120 = math.rsqrt %119 : vector<16x1xf32>
    %121 = vector.broadcast %120 : vector<16x1xf32> to vector<16x32xf32>
    %122 = arith.mulf %117, %121 : vector<16x32xf32>
    %123 = vector.broadcast %103 : vector<1x32xf32> to vector<16x32xf32>
    %124 = arith.mulf %122, %123 : vector<16x32xf32>
    %125 = vector.broadcast %104 : vector<1x32xf32> to vector<16x32xf32>
    %126 = arith.addf %124, %125 : vector<16x32xf32>
    %127 = vector.extract_strided_slice %0 {offsets = [0, 128], sizes = [32, 64], strides = [1, 1]} : vector<32x640xf32> to vector<32x64xf32>
    %128 = vector.extract_strided_slice %2 {offsets = [4, 0], sizes = [1, 64], strides = [1, 1]} : vector<24x128xf32> to vector<1x64xf32>
    %cst_35 = arith.constant dense<0.000000e+00> : vector<16x64xf32>
    %129 = tpu.matmul %126, %127, %cst_35 {dimension_numbers = #tpu.dot_dimension_numbers<[1], [0], [0], [1], [0, 0, 1, 1], [], []>} : vector<16x32xf32>, vector<32x64xf32>, vector<16x64xf32> -> vector<16x64xf32>
    %130 = vector.broadcast %128 : vector<1x64xf32> to vector<16x64xf32>
    %131 = arith.addf %129, %130 : vector<16x64xf32>
    %cst_36 = arith.constant 0.000000e+00 : f32
    %132 = vector.broadcast %cst_36 : f32 to vector<16x64xf32>
    %133 = arith.maximumf %131, %132 : vector<16x64xf32>
    %134 = vector.extract_strided_slice %1 {offsets = [0, 0], sizes = [64, 32], strides = [1, 1]} : vector<64x128xf32> to vector<64x32xf32>
    %135 = vector.extract_strided_slice %2 {offsets = [5, 0], sizes = [1, 32], strides = [1, 1]} : vector<24x128xf32> to vector<1x32xf32>
    %cst_37 = arith.constant dense<0.000000e+00> : vector<16x32xf32>
    %136 = tpu.matmul %133, %134, %cst_37 {dimension_numbers = #tpu.dot_dimension_numbers<[1], [0], [0], [1], [0, 0, 1, 1], [], []>} : vector<16x64xf32>, vector<64x32xf32>, vector<16x32xf32> -> vector<16x32xf32>
    %137 = vector.broadcast %135 : vector<1x32xf32> to vector<16x32xf32>
    %138 = arith.addf %136, %137 : vector<16x32xf32>
    %139 = arith.addf %126, %138 : vector<16x32xf32>
    %140 = vector.extract_strided_slice %2 {offsets = [6, 0], sizes = [1, 32], strides = [1, 1]} : vector<24x128xf32> to vector<1x32xf32>
    %141 = vector.extract_strided_slice %2 {offsets = [7, 0], sizes = [1, 32], strides = [1, 1]} : vector<24x128xf32> to vector<1x32xf32>
    %cst_38 = arith.constant dense<0.000000e+00> : vector<16xf32>
    %142 = vector.multi_reduction <add>, %139, %cst_38 [1] : vector<16x32xf32> to vector<16xf32>
    %143 = vector.shape_cast %142 : vector<16xf32> to vector<16x1xf32>
    %cst_39 = arith.constant 3.200000e+01 : f32
    %144 = vector.broadcast %cst_39 : f32 to vector<16x1xf32>
    %145 = arith.divf %143, %144 : vector<16x1xf32>
    %146 = vector.broadcast %145 : vector<16x1xf32> to vector<16x32xf32>
    %147 = arith.subf %139, %146 : vector<16x32xf32>
    %148 = arith.mulf %147, %147 : vector<16x32xf32>
    %cst_40 = arith.constant dense<0.000000e+00> : vector<16xf32>
    %149 = vector.multi_reduction <add>, %148, %cst_40 [1] : vector<16x32xf32> to vector<16xf32>
    %150 = vector.shape_cast %149 : vector<16xf32> to vector<16x1xf32>
    %cst_41 = arith.constant 3.200000e+01 : f32
    %151 = vector.broadcast %cst_41 : f32 to vector<16x1xf32>
    %152 = arith.divf %150, %151 : vector<16x1xf32>
    %153 = vector.broadcast %145 : vector<16x1xf32> to vector<16x32xf32>
    %154 = arith.subf %139, %153 : vector<16x32xf32>
    %cst_42 = arith.constant 9.99999974E-6 : f32
    %155 = vector.broadcast %cst_42 : f32 to vector<16x1xf32>
    %156 = arith.addf %152, %155 : vector<16x1xf32>
    %157 = math.rsqrt %156 : vector<16x1xf32>
    %158 = vector.broadcast %157 : vector<16x1xf32> to vector<16x32xf32>
    %159 = arith.mulf %154, %158 : vector<16x32xf32>
    %160 = vector.broadcast %140 : vector<1x32xf32> to vector<16x32xf32>
    %161 = arith.mulf %159, %160 : vector<16x32xf32>
    %162 = vector.broadcast %141 : vector<1x32xf32> to vector<16x32xf32>
    %163 = arith.addf %161, %162 : vector<16x32xf32>
    %c0_43 = arith.constant 0 : index
    %c0_44 = arith.constant 0 : index
    %164 = vector.load %arg1[%c0_43, %c0_44] : memref<16x1xi32, #tpu.memory_space<vmem>>, vector<16x1xi32>
    %165 = tpu.iota {dimensions = array<i32: 1>} : vector<16x64xi32>
    %166 = vector.broadcast %164 : vector<16x1xi32> to vector<16x64xi32>
    %167 = arith.cmpi eq, %166, %165 : vector<16x64xi32>
    %168 = arith.extui %167 : vector<16x64xi1> to vector<16x64xi32>
    %169 = arith.sitofp %168 : vector<16x64xi32> to vector<16x64xf32>
    %170 = vector.extract_strided_slice %1 {offsets = [0, 96], sizes = [64, 32], strides = [1, 1]} : vector<64x128xf32> to vector<64x32xf32>
    %cst_45 = arith.constant dense<0.000000e+00> : vector<16x32xf32>
    %171 = tpu.matmul %169, %170, %cst_45 {dimension_numbers = #tpu.dot_dimension_numbers<[1], [0], [0], [1], [0, 0, 1, 1], [], []>} : vector<16x64xf32>, vector<64x32xf32>, vector<16x32xf32> -> vector<16x32xf32>
    %cst_46 = arith.constant 5.65685415 : f32
    %172 = vector.broadcast %cst_46 : f32 to vector<16x32xf32>
    %173 = arith.mulf %171, %172 : vector<16x32xf32>
    %174 = vector.extract_strided_slice %0 {offsets = [0, 608], sizes = [32, 32], strides = [1, 1]} : vector<32x640xf32> to vector<32x32xf32>
    %175 = vector.extract_strided_slice %174 {offsets = [0, 0], sizes = [8, 32], strides = [1, 1]} : vector<32x32xf32> to vector<8x32xf32>
    %176 = tpu.concatenate %175, %175 in 0 : vector<8x32xf32>, vector<8x32xf32> -> vector<16x32xf32>
    %177 = arith.addf %173, %176 : vector<16x32xf32>
    %178 = vector.extract_strided_slice %0 {offsets = [0, 192], sizes = [32, 96], strides = [1, 1]} : vector<32x640xf32> to vector<32x96xf32>
    %179 = vector.extract_strided_slice %2 {offsets = [8, 0], sizes = [1, 96], strides = [1, 1]} : vector<24x128xf32> to vector<1x96xf32>
    %cst_47 = arith.constant dense<0.000000e+00> : vector<16x96xf32>
    %180 = tpu.matmul %177, %178, %cst_47 {dimension_numbers = #tpu.dot_dimension_numbers<[1], [0], [0], [1], [0, 0, 1, 1], [], []>} : vector<16x32xf32>, vector<32x96xf32>, vector<16x96xf32> -> vector<16x96xf32>
    %181 = vector.broadcast %179 : vector<1x96xf32> to vector<16x96xf32>
    %182 = arith.addf %180, %181 : vector<16x96xf32>
    %183 = vector.extract_strided_slice %182 {offsets = [0, 0], sizes = [16, 32], strides = [1, 1]} : vector<16x96xf32> to vector<16x32xf32>
    %184 = vector.extract_strided_slice %182 {offsets = [0, 32], sizes = [16, 32], strides = [1, 1]} : vector<16x96xf32> to vector<16x32xf32>
    %185 = vector.extract_strided_slice %182 {offsets = [0, 64], sizes = [16, 32], strides = [1, 1]} : vector<16x96xf32> to vector<16x32xf32>
    %186 = vector.extract_strided_slice %0 {offsets = [0, 288], sizes = [32, 32], strides = [1, 1]} : vector<32x640xf32> to vector<32x32xf32>
    %187 = vector.extract_strided_slice %2 {offsets = [9, 0], sizes = [1, 32], strides = [1, 1]} : vector<24x128xf32> to vector<1x32xf32>
    %188 = vector.shape_cast %183 : vector<16x32xf32> to vector<2x8x32xf32>
    %189 = vector.shape_cast %184 : vector<16x32xf32> to vector<2x8x32xf32>
    %190 = vector.shape_cast %185 : vector<16x32xf32> to vector<2x8x32xf32>
    %191 = tpu.iota {dimensions = array<i32: 0>} : vector<8x8xi32>
    %192 = tpu.iota {dimensions = array<i32: 1>} : vector<8x8xi32>
    %193 = arith.cmpi sge, %191, %192 : vector<8x8xi32>
    %194 = vector.shape_cast %193 : vector<8x8xi1> to vector<1x8x8xi1>
    %195 = vector.extract_strided_slice %188 {offsets = [0, 0, 0], sizes = [2, 8, 8], strides = [1, 1, 1]} : vector<2x8x32xf32> to vector<2x8x8xf32>
    %196 = vector.extract_strided_slice %189 {offsets = [0, 0, 0], sizes = [2, 8, 8], strides = [1, 1, 1]} : vector<2x8x32xf32> to vector<2x8x8xf32>
    "tpu.trace_start"() <{level = 10 : i32, message = "bqd,bkd->bqk"}> : () -> ()
    %cst_48 = arith.constant dense<0.000000e+00> : vector<2x8x8xf32>
    %197 = tpu.matmul %195, %196, %cst_48 {dimension_numbers = #tpu.dot_dimension_numbers<[2], [2], [1], [1], [0, 0, 0, 1, 1, 1], [0], [0]>} : vector<2x8x8xf32>, vector<2x8x8xf32>, vector<2x8x8xf32> -> vector<2x8x8xf32>
    "tpu.trace_stop"() : () -> ()
    %cst_49 = arith.constant 0.353553385 : f32
    %198 = vector.broadcast %cst_49 : f32 to vector<2x8x8xf32>
    %199 = arith.mulf %197, %198 : vector<2x8x8xf32>
    %cst_50 = arith.constant -1.000000e+09 : f32
    %200 = vector.shape_cast %194 : vector<1x8x8xi1> to vector<1x8x8xi1>
    %201 = vector.broadcast %200 : vector<1x8x8xi1> to vector<2x8x8xi1>
    %202 = vector.broadcast %cst_50 : f32 to vector<2x8x8xf32>
    %203 = arith.select %201, %199, %202 : vector<2x8x8xi1>, vector<2x8x8xf32>
    %cst_51 = arith.constant dense<0xFF800000> : vector<2x8xf32>
    %204 = vector.multi_reduction <maximumf>, %203, %cst_51 [2] : vector<2x8x8xf32> to vector<2x8xf32>
    %205 = vector.shape_cast %204 : vector<2x8xf32> to vector<2x8x1xf32>
    %206 = vector.broadcast %205 : vector<2x8x1xf32> to vector<2x8x8xf32>
    %207 = arith.subf %203, %206 : vector<2x8x8xf32>
    %208 = math.exp %207 : vector<2x8x8xf32>
    %cst_52 = arith.constant dense<0.000000e+00> : vector<2x8xf32>
    %209 = vector.multi_reduction <add>, %208, %cst_52 [2] : vector<2x8x8xf32> to vector<2x8xf32>
    %210 = vector.shape_cast %209 : vector<2x8xf32> to vector<2x8x1xf32>
    %211 = vector.broadcast %210 : vector<2x8x1xf32> to vector<2x8x8xf32>
    %212 = arith.divf %208, %211 : vector<2x8x8xf32>
    %213 = vector.extract_strided_slice %190 {offsets = [0, 0, 0], sizes = [2, 8, 8], strides = [1, 1, 1]} : vector<2x8x32xf32> to vector<2x8x8xf32>
    "tpu.trace_start"() <{level = 10 : i32, message = "bqk,bkd->bqd"}> : () -> ()
    %cst_53 = arith.constant dense<0.000000e+00> : vector<2x8x8xf32>
    %214 = tpu.matmul %212, %213, %cst_53 {dimension_numbers = #tpu.dot_dimension_numbers<[2], [1], [1], [2], [0, 0, 0, 1, 1, 2], [0], [0]>} : vector<2x8x8xf32>, vector<2x8x8xf32>, vector<2x8x8xf32> -> vector<2x8x8xf32>
    "tpu.trace_stop"() : () -> ()
    %215 = vector.shape_cast %214 : vector<2x8x8xf32> to vector<16x8xf32>
    %216 = vector.extract_strided_slice %188 {offsets = [0, 0, 8], sizes = [2, 8, 8], strides = [1, 1, 1]} : vector<2x8x32xf32> to vector<2x8x8xf32>
    %217 = vector.extract_strided_slice %189 {offsets = [0, 0, 8], sizes = [2, 8, 8], strides = [1, 1, 1]} : vector<2x8x32xf32> to vector<2x8x8xf32>
    "tpu.trace_start"() <{level = 10 : i32, message = "bqd,bkd->bqk"}> : () -> ()
    %cst_54 = arith.constant dense<0.000000e+00> : vector<2x8x8xf32>
    %218 = tpu.matmul %216, %217, %cst_54 {dimension_numbers = #tpu.dot_dimension_numbers<[2], [2], [1], [1], [0, 0, 0, 1, 1, 1], [0], [0]>} : vector<2x8x8xf32>, vector<2x8x8xf32>, vector<2x8x8xf32> -> vector<2x8x8xf32>
    "tpu.trace_stop"() : () -> ()
    %cst_55 = arith.constant 0.353553385 : f32
    %219 = vector.broadcast %cst_55 : f32 to vector<2x8x8xf32>
    %220 = arith.mulf %218, %219 : vector<2x8x8xf32>
    %cst_56 = arith.constant -1.000000e+09 : f32
    %221 = vector.shape_cast %194 : vector<1x8x8xi1> to vector<1x8x8xi1>
    %222 = vector.broadcast %221 : vector<1x8x8xi1> to vector<2x8x8xi1>
    %223 = vector.broadcast %cst_56 : f32 to vector<2x8x8xf32>
    %224 = arith.select %222, %220, %223 : vector<2x8x8xi1>, vector<2x8x8xf32>
    %cst_57 = arith.constant dense<0xFF800000> : vector<2x8xf32>
    %225 = vector.multi_reduction <maximumf>, %224, %cst_57 [2] : vector<2x8x8xf32> to vector<2x8xf32>
    %226 = vector.shape_cast %225 : vector<2x8xf32> to vector<2x8x1xf32>
    %227 = vector.broadcast %226 : vector<2x8x1xf32> to vector<2x8x8xf32>
    %228 = arith.subf %224, %227 : vector<2x8x8xf32>
    %229 = math.exp %228 : vector<2x8x8xf32>
    %cst_58 = arith.constant dense<0.000000e+00> : vector<2x8xf32>
    %230 = vector.multi_reduction <add>, %229, %cst_58 [2] : vector<2x8x8xf32> to vector<2x8xf32>
    %231 = vector.shape_cast %230 : vector<2x8xf32> to vector<2x8x1xf32>
    %232 = vector.broadcast %231 : vector<2x8x1xf32> to vector<2x8x8xf32>
    %233 = arith.divf %229, %232 : vector<2x8x8xf32>
    %234 = vector.extract_strided_slice %190 {offsets = [0, 0, 8], sizes = [2, 8, 8], strides = [1, 1, 1]} : vector<2x8x32xf32> to vector<2x8x8xf32>
    "tpu.trace_start"() <{level = 10 : i32, message = "bqk,bkd->bqd"}> : () -> ()
    %cst_59 = arith.constant dense<0.000000e+00> : vector<2x8x8xf32>
    %235 = tpu.matmul %233, %234, %cst_59 {dimension_numbers = #tpu.dot_dimension_numbers<[2], [1], [1], [2], [0, 0, 0, 1, 1, 2], [0], [0]>} : vector<2x8x8xf32>, vector<2x8x8xf32>, vector<2x8x8xf32> -> vector<2x8x8xf32>
    "tpu.trace_stop"() : () -> ()
    %236 = vector.shape_cast %235 : vector<2x8x8xf32> to vector<16x8xf32>
    %237 = vector.extract_strided_slice %188 {offsets = [0, 0, 16], sizes = [2, 8, 8], strides = [1, 1, 1]} : vector<2x8x32xf32> to vector<2x8x8xf32>
    %238 = vector.extract_strided_slice %189 {offsets = [0, 0, 16], sizes = [2, 8, 8], strides = [1, 1, 1]} : vector<2x8x32xf32> to vector<2x8x8xf32>
    "tpu.trace_start"() <{level = 10 : i32, message = "bqd,bkd->bqk"}> : () -> ()
    %cst_60 = arith.constant dense<0.000000e+00> : vector<2x8x8xf32>
    %239 = tpu.matmul %237, %238, %cst_60 {dimension_numbers = #tpu.dot_dimension_numbers<[2], [2], [1], [1], [0, 0, 0, 1, 1, 1], [0], [0]>} : vector<2x8x8xf32>, vector<2x8x8xf32>, vector<2x8x8xf32> -> vector<2x8x8xf32>
    "tpu.trace_stop"() : () -> ()
    %cst_61 = arith.constant 0.353553385 : f32
    %240 = vector.broadcast %cst_61 : f32 to vector<2x8x8xf32>
    %241 = arith.mulf %239, %240 : vector<2x8x8xf32>
    %cst_62 = arith.constant -1.000000e+09 : f32
    %242 = vector.shape_cast %194 : vector<1x8x8xi1> to vector<1x8x8xi1>
    %243 = vector.broadcast %242 : vector<1x8x8xi1> to vector<2x8x8xi1>
    %244 = vector.broadcast %cst_62 : f32 to vector<2x8x8xf32>
    %245 = arith.select %243, %241, %244 : vector<2x8x8xi1>, vector<2x8x8xf32>
    %cst_63 = arith.constant dense<0xFF800000> : vector<2x8xf32>
    %246 = vector.multi_reduction <maximumf>, %245, %cst_63 [2] : vector<2x8x8xf32> to vector<2x8xf32>
    %247 = vector.shape_cast %246 : vector<2x8xf32> to vector<2x8x1xf32>
    %248 = vector.broadcast %247 : vector<2x8x1xf32> to vector<2x8x8xf32>
    %249 = arith.subf %245, %248 : vector<2x8x8xf32>
    %250 = math.exp %249 : vector<2x8x8xf32>
    %cst_64 = arith.constant dense<0.000000e+00> : vector<2x8xf32>
    %251 = vector.multi_reduction <add>, %250, %cst_64 [2] : vector<2x8x8xf32> to vector<2x8xf32>
    %252 = vector.shape_cast %251 : vector<2x8xf32> to vector<2x8x1xf32>
    %253 = vector.broadcast %252 : vector<2x8x1xf32> to vector<2x8x8xf32>
    %254 = arith.divf %250, %253 : vector<2x8x8xf32>
    %255 = vector.extract_strided_slice %190 {offsets = [0, 0, 16], sizes = [2, 8, 8], strides = [1, 1, 1]} : vector<2x8x32xf32> to vector<2x8x8xf32>
    "tpu.trace_start"() <{level = 10 : i32, message = "bqk,bkd->bqd"}> : () -> ()
    %cst_65 = arith.constant dense<0.000000e+00> : vector<2x8x8xf32>
    %256 = tpu.matmul %254, %255, %cst_65 {dimension_numbers = #tpu.dot_dimension_numbers<[2], [1], [1], [2], [0, 0, 0, 1, 1, 2], [0], [0]>} : vector<2x8x8xf32>, vector<2x8x8xf32>, vector<2x8x8xf32> -> vector<2x8x8xf32>
    "tpu.trace_stop"() : () -> ()
    %257 = vector.shape_cast %256 : vector<2x8x8xf32> to vector<16x8xf32>
    %258 = vector.extract_strided_slice %188 {offsets = [0, 0, 24], sizes = [2, 8, 8], strides = [1, 1, 1]} : vector<2x8x32xf32> to vector<2x8x8xf32>
    %259 = vector.extract_strided_slice %189 {offsets = [0, 0, 24], sizes = [2, 8, 8], strides = [1, 1, 1]} : vector<2x8x32xf32> to vector<2x8x8xf32>
    "tpu.trace_start"() <{level = 10 : i32, message = "bqd,bkd->bqk"}> : () -> ()
    %cst_66 = arith.constant dense<0.000000e+00> : vector<2x8x8xf32>
    %260 = tpu.matmul %258, %259, %cst_66 {dimension_numbers = #tpu.dot_dimension_numbers<[2], [2], [1], [1], [0, 0, 0, 1, 1, 1], [0], [0]>} : vector<2x8x8xf32>, vector<2x8x8xf32>, vector<2x8x8xf32> -> vector<2x8x8xf32>
    "tpu.trace_stop"() : () -> ()
    %cst_67 = arith.constant 0.353553385 : f32
    %261 = vector.broadcast %cst_67 : f32 to vector<2x8x8xf32>
    %262 = arith.mulf %260, %261 : vector<2x8x8xf32>
    %cst_68 = arith.constant -1.000000e+09 : f32
    %263 = vector.shape_cast %194 : vector<1x8x8xi1> to vector<1x8x8xi1>
    %264 = vector.broadcast %263 : vector<1x8x8xi1> to vector<2x8x8xi1>
    %265 = vector.broadcast %cst_68 : f32 to vector<2x8x8xf32>
    %266 = arith.select %264, %262, %265 : vector<2x8x8xi1>, vector<2x8x8xf32>
    %cst_69 = arith.constant dense<0xFF800000> : vector<2x8xf32>
    %267 = vector.multi_reduction <maximumf>, %266, %cst_69 [2] : vector<2x8x8xf32> to vector<2x8xf32>
    %268 = vector.shape_cast %267 : vector<2x8xf32> to vector<2x8x1xf32>
    %269 = vector.broadcast %268 : vector<2x8x1xf32> to vector<2x8x8xf32>
    %270 = arith.subf %266, %269 : vector<2x8x8xf32>
    %271 = math.exp %270 : vector<2x8x8xf32>
    %cst_70 = arith.constant dense<0.000000e+00> : vector<2x8xf32>
    %272 = vector.multi_reduction <add>, %271, %cst_70 [2] : vector<2x8x8xf32> to vector<2x8xf32>
    %273 = vector.shape_cast %272 : vector<2x8xf32> to vector<2x8x1xf32>
    %274 = vector.broadcast %273 : vector<2x8x1xf32> to vector<2x8x8xf32>
    %275 = arith.divf %271, %274 : vector<2x8x8xf32>
    %276 = vector.extract_strided_slice %190 {offsets = [0, 0, 24], sizes = [2, 8, 8], strides = [1, 1, 1]} : vector<2x8x32xf32> to vector<2x8x8xf32>
    "tpu.trace_start"() <{level = 10 : i32, message = "bqk,bkd->bqd"}> : () -> ()
    %cst_71 = arith.constant dense<0.000000e+00> : vector<2x8x8xf32>
    %277 = tpu.matmul %275, %276, %cst_71 {dimension_numbers = #tpu.dot_dimension_numbers<[2], [1], [1], [2], [0, 0, 0, 1, 1, 2], [0], [0]>} : vector<2x8x8xf32>, vector<2x8x8xf32>, vector<2x8x8xf32> -> vector<2x8x8xf32>
    "tpu.trace_stop"() : () -> ()
    %278 = vector.shape_cast %277 : vector<2x8x8xf32> to vector<16x8xf32>
    %279 = tpu.concatenate %215, %236, %257, %278 in 1 : vector<16x8xf32>, vector<16x8xf32>, vector<16x8xf32>, vector<16x8xf32> -> vector<16x32xf32>
    %cst_72 = arith.constant dense<0.000000e+00> : vector<16x32xf32>
    %280 = tpu.matmul %279, %186, %cst_72 {dimension_numbers = #tpu.dot_dimension_numbers<[1], [0], [0], [1], [0, 0, 1, 1], [], []>} : vector<16x32xf32>, vector<32x32xf32>, vector<16x32xf32> -> vector<16x32xf32>
    %281 = vector.broadcast %187 : vector<1x32xf32> to vector<16x32xf32>
    %282 = arith.addf %280, %281 : vector<16x32xf32>
    %283 = arith.addf %177, %282 : vector<16x32xf32>
    %284 = vector.extract_strided_slice %2 {offsets = [10, 0], sizes = [1, 32], strides = [1, 1]} : vector<24x128xf32> to vector<1x32xf32>
    %285 = vector.extract_strided_slice %2 {offsets = [11, 0], sizes = [1, 32], strides = [1, 1]} : vector<24x128xf32> to vector<1x32xf32>
    %cst_73 = arith.constant dense<0.000000e+00> : vector<16xf32>
    %286 = vector.multi_reduction <add>, %283, %cst_73 [1] : vector<16x32xf32> to vector<16xf32>
    %287 = vector.shape_cast %286 : vector<16xf32> to vector<16x1xf32>
    %cst_74 = arith.constant 3.200000e+01 : f32
    %288 = vector.broadcast %cst_74 : f32 to vector<16x1xf32>
    %289 = arith.divf %287, %288 : vector<16x1xf32>
    %290 = vector.broadcast %289 : vector<16x1xf32> to vector<16x32xf32>
    %291 = arith.subf %283, %290 : vector<16x32xf32>
    %292 = arith.mulf %291, %291 : vector<16x32xf32>
    %cst_75 = arith.constant dense<0.000000e+00> : vector<16xf32>
    %293 = vector.multi_reduction <add>, %292, %cst_75 [1] : vector<16x32xf32> to vector<16xf32>
    %294 = vector.shape_cast %293 : vector<16xf32> to vector<16x1xf32>
    %cst_76 = arith.constant 3.200000e+01 : f32
    %295 = vector.broadcast %cst_76 : f32 to vector<16x1xf32>
    %296 = arith.divf %294, %295 : vector<16x1xf32>
    %297 = vector.broadcast %289 : vector<16x1xf32> to vector<16x32xf32>
    %298 = arith.subf %283, %297 : vector<16x32xf32>
    %cst_77 = arith.constant 9.99999974E-6 : f32
    %299 = vector.broadcast %cst_77 : f32 to vector<16x1xf32>
    %300 = arith.addf %296, %299 : vector<16x1xf32>
    %301 = math.rsqrt %300 : vector<16x1xf32>
    %302 = vector.broadcast %301 : vector<16x1xf32> to vector<16x32xf32>
    %303 = arith.mulf %298, %302 : vector<16x32xf32>
    %304 = vector.broadcast %284 : vector<1x32xf32> to vector<16x32xf32>
    %305 = arith.mulf %303, %304 : vector<16x32xf32>
    %306 = vector.broadcast %285 : vector<1x32xf32> to vector<16x32xf32>
    %307 = arith.addf %305, %306 : vector<16x32xf32>
    %308 = vector.extract_strided_slice %0 {offsets = [0, 320], sizes = [32, 32], strides = [1, 1]} : vector<32x640xf32> to vector<32x32xf32>
    %309 = vector.extract_strided_slice %2 {offsets = [12, 0], sizes = [1, 32], strides = [1, 1]} : vector<24x128xf32> to vector<1x32xf32>
    %cst_78 = arith.constant dense<0.000000e+00> : vector<16x32xf32>
    %310 = tpu.matmul %307, %308, %cst_78 {dimension_numbers = #tpu.dot_dimension_numbers<[1], [0], [0], [1], [0, 0, 1, 1], [], []>} : vector<16x32xf32>, vector<32x32xf32>, vector<16x32xf32> -> vector<16x32xf32>
    %311 = vector.broadcast %309 : vector<1x32xf32> to vector<16x32xf32>
    %312 = arith.addf %310, %311 : vector<16x32xf32>
    %313 = vector.extract_strided_slice %0 {offsets = [0, 352], sizes = [32, 64], strides = [1, 1]} : vector<32x640xf32> to vector<32x64xf32>
    %314 = vector.extract_strided_slice %2 {offsets = [13, 0], sizes = [1, 64], strides = [1, 1]} : vector<24x128xf32> to vector<1x64xf32>
    %cst_79 = arith.constant dense<0.000000e+00> : vector<16x64xf32>
    %315 = tpu.matmul %163, %313, %cst_79 {dimension_numbers = #tpu.dot_dimension_numbers<[1], [0], [0], [1], [0, 0, 1, 1], [], []>} : vector<16x32xf32>, vector<32x64xf32>, vector<16x64xf32> -> vector<16x64xf32>
    %316 = vector.broadcast %314 : vector<1x64xf32> to vector<16x64xf32>
    %317 = arith.addf %315, %316 : vector<16x64xf32>
    %318 = vector.extract_strided_slice %317 {offsets = [0, 0], sizes = [16, 32], strides = [1, 1]} : vector<16x64xf32> to vector<16x32xf32>
    %319 = vector.extract_strided_slice %317 {offsets = [0, 32], sizes = [16, 32], strides = [1, 1]} : vector<16x64xf32> to vector<16x32xf32>
    %320 = vector.extract_strided_slice %0 {offsets = [0, 416], sizes = [32, 32], strides = [1, 1]} : vector<32x640xf32> to vector<32x32xf32>
    %321 = vector.extract_strided_slice %2 {offsets = [14, 0], sizes = [1, 32], strides = [1, 1]} : vector<24x128xf32> to vector<1x32xf32>
    %322 = vector.shape_cast %312 : vector<16x32xf32> to vector<2x8x32xf32>
    %323 = vector.shape_cast %318 : vector<16x32xf32> to vector<2x8x32xf32>
    %324 = vector.shape_cast %319 : vector<16x32xf32> to vector<2x8x32xf32>
    %325 = vector.extract_strided_slice %322 {offsets = [0, 0, 0], sizes = [2, 8, 8], strides = [1, 1, 1]} : vector<2x8x32xf32> to vector<2x8x8xf32>
    %326 = vector.extract_strided_slice %323 {offsets = [0, 0, 0], sizes = [2, 8, 8], strides = [1, 1, 1]} : vector<2x8x32xf32> to vector<2x8x8xf32>
    "tpu.trace_start"() <{level = 10 : i32, message = "bqd,bkd->bqk"}> : () -> ()
    %cst_80 = arith.constant dense<0.000000e+00> : vector<2x8x8xf32>
    %327 = tpu.matmul %325, %326, %cst_80 {dimension_numbers = #tpu.dot_dimension_numbers<[2], [2], [1], [1], [0, 0, 0, 1, 1, 1], [0], [0]>} : vector<2x8x8xf32>, vector<2x8x8xf32>, vector<2x8x8xf32> -> vector<2x8x8xf32>
    "tpu.trace_stop"() : () -> ()
    %cst_81 = arith.constant 0.353553385 : f32
    %328 = vector.broadcast %cst_81 : f32 to vector<2x8x8xf32>
    %329 = arith.mulf %327, %328 : vector<2x8x8xf32>
    %cst_82 = arith.constant dense<0xFF800000> : vector<2x8xf32>
    %330 = vector.multi_reduction <maximumf>, %329, %cst_82 [2] : vector<2x8x8xf32> to vector<2x8xf32>
    %331 = vector.shape_cast %330 : vector<2x8xf32> to vector<2x8x1xf32>
    %332 = vector.broadcast %331 : vector<2x8x1xf32> to vector<2x8x8xf32>
    %333 = arith.subf %329, %332 : vector<2x8x8xf32>
    %334 = math.exp %333 : vector<2x8x8xf32>
    %cst_83 = arith.constant dense<0.000000e+00> : vector<2x8xf32>
    %335 = vector.multi_reduction <add>, %334, %cst_83 [2] : vector<2x8x8xf32> to vector<2x8xf32>
    %336 = vector.shape_cast %335 : vector<2x8xf32> to vector<2x8x1xf32>
    %337 = vector.broadcast %336 : vector<2x8x1xf32> to vector<2x8x8xf32>
    %338 = arith.divf %334, %337 : vector<2x8x8xf32>
    %339 = vector.extract_strided_slice %324 {offsets = [0, 0, 0], sizes = [2, 8, 8], strides = [1, 1, 1]} : vector<2x8x32xf32> to vector<2x8x8xf32>
    "tpu.trace_start"() <{level = 10 : i32, message = "bqk,bkd->bqd"}> : () -> ()
    %cst_84 = arith.constant dense<0.000000e+00> : vector<2x8x8xf32>
    %340 = tpu.matmul %338, %339, %cst_84 {dimension_numbers = #tpu.dot_dimension_numbers<[2], [1], [1], [2], [0, 0, 0, 1, 1, 2], [0], [0]>} : vector<2x8x8xf32>, vector<2x8x8xf32>, vector<2x8x8xf32> -> vector<2x8x8xf32>
    "tpu.trace_stop"() : () -> ()
    %341 = vector.shape_cast %340 : vector<2x8x8xf32> to vector<16x8xf32>
    %342 = vector.extract_strided_slice %322 {offsets = [0, 0, 8], sizes = [2, 8, 8], strides = [1, 1, 1]} : vector<2x8x32xf32> to vector<2x8x8xf32>
    %343 = vector.extract_strided_slice %323 {offsets = [0, 0, 8], sizes = [2, 8, 8], strides = [1, 1, 1]} : vector<2x8x32xf32> to vector<2x8x8xf32>
    "tpu.trace_start"() <{level = 10 : i32, message = "bqd,bkd->bqk"}> : () -> ()
    %cst_85 = arith.constant dense<0.000000e+00> : vector<2x8x8xf32>
    %344 = tpu.matmul %342, %343, %cst_85 {dimension_numbers = #tpu.dot_dimension_numbers<[2], [2], [1], [1], [0, 0, 0, 1, 1, 1], [0], [0]>} : vector<2x8x8xf32>, vector<2x8x8xf32>, vector<2x8x8xf32> -> vector<2x8x8xf32>
    "tpu.trace_stop"() : () -> ()
    %cst_86 = arith.constant 0.353553385 : f32
    %345 = vector.broadcast %cst_86 : f32 to vector<2x8x8xf32>
    %346 = arith.mulf %344, %345 : vector<2x8x8xf32>
    %cst_87 = arith.constant dense<0xFF800000> : vector<2x8xf32>
    %347 = vector.multi_reduction <maximumf>, %346, %cst_87 [2] : vector<2x8x8xf32> to vector<2x8xf32>
    %348 = vector.shape_cast %347 : vector<2x8xf32> to vector<2x8x1xf32>
    %349 = vector.broadcast %348 : vector<2x8x1xf32> to vector<2x8x8xf32>
    %350 = arith.subf %346, %349 : vector<2x8x8xf32>
    %351 = math.exp %350 : vector<2x8x8xf32>
    %cst_88 = arith.constant dense<0.000000e+00> : vector<2x8xf32>
    %352 = vector.multi_reduction <add>, %351, %cst_88 [2] : vector<2x8x8xf32> to vector<2x8xf32>
    %353 = vector.shape_cast %352 : vector<2x8xf32> to vector<2x8x1xf32>
    %354 = vector.broadcast %353 : vector<2x8x1xf32> to vector<2x8x8xf32>
    %355 = arith.divf %351, %354 : vector<2x8x8xf32>
    %356 = vector.extract_strided_slice %324 {offsets = [0, 0, 8], sizes = [2, 8, 8], strides = [1, 1, 1]} : vector<2x8x32xf32> to vector<2x8x8xf32>
    "tpu.trace_start"() <{level = 10 : i32, message = "bqk,bkd->bqd"}> : () -> ()
    %cst_89 = arith.constant dense<0.000000e+00> : vector<2x8x8xf32>
    %357 = tpu.matmul %355, %356, %cst_89 {dimension_numbers = #tpu.dot_dimension_numbers<[2], [1], [1], [2], [0, 0, 0, 1, 1, 2], [0], [0]>} : vector<2x8x8xf32>, vector<2x8x8xf32>, vector<2x8x8xf32> -> vector<2x8x8xf32>
    "tpu.trace_stop"() : () -> ()
    %358 = vector.shape_cast %357 : vector<2x8x8xf32> to vector<16x8xf32>
    %359 = vector.extract_strided_slice %322 {offsets = [0, 0, 16], sizes = [2, 8, 8], strides = [1, 1, 1]} : vector<2x8x32xf32> to vector<2x8x8xf32>
    %360 = vector.extract_strided_slice %323 {offsets = [0, 0, 16], sizes = [2, 8, 8], strides = [1, 1, 1]} : vector<2x8x32xf32> to vector<2x8x8xf32>
    "tpu.trace_start"() <{level = 10 : i32, message = "bqd,bkd->bqk"}> : () -> ()
    %cst_90 = arith.constant dense<0.000000e+00> : vector<2x8x8xf32>
    %361 = tpu.matmul %359, %360, %cst_90 {dimension_numbers = #tpu.dot_dimension_numbers<[2], [2], [1], [1], [0, 0, 0, 1, 1, 1], [0], [0]>} : vector<2x8x8xf32>, vector<2x8x8xf32>, vector<2x8x8xf32> -> vector<2x8x8xf32>
    "tpu.trace_stop"() : () -> ()
    %cst_91 = arith.constant 0.353553385 : f32
    %362 = vector.broadcast %cst_91 : f32 to vector<2x8x8xf32>
    %363 = arith.mulf %361, %362 : vector<2x8x8xf32>
    %cst_92 = arith.constant dense<0xFF800000> : vector<2x8xf32>
    %364 = vector.multi_reduction <maximumf>, %363, %cst_92 [2] : vector<2x8x8xf32> to vector<2x8xf32>
    %365 = vector.shape_cast %364 : vector<2x8xf32> to vector<2x8x1xf32>
    %366 = vector.broadcast %365 : vector<2x8x1xf32> to vector<2x8x8xf32>
    %367 = arith.subf %363, %366 : vector<2x8x8xf32>
    %368 = math.exp %367 : vector<2x8x8xf32>
    %cst_93 = arith.constant dense<0.000000e+00> : vector<2x8xf32>
    %369 = vector.multi_reduction <add>, %368, %cst_93 [2] : vector<2x8x8xf32> to vector<2x8xf32>
    %370 = vector.shape_cast %369 : vector<2x8xf32> to vector<2x8x1xf32>
    %371 = vector.broadcast %370 : vector<2x8x1xf32> to vector<2x8x8xf32>
    %372 = arith.divf %368, %371 : vector<2x8x8xf32>
    %373 = vector.extract_strided_slice %324 {offsets = [0, 0, 16], sizes = [2, 8, 8], strides = [1, 1, 1]} : vector<2x8x32xf32> to vector<2x8x8xf32>
    "tpu.trace_start"() <{level = 10 : i32, message = "bqk,bkd->bqd"}> : () -> ()
    %cst_94 = arith.constant dense<0.000000e+00> : vector<2x8x8xf32>
    %374 = tpu.matmul %372, %373, %cst_94 {dimension_numbers = #tpu.dot_dimension_numbers<[2], [1], [1], [2], [0, 0, 0, 1, 1, 2], [0], [0]>} : vector<2x8x8xf32>, vector<2x8x8xf32>, vector<2x8x8xf32> -> vector<2x8x8xf32>
    "tpu.trace_stop"() : () -> ()
    %375 = vector.shape_cast %374 : vector<2x8x8xf32> to vector<16x8xf32>
    %376 = vector.extract_strided_slice %322 {offsets = [0, 0, 24], sizes = [2, 8, 8], strides = [1, 1, 1]} : vector<2x8x32xf32> to vector<2x8x8xf32>
    %377 = vector.extract_strided_slice %323 {offsets = [0, 0, 24], sizes = [2, 8, 8], strides = [1, 1, 1]} : vector<2x8x32xf32> to vector<2x8x8xf32>
    "tpu.trace_start"() <{level = 10 : i32, message = "bqd,bkd->bqk"}> : () -> ()
    %cst_95 = arith.constant dense<0.000000e+00> : vector<2x8x8xf32>
    %378 = tpu.matmul %376, %377, %cst_95 {dimension_numbers = #tpu.dot_dimension_numbers<[2], [2], [1], [1], [0, 0, 0, 1, 1, 1], [0], [0]>} : vector<2x8x8xf32>, vector<2x8x8xf32>, vector<2x8x8xf32> -> vector<2x8x8xf32>
    "tpu.trace_stop"() : () -> ()
    %cst_96 = arith.constant 0.353553385 : f32
    %379 = vector.broadcast %cst_96 : f32 to vector<2x8x8xf32>
    %380 = arith.mulf %378, %379 : vector<2x8x8xf32>
    %cst_97 = arith.constant dense<0xFF800000> : vector<2x8xf32>
    %381 = vector.multi_reduction <maximumf>, %380, %cst_97 [2] : vector<2x8x8xf32> to vector<2x8xf32>
    %382 = vector.shape_cast %381 : vector<2x8xf32> to vector<2x8x1xf32>
    %383 = vector.broadcast %382 : vector<2x8x1xf32> to vector<2x8x8xf32>
    %384 = arith.subf %380, %383 : vector<2x8x8xf32>
    %385 = math.exp %384 : vector<2x8x8xf32>
    %cst_98 = arith.constant dense<0.000000e+00> : vector<2x8xf32>
    %386 = vector.multi_reduction <add>, %385, %cst_98 [2] : vector<2x8x8xf32> to vector<2x8xf32>
    %387 = vector.shape_cast %386 : vector<2x8xf32> to vector<2x8x1xf32>
    %388 = vector.broadcast %387 : vector<2x8x1xf32> to vector<2x8x8xf32>
    %389 = arith.divf %385, %388 : vector<2x8x8xf32>
    %390 = vector.extract_strided_slice %324 {offsets = [0, 0, 24], sizes = [2, 8, 8], strides = [1, 1, 1]} : vector<2x8x32xf32> to vector<2x8x8xf32>
    "tpu.trace_start"() <{level = 10 : i32, message = "bqk,bkd->bqd"}> : () -> ()
    %cst_99 = arith.constant dense<0.000000e+00> : vector<2x8x8xf32>
    %391 = tpu.matmul %389, %390, %cst_99 {dimension_numbers = #tpu.dot_dimension_numbers<[2], [1], [1], [2], [0, 0, 0, 1, 1, 2], [0], [0]>} : vector<2x8x8xf32>, vector<2x8x8xf32>, vector<2x8x8xf32> -> vector<2x8x8xf32>
    "tpu.trace_stop"() : () -> ()
    %392 = vector.shape_cast %391 : vector<2x8x8xf32> to vector<16x8xf32>
    %393 = tpu.concatenate %341, %358, %375, %392 in 1 : vector<16x8xf32>, vector<16x8xf32>, vector<16x8xf32>, vector<16x8xf32> -> vector<16x32xf32>
    %cst_100 = arith.constant dense<0.000000e+00> : vector<16x32xf32>
    %394 = tpu.matmul %393, %320, %cst_100 {dimension_numbers = #tpu.dot_dimension_numbers<[1], [0], [0], [1], [0, 0, 1, 1], [], []>} : vector<16x32xf32>, vector<32x32xf32>, vector<16x32xf32> -> vector<16x32xf32>
    %395 = vector.broadcast %321 : vector<1x32xf32> to vector<16x32xf32>
    %396 = arith.addf %394, %395 : vector<16x32xf32>
    %397 = tpu.concatenate %338, %355, %372, %389 in 1 : vector<2x8x8xf32>, vector<2x8x8xf32>, vector<2x8x8xf32>, vector<2x8x8xf32> -> vector<2x32x8xf32>
    %c0_101 = arith.constant 0 : index
    %c0_102 = arith.constant 0 : index
    %c0_103 = arith.constant 0 : index
    %398 = vector.load %arg6[%c0_101, %c0_102, %c0_103] : memref<2x32x8xf32, #tpu.memory_space<vmem>>, vector<2x32x8xf32>
    tpu.vector_store %arg6[%c0_101, %c0_102, %c0_103], %397 {strides = array<i32>} : memref<2x32x8xf32, #tpu.memory_space<vmem>>, vector<2x32x8xf32>,
    %399 = arith.addf %307, %396 : vector<16x32xf32>
    %400 = vector.extract_strided_slice %2 {offsets = [15, 0], sizes = [1, 32], strides = [1, 1]} : vector<24x128xf32> to vector<1x32xf32>
    %401 = vector.extract_strided_slice %2 {offsets = [16, 0], sizes = [1, 32], strides = [1, 1]} : vector<24x128xf32> to vector<1x32xf32>
    %cst_104 = arith.constant dense<0.000000e+00> : vector<16xf32>
    %402 = vector.multi_reduction <add>, %399, %cst_104 [1] : vector<16x32xf32> to vector<16xf32>
    %403 = vector.shape_cast %402 : vector<16xf32> to vector<16x1xf32>
    %cst_105 = arith.constant 3.200000e+01 : f32
    %404 = vector.broadcast %cst_105 : f32 to vector<16x1xf32>
    %405 = arith.divf %403, %404 : vector<16x1xf32>
    %406 = vector.broadcast %405 : vector<16x1xf32> to vector<16x32xf32>
    %407 = arith.subf %399, %406 : vector<16x32xf32>
    %408 = arith.mulf %407, %407 : vector<16x32xf32>
    %cst_106 = arith.constant dense<0.000000e+00> : vector<16xf32>
    %409 = vector.multi_reduction <add>, %408, %cst_106 [1] : vector<16x32xf32> to vector<16xf32>
    %410 = vector.shape_cast %409 : vector<16xf32> to vector<16x1xf32>
    %cst_107 = arith.constant 3.200000e+01 : f32
    %411 = vector.broadcast %cst_107 : f32 to vector<16x1xf32>
    %412 = arith.divf %410, %411 : vector<16x1xf32>
    %413 = vector.broadcast %405 : vector<16x1xf32> to vector<16x32xf32>
    %414 = arith.subf %399, %413 : vector<16x32xf32>
    %cst_108 = arith.constant 9.99999974E-6 : f32
    %415 = vector.broadcast %cst_108 : f32 to vector<16x1xf32>
    %416 = arith.addf %412, %415 : vector<16x1xf32>
    %417 = math.rsqrt %416 : vector<16x1xf32>
    %418 = vector.broadcast %417 : vector<16x1xf32> to vector<16x32xf32>
    %419 = arith.mulf %414, %418 : vector<16x32xf32>
    %420 = vector.broadcast %400 : vector<1x32xf32> to vector<16x32xf32>
    %421 = arith.mulf %419, %420 : vector<16x32xf32>
    %422 = vector.broadcast %401 : vector<1x32xf32> to vector<16x32xf32>
    %423 = arith.addf %421, %422 : vector<16x32xf32>
    %424 = vector.extract_strided_slice %0 {offsets = [0, 448], sizes = [32, 64], strides = [1, 1]} : vector<32x640xf32> to vector<32x64xf32>
    %425 = vector.extract_strided_slice %2 {offsets = [17, 0], sizes = [1, 64], strides = [1, 1]} : vector<24x128xf32> to vector<1x64xf32>
    %cst_109 = arith.constant dense<0.000000e+00> : vector<16x64xf32>
    %426 = tpu.matmul %423, %424, %cst_109 {dimension_numbers = #tpu.dot_dimension_numbers<[1], [0], [0], [1], [0, 0, 1, 1], [], []>} : vector<16x32xf32>, vector<32x64xf32>, vector<16x64xf32> -> vector<16x64xf32>
    %427 = vector.broadcast %425 : vector<1x64xf32> to vector<16x64xf32>
    %428 = arith.addf %426, %427 : vector<16x64xf32>
    %cst_110 = arith.constant 0.000000e+00 : f32
    %429 = vector.broadcast %cst_110 : f32 to vector<16x64xf32>
    %430 = arith.maximumf %428, %429 : vector<16x64xf32>
    %431 = vector.extract_strided_slice %1 {offsets = [0, 32], sizes = [64, 32], strides = [1, 1]} : vector<64x128xf32> to vector<64x32xf32>
    %432 = vector.extract_strided_slice %2 {offsets = [18, 0], sizes = [1, 32], strides = [1, 1]} : vector<24x128xf32> to vector<1x32xf32>
    %cst_111 = arith.constant dense<0.000000e+00> : vector<16x32xf32>
    %433 = tpu.matmul %430, %431, %cst_111 {dimension_numbers = #tpu.dot_dimension_numbers<[1], [0], [0], [1], [0, 0, 1, 1], [], []>} : vector<16x64xf32>, vector<64x32xf32>, vector<16x32xf32> -> vector<16x32xf32>
    %434 = vector.broadcast %432 : vector<1x32xf32> to vector<16x32xf32>
    %435 = arith.addf %433, %434 : vector<16x32xf32>
    %436 = arith.addf %423, %435 : vector<16x32xf32>
    %437 = vector.extract_strided_slice %2 {offsets = [19, 0], sizes = [1, 32], strides = [1, 1]} : vector<24x128xf32> to vector<1x32xf32>
    %438 = vector.extract_strided_slice %2 {offsets = [20, 0], sizes = [1, 32], strides = [1, 1]} : vector<24x128xf32> to vector<1x32xf32>
    %cst_112 = arith.constant dense<0.000000e+00> : vector<16xf32>
    %439 = vector.multi_reduction <add>, %436, %cst_112 [1] : vector<16x32xf32> to vector<16xf32>
    %440 = vector.shape_cast %439 : vector<16xf32> to vector<16x1xf32>
    %cst_113 = arith.constant 3.200000e+01 : f32
    %441 = vector.broadcast %cst_113 : f32 to vector<16x1xf32>
    %442 = arith.divf %440, %441 : vector<16x1xf32>
    %443 = vector.broadcast %442 : vector<16x1xf32> to vector<16x32xf32>
    %444 = arith.subf %436, %443 : vector<16x32xf32>
    %445 = arith.mulf %444, %444 : vector<16x32xf32>
    %cst_114 = arith.constant dense<0.000000e+00> : vector<16xf32>
    %446 = vector.multi_reduction <add>, %445, %cst_114 [1] : vector<16x32xf32> to vector<16xf32>
    %447 = vector.shape_cast %446 : vector<16xf32> to vector<16x1xf32>
    %cst_115 = arith.constant 3.200000e+01 : f32
    %448 = vector.broadcast %cst_115 : f32 to vector<16x1xf32>
    %449 = arith.divf %447, %448 : vector<16x1xf32>
    %450 = vector.broadcast %442 : vector<16x1xf32> to vector<16x32xf32>
    %451 = arith.subf %436, %450 : vector<16x32xf32>
    %cst_116 = arith.constant 9.99999974E-6 : f32
    %452 = vector.broadcast %cst_116 : f32 to vector<16x1xf32>
    %453 = arith.addf %449, %452 : vector<16x1xf32>
    %454 = math.rsqrt %453 : vector<16x1xf32>
    %455 = vector.broadcast %454 : vector<16x1xf32> to vector<16x32xf32>
    %456 = arith.mulf %451, %455 : vector<16x32xf32>
    %457 = vector.broadcast %437 : vector<1x32xf32> to vector<16x32xf32>
    %458 = arith.mulf %456, %457 : vector<16x32xf32>
    %459 = vector.broadcast %438 : vector<1x32xf32> to vector<16x32xf32>
    %460 = arith.addf %458, %459 : vector<16x32xf32>
    %461 = vector.extract_strided_slice %0 {offsets = [0, 512], sizes = [32, 64], strides = [1, 1]} : vector<32x640xf32> to vector<32x64xf32>
    %462 = vector.extract_strided_slice %2 {offsets = [21, 0], sizes = [1, 64], strides = [1, 1]} : vector<24x128xf32> to vector<1x64xf32>
    %cst_117 = arith.constant dense<0.000000e+00> : vector<16x64xf32>
    %463 = tpu.matmul %460, %461, %cst_117 {dimension_numbers = #tpu.dot_dimension_numbers<[1], [0], [0], [1], [0, 0, 1, 1], [], []>} : vector<16x32xf32>, vector<32x64xf32>, vector<16x64xf32> -> vector<16x64xf32>
    %464 = vector.broadcast %462 : vector<1x64xf32> to vector<16x64xf32>
    %465 = arith.addf %463, %464 : vector<16x64xf32>
    %466 = vector.shape_cast %465 : vector<16x64xf32> to vector<2x8x64xf32>
    %c0_118 = arith.constant 0 : index
    %c0_119 = arith.constant 0 : index
    %c0_120 = arith.constant 0 : index
    %467 = vector.load %arg5[%c0_118, %c0_119, %c0_120] : memref<2x8x64xf32, #tpu.memory_space<vmem>>, vector<2x8x64xf32>
    tpu.vector_store %arg5[%c0_118, %c0_119, %c0_120], %466 {strides = array<i32>} : memref<2x8x64xf32, #tpu.memory_space<vmem>>, vector<2x8x64xf32>,
    return
  }
}

</mosaic_0001>

<llo_original>
// kernel: transformer_forward.1
$region0: #{transformer_forward.1}
  #allocation0 [shape = 'u32[]', space=smem, size = 0x4, offset = 0x4, fixed_abs, tag = 'smem constant byte address 0x4 - core index']
  #allocation1 [shape = 'u32[144,128]{1,0:T(1,128)}', space=vmem, size = 0x12000, scoped, tag = 'internal scratch']
  %s0 = inlined_call_operand.vmem [shape: s32[16,1], index: 0, kind: input, shape index: {}]
  %s1 = inlined_call_operand.vmem [shape: s32[16,1], index: 1, kind: input, shape index: {}]
  %s2 = inlined_call_operand.hbm [shape: f32[32,640], index: 2, kind: input, shape index: {}]
  %s3 = inlined_call_operand.hbm [shape: f32[64,128], index: 3, kind: input, shape index: {}]
  %s4 = inlined_call_operand.vmem [shape: f32[24,128], index: 4, kind: input, shape index: {}]
  %s5 = inlined_call_operand.hbm [shape: f32[2,8,64], index: 5, kind: output, shape index: {0}]
  %s6 = inlined_call_operand.hbm [shape: f32[2,32,8], index: 6, kind: output, shape index: {1}]
  %7 = xla_tuple %s5, %s6
  %s8 = sld [smem:[#allocation0]]
  $region46: #{transformer_forward.1} parent=0
    _
  %s10 = ssub.s32 1, %s8
  %s11 = scalar_select 0, %s10, %s8
  $region1: #{transformer_forward.1} parent=0
    #allocation2 [shape = 'u8[81920]{0}', space=vmem, size = 0x14000, scoped, tag = 'input window, operand 2, single buffered']
    #allocation3 [shape = 's32[1]{0}', space=sflag, size = 0x4, scoped, tag = 'scoped memory for transformer_forward.1']
    #allocation4 [shape = 's32[1]{0}', space=sflag, size = 0x4, scoped, tag = 'scoped memory for transformer_forward.1']
    #allocation5 [shape = 'u8[32768]{0}', space=vmem, size = 0x8000, scoped, tag = 'input window, operand 3, single buffered']
    #allocation6 [shape = 's32[1]{0}', space=sflag, size = 0x4, scoped, tag = 'scoped memory for transformer_forward.1']
    #allocation7 [shape = 'u8[8192]{0}', space=vmem, size = 0x2000, scoped, tag = 'output window, operand 0, single buffered']
    #allocation8 [shape = 'u8[32768]{0}', space=vmem, size = 0x8000, scoped, tag = 'output window, operand 1, single buffered']
    #allocation9 [shape = 's32[1]{0}', space=sflag, size = 0x4, scoped, tag = 'scoped memory for transformer_forward.1']
    %12 = vsyncpa [#allocation3], 0
    %13 = vsyncpa [#allocation6], 0
    %14 = vsyncpa [#allocation4], 0
    %15 = vsyncpa [#allocation9], 0
    // Predicated region
    $region2: #{transformer_forward.1} parent=1 // pred_check
      _
    $region3: #{transformer_forward.1} parent=1 // pred_check_branch
      %17 = sbr.rel (0) target = $region5
    $region4: #{transformer_forward.1} parent=1 // pred_region
      _
    $region5: #{transformer_forward.1} parent=1 // pred_fallthru
      _
    // Predicated region
    $region6: #{transformer_forward.1} parent=1 // pred_check
      _
    $region7: #{transformer_forward.1} parent=1 // pred_check_branch
      %19 = sbr.rel (0) target = $region9
    $region8: #{transformer_forward.1} parent=1 // pred_region
      _
    $region9: #{transformer_forward.1} parent=1 // pred_fallthru
      _
    // Predicated region
    $region10: #{transformer_forward.1} parent=1 // pred_check
      _
    $region11: #{transformer_forward.1} parent=1 // pred_check_branch
      %21 = sbr.rel (0) target = $region13
    $region12: #{transformer_forward.1} parent=1 // pred_region
      %s23 = ssub.s32 2560, 2560
      %24 = vsyncadd [#allocation3], %s23
      %s25 = sshll.u32 [#allocation2], 4
      %s26 = int_to_ptr.vmem [resolvable:$true] %s25
      %31 = dma.hbm_to_vmem [thread:$0]  %s2, 2560, %s26, [#allocation3], 640, 640, 40
    $region13: #{transformer_forward.1} parent=1 // pred_fallthru
      _
    // Predicated region
    $region14: #{transformer_forward.1} parent=1 // pred_check
      _
    $region15: #{transformer_forward.1} parent=1 // pred_check_branch
      %33 = sbr.rel (0) target = $region17
    $region16: #{transformer_forward.1} parent=1 // pred_region
      %s35 = ssub.s32 1024, 1024
      %36 = vsyncadd [#allocation6], %s35
      %s37 = sshll.u32 [#allocation5], 4
      %s38 = int_to_ptr.vmem [resolvable:$true] %s37
      %43 = dma.hbm_to_vmem [thread:$0]  %s3, 1024, %s38, [#allocation6], 128, 128, 8
    $region17: #{transformer_forward.1} parent=1 // pred_fallthru
      _
    // Predicated region
    $region18: #{transformer_forward.1} parent=1 // pred_check
      _
    $region19: #{transformer_forward.1} parent=1 // pred_check_branch
      %45 = sbr.rel (0) target = $region21
    $region20: #{transformer_forward.1} parent=1 // pred_region
      _
    $region21: #{transformer_forward.1} parent=1 // pred_fallthru
      _
    // Predicated region
    $region22: #{transformer_forward.1} parent=1 // pred_check
      _
    $region23: #{transformer_forward.1} parent=1 // pred_check_branch
      %47 = sbr.rel (0) target = $region25
    $region24: #{transformer_forward.1} parent=1 // pred_region
      %48 = dma.done [#allocation3], 2560
    $region25: #{transformer_forward.1} parent=1 // pred_fallthru
      _
    // Predicated region
    $region26: #{transformer_forward.1} parent=1 // pred_check
      _
    $region27: #{transformer_forward.1} parent=1 // pred_check_branch
      %50 = sbr.rel (0) target = $region29
    $region28: #{transformer_forward.1} parent=1 // pred_region
      %51 = dma.done [#allocation6], 1024
    $region29: #{transformer_forward.1} parent=1 // pred_fallthru
      _
    %v52 = vld [vmem:[#allocation2] sm:$0xff]
    %v53 = vld [vmem:[#allocation2 + $0x8] sm:$0xff]
    %v54 = vld [vmem:[#allocation2 + $0x10] sm:$0xff]
    %v55 = vld [vmem:[#allocation2 + $0x18] sm:$0xff]
    %v56 = vld [vmem:[#allocation2 + $0x20] sm:$0xff]
    %v57 = vld [vmem:[#allocation2 + $0x28] sm:$0xff]
    %v58 = vld [vmem:[#allocation2 + $0x30] sm:$0xff]
    %v59 = vld [vmem:[#allocation2 + $0x38] sm:$0xff]
    %v60 = vld [vmem:[#allocation2 + $0x40] sm:$0xff]
    %v61 = vld [vmem:[#allocation2 + $0x48] sm:$0xff]
    %v62 = vld [vmem:[#allocation2 + $0x50] sm:$0xff]
    %v63 = vld [vmem:[#allocation2 + $0x58] sm:$0xff]
    %v64 = vld [vmem:[#allocation2 + $0x60] sm:$0xff]
    %v65 = vld [vmem:[#allocation2 + $0x68] sm:$0xff]
    %v66 = vld [vmem:[#allocation2 + $0x70] sm:$0xff]
    %v67 = vld [vmem:[#allocation2 + $0x78] sm:$0xff]
    %v68 = vld [vmem:[#allocation2 + $0x80] sm:$0xff]
    %v69 = vld [vmem:[#allocation2 + $0x88] sm:$0xff]
    %v70 = vld [vmem:[#allocation2 + $0x90] sm:$0xff]
    %v71 = vld [vmem:[#allocation2 + $0x98] sm:$0xff]
    %v72 = vld [vmem:[#allocation5] sm:$0xff]
    %v73 = vld [vmem:[#allocation5 + $0x8] sm:$0xff]
    %v74 = vld [vmem:[#allocation5 + $0x10] sm:$0xff]
    %v75 = vld [vmem:[#allocation5 + $0x18] sm:$0xff]
    %v76 = vld [vmem:[#allocation5 + $0x20] sm:$0xff]
    %v77 = vld [vmem:[#allocation5 + $0x28] sm:$0xff]
    %v78 = vld [vmem:[#allocation5 + $0x30] sm:$0xff]
    %v79 = vld [vmem:[#allocation5 + $0x38] sm:$0xff]
    %v80 = vld [vmem:[%s4] sm:$0xff]
    %v81 = vld [vmem:[%s4 + $0x8] sm:$0xff]
    %v82 = vld [vmem:[%s4 + $0x10] sm:$0xff]
    %v83 = vld [vmem:[%s0] sm:$0xff]
    %v84 = vld [vmem:[%s0 + $0x8] sm:$0xff]
    %v85 = vlaneseq
    %v86 = vand.u32 %v85, 127
    %87 = vset.pattern.permute.xlu0 0
    %88 = vperm.xlu0 %87, %v83
    %v89 = vpop.permute.xlu0 %88
    %90 = vset.pattern.permute.xlu0 0
    %91 = vperm.xlu0 %90, %v84
    %v92 = vpop.permute.xlu0 %91
    %vm93 = vcmp.eq.s32.totalorder %v89, %v86
    %vm94 = vcmp.eq.s32.totalorder %v92, %v86
    %v95 = vsel %vm93, 1, 0
    %v96 = vsel %vm94, 1, 0
    %v97 = vcvt.s32.f32 %v95
    %v98 = vcvt.s32.f32 %v96
    %107 = vrot.lane.b32.xlu0 %v72, 64
    %v108 = vpop.permute.xlu0 %107
    %109 = vrot.lane.b32.xlu0 %v73, 64
    %v110 = vpop.permute.xlu0 %109
    %111 = vrot.lane.b32.xlu0 %v74, 64
    %v112 = vpop.permute.xlu0 %111
    %113 = vrot.lane.b32.xlu0 %v75, 64
    %v114 = vpop.permute.xlu0 %113
    %115 = vrot.lane.b32.xlu0 %v76, 64
    %v116 = vpop.permute.xlu0 %115
    %117 = vrot.lane.b32.xlu0 %v77, 64
    %v118 = vpop.permute.xlu0 %117
    %119 = vrot.lane.b32.xlu0 %v78, 64
    %v120 = vpop.permute.xlu0 %119
    %121 = vrot.lane.b32.xlu0 %v79, 64
    %v122 = vpop.permute.xlu0 %121
    %vm131 = vcmask 523264
    %v133 = vsel %vm131, %v97, 0
    %v136 = vsel %vm131, %v98, 0
    %138 = vmatprep.subr.mxu0 0.0
    %139 = vmatpush1.msra.mxu0 %v108
    %140 = vmatprep.subr.mxu0 0.0
    %141 = vmatpush1.msra.mxu0 %v110
    %142 = vmatprep.subr.mxu0 0.0
    %143 = vmatpush1.msra.mxu0 %v112
    %144 = vmatprep.subr.mxu0 0.0
    %145 = vmatpush1.msra.mxu0 %v114
    %146 = vmatprep.subr.mxu0 0.0
    %147 = vmatpush1.msra.mxu0 %v116
    %148 = vmatprep.subr.mxu0 0.0
    %149 = vmatpush1.msra.mxu0 %v118
    %150 = vmatprep.subr.mxu0 0.0
    %151 = vmatpush1.msra.mxu0 %v120
    %152 = vmatprep.subr.mxu0 0.0
    %153 = vmatpush1.msra.mxu0 %v122
    %154 = vmatprep.subr.mxu0 0.0
    %155 = vmatpush1.msra.mxu0 0.0
    %156 = vmatprep.subr.mxu0 0.0
    %157 = vmatpush1.msra.mxu0 0.0
    %158 = vmatprep.subr.mxu0 0.0
    %159 = vmatpush1.msra.mxu0 0.0
    %160 = vmatprep.subr.mxu0 0.0
    %161 = vmatpush1.msra.mxu0 0.0
    %162 = vmatprep.subr.mxu0 0.0
    %163 = vmatpush1.msra.mxu0 0.0
    %164 = vmatprep.subr.mxu0 0.0
    %165 = vmatpush1.msra.mxu0 0.0
    %166 = vmatprep.subr.mxu0 0.0
    %167 = vmatpush1.msra.mxu0 0.0
    %168 = vmatprep.subr.mxu0 0.0
    %169 = vmatpush1.msra.mxu0 0.0
    %170 = vmatprep.subr.mxu0 0.0
    %171 = vmatpush1.msra.mxu0 0.0
    %172 = vmatprep.subr.mxu0 0.0
    %173 = vmatpush1.msra.mxu0 0.0
    %174 = vmatprep.subr.mxu0 0.0
    %175 = vmatpush1.msra.mxu0 0.0
    %176 = vmatprep.subr.mxu0 0.0
    %177 = vmatpush1.msra.mxu0 0.0
    %178 = vmatprep.subr.mxu0 0.0
    %179 = vmatpush1.msra.mxu0 0.0
    %180 = vmatprep.subr.mxu0 0.0
    %181 = vmatpush1.msra.mxu0 0.0
    %182 = vmatprep.subr.mxu0 0.0
    %183 = vmatpush1.msra.mxu0 0.0
    %184 = vmatprep.subr.mxu0 0.0
    %185 = vmatpush1.msra.mxu0 0.0
    %186 = vmatprep.subr.mxu0 0.0
    %187 = vmatpush1.msra.mxu0 0.0
    %188 = vmatprep.subr.mxu0 0.0
    %189 = vmatpush1.msra.mxu0 0.0
    %190 = vmatprep.subr.mxu0 0.0
    %191 = vmatpush1.msra.mxu0 0.0
    %192 = vmatprep.subr.mxu0 0.0
    %193 = vmatpush1.msra.mxu0 0.0
    %194 = vmatprep.subr.mxu0 0.0
    %195 = vmatpush1.msra.mxu0 0.0
    %196 = vmatprep.subr.mxu0 0.0
    %197 = vmatpush1.msra.mxu0 0.0
    %198 = vmatprep.subr.mxu0 0.0
    %199 = vmatpush1.msra.mxu0 0.0
    %200 = vmatprep.subr.mxu0 0.0
    %201 = vmatpush1.msra.mxu0 0.0
    %202 = vmatprep.mubr.f32.mxu0 0.0
    %203 = vmatmul.mubr.f32.gmra.mrb[0].mxu0 %v133
    %v204 = vpop.f32.mrb[0].mxu0
    %v205 = vadd.f32 0.0, %v204
    %v206 = vpop.f32.mrb[0].mxu0
    %207 = vmatprep.mubr.f32.mxu0 0.0
    %208 = vmatmul.mubr.f32.gmra.mrb[0].mxu0 %v136
    %v209 = vpop.f32.mrb[0].mxu0
    %v210 = vadd.f32 0.0, %v209
    %v211 = vpop.f32.mrb[0].mxu0
    %212 = vdwg.mxu0
    %v213 = vmul.f32 %v205, 5.656854
    %v214 = vmul.f32 %v210, 5.656854
    %216 = vrot.lane.b32.xlu0 %v56, 64
    %v217 = vpop.permute.xlu0 %216
    %v219 = vadd.f32 %v213, %v217
    %v220 = vadd.f32 %v214, %v217
    %v221 = vlaneseq
    %v222 = vshrl.u32 %v221, 7
    %v223 = vsub.s32 0, %v222
    %v224 = vrot.slane %v80, %v223
    %vm225 = vcmask 261120
    %v227 = vsel %vm225, %v219, 0
    %v230 = vsel %vm225, %v220, 0
    %232 = vmatprep.subr.mxu0 0.0
    %233 = vmatpush1.msra.mxu0 %v52
    %234 = vmatprep.subr.mxu0 0.0
    %235 = vmatpush1.msra.mxu0 %v57
    %236 = vmatprep.subr.mxu0 0.0
    %237 = vmatpush1.msra.mxu0 %v62
    %238 = vmatprep.subr.mxu0 0.0
    %239 = vmatpush1.msra.mxu0 %v67
    %240 = vmatprep.subr.mxu0 0.0
    %241 = vmatpush1.msra.mxu0 0.0
    %242 = vmatprep.subr.mxu0 0.0
    %243 = vmatpush1.msra.mxu0 0.0
    %244 = vmatprep.subr.mxu0 0.0
    %245 = vmatpush1.msra.mxu0 0.0
    %246 = vmatprep.subr.mxu0 0.0
    %247 = vmatpush1.msra.mxu0 0.0
    %248 = vmatprep.subr.mxu0 0.0
    %249 = vmatpush1.msra.mxu0 0.0
    %250 = vmatprep.subr.mxu0 0.0
    %251 = vmatpush1.msra.mxu0 0.0
    %252 = vmatprep.subr.mxu0 0.0
    %253 = vmatpush1.msra.mxu0 0.0
    %254 = vmatprep.subr.mxu0 0.0
    %255 = vmatpush1.msra.mxu0 0.0
    %256 = vmatprep.subr.mxu0 0.0
    %257 = vmatpush1.msra.mxu0 0.0
    %258 = vmatprep.subr.mxu0 0.0
    %259 = vmatpush1.msra.mxu0 0.0
    %260 = vmatprep.subr.mxu0 0.0
    %261 = vmatpush1.msra.mxu0 0.0
    %262 = vmatprep.subr.mxu0 0.0
    %263 = vmatpush1.msra.mxu0 0.0
    %264 = vmatprep.subr.mxu0 0.0
    %265 = vmatpush1.msra.mxu0 0.0
    %266 = vmatprep.subr.mxu0 0.0
    %267 = vmatpush1.msra.mxu0 0.0
    %268 = vmatprep.subr.mxu0 0.0
    %269 = vmatpush1.msra.mxu0 0.0
    %270 = vmatprep.subr.mxu0 0.0
    %271 = vmatpush1.msra.mxu0 0.0
    %272 = vmatprep.subr.mxu0 0.0
    %273 = vmatpush1.msra.mxu0 0.0
    %274 = vmatprep.subr.mxu0 0.0
    %275 = vmatpush1.msra.mxu0 0.0
    %276 = vmatprep.subr.mxu0 0.0
    %277 = vmatpush1.msra.mxu0 0.0
    %278 = vmatprep.subr.mxu0 0.0
    %279 = vmatpush1.msra.mxu0 0.0
    %280 = vmatprep.subr.mxu0 0.0
    %281 = vmatpush1.msra.mxu0 0.0
    %282 = vmatprep.subr.mxu0 0.0
    %283 = vmatpush1.msra.mxu0 0.0
    %284 = vmatprep.subr.mxu0 0.0
    %285 = vmatpush1.msra.mxu0 0.0
    %286 = vmatprep.subr.mxu0 0.0
    %287 = vmatpush1.msra.mxu0 0.0
    %288 = vmatprep.subr.mxu0 0.0
    %289 = vmatpush1.msra.mxu0 0.0
    %290 = vmatprep.subr.mxu0 0.0
    %291 = vmatpush1.msra.mxu0 0.0
    %292 = vmatprep.subr.mxu0 0.0
    %293 = vmatpush1.msra.mxu0 0.0
    %294 = vmatprep.subr.mxu0 0.0
    %295 = vmatpush1.msra.mxu0 0.0
    %296 = vmatprep.mubr.f32.mxu0 0.0
    %297 = vmatmul.mubr.f32.gmra.mrb[0].mxu0 %v227
    %v298 = vpop.f32.mrb[0].mxu0
    %v299 = vadd.f32 %v224, %v298
    %v300 = vpop.f32.mrb[0].mxu0
    %301 = vmatprep.mubr.f32.mxu0 0.0
    %302 = vmatmul.mubr.f32.gmra.mrb[0].mxu0 %v230
    %v303 = vpop.f32.mrb[0].mxu0
    %v304 = vadd.f32 %v224, %v303
    %v305 = vpop.f32.mrb[0].mxu0
    %306 = vdwg.mxu0
    %308 = vrot.lane.b32.xlu0 %v299, 96
    %v309 = vpop.permute.xlu0 %308
    %vm310 = vcmask 64512
    %v311 = vsel %vm310, %v299, 0
    %v313 = vsel %vm310, %v309, 0
    %315 = vmatprep.subr.mxu0 0.0
    %316 = vmatpush1.xpose.msra.mxu0 %v313
    %317 = vmatprep.subr.mxu0 0.0
    %318 = vmatpush1.xpose.msra.mxu0 0.0
    %319 = vmatprep.subr.mxu0 0.0
    %320 = vmatpush1.xpose.msra.mxu0 0.0
    %321 = vmatprep.subr.mxu0 0.0
    %322 = vmatpush1.xpose.msra.mxu0 0.0
    %323 = vmatprep.subr.mxu0 0.0
    %324 = vmatpush1.xpose.msra.mxu0 0.0
    %325 = vmatprep.subr.mxu0 0.0
    %326 = vmatpush1.xpose.msra.mxu0 0.0
    %327 = vmatprep.subr.mxu0 0.0
    %328 = vmatpush1.xpose.msra.mxu0 0.0
    %329 = vmatprep.subr.mxu0 0.0
    %330 = vmatpush1.xpose.msra.mxu0 0.0
    %331 = vmatprep.subr.mxu0 0.0
    %332 = vmatpush1.xpose.msra.mxu0 0.0
    %333 = vmatprep.subr.mxu0 0.0
    %334 = vmatpush1.xpose.msra.mxu0 0.0
    %335 = vmatprep.subr.mxu0 0.0
    %336 = vmatpush1.xpose.msra.mxu0 0.0
    %337 = vmatprep.subr.mxu0 0.0
    %338 = vmatpush1.xpose.msra.mxu0 0.0
    %339 = vmatprep.subr.mxu0 0.0
    %340 = vmatpush1.xpose.msra.mxu0 0.0
    %341 = vmatprep.subr.mxu0 0.0
    %342 = vmatpush1.xpose.msra.mxu0 0.0
    %343 = vmatprep.subr.mxu0 0.0
    %344 = vmatpush1.xpose.msra.mxu0 0.0
    %345 = vmatprep.subr.mxu0 0.0
    %346 = vmatpush1.xpose.msra.mxu0 0.0
    %347 = vmatprep.subr.mxu0 0.0
    %348 = vmatpush1.xpose.msra.mxu0 0.0
    %349 = vmatprep.subr.mxu0 0.0
    %350 = vmatpush1.xpose.msra.mxu0 0.0
    %351 = vmatprep.subr.mxu0 0.0
    %352 = vmatpush1.xpose.msra.mxu0 0.0
    %353 = vmatprep.subr.mxu0 0.0
    %354 = vmatpush1.xpose.msra.mxu0 0.0
    %355 = vmatprep.subr.mxu0 0.0
    %356 = vmatpush1.xpose.msra.mxu0 0.0
    %357 = vmatprep.subr.mxu0 0.0
    %358 = vmatpush1.xpose.msra.mxu0 0.0
    %359 = vmatprep.subr.mxu0 0.0
    %360 = vmatpush1.xpose.msra.mxu0 0.0
    %361 = vmatprep.subr.mxu0 0.0
    %362 = vmatpush1.xpose.msra.mxu0 0.0
    %363 = vmatprep.subr.mxu0 0.0
    %364 = vmatpush1.xpose.msra.mxu0 0.0
    %365 = vmatprep.subr.mxu0 0.0
    %366 = vmatpush1.xpose.msra.mxu0 0.0
    %367 = vmatprep.subr.mxu0 0.0
    %368 = vmatpush1.xpose.msra.mxu0 0.0
    %369 = vmatprep.subr.mxu0 0.0
    %370 = vmatpush1.xpose.msra.mxu0 0.0
    %371 = vmatprep.subr.mxu0 0.0
    %372 = vmatpush1.xpose.msra.mxu0 0.0
    %373 = vmatprep.subr.mxu0 0.0
    %374 = vmatpush1.xpose.msra.mxu0 0.0
    %375 = vmatprep.subr.mxu0 0.0
    %376 = vmatpush1.xpose.msra.mxu0 0.0
    %377 = vmatprep.subr.mxu0 0.0
    %378 = vmatpush1.xpose.msra.mxu0 0.0
    %379 = vmatprep.mubr.f32.mxu0 0.0
    %380 = vmatmul.mubr.f32.gmra.mrb[0].mxu0 %v311
    %v381 = vpop.f32.mrb[0].mxu0
    %v382 = vadd.f32 0.0, %v381
    %v383 = vpop.f32.mrb[0].mxu0
    %384 = vdwg.mxu0
    %386 = vrot.lane.b32.xlu0 %v304, 96
    %v387 = vpop.permute.xlu0 %386
    %v388 = vsel %vm310, %v304, 0
    %v390 = vsel %vm310, %v387, 0
    %392 = vmatprep.subr.mxu0 0.0
    %393 = vmatpush1.xpose.msra.mxu0 %v390
    %394 = vmatprep.subr.mxu0 0.0
    %395 = vmatpush1.xpose.msra.mxu0 0.0
    %396 = vmatprep.subr.mxu0 0.0
    %397 = vmatpush1.xpose.msra.mxu0 0.0
    %398 = vmatprep.subr.mxu0 0.0
    %399 = vmatpush1.xpose.msra.mxu0 0.0
    %400 = vmatprep.subr.mxu0 0.0
    %401 = vmatpush1.xpose.msra.mxu0 0.0
    %402 = vmatprep.subr.mxu0 0.0
    %403 = vmatpush1.xpose.msra.mxu0 0.0
    %404 = vmatprep.subr.mxu0 0.0
    %405 = vmatpush1.xpose.msra.mxu0 0.0
    %406 = vmatprep.subr.mxu0 0.0
    %407 = vmatpush1.xpose.msra.mxu0 0.0
    %408 = vmatprep.subr.mxu0 0.0
    %409 = vmatpush1.xpose.msra.mxu0 0.0
    %410 = vmatprep.subr.mxu0 0.0
    %411 = vmatpush1.xpose.msra.mxu0 0.0
    %412 = vmatprep.subr.mxu0 0.0
    %413 = vmatpush1.xpose.msra.mxu0 0.0
    %414 = vmatprep.subr.mxu0 0.0
    %415 = vmatpush1.xpose.msra.mxu0 0.0
    %416 = vmatprep.subr.mxu0 0.0
    %417 = vmatpush1.xpose.msra.mxu0 0.0
    %418 = vmatprep.subr.mxu0 0.0
    %419 = vmatpush1.xpose.msra.mxu0 0.0
    %420 = vmatprep.subr.mxu0 0.0
    %421 = vmatpush1.xpose.msra.mxu0 0.0
    %422 = vmatprep.subr.mxu0 0.0
    %423 = vmatpush1.xpose.msra.mxu0 0.0
    %424 = vmatprep.subr.mxu0 0.0
    %425 = vmatpush1.xpose.msra.mxu0 0.0
    %426 = vmatprep.subr.mxu0 0.0
    %427 = vmatpush1.xpose.msra.mxu0 0.0
    %428 = vmatprep.subr.mxu0 0.0
    %429 = vmatpush1.xpose.msra.mxu0 0.0
    %430 = vmatprep.subr.mxu0 0.0
    %431 = vmatpush1.xpose.msra.mxu0 0.0
    %432 = vmatprep.subr.mxu0 0.0
    %433 = vmatpush1.xpose.msra.mxu0 0.0
    %434 = vmatprep.subr.mxu0 0.0
    %435 = vmatpush1.xpose.msra.mxu0 0.0
    %436 = vmatprep.subr.mxu0 0.0
    %437 = vmatpush1.xpose.msra.mxu0 0.0
    %438 = vmatprep.subr.mxu0 0.0
    %439 = vmatpush1.xpose.msra.mxu0 0.0
    %440 = vmatprep.subr.mxu0 0.0
    %441 = vmatpush1.xpose.msra.mxu0 0.0
    %442 = vmatprep.subr.mxu0 0.0
    %443 = vmatpush1.xpose.msra.mxu0 0.0
    %444 = vmatprep.subr.mxu0 0.0
    %445 = vmatpush1.xpose.msra.mxu0 0.0
    %446 = vmatprep.subr.mxu0 0.0
    %447 = vmatpush1.xpose.msra.mxu0 0.0
    %448 = vmatprep.subr.mxu0 0.0
    %449 = vmatpush1.xpose.msra.mxu0 0.0
    %450 = vmatprep.subr.mxu0 0.0
    %451 = vmatpush1.xpose.msra.mxu0 0.0
    %452 = vmatprep.subr.mxu0 0.0
    %453 = vmatpush1.xpose.msra.mxu0 0.0
    %454 = vmatprep.subr.mxu0 0.0
    %455 = vmatpush1.xpose.msra.mxu0 0.0
    %456 = vmatprep.mubr.f32.mxu0 0.0
    %457 = vmatmul.mubr.f32.gmra.mrb[0].mxu0 %v388
    %v458 = vpop.f32.mrb[0].mxu0
    %v459 = vadd.f32 0.0, %v458
    %v460 = vpop.f32.mrb[0].mxu0
    %461 = vdwg.mxu0
    %v462 = vmul.f32 %v382, 0.35355338
    %v463 = vmul.f32 %v459, 0.35355338
    %v464 = vsel %vm310, %v462, -inf
    %465 = vmax.xlane.f32.xlu0 %v464
    %v466 = vpop.xlane.xlu0 %465
    %v467 = vsel %vm310, %v463, -inf
    %468 = vmax.xlane.f32.xlu0 %v467
    %v469 = vpop.xlane.xlu0 %468
    %v470 = vsub.f32 %v462, %v466
    %v471 = vsub.f32 %v463, %v469
    %v472 = vmul.f32 %v470, 1.442695
    %v473 = vpow.pop %v472
    %v474 = vmul.f32 %v471, 1.442695
    %v475 = vpow.pop %v474
    %v476 = vsel %vm310, %v473, 0.0
    %477 = vadd.xlane.f32.xlu0 %v476
    %v478 = vpop.xlane.xlu0 %477
    %v479 = vsel %vm310, %v475, 0.0
    %480 = vadd.xlane.f32.xlu0 %v479
    %v481 = vpop.xlane.xlu0 %480
    %v482 = vrcp.pop %v478
    %v483 = vmul.f32 %v473, %v482
    %v484 = vrcp.pop %v481
    %v485 = vmul.f32 %v475, %v484
    %486 = vrot.lane.b32.xlu0 %v299, 64
    %v487 = vpop.permute.xlu0 %486
    %v490 = vsel %vm310, %v483, 0
    %492 = vmatprep.subr.mxu0 0.0
    %493 = vmatpush1.msra.mxu0 %v487
    %494 = vmatprep.subr.mxu0 0.0
    %495 = vmatpush1.msra.mxu0 0.0
    %496 = vmatprep.subr.mxu0 0.0
    %497 = vmatpush1.msra.mxu0 0.0
    %498 = vmatprep.subr.mxu0 0.0
    %499 = vmatpush1.msra.mxu0 0.0
    %500 = vmatprep.subr.mxu0 0.0
    %501 = vmatpush1.msra.mxu0 0.0
    %502 = vmatprep.subr.mxu0 0.0
    %503 = vmatpush1.msra.mxu0 0.0
    %504 = vmatprep.subr.mxu0 0.0
    %505 = vmatpush1.msra.mxu0 0.0
    %506 = vmatprep.subr.mxu0 0.0
    %507 = vmatpush1.msra.mxu0 0.0
    %508 = vmatprep.subr.mxu0 0.0
    %509 = vmatpush1.msra.mxu0 0.0
    %510 = vmatprep.subr.mxu0 0.0
    %511 = vmatpush1.msra.mxu0 0.0
    %512 = vmatprep.subr.mxu0 0.0
    %513 = vmatpush1.msra.mxu0 0.0
    %514 = vmatprep.subr.mxu0 0.0
    %515 = vmatpush1.msra.mxu0 0.0
    %516 = vmatprep.subr.mxu0 0.0
    %517 = vmatpush1.msra.mxu0 0.0
    %518 = vmatprep.subr.mxu0 0.0
    %519 = vmatpush1.msra.mxu0 0.0
    %520 = vmatprep.subr.mxu0 0.0
    %521 = vmatpush1.msra.mxu0 0.0
    %522 = vmatprep.subr.mxu0 0.0
    %523 = vmatpush1.msra.mxu0 0.0
    %524 = vmatprep.subr.mxu0 0.0
    %525 = vmatpush1.msra.mxu0 0.0
    %526 = vmatprep.subr.mxu0 0.0
    %527 = vmatpush1.msra.mxu0 0.0
    %528 = vmatprep.subr.mxu0 0.0
    %529 = vmatpush1.msra.mxu0 0.0
    %530 = vmatprep.subr.mxu0 0.0
    %531 = vmatpush1.msra.mxu0 0.0
    %532 = vmatprep.subr.mxu0 0.0
    %533 = vmatpush1.msra.mxu0 0.0
    %534 = vmatprep.subr.mxu0 0.0
    %535 = vmatpush1.msra.mxu0 0.0
    %536 = vmatprep.subr.mxu0 0.0
    %537 = vmatpush1.msra.mxu0 0.0
    %538 = vmatprep.subr.mxu0 0.0
    %539 = vmatpush1.msra.mxu0 0.0
    %540 = vmatprep.subr.mxu0 0.0
    %541 = vmatpush1.msra.mxu0 0.0
    %542 = vmatprep.subr.mxu0 0.0
    %543 = vmatpush1.msra.mxu0 0.0
    %544 = vmatprep.subr.mxu0 0.0
    %545 = vmatpush1.msra.mxu0 0.0
    %546 = vmatprep.subr.mxu0 0.0
    %547 = vmatpush1.msra.mxu0 0.0
    %548 = vmatprep.subr.mxu0 0.0
    %549 = vmatpush1.msra.mxu0 0.0
    %550 = vmatprep.subr.mxu0 0.0
    %551 = vmatpush1.msra.mxu0 0.0
    %552 = vmatprep.subr.mxu0 0.0
    %553 = vmatpush1.msra.mxu0 0.0
    %554 = vmatprep.subr.mxu0 0.0
    %555 = vmatpush1.msra.mxu0 0.0
    %556 = vmatprep.mubr.f32.mxu0 0.0
    %557 = vmatmul.mubr.f32.gmra.mrb[0].mxu0 %v490
    %v558 = vpop.f32.mrb[0].mxu0
    %v559 = vadd.f32 0.0, %v558
    %v560 = vpop.f32.mrb[0].mxu0
    %561 = vdwg.mxu0
    %562 = vrot.lane.b32.xlu0 %v304, 64
    %v563 = vpop.permute.xlu0 %562
    %v566 = vsel %vm310, %v485, 0
    %568 = vmatprep.subr.mxu0 0.0
    %569 = vmatpush1.msra.mxu0 %v563
    %570 = vmatprep.subr.mxu0 0.0
    %571 = vmatpush1.msra.mxu0 0.0
    %572 = vmatprep.subr.mxu0 0.0
    %573 = vmatpush1.msra.mxu0 0.0
    %574 = vmatprep.subr.mxu0 0.0
    %575 = vmatpush1.msra.mxu0 0.0
    %576 = vmatprep.subr.mxu0 0.0
    %577 = vmatpush1.msra.mxu0 0.0
    %578 = vmatprep.subr.mxu0 0.0
    %579 = vmatpush1.msra.mxu0 0.0
    %580 = vmatprep.subr.mxu0 0.0
    %581 = vmatpush1.msra.mxu0 0.0
    %582 = vmatprep.subr.mxu0 0.0
    %583 = vmatpush1.msra.mxu0 0.0
    %584 = vmatprep.subr.mxu0 0.0
    %585 = vmatpush1.msra.mxu0 0.0
    %586 = vmatprep.subr.mxu0 0.0
    %587 = vmatpush1.msra.mxu0 0.0
    %588 = vmatprep.subr.mxu0 0.0
    %589 = vmatpush1.msra.mxu0 0.0
    %590 = vmatprep.subr.mxu0 0.0
    %591 = vmatpush1.msra.mxu0 0.0
    %592 = vmatprep.subr.mxu0 0.0
    %593 = vmatpush1.msra.mxu0 0.0
    %594 = vmatprep.subr.mxu0 0.0
    %595 = vmatpush1.msra.mxu0 0.0
    %596 = vmatprep.subr.mxu0 0.0
    %597 = vmatpush1.msra.mxu0 0.0
    %598 = vmatprep.subr.mxu0 0.0
    %599 = vmatpush1.msra.mxu0 0.0
    %600 = vmatprep.subr.mxu0 0.0
    %601 = vmatpush1.msra.mxu0 0.0
    %602 = vmatprep.subr.mxu0 0.0
    %603 = vmatpush1.msra.mxu0 0.0
    %604 = vmatprep.subr.mxu0 0.0
    %605 = vmatpush1.msra.mxu0 0.0
    %606 = vmatprep.subr.mxu0 0.0
    %607 = vmatpush1.msra.mxu0 0.0
    %608 = vmatprep.subr.mxu0 0.0
    %609 = vmatpush1.msra.mxu0 0.0
    %610 = vmatprep.subr.mxu0 0.0
    %611 = vmatpush1.msra.mxu0 0.0
    %612 = vmatprep.subr.mxu0 0.0
    %613 = vmatpush1.msra.mxu0 0.0
    %614 = vmatprep.subr.mxu0 0.0
    %615 = vmatpush1.msra.mxu0 0.0
    %616 = vmatprep.subr.mxu0 0.0
    %617 = vmatpush1.msra.mxu0 0.0
    %618 = vmatprep.subr.mxu0 0.0
    %619 = vmatpush1.msra.mxu0 0.0
    %620 = vmatprep.subr.mxu0 0.0
    %621 = vmatpush1.msra.mxu0 0.0
    %622 = vmatprep.subr.mxu0 0.0
    %623 = vmatpush1.msra.mxu0 0.0
    %624 = vmatprep.subr.mxu0 0.0
    %625 = vmatpush1.msra.mxu0 0.0
    %626 = vmatprep.subr.mxu0 0.0
    %627 = vmatpush1.msra.mxu0 0.0
    %628 = vmatprep.subr.mxu0 0.0
    %629 = vmatpush1.msra.mxu0 0.0
    %630 = vmatprep.subr.mxu0 0.0
    %631 = vmatpush1.msra.mxu0 0.0
    %632 = vmatprep.mubr.f32.mxu0 0.0
    %633 = vmatmul.mubr.f32.gmra.mrb[0].mxu0 %v566
    %v634 = vpop.f32.mrb[0].mxu0
    %v635 = vadd.f32 0.0, %v634
    %v636 = vpop.f32.mrb[0].mxu0
    %637 = vdwg.mxu0
    %638 = vrot.lane.b32.xlu0 %v299, 120
    %v639 = vpop.permute.xlu0 %638
    %640 = vrot.lane.b32.xlu0 %v299, 88
    %v641 = vpop.permute.xlu0 %640
    %v642 = vsel %vm310, %v639, 0
    %v644 = vsel %vm310, %v641, 0
    %646 = vmatprep.subr.mxu0 0.0
    %647 = vmatpush1.xpose.msra.mxu0 %v644
    %648 = vmatprep.subr.mxu0 0.0
    %649 = vmatpush1.xpose.msra.mxu0 0.0
    %650 = vmatprep.subr.mxu0 0.0
    %651 = vmatpush1.xpose.msra.mxu0 0.0
    %652 = vmatprep.subr.mxu0 0.0
    %653 = vmatpush1.xpose.msra.mxu0 0.0
    %654 = vmatprep.subr.mxu0 0.0
    %655 = vmatpush1.xpose.msra.mxu0 0.0
    %656 = vmatprep.subr.mxu0 0.0
    %657 = vmatpush1.xpose.msra.mxu0 0.0
    %658 = vmatprep.subr.mxu0 0.0
    %659 = vmatpush1.xpose.msra.mxu0 0.0
    %660 = vmatprep.subr.mxu0 0.0
    %661 = vmatpush1.xpose.msra.mxu0 0.0
    %662 = vmatprep.subr.mxu0 0.0
    %663 = vmatpush1.xpose.msra.mxu0 0.0
    %664 = vmatprep.subr.mxu0 0.0
    %665 = vmatpush1.xpose.msra.mxu0 0.0
    %666 = vmatprep.subr.mxu0 0.0
    %667 = vmatpush1.xpose.msra.mxu0 0.0
    %668 = vmatprep.subr.mxu0 0.0
    %669 = vmatpush1.xpose.msra.mxu0 0.0
    %670 = vmatprep.subr.mxu0 0.0
    %671 = vmatpush1.xpose.msra.mxu0 0.0
    %672 = vmatprep.subr.mxu0 0.0
    %673 = vmatpush1.xpose.msra.mxu0 0.0
    %674 = vmatprep.subr.mxu0 0.0
    %675 = vmatpush1.xpose.msra.mxu0 0.0
    %676 = vmatprep.subr.mxu0 0.0
    %677 = vmatpush1.xpose.msra.mxu0 0.0
    %678 = vmatprep.subr.mxu0 0.0
    %679 = vmatpush1.xpose.msra.mxu0 0.0
    %680 = vmatprep.subr.mxu0 0.0
    %681 = vmatpush1.xpose.msra.mxu0 0.0
    %682 = vmatprep.subr.mxu0 0.0
    %683 = vmatpush1.xpose.msra.mxu0 0.0
    %684 = vmatprep.subr.mxu0 0.0
    %685 = vmatpush1.xpose.msra.mxu0 0.0
    %686 = vmatprep.subr.mxu0 0.0
    %687 = vmatpush1.xpose.msra.mxu0 0.0
    %688 = vmatprep.subr.mxu0 0.0
    %689 = vmatpush1.xpose.msra.mxu0 0.0
    %690 = vmatprep.subr.mxu0 0.0
    %691 = vmatpush1.xpose.msra.mxu0 0.0
    %692 = vmatprep.subr.mxu0 0.0
    %693 = vmatpush1.xpose.msra.mxu0 0.0
    %694 = vmatprep.subr.mxu0 0.0
    %695 = vmatpush1.xpose.msra.mxu0 0.0
    %696 = vmatprep.subr.mxu0 0.0
    %697 = vmatpush1.xpose.msra.mxu0 0.0
    %698 = vmatprep.subr.mxu0 0.0
    %699 = vmatpush1.xpose.msra.mxu0 0.0
    %700 = vmatprep.subr.mxu0 0.0
    %701 = vmatpush1.xpose.msra.mxu0 0.0
    %702 = vmatprep.subr.mxu0 0.0
    %703 = vmatpush1.xpose.msra.mxu0 0.0
    %704 = vmatprep.subr.mxu0 0.0
    %705 = vmatpush1.xpose.msra.mxu0 0.0
    %706 = vmatprep.subr.mxu0 0.0
    %707 = vmatpush1.xpose.msra.mxu0 0.0
    %708 = vmatprep.subr.mxu0 0.0
    %709 = vmatpush1.xpose.msra.mxu0 0.0
    %710 = vmatprep.mubr.f32.mxu0 0.0
    %711 = vmatmul.mubr.f32.gmra.mrb[0].mxu0 %v642
    %v712 = vpop.f32.mrb[0].mxu0
    %v713 = vadd.f32 0.0, %v712
    %v714 = vpop.f32.mrb[0].mxu0
    %715 = vdwg.mxu0
    %716 = vrot.lane.b32.xlu0 %v304, 120
    %v717 = vpop.permute.xlu0 %716
    %718 = vrot.lane.b32.xlu0 %v304, 88
    %v719 = vpop.permute.xlu0 %718
    %v720 = vsel %vm310, %v717, 0
    %v722 = vsel %vm310, %v719, 0
    %724 = vmatprep.subr.mxu0 0.0
    %725 = vmatpush1.xpose.msra.mxu0 %v722
    %726 = vmatprep.subr.mxu0 0.0
    %727 = vmatpush1.xpose.msra.mxu0 0.0
    %728 = vmatprep.subr.mxu0 0.0
    %729 = vmatpush1.xpose.msra.mxu0 0.0
    %730 = vmatprep.subr.mxu0 0.0
    %731 = vmatpush1.xpose.msra.mxu0 0.0
    %732 = vmatprep.subr.mxu0 0.0
    %733 = vmatpush1.xpose.msra.mxu0 0.0
    %734 = vmatprep.subr.mxu0 0.0
    %735 = vmatpush1.xpose.msra.mxu0 0.0
    %736 = vmatprep.subr.mxu0 0.0
    %737 = vmatpush1.xpose.msra.mxu0 0.0
    %738 = vmatprep.subr.mxu0 0.0
    %739 = vmatpush1.xpose.msra.mxu0 0.0
    %740 = vmatprep.subr.mxu0 0.0
    %741 = vmatpush1.xpose.msra.mxu0 0.0
    %742 = vmatprep.subr.mxu0 0.0
    %743 = vmatpush1.xpose.msra.mxu0 0.0
    %744 = vmatprep.subr.mxu0 0.0
    %745 = vmatpush1.xpose.msra.mxu0 0.0
    %746 = vmatprep.subr.mxu0 0.0
    %747 = vmatpush1.xpose.msra.mxu0 0.0
    %748 = vmatprep.subr.mxu0 0.0
    %749 = vmatpush1.xpose.msra.mxu0 0.0
    %750 = vmatprep.subr.mxu0 0.0
    %751 = vmatpush1.xpose.msra.mxu0 0.0
    %752 = vmatprep.subr.mxu0 0.0
    %753 = vmatpush1.xpose.msra.mxu0 0.0
    %754 = vmatprep.subr.mxu0 0.0
    %755 = vmatpush1.xpose.msra.mxu0 0.0
    %756 = vmatprep.subr.mxu0 0.0
    %757 = vmatpush1.xpose.msra.mxu0 0.0
    %758 = vmatprep.subr.mxu0 0.0
    %759 = vmatpush1.xpose.msra.mxu0 0.0
    %760 = vmatprep.subr.mxu0 0.0
    %761 = vmatpush1.xpose.msra.mxu0 0.0
    %762 = vmatprep.subr.mxu0 0.0
    %763 = vmatpush1.xpose.msra.mxu0 0.0
    %764 = vmatprep.subr.mxu0 0.0
    %765 = vmatpush1.xpose.msra.mxu0 0.0
    %766 = vmatprep.subr.mxu0 0.0
    %767 = vmatpush1.xpose.msra.mxu0 0.0
    %768 = vmatprep.subr.mxu0 0.0
    %769 = vmatpush1.xpose.msra.mxu0 0.0
    %770 = vmatprep.subr.mxu0 0.0
    %771 = vmatpush1.xpose.msra.mxu0 0.0
    %772 = vmatprep.subr.mxu0 0.0
    %773 = vmatpush1.xpose.msra.mxu0 0.0
    %774 = vmatprep.subr.mxu0 0.0
    %775 = vmatpush1.xpose.msra.mxu0 0.0
    %776 = vmatprep.subr.mxu0 0.0
    %777 = vmatpush1.xpose.msra.mxu0 0.0
    %778 = vmatprep.subr.mxu0 0.0
    %779 = vmatpush1.xpose.msra.mxu0 0.0
    %780 = vmatprep.subr.mxu0 0.0
    %781 = vmatpush1.xpose.msra.mxu0 0.0
    %782 = vmatprep.subr.mxu0 0.0
    %783 = vmatpush1.xpose.msra.mxu0 0.0
    %784 = vmatprep.subr.mxu0 0.0
    %785 = vmatpush1.xpose.msra.mxu0 0.0
    %786 = vmatprep.subr.mxu0 0.0
    %787 = vmatpush1.xpose.msra.mxu0 0.0
    %788 = vmatprep.mubr.f32.mxu0 0.0
    %789 = vmatmul.mubr.f32.gmra.mrb[0].mxu0 %v720
    %v790 = vpop.f32.mrb[0].mxu0
    %v791 = vadd.f32 0.0, %v790
    %v792 = vpop.f32.mrb[0].mxu0
    %793 = vdwg.mxu0
    %v794 = vmul.f32 %v713, 0.35355338
    %v795 = vmul.f32 %v791, 0.35355338
    %v796 = vsel %vm310, %v794, -inf
    %797 = vmax.xlane.f32.xlu0 %v796
    %v798 = vpop.xlane.xlu0 %797
    %v799 = vsel %vm310, %v795, -inf
    %800 = vmax.xlane.f32.xlu0 %v799
    %v801 = vpop.xlane.xlu0 %800
    %v802 = vsub.f32 %v794, %v798
    %v803 = vsub.f32 %v795, %v801
    %v804 = vmul.f32 %v802, 1.442695
    %v805 = vpow.pop %v804
    %v806 = vmul.f32 %v803, 1.442695
    %v807 = vpow.pop %v806
    %v808 = vsel %vm310, %v805, 0.0
    %809 = vadd.xlane.f32.xlu0 %v808
    %v810 = vpop.xlane.xlu0 %809
    %v811 = vsel %vm310, %v807, 0.0
    %812 = vadd.xlane.f32.xlu0 %v811
    %v813 = vpop.xlane.xlu0 %812
    %v814 = vrcp.pop %v810
    %v815 = vmul.f32 %v805, %v814
    %v816 = vrcp.pop %v813
    %v817 = vmul.f32 %v807, %v816
    %818 = vrot.lane.b32.xlu0 %v299, 56
    %v819 = vpop.permute.xlu0 %818
    %v822 = vsel %vm310, %v815, 0
    %824 = vmatprep.subr.mxu0 0.0
    %825 = vmatpush1.msra.mxu0 %v819
    %826 = vmatprep.subr.mxu0 0.0
    %827 = vmatpush1.msra.mxu0 0.0
    %828 = vmatprep.subr.mxu0 0.0
    %829 = vmatpush1.msra.mxu0 0.0
    %830 = vmatprep.subr.mxu0 0.0
    %831 = vmatpush1.msra.mxu0 0.0
    %832 = vmatprep.subr.mxu0 0.0
    %833 = vmatpush1.msra.mxu0 0.0
    %834 = vmatprep.subr.mxu0 0.0
    %835 = vmatpush1.msra.mxu0 0.0
    %836 = vmatprep.subr.mxu0 0.0
    %837 = vmatpush1.msra.mxu0 0.0
    %838 = vmatprep.subr.mxu0 0.0
    %839 = vmatpush1.msra.mxu0 0.0
    %840 = vmatprep.subr.mxu0 0.0
    %841 = vmatpush1.msra.mxu0 0.0
    %842 = vmatprep.subr.mxu0 0.0
    %843 = vmatpush1.msra.mxu0 0.0
    %844 = vmatprep.subr.mxu0 0.0
    %845 = vmatpush1.msra.mxu0 0.0
    %846 = vmatprep.subr.mxu0 0.0
    %847 = vmatpush1.msra.mxu0 0.0
    %848 = vmatprep.subr.mxu0 0.0
    %849 = vmatpush1.msra.mxu0 0.0
    %850 = vmatprep.subr.mxu0 0.0
    %851 = vmatpush1.msra.mxu0 0.0
    %852 = vmatprep.subr.mxu0 0.0
    %853 = vmatpush1.msra.mxu0 0.0
    %854 = vmatprep.subr.mxu0 0.0
    %855 = vmatpush1.msra.mxu0 0.0
    %856 = vmatprep.subr.mxu0 0.0
    %857 = vmatpush1.msra.mxu0 0.0
    %858 = vmatprep.subr.mxu0 0.0
    %859 = vmatpush1.msra.mxu0 0.0
    %860 = vmatprep.subr.mxu0 0.0
    %861 = vmatpush1.msra.mxu0 0.0
    %862 = vmatprep.subr.mxu0 0.0
    %863 = vmatpush1.msra.mxu0 0.0
    %864 = vmatprep.subr.mxu0 0.0
    %865 = vmatpush1.msra.mxu0 0.0
    %866 = vmatprep.subr.mxu0 0.0
    %867 = vmatpush1.msra.mxu0 0.0
    %868 = vmatprep.subr.mxu0 0.0
    %869 = vmatpush1.msra.mxu0 0.0
    %870 = vmatprep.subr.mxu0 0.0
    %871 = vmatpush1.msra.mxu0 0.0
    %872 = vmatprep.subr.mxu0 0.0
    %873 = vmatpush1.msra.mxu0 0.0
    %874 = vmatprep.subr.mxu0 0.0
    %875 = vmatpush1.msra.mxu0 0.0
    %876 = vmatprep.subr.mxu0 0.0
    %877 = vmatpush1.msra.mxu0 0.0
    %878 = vmatprep.subr.mxu0 0.0
    %879 = vmatpush1.msra.mxu0 0.0
    %880 = vmatprep.subr.mxu0 0.0
    %881 = vmatpush1.msra.mxu0 0.0
    %882 = vmatprep.subr.mxu0 0.0
    %883 = vmatpush1.msra.mxu0 0.0
    %884 = vmatprep.subr.mxu0 0.0
    %885 = vmatpush1.msra.mxu0 0.0
    %886 = vmatprep.subr.mxu0 0.0
    %887 = vmatpush1.msra.mxu0 0.0
    %888 = vmatprep.mubr.f32.mxu0 0.0
    %889 = vmatmul.mubr.f32.gmra.mrb[0].mxu0 %v822
    %v890 = vpop.f32.mrb[0].mxu0
    %v891 = vadd.f32 0.0, %v890
    %v892 = vpop.f32.mrb[0].mxu0
    %893 = vdwg.mxu0
    %894 = vrot.lane.b32.xlu0 %v304, 56
    %v895 = vpop.permute.xlu0 %894
    %v898 = vsel %vm310, %v817, 0
    %900 = vmatprep.subr.mxu0 0.0
    %901 = vmatpush1.msra.mxu0 %v895
    %902 = vmatprep.subr.mxu0 0.0
    %903 = vmatpush1.msra.mxu0 0.0
    %904 = vmatprep.subr.mxu0 0.0
    %905 = vmatpush1.msra.mxu0 0.0
    %906 = vmatprep.subr.mxu0 0.0
    %907 = vmatpush1.msra.mxu0 0.0
    %908 = vmatprep.subr.mxu0 0.0
    %909 = vmatpush1.msra.mxu0 0.0
    %910 = vmatprep.subr.mxu0 0.0
    %911 = vmatpush1.msra.mxu0 0.0
    %912 = vmatprep.subr.mxu0 0.0
    %913 = vmatpush1.msra.mxu0 0.0
    %914 = vmatprep.subr.mxu0 0.0
    %915 = vmatpush1.msra.mxu0 0.0
    %916 = vmatprep.subr.mxu0 0.0
    %917 = vmatpush1.msra.mxu0 0.0
    %918 = vmatprep.subr.mxu0 0.0
    %919 = vmatpush1.msra.mxu0 0.0
    %920 = vmatprep.subr.mxu0 0.0
    %921 = vmatpush1.msra.mxu0 0.0
    %922 = vmatprep.subr.mxu0 0.0
    %923 = vmatpush1.msra.mxu0 0.0
    %924 = vmatprep.subr.mxu0 0.0
    %925 = vmatpush1.msra.mxu0 0.0
    %926 = vmatprep.subr.mxu0 0.0
    %927 = vmatpush1.msra.mxu0 0.0
    %928 = vmatprep.subr.mxu0 0.0
    %929 = vmatpush1.msra.mxu0 0.0
    %930 = vmatprep.subr.mxu0 0.0
    %931 = vmatpush1.msra.mxu0 0.0
    %932 = vmatprep.subr.mxu0 0.0
    %933 = vmatpush1.msra.mxu0 0.0
    %934 = vmatprep.subr.mxu0 0.0
    %935 = vmatpush1.msra.mxu0 0.0
    %936 = vmatprep.subr.mxu0 0.0
    %937 = vmatpush1.msra.mxu0 0.0
    %938 = vmatprep.subr.mxu0 0.0
    %939 = vmatpush1.msra.mxu0 0.0
    %940 = vmatprep.subr.mxu0 0.0
    %941 = vmatpush1.msra.mxu0 0.0
    %942 = vmatprep.subr.mxu0 0.0
    %943 = vmatpush1.msra.mxu0 0.0
    %944 = vmatprep.subr.mxu0 0.0
    %945 = vmatpush1.msra.mxu0 0.0
    %946 = vmatprep.subr.mxu0 0.0
    %947 = vmatpush1.msra.mxu0 0.0
    %948 = vmatprep.subr.mxu0 0.0
    %949 = vmatpush1.msra.mxu0 0.0
    %950 = vmatprep.subr.mxu0 0.0
    %951 = vmatpush1.msra.mxu0 0.0
    %952 = vmatprep.subr.mxu0 0.0
    %953 = vmatpush1.msra.mxu0 0.0
    %954 = vmatprep.subr.mxu0 0.0
    %955 = vmatpush1.msra.mxu0 0.0
    %956 = vmatprep.subr.mxu0 0.0
    %957 = vmatpush1.msra.mxu0 0.0
    %958 = vmatprep.subr.mxu0 0.0
    %959 = vmatpush1.msra.mxu0 0.0
    %960 = vmatprep.subr.mxu0 0.0
    %961 = vmatpush1.msra.mxu0 0.0
    %962 = vmatprep.subr.mxu0 0.0
    %963 = vmatpush1.msra.mxu0 0.0
    %964 = vmatprep.mubr.f32.mxu0 0.0
    %965 = vmatmul.mubr.f32.gmra.mrb[0].mxu0 %v898
    %v966 = vpop.f32.mrb[0].mxu0
    %v967 = vadd.f32 0.0, %v966
    %v968 = vpop.f32.mrb[0].mxu0
    %969 = vdwg.mxu0
    %970 = vrot.lane.b32.xlu0 %v299, 112
    %v971 = vpop.permute.xlu0 %970
    %972 = vrot.lane.b32.xlu0 %v299, 80
    %v973 = vpop.permute.xlu0 %972
    %v974 = vsel %vm310, %v971, 0
    %v976 = vsel %vm310, %v973, 0
    %978 = vmatprep.subr.mxu0 0.0
    %979 = vmatpush1.xpose.msra.mxu0 %v976
    %980 = vmatprep.subr.mxu0 0.0
    %981 = vmatpush1.xpose.msra.mxu0 0.0
    %982 = vmatprep.subr.mxu0 0.0
    %983 = vmatpush1.xpose.msra.mxu0 0.0
    %984 = vmatprep.subr.mxu0 0.0
    %985 = vmatpush1.xpose.msra.mxu0 0.0
    %986 = vmatprep.subr.mxu0 0.0
    %987 = vmatpush1.xpose.msra.mxu0 0.0
    %988 = vmatprep.subr.mxu0 0.0
    %989 = vmatpush1.xpose.msra.mxu0 0.0
    %990 = vmatprep.subr.mxu0 0.0
    %991 = vmatpush1.xpose.msra.mxu0 0.0
    %992 = vmatprep.subr.mxu0 0.0
    %993 = vmatpush1.xpose.msra.mxu0 0.0
    %994 = vmatprep.subr.mxu0 0.0
    %995 = vmatpush1.xpose.msra.mxu0 0.0
    %996 = vmatprep.subr.mxu0 0.0
    %997 = vmatpush1.xpose.msra.mxu0 0.0
    %998 = vmatprep.subr.mxu0 0.0
    %999 = vmatpush1.xpose.msra.mxu0 0.0
    %1000 = vmatprep.subr.mxu0 0.0
    %1001 = vmatpush1.xpose.msra.mxu0 0.0
    %1002 = vmatprep.subr.mxu0 0.0
    %1003 = vmatpush1.xpose.msra.mxu0 0.0
    %1004 = vmatprep.subr.mxu0 0.0
    %1005 = vmatpush1.xpose.msra.mxu0 0.0
    %1006 = vmatprep.subr.mxu0 0.0
    %1007 = vmatpush1.xpose.msra.mxu0 0.0
    %1008 = vmatprep.subr.mxu0 0.0
    %1009 = vmatpush1.xpose.msra.mxu0 0.0
    %1010 = vmatprep.subr.mxu0 0.0
    %1011 = vmatpush1.xpose.msra.mxu0 0.0
    %1012 = vmatprep.subr.mxu0 0.0
    %1013 = vmatpush1.xpose.msra.mxu0 0.0
    %1014 = vmatprep.subr.mxu0 0.0
    %1015 = vmatpush1.xpose.msra.mxu0 0.0
    %1016 = vmatprep.subr.mxu0 0.0
    %1017 = vmatpush1.xpose.msra.mxu0 0.0
    %1018 = vmatprep.subr.mxu0 0.0
    %1019 = vmatpush1.xpose.msra.mxu0 0.0
    %1020 = vmatprep.subr.mxu0 0.0
    %1021 = vmatpush1.xpose.msra.mxu0 0.0
    %1022 = vmatprep.subr.mxu0 0.0
    %1023 = vmatpush1.xpose.msra.mxu0 0.0
    %1024 = vmatprep.subr.mxu0 0.0
    %1025 = vmatpush1.xpose.msra.mxu0 0.0
    %1026 = vmatprep.subr.mxu0 0.0
    %1027 = vmatpush1.xpose.msra.mxu0 0.0
    %1028 = vmatprep.subr.mxu0 0.0
    %1029 = vmatpush1.xpose.msra.mxu0 0.0
    %1030 = vmatprep.subr.mxu0 0.0
    %1031 = vmatpush1.xpose.msra.mxu0 0.0
    %1032 = vmatprep.subr.mxu0 0.0
    %1033 = vmatpush1.xpose.msra.mxu0 0.0
    %1034 = vmatprep.subr.mxu0 0.0
    %1035 = vmatpush1.xpose.msra.mxu0 0.0
    %1036 = vmatprep.subr.mxu0 0.0
    %1037 = vmatpush1.xpose.msra.mxu0 0.0
    %1038 = vmatprep.subr.mxu0 0.0
    %1039 = vmatpush1.xpose.msra.mxu0 0.0
    %1040 = vmatprep.subr.mxu0 0.0
    %1041 = vmatpush1.xpose.msra.mxu0 0.0
    %1042 = vmatprep.mubr.f32.mxu0 0.0
    %1043 = vmatmul.mubr.f32.gmra.mrb[0].mxu0 %v974
    %v1044 = vpop.f32.mrb[0].mxu0
    %v1045 = vadd.f32 0.0, %v1044
    %v1046 = vpop.f32.mrb[0].mxu0
    %1047 = vdwg.mxu0
    %1048 = vrot.lane.b32.xlu0 %v304, 112
    %v1049 = vpop.permute.xlu0 %1048
    %1050 = vrot.lane.b32.xlu0 %v304, 80
    %v1051 = vpop.permute.xlu0 %1050
    %v1052 = vsel %vm310, %v1049, 0
    %v1054 = vsel %vm310, %v1051, 0
    %1056 = vmatprep.subr.mxu0 0.0
    %1057 = vmatpush1.xpose.msra.mxu0 %v1054
    %1058 = vmatprep.subr.mxu0 0.0
    %1059 = vmatpush1.xpose.msra.mxu0 0.0
    %1060 = vmatprep.subr.mxu0 0.0
    %1061 = vmatpush1.xpose.msra.mxu0 0.0
    %1062 = vmatprep.subr.mxu0 0.0
    %1063 = vmatpush1.xpose.msra.mxu0 0.0
    %1064 = vmatprep.subr.mxu0 0.0
    %1065 = vmatpush1.xpose.msra.mxu0 0.0
    %1066 = vmatprep.subr.mxu0 0.0
    %1067 = vmatpush1.xpose.msra.mxu0 0.0
    %1068 = vmatprep.subr.mxu0 0.0
    %1069 = vmatpush1.xpose.msra.mxu0 0.0
    %1070 = vmatprep.subr.mxu0 0.0
    %1071 = vmatpush1.xpose.msra.mxu0 0.0
    %1072 = vmatprep.subr.mxu0 0.0
    %1073 = vmatpush1.xpose.msra.mxu0 0.0
    %1074 = vmatprep.subr.mxu0 0.0
    %1075 = vmatpush1.xpose.msra.mxu0 0.0
    %1076 = vmatprep.subr.mxu0 0.0
    %1077 = vmatpush1.xpose.msra.mxu0 0.0
    %1078 = vmatprep.subr.mxu0 0.0
    %1079 = vmatpush1.xpose.msra.mxu0 0.0
    %1080 = vmatprep.subr.mxu0 0.0
    %1081 = vmatpush1.xpose.msra.mxu0 0.0
    %1082 = vmatprep.subr.mxu0 0.0
    %1083 = vmatpush1.xpose.msra.mxu0 0.0
    %1084 = vmatprep.subr.mxu0 0.0
    %1085 = vmatpush1.xpose.msra.mxu0 0.0
    %1086 = vmatprep.subr.mxu0 0.0
    %1087 = vmatpush1.xpose.msra.mxu0 0.0
    %1088 = vmatprep.subr.mxu0 0.0
    %1089 = vmatpush1.xpose.msra.mxu0 0.0
    %1090 = vmatprep.subr.mxu0 0.0
    %1091 = vmatpush1.xpose.msra.mxu0 0.0
    %1092 = vmatprep.subr.mxu0 0.0
    %1093 = vmatpush1.xpose.msra.mxu0 0.0
    %1094 = vmatprep.subr.mxu0 0.0
    %1095 = vmatpush1.xpose.msra.mxu0 0.0
    %1096 = vmatprep.subr.mxu0 0.0
    %1097 = vmatpush1.xpose.msra.mxu0 0.0
    %1098 = vmatprep.subr.mxu0 0.0
    %1099 = vmatpush1.xpose.msra.mxu0 0.0
    %1100 = vmatprep.subr.mxu0 0.0
    %1101 = vmatpush1.xpose.msra.mxu0 0.0
    %1102 = vmatprep.subr.mxu0 0.0
    %1103 = vmatpush1.xpose.msra.mxu0 0.0
    %1104 = vmatprep.subr.mxu0 0.0
    %1105 = vmatpush1.xpose.msra.mxu0 0.0
    %1106 = vmatprep.subr.mxu0 0.0
    %1107 = vmatpush1.xpose.msra.mxu0 0.0
    %1108 = vmatprep.subr.mxu0 0.0
    %1109 = vmatpush1.xpose.msra.mxu0 0.0
    %1110 = vmatprep.subr.mxu0 0.0
    %1111 = vmatpush1.xpose.msra.mxu0 0.0
    %1112 = vmatprep.subr.mxu0 0.0
    %1113 = vmatpush1.xpose.msra.mxu0 0.0
    %1114 = vmatprep.subr.mxu0 0.0
    %1115 = vmatpush1.xpose.msra.mxu0 0.0
    %1116 = vmatprep.subr.mxu0 0.0
    %1117 = vmatpush1.xpose.msra.mxu0 0.0
    %1118 = vmatprep.subr.mxu0 0.0
    %1119 = vmatpush1.xpose.msra.mxu0 0.0
    %1120 = vmatprep.mubr.f32.mxu0 0.0
    %1121 = vmatmul.mubr.f32.gmra.mrb[0].mxu0 %v1052
    %v1122 = vpop.f32.mrb[0].mxu0
    %v1123 = vadd.f32 0.0, %v1122
    %v1124 = vpop.f32.mrb[0].mxu0
    %1125 = vdwg.mxu0
    %v1126 = vmul.f32 %v1045, 0.35355338
    %v1127 = vmul.f32 %v1123, 0.35355338
    %v1128 = vsel %vm310, %v1126, -inf
    %1129 = vmax.xlane.f32.xlu0 %v1128
    %v1130 = vpop.xlane.xlu0 %1129
    %v1131 = vsel %vm310, %v1127, -inf
    %1132 = vmax.xlane.f32.xlu0 %v1131
    %v1133 = vpop.xlane.xlu0 %1132
    %v1134 = vsub.f32 %v1126, %v1130
    %v1135 = vsub.f32 %v1127, %v1133
    %v1136 = vmul.f32 %v1134, 1.442695
    %v1137 = vpow.pop %v1136
    %v1138 = vmul.f32 %v1135, 1.442695
    %v1139 = vpow.pop %v1138
    %v1140 = vsel %vm310, %v1137, 0.0
    %1141 = vadd.xlane.f32.xlu0 %v1140
    %v1142 = vpop.xlane.xlu0 %1141
    %v1143 = vsel %vm310, %v1139, 0.0
    %1144 = vadd.xlane.f32.xlu0 %v1143
    %v1145 = vpop.xlane.xlu0 %1144
    %v1146 = vrcp.pop %v1142
    %v1147 = vmul.f32 %v1137, %v1146
    %v1148 = vrcp.pop %v1145
    %v1149 = vmul.f32 %v1139, %v1148
    %1150 = vrot.lane.b32.xlu0 %v299, 48
    %v1151 = vpop.permute.xlu0 %1150
    %v1154 = vsel %vm310, %v1147, 0
    %1156 = vmatprep.subr.mxu0 0.0
    %1157 = vmatpush1.msra.mxu0 %v1151
    %1158 = vmatprep.subr.mxu0 0.0
    %1159 = vmatpush1.msra.mxu0 0.0
    %1160 = vmatprep.subr.mxu0 0.0
    %1161 = vmatpush1.msra.mxu0 0.0
    %1162 = vmatprep.subr.mxu0 0.0
    %1163 = vmatpush1.msra.mxu0 0.0
    %1164 = vmatprep.subr.mxu0 0.0
    %1165 = vmatpush1.msra.mxu0 0.0
    %1166 = vmatprep.subr.mxu0 0.0
    %1167 = vmatpush1.msra.mxu0 0.0
    %1168 = vmatprep.subr.mxu0 0.0
    %1169 = vmatpush1.msra.mxu0 0.0
    %1170 = vmatprep.subr.mxu0 0.0
    %1171 = vmatpush1.msra.mxu0 0.0
    %1172 = vmatprep.subr.mxu0 0.0
    %1173 = vmatpush1.msra.mxu0 0.0
    %1174 = vmatprep.subr.mxu0 0.0
    %1175 = vmatpush1.msra.mxu0 0.0
    %1176 = vmatprep.subr.mxu0 0.0
    %1177 = vmatpush1.msra.mxu0 0.0
    %1178 = vmatprep.subr.mxu0 0.0
    %1179 = vmatpush1.msra.mxu0 0.0
    %1180 = vmatprep.subr.mxu0 0.0
    %1181 = vmatpush1.msra.mxu0 0.0
    %1182 = vmatprep.subr.mxu0 0.0
    %1183 = vmatpush1.msra.mxu0 0.0
    %1184 = vmatprep.subr.mxu0 0.0
    %1185 = vmatpush1.msra.mxu0 0.0
    %1186 = vmatprep.subr.mxu0 0.0
    %1187 = vmatpush1.msra.mxu0 0.0
    %1188 = vmatprep.subr.mxu0 0.0
    %1189 = vmatpush1.msra.mxu0 0.0
    %1190 = vmatprep.subr.mxu0 0.0
    %1191 = vmatpush1.msra.mxu0 0.0
    %1192 = vmatprep.subr.mxu0 0.0
    %1193 = vmatpush1.msra.mxu0 0.0
    %1194 = vmatprep.subr.mxu0 0.0
    %1195 = vmatpush1.msra.mxu0 0.0
    %1196 = vmatprep.subr.mxu0 0.0
    %1197 = vmatpush1.msra.mxu0 0.0
    %1198 = vmatprep.subr.mxu0 0.0
    %1199 = vmatpush1.msra.mxu0 0.0
    %1200 = vmatprep.subr.mxu0 0.0
    %1201 = vmatpush1.msra.mxu0 0.0
    %1202 = vmatprep.subr.mxu0 0.0
    %1203 = vmatpush1.msra.mxu0 0.0
    %1204 = vmatprep.subr.mxu0 0.0
    %1205 = vmatpush1.msra.mxu0 0.0
    %1206 = vmatprep.subr.mxu0 0.0
    %1207 = vmatpush1.msra.mxu0 0.0
    %1208 = vmatprep.subr.mxu0 0.0
    %1209 = vmatpush1.msra.mxu0 0.0
    %1210 = vmatprep.subr.mxu0 0.0
    %1211 = vmatpush1.msra.mxu0 0.0
    %1212 = vmatprep.subr.mxu0 0.0
    %1213 = vmatpush1.msra.mxu0 0.0
    %1214 = vmatprep.subr.mxu0 0.0
    %1215 = vmatpush1.msra.mxu0 0.0
    %1216 = vmatprep.subr.mxu0 0.0
    %1217 = vmatpush1.msra.mxu0 0.0
    %1218 = vmatprep.subr.mxu0 0.0
    %1219 = vmatpush1.msra.mxu0 0.0
    %1220 = vmatprep.mubr.f32.mxu0 0.0
    %1221 = vmatmul.mubr.f32.gmra.mrb[0].mxu0 %v1154
    %v1222 = vpop.f32.mrb[0].mxu0
    %v1223 = vadd.f32 0.0, %v1222
    %v1224 = vpop.f32.mrb[0].mxu0
    %1225 = vdwg.mxu0
    %1226 = vrot.lane.b32.xlu0 %v304, 48
    %v1227 = vpop.permute.xlu0 %1226
    %v1230 = vsel %vm310, %v1149, 0
    %1232 = vmatprep.subr.mxu0 0.0
    %1233 = vmatpush1.msra.mxu0 %v1227
    %1234 = vmatprep.subr.mxu0 0.0
    %1235 = vmatpush1.msra.mxu0 0.0
    %1236 = vmatprep.subr.mxu0 0.0
    %1237 = vmatpush1.msra.mxu0 0.0
    %1238 = vmatprep.subr.mxu0 0.0
    %1239 = vmatpush1.msra.mxu0 0.0
    %1240 = vmatprep.subr.mxu0 0.0
    %1241 = vmatpush1.msra.mxu0 0.0
    %1242 = vmatprep.subr.mxu0 0.0
    %1243 = vmatpush1.msra.mxu0 0.0
    %1244 = vmatprep.subr.mxu0 0.0
    %1245 = vmatpush1.msra.mxu0 0.0
    %1246 = vmatprep.subr.mxu0 0.0
    %1247 = vmatpush1.msra.mxu0 0.0
    %1248 = vmatprep.subr.mxu0 0.0
    %1249 = vmatpush1.msra.mxu0 0.0
    %1250 = vmatprep.subr.mxu0 0.0
    %1251 = vmatpush1.msra.mxu0 0.0
    %1252 = vmatprep.subr.mxu0 0.0
    %1253 = vmatpush1.msra.mxu0 0.0
    %1254 = vmatprep.subr.mxu0 0.0
    %1255 = vmatpush1.msra.mxu0 0.0
    %1256 = vmatprep.subr.mxu0 0.0
    %1257 = vmatpush1.msra.mxu0 0.0
    %1258 = vmatprep.subr.mxu0 0.0
    %1259 = vmatpush1.msra.mxu0 0.0
    %1260 = vmatprep.subr.mxu0 0.0
    %1261 = vmatpush1.msra.mxu0 0.0
    %1262 = vmatprep.subr.mxu0 0.0
    %1263 = vmatpush1.msra.mxu0 0.0
    %1264 = vmatprep.subr.mxu0 0.0
    %1265 = vmatpush1.msra.mxu0 0.0
    %1266 = vmatprep.subr.mxu0 0.0
    %1267 = vmatpush1.msra.mxu0 0.0
    %1268 = vmatprep.subr.mxu0 0.0
    %1269 = vmatpush1.msra.mxu0 0.0
    %1270 = vmatprep.subr.mxu0 0.0
    %1271 = vmatpush1.msra.mxu0 0.0
    %1272 = vmatprep.subr.mxu0 0.0
    %1273 = vmatpush1.msra.mxu0 0.0
    %1274 = vmatprep.subr.mxu0 0.0
    %1275 = vmatpush1.msra.mxu0 0.0
    %1276 = vmatprep.subr.mxu0 0.0
    %1277 = vmatpush1.msra.mxu0 0.0
    %1278 = vmatprep.subr.mxu0 0.0
    %1279 = vmatpush1.msra.mxu0 0.0
    %1280 = vmatprep.subr.mxu0 0.0
    %1281 = vmatpush1.msra.mxu0 0.0
    %1282 = vmatprep.subr.mxu0 0.0
    %1283 = vmatpush1.msra.mxu0 0.0
    %1284 = vmatprep.subr.mxu0 0.0
    %1285 = vmatpush1.msra.mxu0 0.0
    %1286 = vmatprep.subr.mxu0 0.0
    %1287 = vmatpush1.msra.mxu0 0.0
    %1288 = vmatprep.subr.mxu0 0.0
    %1289 = vmatpush1.msra.mxu0 0.0
    %1290 = vmatprep.subr.mxu0 0.0
    %1291 = vmatpush1.msra.mxu0 0.0
    %1292 = vmatprep.subr.mxu0 0.0
    %1293 = vmatpush1.msra.mxu0 0.0
    %1294 = vmatprep.subr.mxu0 0.0
    %1295 = vmatpush1.msra.mxu0 0.0
    %1296 = vmatprep.mubr.f32.mxu0 0.0
    %1297 = vmatmul.mubr.f32.gmra.mrb[0].mxu0 %v1230
    %v1298 = vpop.f32.mrb[0].mxu0
    %v1299 = vadd.f32 0.0, %v1298
    %v1300 = vpop.f32.mrb[0].mxu0
    %1301 = vdwg.mxu0
    %1302 = vrot.lane.b32.xlu0 %v299, 104
    %v1303 = vpop.permute.xlu0 %1302
    %1304 = vrot.lane.b32.xlu0 %v299, 72
    %v1305 = vpop.permute.xlu0 %1304
    %v1306 = vsel %vm310, %v1303, 0
    %v1308 = vsel %vm310, %v1305, 0
    %1310 = vmatprep.subr.mxu0 0.0
    %1311 = vmatpush1.xpose.msra.mxu0 %v1308
    %1312 = vmatprep.subr.mxu0 0.0
    %1313 = vmatpush1.xpose.msra.mxu0 0.0
    %1314 = vmatprep.subr.mxu0 0.0
    %1315 = vmatpush1.xpose.msra.mxu0 0.0
    %1316 = vmatprep.subr.mxu0 0.0
    %1317 = vmatpush1.xpose.msra.mxu0 0.0
    %1318 = vmatprep.subr.mxu0 0.0
    %1319 = vmatpush1.xpose.msra.mxu0 0.0
    %1320 = vmatprep.subr.mxu0 0.0
    %1321 = vmatpush1.xpose.msra.mxu0 0.0
    %1322 = vmatprep.subr.mxu0 0.0
    %1323 = vmatpush1.xpose.msra.mxu0 0.0
    %1324 = vmatprep.subr.mxu0 0.0
    %1325 = vmatpush1.xpose.msra.mxu0 0.0
    %1326 = vmatprep.subr.mxu0 0.0
    %1327 = vmatpush1.xpose.msra.mxu0 0.0
    %1328 = vmatprep.subr.mxu0 0.0
    %1329 = vmatpush1.xpose.msra.mxu0 0.0
    %1330 = vmatprep.subr.mxu0 0.0
    %1331 = vmatpush1.xpose.msra.mxu0 0.0
    %1332 = vmatprep.subr.mxu0 0.0
    %1333 = vmatpush1.xpose.msra.mxu0 0.0
    %1334 = vmatprep.subr.mxu0 0.0
    %1335 = vmatpush1.xpose.msra.mxu0 0.0
    %1336 = vmatprep.subr.mxu0 0.0
    %1337 = vmatpush1.xpose.msra.mxu0 0.0
    %1338 = vmatprep.subr.mxu0 0.0
    %1339 = vmatpush1.xpose.msra.mxu0 0.0
    %1340 = vmatprep.subr.mxu0 0.0
    %1341 = vmatpush1.xpose.msra.mxu0 0.0
    %1342 = vmatprep.subr.mxu0 0.0
    %1343 = vmatpush1.xpose.msra.mxu0 0.0
    %1344 = vmatprep.subr.mxu0 0.0
    %1345 = vmatpush1.xpose.msra.mxu0 0.0
    %1346 = vmatprep.subr.mxu0 0.0
    %1347 = vmatpush1.xpose.msra.mxu0 0.0
    %1348 = vmatprep.subr.mxu0 0.0
    %1349 = vmatpush1.xpose.msra.mxu0 0.0
    %1350 = vmatprep.subr.mxu0 0.0
    %1351 = vmatpush1.xpose.msra.mxu0 0.0
    %1352 = vmatprep.subr.mxu0 0.0
    %1353 = vmatpush1.xpose.msra.mxu0 0.0
    %1354 = vmatprep.subr.mxu0 0.0
    %1355 = vmatpush1.xpose.msra.mxu0 0.0
    %1356 = vmatprep.subr.mxu0 0.0
    %1357 = vmatpush1.xpose.msra.mxu0 0.0
    %1358 = vmatprep.subr.mxu0 0.0
    %1359 = vmatpush1.xpose.msra.mxu0 0.0
    %1360 = vmatprep.subr.mxu0 0.0
    %1361 = vmatpush1.xpose.msra.mxu0 0.0
    %1362 = vmatprep.subr.mxu0 0.0
    %1363 = vmatpush1.xpose.msra.mxu0 0.0
    %1364 = vmatprep.subr.mxu0 0.0
    %1365 = vmatpush1.xpose.msra.mxu0 0.0
    %1366 = vmatprep.subr.mxu0 0.0
    %1367 = vmatpush1.xpose.msra.mxu0 0.0
    %1368 = vmatprep.subr.mxu0 0.0
    %1369 = vmatpush1.xpose.msra.mxu0 0.0
    %1370 = vmatprep.subr.mxu0 0.0
    %1371 = vmatpush1.xpose.msra.mxu0 0.0
    %1372 = vmatprep.subr.mxu0 0.0
    %1373 = vmatpush1.xpose.msra.mxu0 0.0
    %1374 = vmatprep.mubr.f32.mxu0 0.0
    %1375 = vmatmul.mubr.f32.gmra.mrb[0].mxu0 %v1306
    %v1376 = vpop.f32.mrb[0].mxu0
    %v1377 = vadd.f32 0.0, %v1376
    %v1378 = vpop.f32.mrb[0].mxu0
    %1379 = vdwg.mxu0
    %1380 = vrot.lane.b32.xlu0 %v304, 104
    %v1381 = vpop.permute.xlu0 %1380
    %1382 = vrot.lane.b32.xlu0 %v304, 72
    %v1383 = vpop.permute.xlu0 %1382
    %v1384 = vsel %vm310, %v1381, 0
    %v1386 = vsel %vm310, %v1383, 0
    %1388 = vmatprep.subr.mxu0 0.0
    %1389 = vmatpush1.xpose.msra.mxu0 %v1386
    %1390 = vmatprep.subr.mxu0 0.0
    %1391 = vmatpush1.xpose.msra.mxu0 0.0
    %1392 = vmatprep.subr.mxu0 0.0
    %1393 = vmatpush1.xpose.msra.mxu0 0.0
    %1394 = vmatprep.subr.mxu0 0.0
    %1395 = vmatpush1.xpose.msra.mxu0 0.0
    %1396 = vmatprep.subr.mxu0 0.0
    %1397 = vmatpush1.xpose.msra.mxu0 0.0
    %1398 = vmatprep.subr.mxu0 0.0
    %1399 = vmatpush1.xpose.msra.mxu0 0.0
    %1400 = vmatprep.subr.mxu0 0.0
    %1401 = vmatpush1.xpose.msra.mxu0 0.0
    %1402 = vmatprep.subr.mxu0 0.0
    %1403 = vmatpush1.xpose.msra.mxu0 0.0
    %1404 = vmatprep.subr.mxu0 0.0
    %1405 = vmatpush1.xpose.msra.mxu0 0.0
    %1406 = vmatprep.subr.mxu0 0.0
    %1407 = vmatpush1.xpose.msra.mxu0 0.0
    %1408 = vmatprep.subr.mxu0 0.0
    %1409 = vmatpush1.xpose.msra.mxu0 0.0
    %1410 = vmatprep.subr.mxu0 0.0
    %1411 = vmatpush1.xpose.msra.mxu0 0.0
    %1412 = vmatprep.subr.mxu0 0.0
    %1413 = vmatpush1.xpose.msra.mxu0 0.0
    %1414 = vmatprep.subr.mxu0 0.0
    %1415 = vmatpush1.xpose.msra.mxu0 0.0
    %1416 = vmatprep.subr.mxu0 0.0
    %1417 = vmatpush1.xpose.msra.mxu0 0.0
    %1418 = vmatprep.subr.mxu0 0.0
    %1419 = vmatpush1.xpose.msra.mxu0 0.0
    %1420 = vmatprep.subr.mxu0 0.0
    %1421 = vmatpush1.xpose.msra.mxu0 0.0
    %1422 = vmatprep.subr.mxu0 0.0
    %1423 = vmatpush1.xpose.msra.mxu0 0.0
    %1424 = vmatprep.subr.mxu0 0.0
    %1425 = vmatpush1.xpose.msra.mxu0 0.0
    %1426 = vmatprep.subr.mxu0 0.0
    %1427 = vmatpush1.xpose.msra.mxu0 0.0
    %1428 = vmatprep.subr.mxu0 0.0
    %1429 = vmatpush1.xpose.msra.mxu0 0.0
    %1430 = vmatprep.subr.mxu0 0.0
    %1431 = vmatpush1.xpose.msra.mxu0 0.0
    %1432 = vmatprep.subr.mxu0 0.0
    %1433 = vmatpush1.xpose.msra.mxu0 0.0
    %1434 = vmatprep.subr.mxu0 0.0
    %1435 = vmatpush1.xpose.msra.mxu0 0.0
    %1436 = vmatprep.subr.mxu0 0.0
    %1437 = vmatpush1.xpose.msra.mxu0 0.0
    %1438 = vmatprep.subr.mxu0 0.0
    %1439 = vmatpush1.xpose.msra.mxu0 0.0
    %1440 = vmatprep.subr.mxu0 0.0
    %1441 = vmatpush1.xpose.msra.mxu0 0.0
    %1442 = vmatprep.subr.mxu0 0.0
    %1443 = vmatpush1.xpose.msra.mxu0 0.0
    %1444 = vmatprep.subr.mxu0 0.0
    %1445 = vmatpush1.xpose.msra.mxu0 0.0
    %1446 = vmatprep.subr.mxu0 0.0
    %1447 = vmatpush1.xpose.msra.mxu0 0.0
    %1448 = vmatprep.subr.mxu0 0.0
    %1449 = vmatpush1.xpose.msra.mxu0 0.0
    %1450 = vmatprep.subr.mxu0 0.0
    %1451 = vmatpush1.xpose.msra.mxu0 0.0
    %1452 = vmatprep.mubr.f32.mxu0 0.0
    %1453 = vmatmul.mubr.f32.gmra.mrb[0].mxu0 %v1384
    %v1454 = vpop.f32.mrb[0].mxu0
    %v1455 = vadd.f32 0.0, %v1454
    %v1456 = vpop.f32.mrb[0].mxu0
    %1457 = vdwg.mxu0
    %v1458 = vmul.f32 %v1377, 0.35355338
    %v1459 = vmul.f32 %v1455, 0.35355338
    %v1460 = vsel %vm310, %v1458, -inf
    %1461 = vmax.xlane.f32.xlu0 %v1460
    %v1462 = vpop.xlane.xlu0 %1461
    %v1463 = vsel %vm310, %v1459, -inf
    %1464 = vmax.xlane.f32.xlu0 %v1463
    %v1465 = vpop.xlane.xlu0 %1464
    %v1466 = vsub.f32 %v1458, %v1462
    %v1467 = vsub.f32 %v1459, %v1465
    %v1468 = vmul.f32 %v1466, 1.442695
    %v1469 = vpow.pop %v1468
    %v1470 = vmul.f32 %v1467, 1.442695
    %v1471 = vpow.pop %v1470
    %v1472 = vsel %vm310, %v1469, 0.0
    %1473 = vadd.xlane.f32.xlu0 %v1472
    %v1474 = vpop.xlane.xlu0 %1473
    %v1475 = vsel %vm310, %v1471, 0.0
    %1476 = vadd.xlane.f32.xlu0 %v1475
    %v1477 = vpop.xlane.xlu0 %1476
    %v1478 = vrcp.pop %v1474
    %v1479 = vmul.f32 %v1469, %v1478
    %v1480 = vrcp.pop %v1477
    %v1481 = vmul.f32 %v1471, %v1480
    %1482 = vrot.lane.b32.xlu0 %v299, 40
    %v1483 = vpop.permute.xlu0 %1482
    %v1486 = vsel %vm310, %v1479, 0
    %1488 = vmatprep.subr.mxu0 0.0
    %1489 = vmatpush1.msra.mxu0 %v1483
    %1490 = vmatprep.subr.mxu0 0.0
    %1491 = vmatpush1.msra.mxu0 0.0
    %1492 = vmatprep.subr.mxu0 0.0
    %1493 = vmatpush1.msra.mxu0 0.0
    %1494 = vmatprep.subr.mxu0 0.0
    %1495 = vmatpush1.msra.mxu0 0.0
    %1496 = vmatprep.subr.mxu0 0.0
    %1497 = vmatpush1.msra.mxu0 0.0
    %1498 = vmatprep.subr.mxu0 0.0
    %1499 = vmatpush1.msra.mxu0 0.0
    %1500 = vmatprep.subr.mxu0 0.0
    %1501 = vmatpush1.msra.mxu0 0.0
    %1502 = vmatprep.subr.mxu0 0.0
    %1503 = vmatpush1.msra.mxu0 0.0
    %1504 = vmatprep.subr.mxu0 0.0
    %1505 = vmatpush1.msra.mxu0 0.0
    %1506 = vmatprep.subr.mxu0 0.0
    %1507 = vmatpush1.msra.mxu0 0.0
    %1508 = vmatprep.subr.mxu0 0.0
    %1509 = vmatpush1.msra.mxu0 0.0
    %1510 = vmatprep.subr.mxu0 0.0
    %1511 = vmatpush1.msra.mxu0 0.0
    %1512 = vmatprep.subr.mxu0 0.0
    %1513 = vmatpush1.msra.mxu0 0.0
    %1514 = vmatprep.subr.mxu0 0.0
    %1515 = vmatpush1.msra.mxu0 0.0
    %1516 = vmatprep.subr.mxu0 0.0
    %1517 = vmatpush1.msra.mxu0 0.0
    %1518 = vmatprep.subr.mxu0 0.0
    %1519 = vmatpush1.msra.mxu0 0.0
    %1520 = vmatprep.subr.mxu0 0.0
    %1521 = vmatpush1.msra.mxu0 0.0
    %1522 = vmatprep.subr.mxu0 0.0
    %1523 = vmatpush1.msra.mxu0 0.0
    %1524 = vmatprep.subr.mxu0 0.0
    %1525 = vmatpush1.msra.mxu0 0.0
    %1526 = vmatprep.subr.mxu0 0.0
    %1527 = vmatpush1.msra.mxu0 0.0
    %1528 = vmatprep.subr.mxu0 0.0
    %1529 = vmatpush1.msra.mxu0 0.0
    %1530 = vmatprep.subr.mxu0 0.0
    %1531 = vmatpush1.msra.mxu0 0.0
    %1532 = vmatprep.subr.mxu0 0.0
    %1533 = vmatpush1.msra.mxu0 0.0
    %1534 = vmatprep.subr.mxu0 0.0
    %1535 = vmatpush1.msra.mxu0 0.0
    %1536 = vmatprep.subr.mxu0 0.0
    %1537 = vmatpush1.msra.mxu0 0.0
    %1538 = vmatprep.subr.mxu0 0.0
    %1539 = vmatpush1.msra.mxu0 0.0
    %1540 = vmatprep.subr.mxu0 0.0
    %1541 = vmatpush1.msra.mxu0 0.0
    %1542 = vmatprep.subr.mxu0 0.0
    %1543 = vmatpush1.msra.mxu0 0.0
    %1544 = vmatprep.subr.mxu0 0.0
    %1545 = vmatpush1.msra.mxu0 0.0
    %1546 = vmatprep.subr.mxu0 0.0
    %1547 = vmatpush1.msra.mxu0 0.0
    %1548 = vmatprep.subr.mxu0 0.0
    %1549 = vmatpush1.msra.mxu0 0.0
    %1550 = vmatprep.subr.mxu0 0.0
    %1551 = vmatpush1.msra.mxu0 0.0
    %1552 = vmatprep.mubr.f32.mxu0 0.0
    %1553 = vmatmul.mubr.f32.gmra.mrb[0].mxu0 %v1486
    %v1554 = vpop.f32.mrb[0].mxu0
    %v1555 = vadd.f32 0.0, %v1554
    %v1556 = vpop.f32.mrb[0].mxu0
    %1557 = vdwg.mxu0
    %1558 = vrot.lane.b32.xlu0 %v304, 40
    %v1559 = vpop.permute.xlu0 %1558
    %v1562 = vsel %vm310, %v1481, 0
    %1564 = vmatprep.subr.mxu0 0.0
    %1565 = vmatpush1.msra.mxu0 %v1559
    %1566 = vmatprep.subr.mxu0 0.0
    %1567 = vmatpush1.msra.mxu0 0.0
    %1568 = vmatprep.subr.mxu0 0.0
    %1569 = vmatpush1.msra.mxu0 0.0
    %1570 = vmatprep.subr.mxu0 0.0
    %1571 = vmatpush1.msra.mxu0 0.0
    %1572 = vmatprep.subr.mxu0 0.0
    %1573 = vmatpush1.msra.mxu0 0.0
    %1574 = vmatprep.subr.mxu0 0.0
    %1575 = vmatpush1.msra.mxu0 0.0
    %1576 = vmatprep.subr.mxu0 0.0
    %1577 = vmatpush1.msra.mxu0 0.0
    %1578 = vmatprep.subr.mxu0 0.0
    %1579 = vmatpush1.msra.mxu0 0.0
    %1580 = vmatprep.subr.mxu0 0.0
    %1581 = vmatpush1.msra.mxu0 0.0
    %1582 = vmatprep.subr.mxu0 0.0
    %1583 = vmatpush1.msra.mxu0 0.0
    %1584 = vmatprep.subr.mxu0 0.0
    %1585 = vmatpush1.msra.mxu0 0.0
    %1586 = vmatprep.subr.mxu0 0.0
    %1587 = vmatpush1.msra.mxu0 0.0
    %1588 = vmatprep.subr.mxu0 0.0
    %1589 = vmatpush1.msra.mxu0 0.0
    %1590 = vmatprep.subr.mxu0 0.0
    %1591 = vmatpush1.msra.mxu0 0.0
    %1592 = vmatprep.subr.mxu0 0.0
    %1593 = vmatpush1.msra.mxu0 0.0
    %1594 = vmatprep.subr.mxu0 0.0
    %1595 = vmatpush1.msra.mxu0 0.0
    %1596 = vmatprep.subr.mxu0 0.0
    %1597 = vmatpush1.msra.mxu0 0.0
    %1598 = vmatprep.subr.mxu0 0.0
    %1599 = vmatpush1.msra.mxu0 0.0
    %1600 = vmatprep.subr.mxu0 0.0
    %1601 = vmatpush1.msra.mxu0 0.0
    %1602 = vmatprep.subr.mxu0 0.0
    %1603 = vmatpush1.msra.mxu0 0.0
    %1604 = vmatprep.subr.mxu0 0.0
    %1605 = vmatpush1.msra.mxu0 0.0
    %1606 = vmatprep.subr.mxu0 0.0
    %1607 = vmatpush1.msra.mxu0 0.0
    %1608 = vmatprep.subr.mxu0 0.0
    %1609 = vmatpush1.msra.mxu0 0.0
    %1610 = vmatprep.subr.mxu0 0.0
    %1611 = vmatpush1.msra.mxu0 0.0
    %1612 = vmatprep.subr.mxu0 0.0
    %1613 = vmatpush1.msra.mxu0 0.0
    %1614 = vmatprep.subr.mxu0 0.0
    %1615 = vmatpush1.msra.mxu0 0.0
    %1616 = vmatprep.subr.mxu0 0.0
    %1617 = vmatpush1.msra.mxu0 0.0
    %1618 = vmatprep.subr.mxu0 0.0
    %1619 = vmatpush1.msra.mxu0 0.0
    %1620 = vmatprep.subr.mxu0 0.0
    %1621 = vmatpush1.msra.mxu0 0.0
    %1622 = vmatprep.subr.mxu0 0.0
    %1623 = vmatpush1.msra.mxu0 0.0
    %1624 = vmatprep.subr.mxu0 0.0
    %1625 = vmatpush1.msra.mxu0 0.0
    %1626 = vmatprep.subr.mxu0 0.0
    %1627 = vmatpush1.msra.mxu0 0.0
    %1628 = vmatprep.mubr.f32.mxu0 0.0
    %1629 = vmatmul.mubr.f32.gmra.mrb[0].mxu0 %v1562
    %v1630 = vpop.f32.mrb[0].mxu0
    %v1631 = vadd.f32 0.0, %v1630
    %v1632 = vpop.f32.mrb[0].mxu0
    %1633 = vdwg.mxu0
    %1636 = vrot.lane.b32.xlu0 %v891, 8
    %v1637 = vpop.permute.xlu0 %1636
    %1638 = vrot.lane.b32.xlu0 %v967, 8
    %v1639 = vpop.permute.xlu0 %1638
    %1644 = vrot.lane.b32.xlu0 %v1223, 16
    %v1645 = vpop.permute.xlu0 %1644
    %1646 = vrot.lane.b32.xlu0 %v1299, 16
    %v1647 = vpop.permute.xlu0 %1646
    %1652 = vrot.lane.b32.xlu0 %v1555, 24
    %v1653 = vpop.permute.xlu0 %1652
    %1654 = vrot.lane.b32.xlu0 %v1631, 24
    %v1655 = vpop.permute.xlu0 %1654
    %v1658 = vsel %vm310, %v559, %v1637
    %v1659 = vsel %vm310, %v635, %v1639
    %vm1660 = vcmask 130048
    %v1661 = vsel %vm1660, %v1658, %v1645
    %v1662 = vsel %vm1660, %v1659, %v1647
    %vm1663 = vcmask 195584
    %v1664 = vsel %vm1663, %v1661, %v1653
    %v1665 = vsel %vm1663, %v1662, %v1655
    %v1666 = vlaneseq
    %v1667 = vshrl.u32 %v1666, 7
    %v1668 = vsub.s32 1, %v1667
    %v1669 = vrot.slane %v80, %v1668
    %1674 = vrot.lane.b32.xlu0 %v52, 32
    %v1675 = vpop.permute.xlu0 %1674
    %1676 = vrot.lane.b32.xlu0 %v57, 32
    %v1677 = vpop.permute.xlu0 %1676
    %1678 = vrot.lane.b32.xlu0 %v62, 32
    %v1679 = vpop.permute.xlu0 %1678
    %1680 = vrot.lane.b32.xlu0 %v67, 32
    %v1681 = vpop.permute.xlu0 %1680
    %v1687 = vsel %vm225, %v1664, 0
    %v1690 = vsel %vm225, %v1665, 0
    %1692 = vmatprep.subr.mxu0 0.0
    %1693 = vmatpush1.msra.mxu0 %v1675
    %1694 = vmatprep.subr.mxu0 0.0
    %1695 = vmatpush1.msra.mxu0 %v1677
    %1696 = vmatprep.subr.mxu0 0.0
    %1697 = vmatpush1.msra.mxu0 %v1679
    %1698 = vmatprep.subr.mxu0 0.0
    %1699 = vmatpush1.msra.mxu0 %v1681
    %1700 = vmatprep.subr.mxu0 0.0
    %1701 = vmatpush1.msra.mxu0 0.0
    %1702 = vmatprep.subr.mxu0 0.0
    %1703 = vmatpush1.msra.mxu0 0.0
    %1704 = vmatprep.subr.mxu0 0.0
    %1705 = vmatpush1.msra.mxu0 0.0
    %1706 = vmatprep.subr.mxu0 0.0
    %1707 = vmatpush1.msra.mxu0 0.0
    %1708 = vmatprep.subr.mxu0 0.0
    %1709 = vmatpush1.msra.mxu0 0.0
    %1710 = vmatprep.subr.mxu0 0.0
    %1711 = vmatpush1.msra.mxu0 0.0
    %1712 = vmatprep.subr.mxu0 0.0
    %1713 = vmatpush1.msra.mxu0 0.0
    %1714 = vmatprep.subr.mxu0 0.0
    %1715 = vmatpush1.msra.mxu0 0.0
    %1716 = vmatprep.subr.mxu0 0.0
    %1717 = vmatpush1.msra.mxu0 0.0
    %1718 = vmatprep.subr.mxu0 0.0
    %1719 = vmatpush1.msra.mxu0 0.0
    %1720 = vmatprep.subr.mxu0 0.0
    %1721 = vmatpush1.msra.mxu0 0.0
    %1722 = vmatprep.subr.mxu0 0.0
    %1723 = vmatpush1.msra.mxu0 0.0
    %1724 = vmatprep.subr.mxu0 0.0
    %1725 = vmatpush1.msra.mxu0 0.0
    %1726 = vmatprep.subr.mxu0 0.0
    %1727 = vmatpush1.msra.mxu0 0.0
    %1728 = vmatprep.subr.mxu0 0.0
    %1729 = vmatpush1.msra.mxu0 0.0
    %1730 = vmatprep.subr.mxu0 0.0
    %1731 = vmatpush1.msra.mxu0 0.0
    %1732 = vmatprep.subr.mxu0 0.0
    %1733 = vmatpush1.msra.mxu0 0.0
    %1734 = vmatprep.subr.mxu0 0.0
    %1735 = vmatpush1.msra.mxu0 0.0
    %1736 = vmatprep.subr.mxu0 0.0
    %1737 = vmatpush1.msra.mxu0 0.0
    %1738 = vmatprep.subr.mxu0 0.0
    %1739 = vmatpush1.msra.mxu0 0.0
    %1740 = vmatprep.subr.mxu0 0.0
    %1741 = vmatpush1.msra.mxu0 0.0
    %1742 = vmatprep.subr.mxu0 0.0
    %1743 = vmatpush1.msra.mxu0 0.0
    %1744 = vmatprep.subr.mxu0 0.0
    %1745 = vmatpush1.msra.mxu0 0.0
    %1746 = vmatprep.subr.mxu0 0.0
    %1747 = vmatpush1.msra.mxu0 0.0
    %1748 = vmatprep.subr.mxu0 0.0
    %1749 = vmatpush1.msra.mxu0 0.0
    %1750 = vmatprep.subr.mxu0 0.0
    %1751 = vmatpush1.msra.mxu0 0.0
    %1752 = vmatprep.subr.mxu0 0.0
    %1753 = vmatpush1.msra.mxu0 0.0
    %1754 = vmatprep.subr.mxu0 0.0
    %1755 = vmatpush1.msra.mxu0 0.0
    %1756 = vmatprep.mubr.f32.mxu0 0.0
    %1757 = vmatmul.mubr.f32.gmra.mrb[0].mxu0 %v1687
    %v1758 = vpop.f32.mrb[0].mxu0
    %v1759 = vadd.f32 %v1669, %v1758
    %v1760 = vpop.f32.mrb[0].mxu0
    %1761 = vmatprep.mubr.f32.mxu0 0.0
    %1762 = vmatmul.mubr.f32.gmra.mrb[0].mxu0 %v1690
    %v1763 = vpop.f32.mrb[0].mxu0
    %v1764 = vadd.f32 %v1669, %v1763
    %v1765 = vpop.f32.mrb[0].mxu0
    %1766 = vdwg.mxu0
    %v1767 = vadd.f32 %v219, %v1759
    %v1768 = vadd.f32 %v220, %v1764
    %v1769 = vsel %vm225, %v1767, 0.0
    %1770 = vadd.xlane.f32.xlu0 %v1769
    %v1771 = vpop.xlane.xlu0 %1770
    %v1772 = vsel %vm225, %v1768, 0.0
    %1773 = vadd.xlane.f32.xlu0 %v1772
    %v1774 = vpop.xlane.xlu0 %1773
    %v1775 = vrcp.pop 32.0
    %v1776 = vmul.f32 %v1771, %v1775
    %v1777 = vmul.f32 %v1774, %v1775
    %v1778 = vsub.f32 %v1767, %v1776
    %v1779 = vsub.f32 %v1768, %v1777
    %v1780 = vmul.f32 %v1778, %v1778
    %v1781 = vmul.f32 %v1779, %v1779
    %v1782 = vsel %vm225, %v1780, 0.0
    %1783 = vadd.xlane.f32.xlu0 %v1782
    %v1784 = vpop.xlane.xlu0 %1783
    %v1785 = vsel %vm225, %v1781, 0.0
    %1786 = vadd.xlane.f32.xlu0 %v1785
    %v1787 = vpop.xlane.xlu0 %1786
    %v1788 = vmul.f32 %v1784, %v1775
    %v1789 = vmul.f32 %v1787, %v1775
    %v1790 = vadd.f32 %v1788, 1e-05
    %v1791 = vadd.f32 %v1789, 1e-05
    %v1792 = vrsqrt.pop %v1790
    %v1793 = vrsqrt.pop %v1791
    %v1794 = vmul.f32 %v1778, %v1792
    %v1795 = vmul.f32 %v1779, %v1793
    %v1796 = vlaneseq
    %v1797 = vshrl.u32 %v1796, 7
    %v1798 = vsub.s32 2, %v1797
    %v1799 = vrot.slane %v80, %v1798
    %v1800 = vmul.f32 %v1794, %v1799
    %v1801 = vmul.f32 %v1795, %v1799
    %v1802 = vlaneseq
    %v1803 = vshrl.u32 %v1802, 7
    %v1804 = vsub.s32 3, %v1803
    %v1805 = vrot.slane %v80, %v1804
    %v1806 = vadd.f32 %v1800, %v1805
    %v1807 = vadd.f32 %v1801, %v1805
    %v1808 = vlaneseq
    %v1809 = vshrl.u32 %v1808, 7
    %v1810 = vsub.s32 4, %v1809
    %v1811 = vrot.slane %v80, %v1810
    %v1813 = vsel %vm225, %v1806, 0
    %v1816 = vsel %vm225, %v1807, 0
    %1818 = vmatprep.subr.mxu0 0.0
    %1819 = vmatpush1.msra.mxu0 %v53
    %1820 = vmatprep.subr.mxu0 0.0
    %1821 = vmatpush1.msra.mxu0 %v58
    %1822 = vmatprep.subr.mxu0 0.0
    %1823 = vmatpush1.msra.mxu0 %v63
    %1824 = vmatprep.subr.mxu0 0.0
    %1825 = vmatpush1.msra.mxu0 %v68
    %1826 = vmatprep.subr.mxu0 0.0
    %1827 = vmatpush1.msra.mxu0 0.0
    %1828 = vmatprep.subr.mxu0 0.0
    %1829 = vmatpush1.msra.mxu0 0.0
    %1830 = vmatprep.subr.mxu0 0.0
    %1831 = vmatpush1.msra.mxu0 0.0
    %1832 = vmatprep.subr.mxu0 0.0
    %1833 = vmatpush1.msra.mxu0 0.0
    %1834 = vmatprep.subr.mxu0 0.0
    %1835 = vmatpush1.msra.mxu0 0.0
    %1836 = vmatprep.subr.mxu0 0.0
    %1837 = vmatpush1.msra.mxu0 0.0
    %1838 = vmatprep.subr.mxu0 0.0
    %1839 = vmatpush1.msra.mxu0 0.0
    %1840 = vmatprep.subr.mxu0 0.0
    %1841 = vmatpush1.msra.mxu0 0.0
    %1842 = vmatprep.subr.mxu0 0.0
    %1843 = vmatpush1.msra.mxu0 0.0
    %1844 = vmatprep.subr.mxu0 0.0
    %1845 = vmatpush1.msra.mxu0 0.0
    %1846 = vmatprep.subr.mxu0 0.0
    %1847 = vmatpush1.msra.mxu0 0.0
    %1848 = vmatprep.subr.mxu0 0.0
    %1849 = vmatpush1.msra.mxu0 0.0
    %1850 = vmatprep.subr.mxu0 0.0
    %1851 = vmatpush1.msra.mxu0 0.0
    %1852 = vmatprep.subr.mxu0 0.0
    %1853 = vmatpush1.msra.mxu0 0.0
    %1854 = vmatprep.subr.mxu0 0.0
    %1855 = vmatpush1.msra.mxu0 0.0
    %1856 = vmatprep.subr.mxu0 0.0
    %1857 = vmatpush1.msra.mxu0 0.0
    %1858 = vmatprep.subr.mxu0 0.0
    %1859 = vmatpush1.msra.mxu0 0.0
    %1860 = vmatprep.subr.mxu0 0.0
    %1861 = vmatpush1.msra.mxu0 0.0
    %1862 = vmatprep.subr.mxu0 0.0
    %1863 = vmatpush1.msra.mxu0 0.0
    %1864 = vmatprep.subr.mxu0 0.0
    %1865 = vmatpush1.msra.mxu0 0.0
    %1866 = vmatprep.subr.mxu0 0.0
    %1867 = vmatpush1.msra.mxu0 0.0
    %1868 = vmatprep.subr.mxu0 0.0
    %1869 = vmatpush1.msra.mxu0 0.0
    %1870 = vmatprep.subr.mxu0 0.0
    %1871 = vmatpush1.msra.mxu0 0.0
    %1872 = vmatprep.subr.mxu0 0.0
    %1873 = vmatpush1.msra.mxu0 0.0
    %1874 = vmatprep.subr.mxu0 0.0
    %1875 = vmatpush1.msra.mxu0 0.0
    %1876 = vmatprep.subr.mxu0 0.0
    %1877 = vmatpush1.msra.mxu0 0.0
    %1878 = vmatprep.subr.mxu0 0.0
    %1879 = vmatpush1.msra.mxu0 0.0
    %1880 = vmatprep.subr.mxu0 0.0
    %1881 = vmatpush1.msra.mxu0 0.0
    %1882 = vmatprep.mubr.f32.mxu0 0.0
    %1883 = vmatmul.mubr.f32.gmra.mrb[0].mxu0 %v1813
    %v1884 = vpop.f32.mrb[0].mxu0
    %v1885 = vadd.f32 %v1811, %v1884
    %v1886 = vpop.f32.mrb[0].mxu0
    %1887 = vmatprep.mubr.f32.mxu0 0.0
    %1888 = vmatmul.mubr.f32.gmra.mrb[0].mxu0 %v1816
    %v1889 = vpop.f32.mrb[0].mxu0
    %v1890 = vadd.f32 %v1811, %v1889
    %v1891 = vpop.f32.mrb[0].mxu0
    %1892 = vdwg.mxu0
    %v1893 = vmax.f32 %v1885, 0.0
    %v1894 = vmax.f32 %v1890, 0.0
    %v1895 = vlaneseq
    %v1896 = vshrl.u32 %v1895, 7
    %v1897 = vsub.s32 5, %v1896
    %v1898 = vrot.slane %v80, %v1897
    %v1900 = vsel %vm131, %v1893, 0
    %v1903 = vsel %vm131, %v1894, 0
    %1905 = vmatprep.subr.mxu0 0.0
    %1906 = vmatpush1.msra.mxu0 %v72
    %1907 = vmatprep.subr.mxu0 0.0
    %1908 = vmatpush1.msra.mxu0 %v73
    %1909 = vmatprep.subr.mxu0 0.0
    %1910 = vmatpush1.msra.mxu0 %v74
    %1911 = vmatprep.subr.mxu0 0.0
    %1912 = vmatpush1.msra.mxu0 %v75
    %1913 = vmatprep.subr.mxu0 0.0
    %1914 = vmatpush1.msra.mxu0 %v76
    %1915 = vmatprep.subr.mxu0 0.0
    %1916 = vmatpush1.msra.mxu0 %v77
    %1917 = vmatprep.subr.mxu0 0.0
    %1918 = vmatpush1.msra.mxu0 %v78
    %1919 = vmatprep.subr.mxu0 0.0
    %1920 = vmatpush1.msra.mxu0 %v79
    %1921 = vmatprep.subr.mxu0 0.0
    %1922 = vmatpush1.msra.mxu0 0.0
    %1923 = vmatprep.subr.mxu0 0.0
    %1924 = vmatpush1.msra.mxu0 0.0
    %1925 = vmatprep.subr.mxu0 0.0
    %1926 = vmatpush1.msra.mxu0 0.0
    %1927 = vmatprep.subr.mxu0 0.0
    %1928 = vmatpush1.msra.mxu0 0.0
    %1929 = vmatprep.subr.mxu0 0.0
    %1930 = vmatpush1.msra.mxu0 0.0
    %1931 = vmatprep.subr.mxu0 0.0
    %1932 = vmatpush1.msra.mxu0 0.0
    %1933 = vmatprep.subr.mxu0 0.0
    %1934 = vmatpush1.msra.mxu0 0.0
    %1935 = vmatprep.subr.mxu0 0.0
    %1936 = vmatpush1.msra.mxu0 0.0
    %1937 = vmatprep.subr.mxu0 0.0
    %1938 = vmatpush1.msra.mxu0 0.0
    %1939 = vmatprep.subr.mxu0 0.0
    %1940 = vmatpush1.msra.mxu0 0.0
    %1941 = vmatprep.subr.mxu0 0.0
    %1942 = vmatpush1.msra.mxu0 0.0
    %1943 = vmatprep.subr.mxu0 0.0
    %1944 = vmatpush1.msra.mxu0 0.0
    %1945 = vmatprep.subr.mxu0 0.0
    %1946 = vmatpush1.msra.mxu0 0.0
    %1947 = vmatprep.subr.mxu0 0.0
    %1948 = vmatpush1.msra.mxu0 0.0
    %1949 = vmatprep.subr.mxu0 0.0
    %1950 = vmatpush1.msra.mxu0 0.0
    %1951 = vmatprep.subr.mxu0 0.0
    %1952 = vmatpush1.msra.mxu0 0.0
    %1953 = vmatprep.subr.mxu0 0.0
    %1954 = vmatpush1.msra.mxu0 0.0
    %1955 = vmatprep.subr.mxu0 0.0
    %1956 = vmatpush1.msra.mxu0 0.0
    %1957 = vmatprep.subr.mxu0 0.0
    %1958 = vmatpush1.msra.mxu0 0.0
    %1959 = vmatprep.subr.mxu0 0.0
    %1960 = vmatpush1.msra.mxu0 0.0
    %1961 = vmatprep.subr.mxu0 0.0
    %1962 = vmatpush1.msra.mxu0 0.0
    %1963 = vmatprep.subr.mxu0 0.0
    %1964 = vmatpush1.msra.mxu0 0.0
    %1965 = vmatprep.subr.mxu0 0.0
    %1966 = vmatpush1.msra.mxu0 0.0
    %1967 = vmatprep.subr.mxu0 0.0
    %1968 = vmatpush1.msra.mxu0 0.0
    %1969 = vmatprep.mubr.f32.mxu0 0.0
    %1970 = vmatmul.mubr.f32.gmra.mrb[0].mxu0 %v1900
    %v1971 = vpop.f32.mrb[0].mxu0
    %v1972 = vadd.f32 %v1898, %v1971
    %v1973 = vpop.f32.mrb[0].mxu0
    %1974 = vmatprep.mubr.f32.mxu0 0.0
    %1975 = vmatmul.mubr.f32.gmra.mrb[0].mxu0 %v1903
    %v1976 = vpop.f32.mrb[0].mxu0
    %v1977 = vadd.f32 %v1898, %v1976
    %v1978 = vpop.f32.mrb[0].mxu0
    %1979 = vdwg.mxu0
    %v1980 = vadd.f32 %v1806, %v1972
    %v1981 = vadd.f32 %v1807, %v1977
    %v1982 = vsel %vm225, %v1980, 0.0
    %1983 = vadd.xlane.f32.xlu0 %v1982
    %v1984 = vpop.xlane.xlu0 %1983
    %v1985 = vsel %vm225, %v1981, 0.0
    %1986 = vadd.xlane.f32.xlu0 %v1985
    %v1987 = vpop.xlane.xlu0 %1986
    %v1988 = vmul.f32 %v1984, %v1775
    %v1989 = vmul.f32 %v1987, %v1775
    %v1990 = vsub.f32 %v1980, %v1988
    %v1991 = vsub.f32 %v1981, %v1989
    %v1992 = vmul.f32 %v1990, %v1990
    %v1993 = vmul.f32 %v1991, %v1991
    %v1994 = vsel %vm225, %v1992, 0.0
    %1995 = vadd.xlane.f32.xlu0 %v1994
    %v1996 = vpop.xlane.xlu0 %1995
    %v1997 = vsel %vm225, %v1993, 0.0
    %1998 = vadd.xlane.f32.xlu0 %v1997
    %v1999 = vpop.xlane.xlu0 %1998
    %v2000 = vmul.f32 %v1996, %v1775
    %v2001 = vmul.f32 %v1999, %v1775
    %v2002 = vadd.f32 %v2000, 1e-05
    %v2003 = vadd.f32 %v2001, 1e-05
    %v2004 = vrsqrt.pop %v2002
    %v2005 = vrsqrt.pop %v2003
    %v2006 = vmul.f32 %v1990, %v2004
    %v2007 = vmul.f32 %v1991, %v2005
    %v2008 = vlaneseq
    %v2009 = vshrl.u32 %v2008, 7
    %v2010 = vsub.s32 6, %v2009
    %v2011 = vrot.slane %v80, %v2010
    %v2012 = vmul.f32 %v2006, %v2011
    %v2013 = vmul.f32 %v2007, %v2011
    %v2014 = vlaneseq
    %v2015 = vshrl.u32 %v2014, 7
    %v2016 = vsub.s32 7, %v2015
    %v2017 = vrot.slane %v80, %v2016
    %v2018 = vadd.f32 %v2012, %v2017
    %v2019 = vadd.f32 %v2013, %v2017
    %v2020 = vld [vmem:[%s1] sm:$0xff]
    %v2021 = vld [vmem:[%s1 + $0x8] sm:$0xff]
    %2022 = vset.pattern.permute.xlu0 0
    %2023 = vperm.xlu0 %2022, %v2020
    %v2024 = vpop.permute.xlu0 %2023
    %2025 = vset.pattern.permute.xlu0 0
    %2026 = vperm.xlu0 %2025, %v2021
    %v2027 = vpop.permute.xlu0 %2026
    %vm2028 = vcmp.eq.s32.totalorder %v2024, %v86
    %vm2029 = vcmp.eq.s32.totalorder %v2027, %v86
    %v2030 = vsel %vm2028, 1, 0
    %v2031 = vsel %vm2029, 1, 0
    %v2032 = vcvt.s32.f32 %v2030
    %v2033 = vcvt.s32.f32 %v2031
    %2034 = vrot.lane.b32.xlu0 %v72, 32
    %v2035 = vpop.permute.xlu0 %2034
    %2036 = vrot.lane.b32.xlu0 %v73, 32
    %v2037 = vpop.permute.xlu0 %2036
    %2038 = vrot.lane.b32.xlu0 %v74, 32
    %v2039 = vpop.permute.xlu0 %2038
    %2040 = vrot.lane.b32.xlu0 %v75, 32
    %v2041 = vpop.permute.xlu0 %2040
    %2042 = vrot.lane.b32.xlu0 %v76, 32
    %v2043 = vpop.permute.xlu0 %2042
    %2044 = vrot.lane.b32.xlu0 %v77, 32
    %v2045 = vpop.permute.xlu0 %2044
    %2046 = vrot.lane.b32.xlu0 %v78, 32
    %v2047 = vpop.permute.xlu0 %2046
    %2048 = vrot.lane.b32.xlu0 %v79, 32
    %v2049 = vpop.permute.xlu0 %2048
    %v2059 = vsel %vm131, %v2032, 0
    %v2062 = vsel %vm131, %v2033, 0
    %2064 = vmatprep.subr.mxu0 0.0
    %2065 = vmatpush1.msra.mxu0 %v2035
    %2066 = vmatprep.subr.mxu0 0.0
    %2067 = vmatpush1.msra.mxu0 %v2037
    %2068 = vmatprep.subr.mxu0 0.0
    %2069 = vmatpush1.msra.mxu0 %v2039
    %2070 = vmatprep.subr.mxu0 0.0
    %2071 = vmatpush1.msra.mxu0 %v2041
    %2072 = vmatprep.subr.mxu0 0.0
    %2073 = vmatpush1.msra.mxu0 %v2043
    %2074 = vmatprep.subr.mxu0 0.0
    %2075 = vmatpush1.msra.mxu0 %v2045
    %2076 = vmatprep.subr.mxu0 0.0
    %2077 = vmatpush1.msra.mxu0 %v2047
    %2078 = vmatprep.subr.mxu0 0.0
    %2079 = vmatpush1.msra.mxu0 %v2049
    %2080 = vmatprep.subr.mxu0 0.0
    %2081 = vmatpush1.msra.mxu0 0.0
    %2082 = vmatprep.subr.mxu0 0.0
    %2083 = vmatpush1.msra.mxu0 0.0
    %2084 = vmatprep.subr.mxu0 0.0
    %2085 = vmatpush1.msra.mxu0 0.0
    %2086 = vmatprep.subr.mxu0 0.0
    %2087 = vmatpush1.msra.mxu0 0.0
    %2088 = vmatprep.subr.mxu0 0.0
    %2089 = vmatpush1.msra.mxu0 0.0
    %2090 = vmatprep.subr.mxu0 0.0
    %2091 = vmatpush1.msra.mxu0 0.0
    %2092 = vmatprep.subr.mxu0 0.0
    %2093 = vmatpush1.msra.mxu0 0.0
    %2094 = vmatprep.subr.mxu0 0.0
    %2095 = vmatpush1.msra.mxu0 0.0
    %2096 = vmatprep.subr.mxu0 0.0
    %2097 = vmatpush1.msra.mxu0 0.0
    %2098 = vmatprep.subr.mxu0 0.0
    %2099 = vmatpush1.msra.mxu0 0.0
    %2100 = vmatprep.subr.mxu0 0.0
    %2101 = vmatpush1.msra.mxu0 0.0
    %2102 = vmatprep.subr.mxu0 0.0
    %2103 = vmatpush1.msra.mxu0 0.0
    %2104 = vmatprep.subr.mxu0 0.0
    %2105 = vmatpush1.msra.mxu0 0.0
    %2106 = vmatprep.subr.mxu0 0.0
    %2107 = vmatpush1.msra.mxu0 0.0
    %2108 = vmatprep.subr.mxu0 0.0
    %2109 = vmatpush1.msra.mxu0 0.0
    %2110 = vmatprep.subr.mxu0 0.0
    %2111 = vmatpush1.msra.mxu0 0.0
    %2112 = vmatprep.subr.mxu0 0.0
    %2113 = vmatpush1.msra.mxu0 0.0
    %2114 = vmatprep.subr.mxu0 0.0
    %2115 = vmatpush1.msra.mxu0 0.0
    %2116 = vmatprep.subr.mxu0 0.0
    %2117 = vmatpush1.msra.mxu0 0.0
    %2118 = vmatprep.subr.mxu0 0.0
    %2119 = vmatpush1.msra.mxu0 0.0
    %2120 = vmatprep.subr.mxu0 0.0
    %2121 = vmatpush1.msra.mxu0 0.0
    %2122 = vmatprep.subr.mxu0 0.0
    %2123 = vmatpush1.msra.mxu0 0.0
    %2124 = vmatprep.subr.mxu0 0.0
    %2125 = vmatpush1.msra.mxu0 0.0
    %2126 = vmatprep.subr.mxu0 0.0
    %2127 = vmatpush1.msra.mxu0 0.0
    %2128 = vmatprep.mubr.f32.mxu0 0.0
    %2129 = vmatmul.mubr.f32.gmra.mrb[0].mxu0 %v2059
    %v2130 = vpop.f32.mrb[0].mxu0
    %v2131 = vadd.f32 0.0, %v2130
    %v2132 = vpop.f32.mrb[0].mxu0
    %2133 = vmatprep.mubr.f32.mxu0 0.0
    %2134 = vmatmul.mubr.f32.gmra.mrb[0].mxu0 %v2062
    %v2135 = vpop.f32.mrb[0].mxu0
    %v2136 = vadd.f32 0.0, %v2135
    %v2137 = vpop.f32.mrb[0].mxu0
    %2138 = vdwg.mxu0
    %v2139 = vmul.f32 %v2131, 5.656854
    %v2140 = vmul.f32 %v2136, 5.656854
    %2141 = vrot.lane.b32.xlu0 %v56, 32
    %v2142 = vpop.permute.xlu0 %2141
    %v2144 = vadd.f32 %v2139, %v2142
    %v2145 = vadd.f32 %v2140, %v2142
    %v2146 = vlaneseq
    %v2147 = vshrl.u32 %v2146, 7
    %v2148 = vsub.s32 0, %v2147
    %v2149 = vrot.slane %v81, %v2148
    %2158 = vrot.lane.b32.xlu0 %v53, 64
    %v2159 = vpop.permute.xlu0 %2158
    %2160 = vrot.lane.b32.xlu0 %v54, 64
    %v2161 = vpop.permute.xlu0 %2160
    %2162 = vrot.lane.b32.xlu0 %v58, 64
    %v2163 = vpop.permute.xlu0 %2162
    %2164 = vrot.lane.b32.xlu0 %v59, 64
    %v2165 = vpop.permute.xlu0 %2164
    %2166 = vrot.lane.b32.xlu0 %v63, 64
    %v2167 = vpop.permute.xlu0 %2166
    %2168 = vrot.lane.b32.xlu0 %v64, 64
    %v2169 = vpop.permute.xlu0 %2168
    %2170 = vrot.lane.b32.xlu0 %v68, 64
    %v2171 = vpop.permute.xlu0 %2170
    %2172 = vrot.lane.b32.xlu0 %v69, 64
    %v2173 = vpop.permute.xlu0 %2172
    %v2174 = vsel %vm131, %v2159, %v2161
    %v2175 = vsel %vm131, %v2163, %v2165
    %v2176 = vsel %vm131, %v2167, %v2169
    %v2177 = vsel %vm131, %v2171, %v2173
    %v2183 = vsel %vm225, %v2144, 0
    %v2186 = vsel %vm225, %v2145, 0
    %2188 = vmatprep.subr.mxu0 0.0
    %2189 = vmatpush1.msra.mxu0 %v2174
    %2190 = vmatprep.subr.mxu0 0.0
    %2191 = vmatpush1.msra.mxu0 %v2175
    %2192 = vmatprep.subr.mxu0 0.0
    %2193 = vmatpush1.msra.mxu0 %v2176
    %2194 = vmatprep.subr.mxu0 0.0
    %2195 = vmatpush1.msra.mxu0 %v2177
    %2196 = vmatprep.subr.mxu0 0.0
    %2197 = vmatpush1.msra.mxu0 0.0
    %2198 = vmatprep.subr.mxu0 0.0
    %2199 = vmatpush1.msra.mxu0 0.0
    %2200 = vmatprep.subr.mxu0 0.0
    %2201 = vmatpush1.msra.mxu0 0.0
    %2202 = vmatprep.subr.mxu0 0.0
    %2203 = vmatpush1.msra.mxu0 0.0
    %2204 = vmatprep.subr.mxu0 0.0
    %2205 = vmatpush1.msra.mxu0 0.0
    %2206 = vmatprep.subr.mxu0 0.0
    %2207 = vmatpush1.msra.mxu0 0.0
    %2208 = vmatprep.subr.mxu0 0.0
    %2209 = vmatpush1.msra.mxu0 0.0
    %2210 = vmatprep.subr.mxu0 0.0
    %2211 = vmatpush1.msra.mxu0 0.0
    %2212 = vmatprep.subr.mxu0 0.0
    %2213 = vmatpush1.msra.mxu0 0.0
    %2214 = vmatprep.subr.mxu0 0.0
    %2215 = vmatpush1.msra.mxu0 0.0
    %2216 = vmatprep.subr.mxu0 0.0
    %2217 = vmatpush1.msra.mxu0 0.0
    %2218 = vmatprep.subr.mxu0 0.0
    %2219 = vmatpush1.msra.mxu0 0.0
    %2220 = vmatprep.subr.mxu0 0.0
    %2221 = vmatpush1.msra.mxu0 0.0
    %2222 = vmatprep.subr.mxu0 0.0
    %2223 = vmatpush1.msra.mxu0 0.0
    %2224 = vmatprep.subr.mxu0 0.0
    %2225 = vmatpush1.msra.mxu0 0.0
    %2226 = vmatprep.subr.mxu0 0.0
    %2227 = vmatpush1.msra.mxu0 0.0
    %2228 = vmatprep.subr.mxu0 0.0
    %2229 = vmatpush1.msra.mxu0 0.0
    %2230 = vmatprep.subr.mxu0 0.0
    %2231 = vmatpush1.msra.mxu0 0.0
    %2232 = vmatprep.subr.mxu0 0.0
    %2233 = vmatpush1.msra.mxu0 0.0
    %2234 = vmatprep.subr.mxu0 0.0
    %2235 = vmatpush1.msra.mxu0 0.0
    %2236 = vmatprep.subr.mxu0 0.0
    %2237 = vmatpush1.msra.mxu0 0.0
    %2238 = vmatprep.subr.mxu0 0.0
    %2239 = vmatpush1.msra.mxu0 0.0
    %2240 = vmatprep.subr.mxu0 0.0
    %2241 = vmatpush1.msra.mxu0 0.0
    %2242 = vmatprep.subr.mxu0 0.0
    %2243 = vmatpush1.msra.mxu0 0.0
    %2244 = vmatprep.subr.mxu0 0.0
    %2245 = vmatpush1.msra.mxu0 0.0
    %2246 = vmatprep.subr.mxu0 0.0
    %2247 = vmatpush1.msra.mxu0 0.0
    %2248 = vmatprep.subr.mxu0 0.0
    %2249 = vmatpush1.msra.mxu0 0.0
    %2250 = vmatprep.subr.mxu0 0.0
    %2251 = vmatpush1.msra.mxu0 0.0
    %2252 = vmatprep.mubr.f32.mxu0 0.0
    %2253 = vmatmul.mubr.f32.gmra.mrb[0].mxu0 %v2183
    %v2254 = vpop.f32.mrb[0].mxu0
    %v2255 = vadd.f32 %v2149, %v2254
    %v2256 = vpop.f32.mrb[0].mxu0
    %2257 = vmatprep.mubr.f32.mxu0 0.0
    %2258 = vmatmul.mubr.f32.gmra.mrb[0].mxu0 %v2186
    %v2259 = vpop.f32.mrb[0].mxu0
    %v2260 = vadd.f32 %v2149, %v2259
    %v2261 = vpop.f32.mrb[0].mxu0
    %2262 = vdwg.mxu0
    %v2263 = vlaneseq
    %v2264 = vshrl.u32 %v2263, 7
    %vm2265 = vcmp.ge.s32.totalorder %v2264, %v86
    %2267 = vrot.lane.b32.xlu0 %v2255, 96
    %v2268 = vpop.permute.xlu0 %2267
    %v2269 = vsel %vm310, %v2255, 0
    %v2271 = vsel %vm310, %v2268, 0
    %2273 = vmatprep.subr.mxu0 0.0
    %2274 = vmatpush1.xpose.msra.mxu0 %v2271
    %2275 = vmatprep.subr.mxu0 0.0
    %2276 = vmatpush1.xpose.msra.mxu0 0.0
    %2277 = vmatprep.subr.mxu0 0.0
    %2278 = vmatpush1.xpose.msra.mxu0 0.0
    %2279 = vmatprep.subr.mxu0 0.0
    %2280 = vmatpush1.xpose.msra.mxu0 0.0
    %2281 = vmatprep.subr.mxu0 0.0
    %2282 = vmatpush1.xpose.msra.mxu0 0.0
    %2283 = vmatprep.subr.mxu0 0.0
    %2284 = vmatpush1.xpose.msra.mxu0 0.0
    %2285 = vmatprep.subr.mxu0 0.0
    %2286 = vmatpush1.xpose.msra.mxu0 0.0
    %2287 = vmatprep.subr.mxu0 0.0
    %2288 = vmatpush1.xpose.msra.mxu0 0.0
    %2289 = vmatprep.subr.mxu0 0.0
    %2290 = vmatpush1.xpose.msra.mxu0 0.0
    %2291 = vmatprep.subr.mxu0 0.0
    %2292 = vmatpush1.xpose.msra.mxu0 0.0
    %2293 = vmatprep.subr.mxu0 0.0
    %2294 = vmatpush1.xpose.msra.mxu0 0.0
    %2295 = vmatprep.subr.mxu0 0.0
    %2296 = vmatpush1.xpose.msra.mxu0 0.0
    %2297 = vmatprep.subr.mxu0 0.0
    %2298 = vmatpush1.xpose.msra.mxu0 0.0
    %2299 = vmatprep.subr.mxu0 0.0
    %2300 = vmatpush1.xpose.msra.mxu0 0.0
    %2301 = vmatprep.subr.mxu0 0.0
    %2302 = vmatpush1.xpose.msra.mxu0 0.0
    %2303 = vmatprep.subr.mxu0 0.0
    %2304 = vmatpush1.xpose.msra.mxu0 0.0
    %2305 = vmatprep.subr.mxu0 0.0
    %2306 = vmatpush1.xpose.msra.mxu0 0.0
    %2307 = vmatprep.subr.mxu0 0.0
    %2308 = vmatpush1.xpose.msra.mxu0 0.0
    %2309 = vmatprep.subr.mxu0 0.0
    %2310 = vmatpush1.xpose.msra.mxu0 0.0
    %2311 = vmatprep.subr.mxu0 0.0
    %2312 = vmatpush1.xpose.msra.mxu0 0.0
    %2313 = vmatprep.subr.mxu0 0.0
    %2314 = vmatpush1.xpose.msra.mxu0 0.0
    %2315 = vmatprep.subr.mxu0 0.0
    %2316 = vmatpush1.xpose.msra.mxu0 0.0
    %2317 = vmatprep.subr.mxu0 0.0
    %2318 = vmatpush1.xpose.msra.mxu0 0.0
    %2319 = vmatprep.subr.mxu0 0.0
    %2320 = vmatpush1.xpose.msra.mxu0 0.0
    %2321 = vmatprep.subr.mxu0 0.0
    %2322 = vmatpush1.xpose.msra.mxu0 0.0
    %2323 = vmatprep.subr.mxu0 0.0
    %2324 = vmatpush1.xpose.msra.mxu0 0.0
    %2325 = vmatprep.subr.mxu0 0.0
    %2326 = vmatpush1.xpose.msra.mxu0 0.0
    %2327 = vmatprep.subr.mxu0 0.0
    %2328 = vmatpush1.xpose.msra.mxu0 0.0
    %2329 = vmatprep.subr.mxu0 0.0
    %2330 = vmatpush1.xpose.msra.mxu0 0.0
    %2331 = vmatprep.subr.mxu0 0.0
    %2332 = vmatpush1.xpose.msra.mxu0 0.0
    %2333 = vmatprep.subr.mxu0 0.0
    %2334 = vmatpush1.xpose.msra.mxu0 0.0
    %2335 = vmatprep.subr.mxu0 0.0
    %2336 = vmatpush1.xpose.msra.mxu0 0.0
    %2337 = vmatprep.mubr.f32.mxu0 0.0
    %2338 = vmatmul.mubr.f32.gmra.mrb[0].mxu0 %v2269
    %v2339 = vpop.f32.mrb[0].mxu0
    %v2340 = vadd.f32 0.0, %v2339
    %v2341 = vpop.f32.mrb[0].mxu0
    %2342 = vdwg.mxu0
    %2344 = vrot.lane.b32.xlu0 %v2260, 96
    %v2345 = vpop.permute.xlu0 %2344
    %v2346 = vsel %vm310, %v2260, 0
    %v2348 = vsel %vm310, %v2345, 0
    %2350 = vmatprep.subr.mxu0 0.0
    %2351 = vmatpush1.xpose.msra.mxu0 %v2348
    %2352 = vmatprep.subr.mxu0 0.0
    %2353 = vmatpush1.xpose.msra.mxu0 0.0
    %2354 = vmatprep.subr.mxu0 0.0
    %2355 = vmatpush1.xpose.msra.mxu0 0.0
    %2356 = vmatprep.subr.mxu0 0.0
    %2357 = vmatpush1.xpose.msra.mxu0 0.0
    %2358 = vmatprep.subr.mxu0 0.0
    %2359 = vmatpush1.xpose.msra.mxu0 0.0
    %2360 = vmatprep.subr.mxu0 0.0
    %2361 = vmatpush1.xpose.msra.mxu0 0.0
    %2362 = vmatprep.subr.mxu0 0.0
    %2363 = vmatpush1.xpose.msra.mxu0 0.0
    %2364 = vmatprep.subr.mxu0 0.0
    %2365 = vmatpush1.xpose.msra.mxu0 0.0
    %2366 = vmatprep.subr.mxu0 0.0
    %2367 = vmatpush1.xpose.msra.mxu0 0.0
    %2368 = vmatprep.subr.mxu0 0.0
    %2369 = vmatpush1.xpose.msra.mxu0 0.0
    %2370 = vmatprep.subr.mxu0 0.0
    %2371 = vmatpush1.xpose.msra.mxu0 0.0
    %2372 = vmatprep.subr.mxu0 0.0
    %2373 = vmatpush1.xpose.msra.mxu0 0.0
    %2374 = vmatprep.subr.mxu0 0.0
    %2375 = vmatpush1.xpose.msra.mxu0 0.0
    %2376 = vmatprep.subr.mxu0 0.0
    %2377 = vmatpush1.xpose.msra.mxu0 0.0
    %2378 = vmatprep.subr.mxu0 0.0
    %2379 = vmatpush1.xpose.msra.mxu0 0.0
    %2380 = vmatprep.subr.mxu0 0.0
    %2381 = vmatpush1.xpose.msra.mxu0 0.0
    %2382 = vmatprep.subr.mxu0 0.0
    %2383 = vmatpush1.xpose.msra.mxu0 0.0
    %2384 = vmatprep.subr.mxu0 0.0
    %2385 = vmatpush1.xpose.msra.mxu0 0.0
    %2386 = vmatprep.subr.mxu0 0.0
    %2387 = vmatpush1.xpose.msra.mxu0 0.0
    %2388 = vmatprep.subr.mxu0 0.0
    %2389 = vmatpush1.xpose.msra.mxu0 0.0
    %2390 = vmatprep.subr.mxu0 0.0
    %2391 = vmatpush1.xpose.msra.mxu0 0.0
    %2392 = vmatprep.subr.mxu0 0.0
    %2393 = vmatpush1.xpose.msra.mxu0 0.0
    %2394 = vmatprep.subr.mxu0 0.0
    %2395 = vmatpush1.xpose.msra.mxu0 0.0
    %2396 = vmatprep.subr.mxu0 0.0
    %2397 = vmatpush1.xpose.msra.mxu0 0.0
    %2398 = vmatprep.subr.mxu0 0.0
    %2399 = vmatpush1.xpose.msra.mxu0 0.0
    %2400 = vmatprep.subr.mxu0 0.0
    %2401 = vmatpush1.xpose.msra.mxu0 0.0
    %2402 = vmatprep.subr.mxu0 0.0
    %2403 = vmatpush1.xpose.msra.mxu0 0.0
    %2404 = vmatprep.subr.mxu0 0.0
    %2405 = vmatpush1.xpose.msra.mxu0 0.0
    %2406 = vmatprep.subr.mxu0 0.0
    %2407 = vmatpush1.xpose.msra.mxu0 0.0
    %2408 = vmatprep.subr.mxu0 0.0
    %2409 = vmatpush1.xpose.msra.mxu0 0.0
    %2410 = vmatprep.subr.mxu0 0.0
    %2411 = vmatpush1.xpose.msra.mxu0 0.0
    %2412 = vmatprep.subr.mxu0 0.0
    %2413 = vmatpush1.xpose.msra.mxu0 0.0
    %2414 = vmatprep.mubr.f32.mxu0 0.0
    %2415 = vmatmul.mubr.f32.gmra.mrb[0].mxu0 %v2346
    %v2416 = vpop.f32.mrb[0].mxu0
    %v2417 = vadd.f32 0.0, %v2416
    %v2418 = vpop.f32.mrb[0].mxu0
    %2419 = vdwg.mxu0
    %v2420 = vmul.f32 %v2340, 0.35355338
    %v2421 = vmul.f32 %v2417, 0.35355338
    %v2422 = vsel %vm2265, 1, 0
    %vm2423 = vcmp.eq.s32.totalorder %v2422, 1
    %v2424 = vsel %vm2423, %v2420, -1e+09
    %v2425 = vsel %vm2423, %v2421, -1e+09
    %v2426 = vsel %vm310, %v2424, -inf
    %2427 = vmax.xlane.f32.xlu0 %v2426
    %v2428 = vpop.xlane.xlu0 %2427
    %v2429 = vsel %vm310, %v2425, -inf
    %2430 = vmax.xlane.f32.xlu0 %v2429
    %v2431 = vpop.xlane.xlu0 %2430
    %v2432 = vsub.f32 %v2424, %v2428
    %v2433 = vsub.f32 %v2425, %v2431
    %v2434 = vmul.f32 %v2432, 1.442695
    %v2435 = vpow.pop %v2434
    %v2436 = vmul.f32 %v2433, 1.442695
    %v2437 = vpow.pop %v2436
    %v2438 = vsel %vm310, %v2435, 0.0
    %2439 = vadd.xlane.f32.xlu0 %v2438
    %v2440 = vpop.xlane.xlu0 %2439
    %v2441 = vsel %vm310, %v2437, 0.0
    %2442 = vadd.xlane.f32.xlu0 %v2441
    %v2443 = vpop.xlane.xlu0 %2442
    %v2444 = vrcp.pop %v2440
    %v2445 = vmul.f32 %v2435, %v2444
    %v2446 = vrcp.pop %v2443
    %v2447 = vmul.f32 %v2437, %v2446
    %2448 = vrot.lane.b32.xlu0 %v2255, 64
    %v2449 = vpop.permute.xlu0 %2448
    %v2452 = vsel %vm310, %v2445, 0
    %2454 = vmatprep.subr.mxu0 0.0
    %2455 = vmatpush1.msra.mxu0 %v2449
    %2456 = vmatprep.subr.mxu0 0.0
    %2457 = vmatpush1.msra.mxu0 0.0
    %2458 = vmatprep.subr.mxu0 0.0
    %2459 = vmatpush1.msra.mxu0 0.0
    %2460 = vmatprep.subr.mxu0 0.0
    %2461 = vmatpush1.msra.mxu0 0.0
    %2462 = vmatprep.subr.mxu0 0.0
    %2463 = vmatpush1.msra.mxu0 0.0
    %2464 = vmatprep.subr.mxu0 0.0
    %2465 = vmatpush1.msra.mxu0 0.0
    %2466 = vmatprep.subr.mxu0 0.0
    %2467 = vmatpush1.msra.mxu0 0.0
    %2468 = vmatprep.subr.mxu0 0.0
    %2469 = vmatpush1.msra.mxu0 0.0
    %2470 = vmatprep.subr.mxu0 0.0
    %2471 = vmatpush1.msra.mxu0 0.0
    %2472 = vmatprep.subr.mxu0 0.0
    %2473 = vmatpush1.msra.mxu0 0.0
    %2474 = vmatprep.subr.mxu0 0.0
    %2475 = vmatpush1.msra.mxu0 0.0
    %2476 = vmatprep.subr.mxu0 0.0
    %2477 = vmatpush1.msra.mxu0 0.0
    %2478 = vmatprep.subr.mxu0 0.0
    %2479 = vmatpush1.msra.mxu0 0.0
    %2480 = vmatprep.subr.mxu0 0.0
    %2481 = vmatpush1.msra.mxu0 0.0
    %2482 = vmatprep.subr.mxu0 0.0
    %2483 = vmatpush1.msra.mxu0 0.0
    %2484 = vmatprep.subr.mxu0 0.0
    %2485 = vmatpush1.msra.mxu0 0.0
    %2486 = vmatprep.subr.mxu0 0.0
    %2487 = vmatpush1.msra.mxu0 0.0
    %2488 = vmatprep.subr.mxu0 0.0
    %2489 = vmatpush1.msra.mxu0 0.0
    %2490 = vmatprep.subr.mxu0 0.0
    %2491 = vmatpush1.msra.mxu0 0.0
    %2492 = vmatprep.subr.mxu0 0.0
    %2493 = vmatpush1.msra.mxu0 0.0
    %2494 = vmatprep.subr.mxu0 0.0
    %2495 = vmatpush1.msra.mxu0 0.0
    %2496 = vmatprep.subr.mxu0 0.0
    %2497 = vmatpush1.msra.mxu0 0.0
    %2498 = vmatprep.subr.mxu0 0.0
    %2499 = vmatpush1.msra.mxu0 0.0
    %2500 = vmatprep.subr.mxu0 0.0
    %2501 = vmatpush1.msra.mxu0 0.0
    %2502 = vmatprep.subr.mxu0 0.0
    %2503 = vmatpush1.msra.mxu0 0.0
    %2504 = vmatprep.subr.mxu0 0.0
    %2505 = vmatpush1.msra.mxu0 0.0
    %2506 = vmatprep.subr.mxu0 0.0
    %2507 = vmatpush1.msra.mxu0 0.0
    %2508 = vmatprep.subr.mxu0 0.0
    %2509 = vmatpush1.msra.mxu0 0.0
    %2510 = vmatprep.subr.mxu0 0.0
    %2511 = vmatpush1.msra.mxu0 0.0
    %2512 = vmatprep.subr.mxu0 0.0
    %2513 = vmatpush1.msra.mxu0 0.0
    %2514 = vmatprep.subr.mxu0 0.0
    %2515 = vmatpush1.msra.mxu0 0.0
    %2516 = vmatprep.subr.mxu0 0.0
    %2517 = vmatpush1.msra.mxu0 0.0
    %2518 = vmatprep.mubr.f32.mxu0 0.0
    %2519 = vmatmul.mubr.f32.gmra.mrb[0].mxu0 %v2452
    %v2520 = vpop.f32.mrb[0].mxu0
    %v2521 = vadd.f32 0.0, %v2520
    %v2522 = vpop.f32.mrb[0].mxu0
    %2523 = vdwg.mxu0
    %2524 = vrot.lane.b32.xlu0 %v2260, 64
    %v2525 = vpop.permute.xlu0 %2524
    %v2528 = vsel %vm310, %v2447, 0
    %2530 = vmatprep.subr.mxu0 0.0
    %2531 = vmatpush1.msra.mxu0 %v2525
    %2532 = vmatprep.subr.mxu0 0.0
    %2533 = vmatpush1.msra.mxu0 0.0
    %2534 = vmatprep.subr.mxu0 0.0
    %2535 = vmatpush1.msra.mxu0 0.0
    %2536 = vmatprep.subr.mxu0 0.0
    %2537 = vmatpush1.msra.mxu0 0.0
    %2538 = vmatprep.subr.mxu0 0.0
    %2539 = vmatpush1.msra.mxu0 0.0
    %2540 = vmatprep.subr.mxu0 0.0
    %2541 = vmatpush1.msra.mxu0 0.0
    %2542 = vmatprep.subr.mxu0 0.0
    %2543 = vmatpush1.msra.mxu0 0.0
    %2544 = vmatprep.subr.mxu0 0.0
    %2545 = vmatpush1.msra.mxu0 0.0
    %2546 = vmatprep.subr.mxu0 0.0
    %2547 = vmatpush1.msra.mxu0 0.0
    %2548 = vmatprep.subr.mxu0 0.0
    %2549 = vmatpush1.msra.mxu0 0.0
    %2550 = vmatprep.subr.mxu0 0.0
    %2551 = vmatpush1.msra.mxu0 0.0
    %2552 = vmatprep.subr.mxu0 0.0
    %2553 = vmatpush1.msra.mxu0 0.0
    %2554 = vmatprep.subr.mxu0 0.0
    %2555 = vmatpush1.msra.mxu0 0.0
    %2556 = vmatprep.subr.mxu0 0.0
    %2557 = vmatpush1.msra.mxu0 0.0
    %2558 = vmatprep.subr.mxu0 0.0
    %2559 = vmatpush1.msra.mxu0 0.0
    %2560 = vmatprep.subr.mxu0 0.0
    %2561 = vmatpush1.msra.mxu0 0.0
    %2562 = vmatprep.subr.mxu0 0.0
    %2563 = vmatpush1.msra.mxu0 0.0
    %2564 = vmatprep.subr.mxu0 0.0
    %2565 = vmatpush1.msra.mxu0 0.0
    %2566 = vmatprep.subr.mxu0 0.0
    %2567 = vmatpush1.msra.mxu0 0.0
    %2568 = vmatprep.subr.mxu0 0.0
    %2569 = vmatpush1.msra.mxu0 0.0
    %2570 = vmatprep.subr.mxu0 0.0
    %2571 = vmatpush1.msra.mxu0 0.0
    %2572 = vmatprep.subr.mxu0 0.0
    %2573 = vmatpush1.msra.mxu0 0.0
    %2574 = vmatprep.subr.mxu0 0.0
    %2575 = vmatpush1.msra.mxu0 0.0
    %2576 = vmatprep.subr.mxu0 0.0
    %2577 = vmatpush1.msra.mxu0 0.0
    %2578 = vmatprep.subr.mxu0 0.0
    %2579 = vmatpush1.msra.mxu0 0.0
    %2580 = vmatprep.subr.mxu0 0.0
    %2581 = vmatpush1.msra.mxu0 0.0
    %2582 = vmatprep.subr.mxu0 0.0
    %2583 = vmatpush1.msra.mxu0 0.0
    %2584 = vmatprep.subr.mxu0 0.0
    %2585 = vmatpush1.msra.mxu0 0.0
    %2586 = vmatprep.subr.mxu0 0.0
    %2587 = vmatpush1.msra.mxu0 0.0
    %2588 = vmatprep.subr.mxu0 0.0
    %2589 = vmatpush1.msra.mxu0 0.0
    %2590 = vmatprep.subr.mxu0 0.0
    %2591 = vmatpush1.msra.mxu0 0.0
    %2592 = vmatprep.subr.mxu0 0.0
    %2593 = vmatpush1.msra.mxu0 0.0
    %2594 = vmatprep.mubr.f32.mxu0 0.0
    %2595 = vmatmul.mubr.f32.gmra.mrb[0].mxu0 %v2528
    %v2596 = vpop.f32.mrb[0].mxu0
    %v2597 = vadd.f32 0.0, %v2596
    %v2598 = vpop.f32.mrb[0].mxu0
    %2599 = vdwg.mxu0
    %2600 = vrot.lane.b32.xlu0 %v2255, 120
    %v2601 = vpop.permute.xlu0 %2600
    %2602 = vrot.lane.b32.xlu0 %v2255, 88
    %v2603 = vpop.permute.xlu0 %2602
    %v2604 = vsel %vm310, %v2601, 0
    %v2606 = vsel %vm310, %v2603, 0
    %2608 = vmatprep.subr.mxu0 0.0
    %2609 = vmatpush1.xpose.msra.mxu0 %v2606
    %2610 = vmatprep.subr.mxu0 0.0
    %2611 = vmatpush1.xpose.msra.mxu0 0.0
    %2612 = vmatprep.subr.mxu0 0.0
    %2613 = vmatpush1.xpose.msra.mxu0 0.0
    %2614 = vmatprep.subr.mxu0 0.0
    %2615 = vmatpush1.xpose.msra.mxu0 0.0
    %2616 = vmatprep.subr.mxu0 0.0
    %2617 = vmatpush1.xpose.msra.mxu0 0.0
    %2618 = vmatprep.subr.mxu0 0.0
    %2619 = vmatpush1.xpose.msra.mxu0 0.0
    %2620 = vmatprep.subr.mxu0 0.0
    %2621 = vmatpush1.xpose.msra.mxu0 0.0
    %2622 = vmatprep.subr.mxu0 0.0
    %2623 = vmatpush1.xpose.msra.mxu0 0.0
    %2624 = vmatprep.subr.mxu0 0.0
    %2625 = vmatpush1.xpose.msra.mxu0 0.0
    %2626 = vmatprep.subr.mxu0 0.0
    %2627 = vmatpush1.xpose.msra.mxu0 0.0
    %2628 = vmatprep.subr.mxu0 0.0
    %2629 = vmatpush1.xpose.msra.mxu0 0.0
    %2630 = vmatprep.subr.mxu0 0.0
    %2631 = vmatpush1.xpose.msra.mxu0 0.0
    %2632 = vmatprep.subr.mxu0 0.0
    %2633 = vmatpush1.xpose.msra.mxu0 0.0
    %2634 = vmatprep.subr.mxu0 0.0
    %2635 = vmatpush1.xpose.msra.mxu0 0.0
    %2636 = vmatprep.subr.mxu0 0.0
    %2637 = vmatpush1.xpose.msra.mxu0 0.0
    %2638 = vmatprep.subr.mxu0 0.0
    %2639 = vmatpush1.xpose.msra.mxu0 0.0
    %2640 = vmatprep.subr.mxu0 0.0
    %2641 = vmatpush1.xpose.msra.mxu0 0.0
    %2642 = vmatprep.subr.mxu0 0.0
    %2643 = vmatpush1.xpose.msra.mxu0 0.0
    %2644 = vmatprep.subr.mxu0 0.0
    %2645 = vmatpush1.xpose.msra.mxu0 0.0
    %2646 = vmatprep.subr.mxu0 0.0
    %2647 = vmatpush1.xpose.msra.mxu0 0.0
    %2648 = vmatprep.subr.mxu0 0.0
    %2649 = vmatpush1.xpose.msra.mxu0 0.0
    %2650 = vmatprep.subr.mxu0 0.0
    %2651 = vmatpush1.xpose.msra.mxu0 0.0
    %2652 = vmatprep.subr.mxu0 0.0
    %2653 = vmatpush1.xpose.msra.mxu0 0.0
    %2654 = vmatprep.subr.mxu0 0.0
    %2655 = vmatpush1.xpose.msra.mxu0 0.0
    %2656 = vmatprep.subr.mxu0 0.0
    %2657 = vmatpush1.xpose.msra.mxu0 0.0
    %2658 = vmatprep.subr.mxu0 0.0
    %2659 = vmatpush1.xpose.msra.mxu0 0.0
    %2660 = vmatprep.subr.mxu0 0.0
    %2661 = vmatpush1.xpose.msra.mxu0 0.0
    %2662 = vmatprep.subr.mxu0 0.0
    %2663 = vmatpush1.xpose.msra.mxu0 0.0
    %2664 = vmatprep.subr.mxu0 0.0
    %2665 = vmatpush1.xpose.msra.mxu0 0.0
    %2666 = vmatprep.subr.mxu0 0.0
    %2667 = vmatpush1.xpose.msra.mxu0 0.0
    %2668 = vmatprep.subr.mxu0 0.0
    %2669 = vmatpush1.xpose.msra.mxu0 0.0
    %2670 = vmatprep.subr.mxu0 0.0
    %2671 = vmatpush1.xpose.msra.mxu0 0.0
    %2672 = vmatprep.mubr.f32.mxu0 0.0
    %2673 = vmatmul.mubr.f32.gmra.mrb[0].mxu0 %v2604
    %v2674 = vpop.f32.mrb[0].mxu0
    %v2675 = vadd.f32 0.0, %v2674
    %v2676 = vpop.f32.mrb[0].mxu0
    %2677 = vdwg.mxu0
    %2678 = vrot.lane.b32.xlu0 %v2260, 120
    %v2679 = vpop.permute.xlu0 %2678
    %2680 = vrot.lane.b32.xlu0 %v2260, 88
    %v2681 = vpop.permute.xlu0 %2680
    %v2682 = vsel %vm310, %v2679, 0
    %v2684 = vsel %vm310, %v2681, 0
    %2686 = vmatprep.subr.mxu0 0.0
    %2687 = vmatpush1.xpose.msra.mxu0 %v2684
    %2688 = vmatprep.subr.mxu0 0.0
    %2689 = vmatpush1.xpose.msra.mxu0 0.0
    %2690 = vmatprep.subr.mxu0 0.0
    %2691 = vmatpush1.xpose.msra.mxu0 0.0
    %2692 = vmatprep.subr.mxu0 0.0
    %2693 = vmatpush1.xpose.msra.mxu0 0.0
    %2694 = vmatprep.subr.mxu0 0.0
    %2695 = vmatpush1.xpose.msra.mxu0 0.0
    %2696 = vmatprep.subr.mxu0 0.0
    %2697 = vmatpush1.xpose.msra.mxu0 0.0
    %2698 = vmatprep.subr.mxu0 0.0
    %2699 = vmatpush1.xpose.msra.mxu0 0.0
    %2700 = vmatprep.subr.mxu0 0.0
    %2701 = vmatpush1.xpose.msra.mxu0 0.0
    %2702 = vmatprep.subr.mxu0 0.0
    %2703 = vmatpush1.xpose.msra.mxu0 0.0
    %2704 = vmatprep.subr.mxu0 0.0
    %2705 = vmatpush1.xpose.msra.mxu0 0.0
    %2706 = vmatprep.subr.mxu0 0.0
    %2707 = vmatpush1.xpose.msra.mxu0 0.0
    %2708 = vmatprep.subr.mxu0 0.0
    %2709 = vmatpush1.xpose.msra.mxu0 0.0
    %2710 = vmatprep.subr.mxu0 0.0
    %2711 = vmatpush1.xpose.msra.mxu0 0.0
    %2712 = vmatprep.subr.mxu0 0.0
    %2713 = vmatpush1.xpose.msra.mxu0 0.0
    %2714 = vmatprep.subr.mxu0 0.0
    %2715 = vmatpush1.xpose.msra.mxu0 0.0
    %2716 = vmatprep.subr.mxu0 0.0
    %2717 = vmatpush1.xpose.msra.mxu0 0.0
    %2718 = vmatprep.subr.mxu0 0.0
    %2719 = vmatpush1.xpose.msra.mxu0 0.0
    %2720 = vmatprep.subr.mxu0 0.0
    %2721 = vmatpush1.xpose.msra.mxu0 0.0
    %2722 = vmatprep.subr.mxu0 0.0
    %2723 = vmatpush1.xpose.msra.mxu0 0.0
    %2724 = vmatprep.subr.mxu0 0.0
    %2725 = vmatpush1.xpose.msra.mxu0 0.0
    %2726 = vmatprep.subr.mxu0 0.0
    %2727 = vmatpush1.xpose.msra.mxu0 0.0
    %2728 = vmatprep.subr.mxu0 0.0
    %2729 = vmatpush1.xpose.msra.mxu0 0.0
    %2730 = vmatprep.subr.mxu0 0.0
    %2731 = vmatpush1.xpose.msra.mxu0 0.0
    %2732 = vmatprep.subr.mxu0 0.0
    %2733 = vmatpush1.xpose.msra.mxu0 0.0
    %2734 = vmatprep.subr.mxu0 0.0
    %2735 = vmatpush1.xpose.msra.mxu0 0.0
    %2736 = vmatprep.subr.mxu0 0.0
    %2737 = vmatpush1.xpose.msra.mxu0 0.0
    %2738 = vmatprep.subr.mxu0 0.0
    %2739 = vmatpush1.xpose.msra.mxu0 0.0
    %2740 = vmatprep.subr.mxu0 0.0
    %2741 = vmatpush1.xpose.msra.mxu0 0.0
    %2742 = vmatprep.subr.mxu0 0.0
    %2743 = vmatpush1.xpose.msra.mxu0 0.0
    %2744 = vmatprep.subr.mxu0 0.0
    %2745 = vmatpush1.xpose.msra.mxu0 0.0
    %2746 = vmatprep.subr.mxu0 0.0
    %2747 = vmatpush1.xpose.msra.mxu0 0.0
    %2748 = vmatprep.subr.mxu0 0.0
    %2749 = vmatpush1.xpose.msra.mxu0 0.0
    %2750 = vmatprep.mubr.f32.mxu0 0.0
    %2751 = vmatmul.mubr.f32.gmra.mrb[0].mxu0 %v2682
    %v2752 = vpop.f32.mrb[0].mxu0
    %v2753 = vadd.f32 0.0, %v2752
    %v2754 = vpop.f32.mrb[0].mxu0
    %2755 = vdwg.mxu0
    %v2756 = vmul.f32 %v2675, 0.35355338
    %v2757 = vmul.f32 %v2753, 0.35355338
    %v2758 = vsel %vm2423, %v2756, -1e+09
    %v2759 = vsel %vm2423, %v2757, -1e+09
    %v2760 = vsel %vm310, %v2758, -inf
    %2761 = vmax.xlane.f32.xlu0 %v2760
    %v2762 = vpop.xlane.xlu0 %2761
    %v2763 = vsel %vm310, %v2759, -inf
    %2764 = vmax.xlane.f32.xlu0 %v2763
    %v2765 = vpop.xlane.xlu0 %2764
    %v2766 = vsub.f32 %v2758, %v2762
    %v2767 = vsub.f32 %v2759, %v2765
    %v2768 = vmul.f32 %v2766, 1.442695
    %v2769 = vpow.pop %v2768
    %v2770 = vmul.f32 %v2767, 1.442695
    %v2771 = vpow.pop %v2770
    %v2772 = vsel %vm310, %v2769, 0.0
    %2773 = vadd.xlane.f32.xlu0 %v2772
    %v2774 = vpop.xlane.xlu0 %2773
    %v2775 = vsel %vm310, %v2771, 0.0
    %2776 = vadd.xlane.f32.xlu0 %v2775
    %v2777 = vpop.xlane.xlu0 %2776
    %v2778 = vrcp.pop %v2774
    %v2779 = vmul.f32 %v2769, %v2778
    %v2780 = vrcp.pop %v2777
    %v2781 = vmul.f32 %v2771, %v2780
    %2782 = vrot.lane.b32.xlu0 %v2255, 56
    %v2783 = vpop.permute.xlu0 %2782
    %v2786 = vsel %vm310, %v2779, 0
    %2788 = vmatprep.subr.mxu0 0.0
    %2789 = vmatpush1.msra.mxu0 %v2783
    %2790 = vmatprep.subr.mxu0 0.0
    %2791 = vmatpush1.msra.mxu0 0.0
    %2792 = vmatprep.subr.mxu0 0.0
    %2793 = vmatpush1.msra.mxu0 0.0
    %2794 = vmatprep.subr.mxu0 0.0
    %2795 = vmatpush1.msra.mxu0 0.0
    %2796 = vmatprep.subr.mxu0 0.0
    %2797 = vmatpush1.msra.mxu0 0.0
    %2798 = vmatprep.subr.mxu0 0.0
    %2799 = vmatpush1.msra.mxu0 0.0
    %2800 = vmatprep.subr.mxu0 0.0
    %2801 = vmatpush1.msra.mxu0 0.0
    %2802 = vmatprep.subr.mxu0 0.0
    %2803 = vmatpush1.msra.mxu0 0.0
    %2804 = vmatprep.subr.mxu0 0.0
    %2805 = vmatpush1.msra.mxu0 0.0
    %2806 = vmatprep.subr.mxu0 0.0
    %2807 = vmatpush1.msra.mxu0 0.0
    %2808 = vmatprep.subr.mxu0 0.0
    %2809 = vmatpush1.msra.mxu0 0.0
    %2810 = vmatprep.subr.mxu0 0.0
    %2811 = vmatpush1.msra.mxu0 0.0
    %2812 = vmatprep.subr.mxu0 0.0
    %2813 = vmatpush1.msra.mxu0 0.0
    %2814 = vmatprep.subr.mxu0 0.0
    %2815 = vmatpush1.msra.mxu0 0.0
    %2816 = vmatprep.subr.mxu0 0.0
    %2817 = vmatpush1.msra.mxu0 0.0
    %2818 = vmatprep.subr.mxu0 0.0
    %2819 = vmatpush1.msra.mxu0 0.0
    %2820 = vmatprep.subr.mxu0 0.0
    %2821 = vmatpush1.msra.mxu0 0.0
    %2822 = vmatprep.subr.mxu0 0.0
    %2823 = vmatpush1.msra.mxu0 0.0
    %2824 = vmatprep.subr.mxu0 0.0
    %2825 = vmatpush1.msra.mxu0 0.0
    %2826 = vmatprep.subr.mxu0 0.0
    %2827 = vmatpush1.msra.mxu0 0.0
    %2828 = vmatprep.subr.mxu0 0.0
    %2829 = vmatpush1.msra.mxu0 0.0
    %2830 = vmatprep.subr.mxu0 0.0
    %2831 = vmatpush1.msra.mxu0 0.0
    %2832 = vmatprep.subr.mxu0 0.0
    %2833 = vmatpush1.msra.mxu0 0.0
    %2834 = vmatprep.subr.mxu0 0.0
    %2835 = vmatpush1.msra.mxu0 0.0
    %2836 = vmatprep.subr.mxu0 0.0
    %2837 = vmatpush1.msra.mxu0 0.0
    %2838 = vmatprep.subr.mxu0 0.0
    %2839 = vmatpush1.msra.mxu0 0.0
    %2840 = vmatprep.subr.mxu0 0.0
    %2841 = vmatpush1.msra.mxu0 0.0
    %2842 = vmatprep.subr.mxu0 0.0
    %2843 = vmatpush1.msra.mxu0 0.0
    %2844 = vmatprep.subr.mxu0 0.0
    %2845 = vmatpush1.msra.mxu0 0.0
    %2846 = vmatprep.subr.mxu0 0.0
    %2847 = vmatpush1.msra.mxu0 0.0
    %2848 = vmatprep.subr.mxu0 0.0
    %2849 = vmatpush1.msra.mxu0 0.0
    %2850 = vmatprep.subr.mxu0 0.0
    %2851 = vmatpush1.msra.mxu0 0.0
    %2852 = vmatprep.mubr.f32.mxu0 0.0
    %2853 = vmatmul.mubr.f32.gmra.mrb[0].mxu0 %v2786
    %v2854 = vpop.f32.mrb[0].mxu0
    %v2855 = vadd.f32 0.0, %v2854
    %v2856 = vpop.f32.mrb[0].mxu0
    %2857 = vdwg.mxu0
    %2858 = vrot.lane.b32.xlu0 %v2260, 56
    %v2859 = vpop.permute.xlu0 %2858
    %v2862 = vsel %vm310, %v2781, 0
    %2864 = vmatprep.subr.mxu0 0.0
    %2865 = vmatpush1.msra.mxu0 %v2859
    %2866 = vmatprep.subr.mxu0 0.0
    %2867 = vmatpush1.msra.mxu0 0.0
    %2868 = vmatprep.subr.mxu0 0.0
    %2869 = vmatpush1.msra.mxu0 0.0
    %2870 = vmatprep.subr.mxu0 0.0
    %2871 = vmatpush1.msra.mxu0 0.0
    %2872 = vmatprep.subr.mxu0 0.0
    %2873 = vmatpush1.msra.mxu0 0.0
    %2874 = vmatprep.subr.mxu0 0.0
    %2875 = vmatpush1.msra.mxu0 0.0
    %2876 = vmatprep.subr.mxu0 0.0
    %2877 = vmatpush1.msra.mxu0 0.0
    %2878 = vmatprep.subr.mxu0 0.0
    %2879 = vmatpush1.msra.mxu0 0.0
    %2880 = vmatprep.subr.mxu0 0.0
    %2881 = vmatpush1.msra.mxu0 0.0
    %2882 = vmatprep.subr.mxu0 0.0
    %2883 = vmatpush1.msra.mxu0 0.0
    %2884 = vmatprep.subr.mxu0 0.0
    %2885 = vmatpush1.msra.mxu0 0.0
    %2886 = vmatprep.subr.mxu0 0.0
    %2887 = vmatpush1.msra.mxu0 0.0
    %2888 = vmatprep.subr.mxu0 0.0
    %2889 = vmatpush1.msra.mxu0 0.0
    %2890 = vmatprep.subr.mxu0 0.0
    %2891 = vmatpush1.msra.mxu0 0.0
    %2892 = vmatprep.subr.mxu0 0.0
    %2893 = vmatpush1.msra.mxu0 0.0
    %2894 = vmatprep.subr.mxu0 0.0
    %2895 = vmatpush1.msra.mxu0 0.0
    %2896 = vmatprep.subr.mxu0 0.0
    %2897 = vmatpush1.msra.mxu0 0.0
    %2898 = vmatprep.subr.mxu0 0.0
    %2899 = vmatpush1.msra.mxu0 0.0
    %2900 = vmatprep.subr.mxu0 0.0
    %2901 = vmatpush1.msra.mxu0 0.0
    %2902 = vmatprep.subr.mxu0 0.0
    %2903 = vmatpush1.msra.mxu0 0.0
    %2904 = vmatprep.subr.mxu0 0.0
    %2905 = vmatpush1.msra.mxu0 0.0
    %2906 = vmatprep.subr.mxu0 0.0
    %2907 = vmatpush1.msra.mxu0 0.0
    %2908 = vmatprep.subr.mxu0 0.0
    %2909 = vmatpush1.msra.mxu0 0.0
    %2910 = vmatprep.subr.mxu0 0.0
    %2911 = vmatpush1.msra.mxu0 0.0
    %2912 = vmatprep.subr.mxu0 0.0
    %2913 = vmatpush1.msra.mxu0 0.0
    %2914 = vmatprep.subr.mxu0 0.0
    %2915 = vmatpush1.msra.mxu0 0.0
    %2916 = vmatprep.subr.mxu0 0.0
    %2917 = vmatpush1.msra.mxu0 0.0
    %2918 = vmatprep.subr.mxu0 0.0
    %2919 = vmatpush1.msra.mxu0 0.0
    %2920 = vmatprep.subr.mxu0 0.0
    %2921 = vmatpush1.msra.mxu0 0.0
    %2922 = vmatprep.subr.mxu0 0.0
    %2923 = vmatpush1.msra.mxu0 0.0
    %2924 = vmatprep.subr.mxu0 0.0
    %2925 = vmatpush1.msra.mxu0 0.0
    %2926 = vmatprep.subr.mxu0 0.0
    %2927 = vmatpush1.msra.mxu0 0.0
    %2928 = vmatprep.mubr.f32.mxu0 0.0
    %2929 = vmatmul.mubr.f32.gmra.mrb[0].mxu0 %v2862
    %v2930 = vpop.f32.mrb[0].mxu0
    %v2931 = vadd.f32 0.0, %v2930
    %v2932 = vpop.f32.mrb[0].mxu0
    %2933 = vdwg.mxu0
    %2934 = vrot.lane.b32.xlu0 %v2255, 112
    %v2935 = vpop.permute.xlu0 %2934
    %2936 = vrot.lane.b32.xlu0 %v2255, 80
    %v2937 = vpop.permute.xlu0 %2936
    %v2938 = vsel %vm310, %v2935, 0
    %v2940 = vsel %vm310, %v2937, 0
    %2942 = vmatprep.subr.mxu0 0.0
    %2943 = vmatpush1.xpose.msra.mxu0 %v2940
    %2944 = vmatprep.subr.mxu0 0.0
    %2945 = vmatpush1.xpose.msra.mxu0 0.0
    %2946 = vmatprep.subr.mxu0 0.0
    %2947 = vmatpush1.xpose.msra.mxu0 0.0
    %2948 = vmatprep.subr.mxu0 0.0
    %2949 = vmatpush1.xpose.msra.mxu0 0.0
    %2950 = vmatprep.subr.mxu0 0.0
    %2951 = vmatpush1.xpose.msra.mxu0 0.0
    %2952 = vmatprep.subr.mxu0 0.0
    %2953 = vmatpush1.xpose.msra.mxu0 0.0
    %2954 = vmatprep.subr.mxu0 0.0
    %2955 = vmatpush1.xpose.msra.mxu0 0.0
    %2956 = vmatprep.subr.mxu0 0.0
    %2957 = vmatpush1.xpose.msra.mxu0 0.0
    %2958 = vmatprep.subr.mxu0 0.0
    %2959 = vmatpush1.xpose.msra.mxu0 0.0
    %2960 = vmatprep.subr.mxu0 0.0
    %2961 = vmatpush1.xpose.msra.mxu0 0.0
    %2962 = vmatprep.subr.mxu0 0.0
    %2963 = vmatpush1.xpose.msra.mxu0 0.0
    %2964 = vmatprep.subr.mxu0 0.0
    %2965 = vmatpush1.xpose.msra.mxu0 0.0
    %2966 = vmatprep.subr.mxu0 0.0
    %2967 = vmatpush1.xpose.msra.mxu0 0.0
    %2968 = vmatprep.subr.mxu0 0.0
    %2969 = vmatpush1.xpose.msra.mxu0 0.0
    %2970 = vmatprep.subr.mxu0 0.0
    %2971 = vmatpush1.xpose.msra.mxu0 0.0
    %2972 = vmatprep.subr.mxu0 0.0
    %2973 = vmatpush1.xpose.msra.mxu0 0.0
    %2974 = vmatprep.subr.mxu0 0.0
    %2975 = vmatpush1.xpose.msra.mxu0 0.0
    %2976 = vmatprep.subr.mxu0 0.0
    %2977 = vmatpush1.xpose.msra.mxu0 0.0
    %2978 = vmatprep.subr.mxu0 0.0
    %2979 = vmatpush1.xpose.msra.mxu0 0.0
    %2980 = vmatprep.subr.mxu0 0.0
    %2981 = vmatpush1.xpose.msra.mxu0 0.0
    %2982 = vmatprep.subr.mxu0 0.0
    %2983 = vmatpush1.xpose.msra.mxu0 0.0
    %2984 = vmatprep.subr.mxu0 0.0
    %2985 = vmatpush1.xpose.msra.mxu0 0.0
    %2986 = vmatprep.subr.mxu0 0.0
    %2987 = vmatpush1.xpose.msra.mxu0 0.0
    %2988 = vmatprep.subr.mxu0 0.0
    %2989 = vmatpush1.xpose.msra.mxu0 0.0
    %2990 = vmatprep.subr.mxu0 0.0
    %2991 = vmatpush1.xpose.msra.mxu0 0.0
    %2992 = vmatprep.subr.mxu0 0.0
    %2993 = vmatpush1.xpose.msra.mxu0 0.0
    %2994 = vmatprep.subr.mxu0 0.0
    %2995 = vmatpush1.xpose.msra.mxu0 0.0
    %2996 = vmatprep.subr.mxu0 0.0
    %2997 = vmatpush1.xpose.msra.mxu0 0.0
    %2998 = vmatprep.subr.mxu0 0.0
    %2999 = vmatpush1.xpose.msra.mxu0 0.0
    %3000 = vmatprep.subr.mxu0 0.0
    %3001 = vmatpush1.xpose.msra.mxu0 0.0
    %3002 = vmatprep.subr.mxu0 0.0
    %3003 = vmatpush1.xpose.msra.mxu0 0.0
    %3004 = vmatprep.subr.mxu0 0.0
    %3005 = vmatpush1.xpose.msra.mxu0 0.0
    %3006 = vmatprep.mubr.f32.mxu0 0.0
    %3007 = vmatmul.mubr.f32.gmra.mrb[0].mxu0 %v2938
    %v3008 = vpop.f32.mrb[0].mxu0
    %v3009 = vadd.f32 0.0, %v3008
    %v3010 = vpop.f32.mrb[0].mxu0
    %3011 = vdwg.mxu0
    %3012 = vrot.lane.b32.xlu0 %v2260, 112
    %v3013 = vpop.permute.xlu0 %3012
    %3014 = vrot.lane.b32.xlu0 %v2260, 80
    %v3015 = vpop.permute.xlu0 %3014
    %v3016 = vsel %vm310, %v3013, 0
    %v3018 = vsel %vm310, %v3015, 0
    %3020 = vmatprep.subr.mxu0 0.0
    %3021 = vmatpush1.xpose.msra.mxu0 %v3018
    %3022 = vmatprep.subr.mxu0 0.0
    %3023 = vmatpush1.xpose.msra.mxu0 0.0
    %3024 = vmatprep.subr.mxu0 0.0
    %3025 = vmatpush1.xpose.msra.mxu0 0.0
    %3026 = vmatprep.subr.mxu0 0.0
    %3027 = vmatpush1.xpose.msra.mxu0 0.0
    %3028 = vmatprep.subr.mxu0 0.0
    %3029 = vmatpush1.xpose.msra.mxu0 0.0
    %3030 = vmatprep.subr.mxu0 0.0
    %3031 = vmatpush1.xpose.msra.mxu0 0.0
    %3032 = vmatprep.subr.mxu0 0.0
    %3033 = vmatpush1.xpose.msra.mxu0 0.0
    %3034 = vmatprep.subr.mxu0 0.0
    %3035 = vmatpush1.xpose.msra.mxu0 0.0
    %3036 = vmatprep.subr.mxu0 0.0
    %3037 = vmatpush1.xpose.msra.mxu0 0.0
    %3038 = vmatprep.subr.mxu0 0.0
    %3039 = vmatpush1.xpose.msra.mxu0 0.0
    %3040 = vmatprep.subr.mxu0 0.0
    %3041 = vmatpush1.xpose.msra.mxu0 0.0
    %3042 = vmatprep.subr.mxu0 0.0
    %3043 = vmatpush1.xpose.msra.mxu0 0.0
    %3044 = vmatprep.subr.mxu0 0.0
    %3045 = vmatpush1.xpose.msra.mxu0 0.0
    %3046 = vmatprep.subr.mxu0 0.0
    %3047 = vmatpush1.xpose.msra.mxu0 0.0
    %3048 = vmatprep.subr.mxu0 0.0
    %3049 = vmatpush1.xpose.msra.mxu0 0.0
    %3050 = vmatprep.subr.mxu0 0.0
    %3051 = vmatpush1.xpose.msra.mxu0 0.0
    %3052 = vmatprep.subr.mxu0 0.0
    %3053 = vmatpush1.xpose.msra.mxu0 0.0
    %3054 = vmatprep.subr.mxu0 0.0
    %3055 = vmatpush1.xpose.msra.mxu0 0.0
    %3056 = vmatprep.subr.mxu0 0.0
    %3057 = vmatpush1.xpose.msra.mxu0 0.0
    %3058 = vmatprep.subr.mxu0 0.0
    %3059 = vmatpush1.xpose.msra.mxu0 0.0
    %3060 = vmatprep.subr.mxu0 0.0
    %3061 = vmatpush1.xpose.msra.mxu0 0.0
    %3062 = vmatprep.subr.mxu0 0.0
    %3063 = vmatpush1.xpose.msra.mxu0 0.0
    %3064 = vmatprep.subr.mxu0 0.0
    %3065 = vmatpush1.xpose.msra.mxu0 0.0
    %3066 = vmatprep.subr.mxu0 0.0
    %3067 = vmatpush1.xpose.msra.mxu0 0.0
    %3068 = vmatprep.subr.mxu0 0.0
    %3069 = vmatpush1.xpose.msra.mxu0 0.0
    %3070 = vmatprep.subr.mxu0 0.0
    %3071 = vmatpush1.xpose.msra.mxu0 0.0
    %3072 = vmatprep.subr.mxu0 0.0
    %3073 = vmatpush1.xpose.msra.mxu0 0.0
    %3074 = vmatprep.subr.mxu0 0.0
    %3075 = vmatpush1.xpose.msra.mxu0 0.0
    %3076 = vmatprep.subr.mxu0 0.0
    %3077 = vmatpush1.xpose.msra.mxu0 0.0
    %3078 = vmatprep.subr.mxu0 0.0
    %3079 = vmatpush1.xpose.msra.mxu0 0.0
    %3080 = vmatprep.subr.mxu0 0.0
    %3081 = vmatpush1.xpose.msra.mxu0 0.0
    %3082 = vmatprep.subr.mxu0 0.0
    %3083 = vmatpush1.xpose.msra.mxu0 0.0
    %3084 = vmatprep.mubr.f32.mxu0 0.0
    %3085 = vmatmul.mubr.f32.gmra.mrb[0].mxu0 %v3016
    %v3086 = vpop.f32.mrb[0].mxu0
    %v3087 = vadd.f32 0.0, %v3086
    %v3088 = vpop.f32.mrb[0].mxu0
    %3089 = vdwg.mxu0
    %v3090 = vmul.f32 %v3009, 0.35355338
    %v3091 = vmul.f32 %v3087, 0.35355338
    %v3092 = vsel %vm2423, %v3090, -1e+09
    %v3093 = vsel %vm2423, %v3091, -1e+09
    %v3094 = vsel %vm310, %v3092, -inf
    %3095 = vmax.xlane.f32.xlu0 %v3094
    %v3096 = vpop.xlane.xlu0 %3095
    %v3097 = vsel %vm310, %v3093, -inf
    %3098 = vmax.xlane.f32.xlu0 %v3097
    %v3099 = vpop.xlane.xlu0 %3098
    %v3100 = vsub.f32 %v3092, %v3096
    %v3101 = vsub.f32 %v3093, %v3099
    %v3102 = vmul.f32 %v3100, 1.442695
    %v3103 = vpow.pop %v3102
    %v3104 = vmul.f32 %v3101, 1.442695
    %v3105 = vpow.pop %v3104
    %v3106 = vsel %vm310, %v3103, 0.0
    %3107 = vadd.xlane.f32.xlu0 %v3106
    %v3108 = vpop.xlane.xlu0 %3107
    %v3109 = vsel %vm310, %v3105, 0.0
    %3110 = vadd.xlane.f32.xlu0 %v3109
    %v3111 = vpop.xlane.xlu0 %3110
    %v3112 = vrcp.pop %v3108
    %v3113 = vmul.f32 %v3103, %v3112
    %v3114 = vrcp.pop %v3111
    %v3115 = vmul.f32 %v3105, %v3114
    %3116 = vrot.lane.b32.xlu0 %v2255, 48
    %v3117 = vpop.permute.xlu0 %3116
    %v3120 = vsel %vm310, %v3113, 0
    %3122 = vmatprep.subr.mxu0 0.0
    %3123 = vmatpush1.msra.mxu0 %v3117
    %3124 = vmatprep.subr.mxu0 0.0
    %3125 = vmatpush1.msra.mxu0 0.0
    %3126 = vmatprep.subr.mxu0 0.0
    %3127 = vmatpush1.msra.mxu0 0.0
    %3128 = vmatprep.subr.mxu0 0.0
    %3129 = vmatpush1.msra.mxu0 0.0
    %3130 = vmatprep.subr.mxu0 0.0
    %3131 = vmatpush1.msra.mxu0 0.0
    %3132 = vmatprep.subr.mxu0 0.0
    %3133 = vmatpush1.msra.mxu0 0.0
    %3134 = vmatprep.subr.mxu0 0.0
    %3135 = vmatpush1.msra.mxu0 0.0
    %3136 = vmatprep.subr.mxu0 0.0
    %3137 = vmatpush1.msra.mxu0 0.0
    %3138 = vmatprep.subr.mxu0 0.0
    %3139 = vmatpush1.msra.mxu0 0.0
    %3140 = vmatprep.subr.mxu0 0.0
    %3141 = vmatpush1.msra.mxu0 0.0
    %3142 = vmatprep.subr.mxu0 0.0
    %3143 = vmatpush1.msra.mxu0 0.0
    %3144 = vmatprep.subr.mxu0 0.0
    %3145 = vmatpush1.msra.mxu0 0.0
    %3146 = vmatprep.subr.mxu0 0.0
    %3147 = vmatpush1.msra.mxu0 0.0
    %3148 = vmatprep.subr.mxu0 0.0
    %3149 = vmatpush1.msra.mxu0 0.0
    %3150 = vmatprep.subr.mxu0 0.0
    %3151 = vmatpush1.msra.mxu0 0.0
    %3152 = vmatprep.subr.mxu0 0.0
    %3153 = vmatpush1.msra.mxu0 0.0
    %3154 = vmatprep.subr.mxu0 0.0
    %3155 = vmatpush1.msra.mxu0 0.0
    %3156 = vmatprep.subr.mxu0 0.0
    %3157 = vmatpush1.msra.mxu0 0.0
    %3158 = vmatprep.subr.mxu0 0.0
    %3159 = vmatpush1.msra.mxu0 0.0
    %3160 = vmatprep.subr.mxu0 0.0
    %3161 = vmatpush1.msra.mxu0 0.0
    %3162 = vmatprep.subr.mxu0 0.0
    %3163 = vmatpush1.msra.mxu0 0.0
    %3164 = vmatprep.subr.mxu0 0.0
    %3165 = vmatpush1.msra.mxu0 0.0
    %3166 = vmatprep.subr.mxu0 0.0
    %3167 = vmatpush1.msra.mxu0 0.0
    %3168 = vmatprep.subr.mxu0 0.0
    %3169 = vmatpush1.msra.mxu0 0.0
    %3170 = vmatprep.subr.mxu0 0.0
    %3171 = vmatpush1.msra.mxu0 0.0
    %3172 = vmatprep.subr.mxu0 0.0
    %3173 = vmatpush1.msra.mxu0 0.0
    %3174 = vmatprep.subr.mxu0 0.0
    %3175 = vmatpush1.msra.mxu0 0.0
    %3176 = vmatprep.subr.mxu0 0.0
    %3177 = vmatpush1.msra.mxu0 0.0
    %3178 = vmatprep.subr.mxu0 0.0
    %3179 = vmatpush1.msra.mxu0 0.0
    %3180 = vmatprep.subr.mxu0 0.0
    %3181 = vmatpush1.msra.mxu0 0.0
    %3182 = vmatprep.subr.mxu0 0.0
    %3183 = vmatpush1.msra.mxu0 0.0
    %3184 = vmatprep.subr.mxu0 0.0
    %3185 = vmatpush1.msra.mxu0 0.0
    %3186 = vmatprep.mubr.f32.mxu0 0.0
    %3187 = vmatmul.mubr.f32.gmra.mrb[0].mxu0 %v3120
    %v3188 = vpop.f32.mrb[0].mxu0
    %v3189 = vadd.f32 0.0, %v3188
    %v3190 = vpop.f32.mrb[0].mxu0
    %3191 = vdwg.mxu0
    %3192 = vrot.lane.b32.xlu0 %v2260, 48
    %v3193 = vpop.permute.xlu0 %3192
    %v3196 = vsel %vm310, %v3115, 0
    %3198 = vmatprep.subr.mxu0 0.0
    %3199 = vmatpush1.msra.mxu0 %v3193
    %3200 = vmatprep.subr.mxu0 0.0
    %3201 = vmatpush1.msra.mxu0 0.0
    %3202 = vmatprep.subr.mxu0 0.0
    %3203 = vmatpush1.msra.mxu0 0.0
    %3204 = vmatprep.subr.mxu0 0.0
    %3205 = vmatpush1.msra.mxu0 0.0
    %3206 = vmatprep.subr.mxu0 0.0
    %3207 = vmatpush1.msra.mxu0 0.0
    %3208 = vmatprep.subr.mxu0 0.0
    %3209 = vmatpush1.msra.mxu0 0.0
    %3210 = vmatprep.subr.mxu0 0.0
    %3211 = vmatpush1.msra.mxu0 0.0
    %3212 = vmatprep.subr.mxu0 0.0
    %3213 = vmatpush1.msra.mxu0 0.0
    %3214 = vmatprep.subr.mxu0 0.0
    %3215 = vmatpush1.msra.mxu0 0.0
    %3216 = vmatprep.subr.mxu0 0.0
    %3217 = vmatpush1.msra.mxu0 0.0
    %3218 = vmatprep.subr.mxu0 0.0
    %3219 = vmatpush1.msra.mxu0 0.0
    %3220 = vmatprep.subr.mxu0 0.0
    %3221 = vmatpush1.msra.mxu0 0.0
    %3222 = vmatprep.subr.mxu0 0.0
    %3223 = vmatpush1.msra.mxu0 0.0
    %3224 = vmatprep.subr.mxu0 0.0
    %3225 = vmatpush1.msra.mxu0 0.0
    %3226 = vmatprep.subr.mxu0 0.0
    %3227 = vmatpush1.msra.mxu0 0.0
    %3228 = vmatprep.subr.mxu0 0.0
    %3229 = vmatpush1.msra.mxu0 0.0
    %3230 = vmatprep.subr.mxu0 0.0
    %3231 = vmatpush1.msra.mxu0 0.0
    %3232 = vmatprep.subr.mxu0 0.0
    %3233 = vmatpush1.msra.mxu0 0.0
    %3234 = vmatprep.subr.mxu0 0.0
    %3235 = vmatpush1.msra.mxu0 0.0
    %3236 = vmatprep.subr.mxu0 0.0
    %3237 = vmatpush1.msra.mxu0 0.0
    %3238 = vmatprep.subr.mxu0 0.0
    %3239 = vmatpush1.msra.mxu0 0.0
    %3240 = vmatprep.subr.mxu0 0.0
    %3241 = vmatpush1.msra.mxu0 0.0
    %3242 = vmatprep.subr.mxu0 0.0
    %3243 = vmatpush1.msra.mxu0 0.0
    %3244 = vmatprep.subr.mxu0 0.0
    %3245 = vmatpush1.msra.mxu0 0.0
    %3246 = vmatprep.subr.mxu0 0.0
    %3247 = vmatpush1.msra.mxu0 0.0
    %3248 = vmatprep.subr.mxu0 0.0
    %3249 = vmatpush1.msra.mxu0 0.0
    %3250 = vmatprep.subr.mxu0 0.0
    %3251 = vmatpush1.msra.mxu0 0.0
    %3252 = vmatprep.subr.mxu0 0.0
    %3253 = vmatpush1.msra.mxu0 0.0
    %3254 = vmatprep.subr.mxu0 0.0
    %3255 = vmatpush1.msra.mxu0 0.0
    %3256 = vmatprep.subr.mxu0 0.0
    %3257 = vmatpush1.msra.mxu0 0.0
    %3258 = vmatprep.subr.mxu0 0.0
    %3259 = vmatpush1.msra.mxu0 0.0
    %3260 = vmatprep.subr.mxu0 0.0
    %3261 = vmatpush1.msra.mxu0 0.0
    %3262 = vmatprep.mubr.f32.mxu0 0.0
    %3263 = vmatmul.mubr.f32.gmra.mrb[0].mxu0 %v3196
    %v3264 = vpop.f32.mrb[0].mxu0
    %v3265 = vadd.f32 0.0, %v3264
    %v3266 = vpop.f32.mrb[0].mxu0
    %3267 = vdwg.mxu0
    %3268 = vrot.lane.b32.xlu0 %v2255, 104
    %v3269 = vpop.permute.xlu0 %3268
    %3270 = vrot.lane.b32.xlu0 %v2255, 72
    %v3271 = vpop.permute.xlu0 %3270
    %v3272 = vsel %vm310, %v3269, 0
    %v3274 = vsel %vm310, %v3271, 0
    %3276 = vmatprep.subr.mxu0 0.0
    %3277 = vmatpush1.xpose.msra.mxu0 %v3274
    %3278 = vmatprep.subr.mxu0 0.0
    %3279 = vmatpush1.xpose.msra.mxu0 0.0
    %3280 = vmatprep.subr.mxu0 0.0
    %3281 = vmatpush1.xpose.msra.mxu0 0.0
    %3282 = vmatprep.subr.mxu0 0.0
    %3283 = vmatpush1.xpose.msra.mxu0 0.0
    %3284 = vmatprep.subr.mxu0 0.0
    %3285 = vmatpush1.xpose.msra.mxu0 0.0
    %3286 = vmatprep.subr.mxu0 0.0
    %3287 = vmatpush1.xpose.msra.mxu0 0.0
    %3288 = vmatprep.subr.mxu0 0.0
    %3289 = vmatpush1.xpose.msra.mxu0 0.0
    %3290 = vmatprep.subr.mxu0 0.0
    %3291 = vmatpush1.xpose.msra.mxu0 0.0
    %3292 = vmatprep.subr.mxu0 0.0
    %3293 = vmatpush1.xpose.msra.mxu0 0.0
    %3294 = vmatprep.subr.mxu0 0.0
    %3295 = vmatpush1.xpose.msra.mxu0 0.0
    %3296 = vmatprep.subr.mxu0 0.0
    %3297 = vmatpush1.xpose.msra.mxu0 0.0
    %3298 = vmatprep.subr.mxu0 0.0
    %3299 = vmatpush1.xpose.msra.mxu0 0.0
    %3300 = vmatprep.subr.mxu0 0.0
    %3301 = vmatpush1.xpose.msra.mxu0 0.0
    %3302 = vmatprep.subr.mxu0 0.0
    %3303 = vmatpush1.xpose.msra.mxu0 0.0
    %3304 = vmatprep.subr.mxu0 0.0
    %3305 = vmatpush1.xpose.msra.mxu0 0.0
    %3306 = vmatprep.subr.mxu0 0.0
    %3307 = vmatpush1.xpose.msra.mxu0 0.0
    %3308 = vmatprep.subr.mxu0 0.0
    %3309 = vmatpush1.xpose.msra.mxu0 0.0
    %3310 = vmatprep.subr.mxu0 0.0
    %3311 = vmatpush1.xpose.msra.mxu0 0.0
    %3312 = vmatprep.subr.mxu0 0.0
    %3313 = vmatpush1.xpose.msra.mxu0 0.0
    %3314 = vmatprep.subr.mxu0 0.0
    %3315 = vmatpush1.xpose.msra.mxu0 0.0
    %3316 = vmatprep.subr.mxu0 0.0
    %3317 = vmatpush1.xpose.msra.mxu0 0.0
    %3318 = vmatprep.subr.mxu0 0.0
    %3319 = vmatpush1.xpose.msra.mxu0 0.0
    %3320 = vmatprep.subr.mxu0 0.0
    %3321 = vmatpush1.xpose.msra.mxu0 0.0
    %3322 = vmatprep.subr.mxu0 0.0
    %3323 = vmatpush1.xpose.msra.mxu0 0.0
    %3324 = vmatprep.subr.mxu0 0.0
    %3325 = vmatpush1.xpose.msra.mxu0 0.0
    %3326 = vmatprep.subr.mxu0 0.0
    %3327 = vmatpush1.xpose.msra.mxu0 0.0
    %3328 = vmatprep.subr.mxu0 0.0
    %3329 = vmatpush1.xpose.msra.mxu0 0.0
    %3330 = vmatprep.subr.mxu0 0.0
    %3331 = vmatpush1.xpose.msra.mxu0 0.0
    %3332 = vmatprep.subr.mxu0 0.0
    %3333 = vmatpush1.xpose.msra.mxu0 0.0
    %3334 = vmatprep.subr.mxu0 0.0
    %3335 = vmatpush1.xpose.msra.mxu0 0.0
    %3336 = vmatprep.subr.mxu0 0.0
    %3337 = vmatpush1.xpose.msra.mxu0 0.0
    %3338 = vmatprep.subr.mxu0 0.0
    %3339 = vmatpush1.xpose.msra.mxu0 0.0
    %3340 = vmatprep.mubr.f32.mxu0 0.0
    %3341 = vmatmul.mubr.f32.gmra.mrb[0].mxu0 %v3272
    %v3342 = vpop.f32.mrb[0].mxu0
    %v3343 = vadd.f32 0.0, %v3342
    %v3344 = vpop.f32.mrb[0].mxu0
    %3345 = vdwg.mxu0
    %3346 = vrot.lane.b32.xlu0 %v2260, 104
    %v3347 = vpop.permute.xlu0 %3346
    %3348 = vrot.lane.b32.xlu0 %v2260, 72
    %v3349 = vpop.permute.xlu0 %3348
    %v3350 = vsel %vm310, %v3347, 0
    %v3352 = vsel %vm310, %v3349, 0
    %3354 = vmatprep.subr.mxu0 0.0
    %3355 = vmatpush1.xpose.msra.mxu0 %v3352
    %3356 = vmatprep.subr.mxu0 0.0
    %3357 = vmatpush1.xpose.msra.mxu0 0.0
    %3358 = vmatprep.subr.mxu0 0.0
    %3359 = vmatpush1.xpose.msra.mxu0 0.0
    %3360 = vmatprep.subr.mxu0 0.0
    %3361 = vmatpush1.xpose.msra.mxu0 0.0
    %3362 = vmatprep.subr.mxu0 0.0
    %3363 = vmatpush1.xpose.msra.mxu0 0.0
    %3364 = vmatprep.subr.mxu0 0.0
    %3365 = vmatpush1.xpose.msra.mxu0 0.0
    %3366 = vmatprep.subr.mxu0 0.0
    %3367 = vmatpush1.xpose.msra.mxu0 0.0
    %3368 = vmatprep.subr.mxu0 0.0
    %3369 = vmatpush1.xpose.msra.mxu0 0.0
    %3370 = vmatprep.subr.mxu0 0.0
    %3371 = vmatpush1.xpose.msra.mxu0 0.0
    %3372 = vmatprep.subr.mxu0 0.0
    %3373 = vmatpush1.xpose.msra.mxu0 0.0
    %3374 = vmatprep.subr.mxu0 0.0
    %3375 = vmatpush1.xpose.msra.mxu0 0.0
    %3376 = vmatprep.subr.mxu0 0.0
    %3377 = vmatpush1.xpose.msra.mxu0 0.0
    %3378 = vmatprep.subr.mxu0 0.0
    %3379 = vmatpush1.xpose.msra.mxu0 0.0
    %3380 = vmatprep.subr.mxu0 0.0
    %3381 = vmatpush1.xpose.msra.mxu0 0.0
    %3382 = vmatprep.subr.mxu0 0.0
    %3383 = vmatpush1.xpose.msra.mxu0 0.0
    %3384 = vmatprep.subr.mxu0 0.0
    %3385 = vmatpush1.xpose.msra.mxu0 0.0
    %3386 = vmatprep.subr.mxu0 0.0
    %3387 = vmatpush1.xpose.msra.mxu0 0.0
    %3388 = vmatprep.subr.mxu0 0.0
    %3389 = vmatpush1.xpose.msra.mxu0 0.0
    %3390 = vmatprep.subr.mxu0 0.0
    %3391 = vmatpush1.xpose.msra.mxu0 0.0
    %3392 = vmatprep.subr.mxu0 0.0
    %3393 = vmatpush1.xpose.msra.mxu0 0.0
    %3394 = vmatprep.subr.mxu0 0.0
    %3395 = vmatpush1.xpose.msra.mxu0 0.0
    %3396 = vmatprep.subr.mxu0 0.0
    %3397 = vmatpush1.xpose.msra.mxu0 0.0
    %3398 = vmatprep.subr.mxu0 0.0
    %3399 = vmatpush1.xpose.msra.mxu0 0.0
    %3400 = vmatprep.subr.mxu0 0.0
    %3401 = vmatpush1.xpose.msra.mxu0 0.0
    %3402 = vmatprep.subr.mxu0 0.0
    %3403 = vmatpush1.xpose.msra.mxu0 0.0
    %3404 = vmatprep.subr.mxu0 0.0
    %3405 = vmatpush1.xpose.msra.mxu0 0.0
    %3406 = vmatprep.subr.mxu0 0.0
    %3407 = vmatpush1.xpose.msra.mxu0 0.0
    %3408 = vmatprep.subr.mxu0 0.0
    %3409 = vmatpush1.xpose.msra.mxu0 0.0
    %3410 = vmatprep.subr.mxu0 0.0
    %3411 = vmatpush1.xpose.msra.mxu0 0.0
    %3412 = vmatprep.subr.mxu0 0.0
    %3413 = vmatpush1.xpose.msra.mxu0 0.0
    %3414 = vmatprep.subr.mxu0 0.0
    %3415 = vmatpush1.xpose.msra.mxu0 0.0
    %3416 = vmatprep.subr.mxu0 0.0
    %3417 = vmatpush1.xpose.msra.mxu0 0.0
    %3418 = vmatprep.mubr.f32.mxu0 0.0
    %3419 = vmatmul.mubr.f32.gmra.mrb[0].mxu0 %v3350
    %v3420 = vpop.f32.mrb[0].mxu0
    %v3421 = vadd.f32 0.0, %v3420
    %v3422 = vpop.f32.mrb[0].mxu0
    %3423 = vdwg.mxu0
    %v3424 = vmul.f32 %v3343, 0.35355338
    %v3425 = vmul.f32 %v3421, 0.35355338
    %v3426 = vsel %vm2423, %v3424, -1e+09
    %v3427 = vsel %vm2423, %v3425, -1e+09
    %v3428 = vsel %vm310, %v3426, -inf
    %3429 = vmax.xlane.f32.xlu0 %v3428
    %v3430 = vpop.xlane.xlu0 %3429
    %v3431 = vsel %vm310, %v3427, -inf
    %3432 = vmax.xlane.f32.xlu0 %v3431
    %v3433 = vpop.xlane.xlu0 %3432
    %v3434 = vsub.f32 %v3426, %v3430
    %v3435 = vsub.f32 %v3427, %v3433
    %v3436 = vmul.f32 %v3434, 1.442695
    %v3437 = vpow.pop %v3436
    %v3438 = vmul.f32 %v3435, 1.442695
    %v3439 = vpow.pop %v3438
    %v3440 = vsel %vm310, %v3437, 0.0
    %3441 = vadd.xlane.f32.xlu0 %v3440
    %v3442 = vpop.xlane.xlu0 %3441
    %v3443 = vsel %vm310, %v3439, 0.0
    %3444 = vadd.xlane.f32.xlu0 %v3443
    %v3445 = vpop.xlane.xlu0 %3444
    %v3446 = vrcp.pop %v3442
    %v3447 = vmul.f32 %v3437, %v3446
    %v3448 = vrcp.pop %v3445
    %v3449 = vmul.f32 %v3439, %v3448
    %3450 = vrot.lane.b32.xlu0 %v2255, 40
    %v3451 = vpop.permute.xlu0 %3450
    %v3454 = vsel %vm310, %v3447, 0
    %3456 = vmatprep.subr.mxu0 0.0
    %3457 = vmatpush1.msra.mxu0 %v3451
    %3458 = vmatprep.subr.mxu0 0.0
    %3459 = vmatpush1.msra.mxu0 0.0
    %3460 = vmatprep.subr.mxu0 0.0
    %3461 = vmatpush1.msra.mxu0 0.0
    %3462 = vmatprep.subr.mxu0 0.0
    %3463 = vmatpush1.msra.mxu0 0.0
    %3464 = vmatprep.subr.mxu0 0.0
    %3465 = vmatpush1.msra.mxu0 0.0
    %3466 = vmatprep.subr.mxu0 0.0
    %3467 = vmatpush1.msra.mxu0 0.0
    %3468 = vmatprep.subr.mxu0 0.0
    %3469 = vmatpush1.msra.mxu0 0.0
    %3470 = vmatprep.subr.mxu0 0.0
    %3471 = vmatpush1.msra.mxu0 0.0
    %3472 = vmatprep.subr.mxu0 0.0
    %3473 = vmatpush1.msra.mxu0 0.0
    %3474 = vmatprep.subr.mxu0 0.0
    %3475 = vmatpush1.msra.mxu0 0.0
    %3476 = vmatprep.subr.mxu0 0.0
    %3477 = vmatpush1.msra.mxu0 0.0
    %3478 = vmatprep.subr.mxu0 0.0
    %3479 = vmatpush1.msra.mxu0 0.0
    %3480 = vmatprep.subr.mxu0 0.0
    %3481 = vmatpush1.msra.mxu0 0.0
    %3482 = vmatprep.subr.mxu0 0.0
    %3483 = vmatpush1.msra.mxu0 0.0
    %3484 = vmatprep.subr.mxu0 0.0
    %3485 = vmatpush1.msra.mxu0 0.0
    %3486 = vmatprep.subr.mxu0 0.0
    %3487 = vmatpush1.msra.mxu0 0.0
    %3488 = vmatprep.subr.mxu0 0.0
    %3489 = vmatpush1.msra.mxu0 0.0
    %3490 = vmatprep.subr.mxu0 0.0
    %3491 = vmatpush1.msra.mxu0 0.0
    %3492 = vmatprep.subr.mxu0 0.0
    %3493 = vmatpush1.msra.mxu0 0.0
    %3494 = vmatprep.subr.mxu0 0.0
    %3495 = vmatpush1.msra.mxu0 0.0
    %3496 = vmatprep.subr.mxu0 0.0
    %3497 = vmatpush1.msra.mxu0 0.0
    %3498 = vmatprep.subr.mxu0 0.0
    %3499 = vmatpush1.msra.mxu0 0.0
    %3500 = vmatprep.subr.mxu0 0.0
    %3501 = vmatpush1.msra.mxu0 0.0
    %3502 = vmatprep.subr.mxu0 0.0
    %3503 = vmatpush1.msra.mxu0 0.0
    %3504 = vmatprep.subr.mxu0 0.0
    %3505 = vmatpush1.msra.mxu0 0.0
    %3506 = vmatprep.subr.mxu0 0.0
    %3507 = vmatpush1.msra.mxu0 0.0
    %3508 = vmatprep.subr.mxu0 0.0
    %3509 = vmatpush1.msra.mxu0 0.0
    %3510 = vmatprep.subr.mxu0 0.0
    %3511 = vmatpush1.msra.mxu0 0.0
    %3512 = vmatprep.subr.mxu0 0.0
    %3513 = vmatpush1.msra.mxu0 0.0
    %3514 = vmatprep.subr.mxu0 0.0
    %3515 = vmatpush1.msra.mxu0 0.0
    %3516 = vmatprep.subr.mxu0 0.0
    %3517 = vmatpush1.msra.mxu0 0.0
    %3518 = vmatprep.subr.mxu0 0.0
    %3519 = vmatpush1.msra.mxu0 0.0
    %3520 = vmatprep.mubr.f32.mxu0 0.0
    %3521 = vmatmul.mubr.f32.gmra.mrb[0].mxu0 %v3454
    %v3522 = vpop.f32.mrb[0].mxu0
    %v3523 = vadd.f32 0.0, %v3522
    %v3524 = vpop.f32.mrb[0].mxu0
    %3525 = vdwg.mxu0
    %3526 = vrot.lane.b32.xlu0 %v2260, 40
    %v3527 = vpop.permute.xlu0 %3526
    %v3530 = vsel %vm310, %v3449, 0
    %3532 = vmatprep.subr.mxu0 0.0
    %3533 = vmatpush1.msra.mxu0 %v3527
    %3534 = vmatprep.subr.mxu0 0.0
    %3535 = vmatpush1.msra.mxu0 0.0
    %3536 = vmatprep.subr.mxu0 0.0
    %3537 = vmatpush1.msra.mxu0 0.0
    %3538 = vmatprep.subr.mxu0 0.0
    %3539 = vmatpush1.msra.mxu0 0.0
    %3540 = vmatprep.subr.mxu0 0.0
    %3541 = vmatpush1.msra.mxu0 0.0
    %3542 = vmatprep.subr.mxu0 0.0
    %3543 = vmatpush1.msra.mxu0 0.0
    %3544 = vmatprep.subr.mxu0 0.0
    %3545 = vmatpush1.msra.mxu0 0.0
    %3546 = vmatprep.subr.mxu0 0.0
    %3547 = vmatpush1.msra.mxu0 0.0
    %3548 = vmatprep.subr.mxu0 0.0
    %3549 = vmatpush1.msra.mxu0 0.0
    %3550 = vmatprep.subr.mxu0 0.0
    %3551 = vmatpush1.msra.mxu0 0.0
    %3552 = vmatprep.subr.mxu0 0.0
    %3553 = vmatpush1.msra.mxu0 0.0
    %3554 = vmatprep.subr.mxu0 0.0
    %3555 = vmatpush1.msra.mxu0 0.0
    %3556 = vmatprep.subr.mxu0 0.0
    %3557 = vmatpush1.msra.mxu0 0.0
    %3558 = vmatprep.subr.mxu0 0.0
    %3559 = vmatpush1.msra.mxu0 0.0
    %3560 = vmatprep.subr.mxu0 0.0
    %3561 = vmatpush1.msra.mxu0 0.0
    %3562 = vmatprep.subr.mxu0 0.0
    %3563 = vmatpush1.msra.mxu0 0.0
    %3564 = vmatprep.subr.mxu0 0.0
    %3565 = vmatpush1.msra.mxu0 0.0
    %3566 = vmatprep.subr.mxu0 0.0
    %3567 = vmatpush1.msra.mxu0 0.0
    %3568 = vmatprep.subr.mxu0 0.0
    %3569 = vmatpush1.msra.mxu0 0.0
    %3570 = vmatprep.subr.mxu0 0.0
    %3571 = vmatpush1.msra.mxu0 0.0
    %3572 = vmatprep.subr.mxu0 0.0
    %3573 = vmatpush1.msra.mxu0 0.0
    %3574 = vmatprep.subr.mxu0 0.0
    %3575 = vmatpush1.msra.mxu0 0.0
    %3576 = vmatprep.subr.mxu0 0.0
    %3577 = vmatpush1.msra.mxu0 0.0
    %3578 = vmatprep.subr.mxu0 0.0
    %3579 = vmatpush1.msra.mxu0 0.0
    %3580 = vmatprep.subr.mxu0 0.0
    %3581 = vmatpush1.msra.mxu0 0.0
    %3582 = vmatprep.subr.mxu0 0.0
    %3583 = vmatpush1.msra.mxu0 0.0
    %3584 = vmatprep.subr.mxu0 0.0
    %3585 = vmatpush1.msra.mxu0 0.0
    %3586 = vmatprep.subr.mxu0 0.0
    %3587 = vmatpush1.msra.mxu0 0.0
    %3588 = vmatprep.subr.mxu0 0.0
    %3589 = vmatpush1.msra.mxu0 0.0
    %3590 = vmatprep.subr.mxu0 0.0
    %3591 = vmatpush1.msra.mxu0 0.0
    %3592 = vmatprep.subr.mxu0 0.0
    %3593 = vmatpush1.msra.mxu0 0.0
    %3594 = vmatprep.subr.mxu0 0.0
    %3595 = vmatpush1.msra.mxu0 0.0
    %3596 = vmatprep.mubr.f32.mxu0 0.0
    %3597 = vmatmul.mubr.f32.gmra.mrb[0].mxu0 %v3530
    %v3598 = vpop.f32.mrb[0].mxu0
    %v3599 = vadd.f32 0.0, %v3598
    %v3600 = vpop.f32.mrb[0].mxu0
    %3601 = vdwg.mxu0
    %3604 = vrot.lane.b32.xlu0 %v2855, 8
    %v3605 = vpop.permute.xlu0 %3604
    %3606 = vrot.lane.b32.xlu0 %v2931, 8
    %v3607 = vpop.permute.xlu0 %3606
    %3612 = vrot.lane.b32.xlu0 %v3189, 16
    %v3613 = vpop.permute.xlu0 %3612
    %3614 = vrot.lane.b32.xlu0 %v3265, 16
    %v3615 = vpop.permute.xlu0 %3614
    %3620 = vrot.lane.b32.xlu0 %v3523, 24
    %v3621 = vpop.permute.xlu0 %3620
    %3622 = vrot.lane.b32.xlu0 %v3599, 24
    %v3623 = vpop.permute.xlu0 %3622
    %v3626 = vsel %vm310, %v2521, %v3605
    %v3627 = vsel %vm310, %v2597, %v3607
    %v3628 = vsel %vm1660, %v3626, %v3613
    %v3629 = vsel %vm1660, %v3627, %v3615
    %v3630 = vsel %vm1663, %v3628, %v3621
    %v3631 = vsel %vm1663, %v3629, %v3623
    %v3632 = vlaneseq
    %v3633 = vshrl.u32 %v3632, 7
    %v3634 = vsub.s32 1, %v3633
    %v3635 = vrot.slane %v81, %v3634
    %3636 = vrot.lane.b32.xlu0 %v54, 96
    %v3637 = vpop.permute.xlu0 %3636
    %3638 = vrot.lane.b32.xlu0 %v59, 96
    %v3639 = vpop.permute.xlu0 %3638
    %3640 = vrot.lane.b32.xlu0 %v64, 96
    %v3641 = vpop.permute.xlu0 %3640
    %3642 = vrot.lane.b32.xlu0 %v69, 96
    %v3643 = vpop.permute.xlu0 %3642
    %v3649 = vsel %vm225, %v3630, 0
    %v3652 = vsel %vm225, %v3631, 0
    %3654 = vmatprep.subr.mxu0 0.0
    %3655 = vmatpush1.msra.mxu0 %v3637
    %3656 = vmatprep.subr.mxu0 0.0
    %3657 = vmatpush1.msra.mxu0 %v3639
    %3658 = vmatprep.subr.mxu0 0.0
    %3659 = vmatpush1.msra.mxu0 %v3641
    %3660 = vmatprep.subr.mxu0 0.0
    %3661 = vmatpush1.msra.mxu0 %v3643
    %3662 = vmatprep.subr.mxu0 0.0
    %3663 = vmatpush1.msra.mxu0 0.0
    %3664 = vmatprep.subr.mxu0 0.0
    %3665 = vmatpush1.msra.mxu0 0.0
    %3666 = vmatprep.subr.mxu0 0.0
    %3667 = vmatpush1.msra.mxu0 0.0
    %3668 = vmatprep.subr.mxu0 0.0
    %3669 = vmatpush1.msra.mxu0 0.0
    %3670 = vmatprep.subr.mxu0 0.0
    %3671 = vmatpush1.msra.mxu0 0.0
    %3672 = vmatprep.subr.mxu0 0.0
    %3673 = vmatpush1.msra.mxu0 0.0
    %3674 = vmatprep.subr.mxu0 0.0
    %3675 = vmatpush1.msra.mxu0 0.0
    %3676 = vmatprep.subr.mxu0 0.0
    %3677 = vmatpush1.msra.mxu0 0.0
    %3678 = vmatprep.subr.mxu0 0.0
    %3679 = vmatpush1.msra.mxu0 0.0
    %3680 = vmatprep.subr.mxu0 0.0
    %3681 = vmatpush1.msra.mxu0 0.0
    %3682 = vmatprep.subr.mxu0 0.0
    %3683 = vmatpush1.msra.mxu0 0.0
    %3684 = vmatprep.subr.mxu0 0.0
    %3685 = vmatpush1.msra.mxu0 0.0
    %3686 = vmatprep.subr.mxu0 0.0
    %3687 = vmatpush1.msra.mxu0 0.0
    %3688 = vmatprep.subr.mxu0 0.0
    %3689 = vmatpush1.msra.mxu0 0.0
    %3690 = vmatprep.subr.mxu0 0.0
    %3691 = vmatpush1.msra.mxu0 0.0
    %3692 = vmatprep.subr.mxu0 0.0
    %3693 = vmatpush1.msra.mxu0 0.0
    %3694 = vmatprep.subr.mxu0 0.0
    %3695 = vmatpush1.msra.mxu0 0.0
    %3696 = vmatprep.subr.mxu0 0.0
    %3697 = vmatpush1.msra.mxu0 0.0
    %3698 = vmatprep.subr.mxu0 0.0
    %3699 = vmatpush1.msra.mxu0 0.0
    %3700 = vmatprep.subr.mxu0 0.0
    %3701 = vmatpush1.msra.mxu0 0.0
    %3702 = vmatprep.subr.mxu0 0.0
    %3703 = vmatpush1.msra.mxu0 0.0
    %3704 = vmatprep.subr.mxu0 0.0
    %3705 = vmatpush1.msra.mxu0 0.0
    %3706 = vmatprep.subr.mxu0 0.0
    %3707 = vmatpush1.msra.mxu0 0.0
    %3708 = vmatprep.subr.mxu0 0.0
    %3709 = vmatpush1.msra.mxu0 0.0
    %3710 = vmatprep.subr.mxu0 0.0
    %3711 = vmatpush1.msra.mxu0 0.0
    %3712 = vmatprep.subr.mxu0 0.0
    %3713 = vmatpush1.msra.mxu0 0.0
    %3714 = vmatprep.subr.mxu0 0.0
    %3715 = vmatpush1.msra.mxu0 0.0
    %3716 = vmatprep.subr.mxu0 0.0
    %3717 = vmatpush1.msra.mxu0 0.0
    %3718 = vmatprep.mubr.f32.mxu0 0.0
    %3719 = vmatmul.mubr.f32.gmra.mrb[0].mxu0 %v3649
    %v3720 = vpop.f32.mrb[0].mxu0
    %v3721 = vadd.f32 %v3635, %v3720
    %v3722 = vpop.f32.mrb[0].mxu0
    %3723 = vmatprep.mubr.f32.mxu0 0.0
    %3724 = vmatmul.mubr.f32.gmra.mrb[0].mxu0 %v3652
    %v3725 = vpop.f32.mrb[0].mxu0
    %v3726 = vadd.f32 %v3635, %v3725
    %v3727 = vpop.f32.mrb[0].mxu0
    %3728 = vdwg.mxu0
    %v3729 = vadd.f32 %v2144, %v3721
    %v3730 = vadd.f32 %v2145, %v3726
    %v3731 = vsel %vm225, %v3729, 0.0
    %3732 = vadd.xlane.f32.xlu0 %v3731
    %v3733 = vpop.xlane.xlu0 %3732
    %v3734 = vsel %vm225, %v3730, 0.0
    %3735 = vadd.xlane.f32.xlu0 %v3734
    %v3736 = vpop.xlane.xlu0 %3735
    %v3737 = vmul.f32 %v3733, %v1775
    %v3738 = vmul.f32 %v3736, %v1775
    %v3739 = vsub.f32 %v3729, %v3737
    %v3740 = vsub.f32 %v3730, %v3738
    %v3741 = vmul.f32 %v3739, %v3739
    %v3742 = vmul.f32 %v3740, %v3740
    %v3743 = vsel %vm225, %v3741, 0.0
    %3744 = vadd.xlane.f32.xlu0 %v3743
    %v3745 = vpop.xlane.xlu0 %3744
    %v3746 = vsel %vm225, %v3742, 0.0
    %3747 = vadd.xlane.f32.xlu0 %v3746
    %v3748 = vpop.xlane.xlu0 %3747
    %v3749 = vmul.f32 %v3745, %v1775
    %v3750 = vmul.f32 %v3748, %v1775
    %v3751 = vadd.f32 %v3749, 1e-05
    %v3752 = vadd.f32 %v3750, 1e-05
    %v3753 = vrsqrt.pop %v3751
    %v3754 = vrsqrt.pop %v3752
    %v3755 = vmul.f32 %v3739, %v3753
    %v3756 = vmul.f32 %v3740, %v3754
    %v3757 = vlaneseq
    %v3758 = vshrl.u32 %v3757, 7
    %v3759 = vsub.s32 2, %v3758
    %v3760 = vrot.slane %v81, %v3759
    %v3761 = vmul.f32 %v3755, %v3760
    %v3762 = vmul.f32 %v3756, %v3760
    %v3763 = vlaneseq
    %v3764 = vshrl.u32 %v3763, 7
    %v3765 = vsub.s32 3, %v3764
    %v3766 = vrot.slane %v81, %v3765
    %v3767 = vadd.f32 %v3761, %v3766
    %v3768 = vadd.f32 %v3762, %v3766
    %v3769 = vlaneseq
    %v3770 = vshrl.u32 %v3769, 7
    %v3771 = vsub.s32 4, %v3770
    %v3772 = vrot.slane %v81, %v3771
    %v3778 = vsel %vm225, %v3767, 0
    %v3781 = vsel %vm225, %v3768, 0
    %3783 = vmatprep.subr.mxu0 0.0
    %3784 = vmatpush1.msra.mxu0 %v2161
    %3785 = vmatprep.subr.mxu0 0.0
    %3786 = vmatpush1.msra.mxu0 %v2165
    %3787 = vmatprep.subr.mxu0 0.0
    %3788 = vmatpush1.msra.mxu0 %v2169
    %3789 = vmatprep.subr.mxu0 0.0
    %3790 = vmatpush1.msra.mxu0 %v2173
    %3791 = vmatprep.subr.mxu0 0.0
    %3792 = vmatpush1.msra.mxu0 0.0
    %3793 = vmatprep.subr.mxu0 0.0
    %3794 = vmatpush1.msra.mxu0 0.0
    %3795 = vmatprep.subr.mxu0 0.0
    %3796 = vmatpush1.msra.mxu0 0.0
    %3797 = vmatprep.subr.mxu0 0.0
    %3798 = vmatpush1.msra.mxu0 0.0
    %3799 = vmatprep.subr.mxu0 0.0
    %3800 = vmatpush1.msra.mxu0 0.0
    %3801 = vmatprep.subr.mxu0 0.0
    %3802 = vmatpush1.msra.mxu0 0.0
    %3803 = vmatprep.subr.mxu0 0.0
    %3804 = vmatpush1.msra.mxu0 0.0
    %3805 = vmatprep.subr.mxu0 0.0
    %3806 = vmatpush1.msra.mxu0 0.0
    %3807 = vmatprep.subr.mxu0 0.0
    %3808 = vmatpush1.msra.mxu0 0.0
    %3809 = vmatprep.subr.mxu0 0.0
    %3810 = vmatpush1.msra.mxu0 0.0
    %3811 = vmatprep.subr.mxu0 0.0
    %3812 = vmatpush1.msra.mxu0 0.0
    %3813 = vmatprep.subr.mxu0 0.0
    %3814 = vmatpush1.msra.mxu0 0.0
    %3815 = vmatprep.subr.mxu0 0.0
    %3816 = vmatpush1.msra.mxu0 0.0
    %3817 = vmatprep.subr.mxu0 0.0
    %3818 = vmatpush1.msra.mxu0 0.0
    %3819 = vmatprep.subr.mxu0 0.0
    %3820 = vmatpush1.msra.mxu0 0.0
    %3821 = vmatprep.subr.mxu0 0.0
    %3822 = vmatpush1.msra.mxu0 0.0
    %3823 = vmatprep.subr.mxu0 0.0
    %3824 = vmatpush1.msra.mxu0 0.0
    %3825 = vmatprep.subr.mxu0 0.0
    %3826 = vmatpush1.msra.mxu0 0.0
    %3827 = vmatprep.subr.mxu0 0.0
    %3828 = vmatpush1.msra.mxu0 0.0
    %3829 = vmatprep.subr.mxu0 0.0
    %3830 = vmatpush1.msra.mxu0 0.0
    %3831 = vmatprep.subr.mxu0 0.0
    %3832 = vmatpush1.msra.mxu0 0.0
    %3833 = vmatprep.subr.mxu0 0.0
    %3834 = vmatpush1.msra.mxu0 0.0
    %3835 = vmatprep.subr.mxu0 0.0
    %3836 = vmatpush1.msra.mxu0 0.0
    %3837 = vmatprep.subr.mxu0 0.0
    %3838 = vmatpush1.msra.mxu0 0.0
    %3839 = vmatprep.subr.mxu0 0.0
    %3840 = vmatpush1.msra.mxu0 0.0
    %3841 = vmatprep.subr.mxu0 0.0
    %3842 = vmatpush1.msra.mxu0 0.0
    %3843 = vmatprep.subr.mxu0 0.0
    %3844 = vmatpush1.msra.mxu0 0.0
    %3845 = vmatprep.subr.mxu0 0.0
    %3846 = vmatpush1.msra.mxu0 0.0
    %3847 = vmatprep.mubr.f32.mxu0 0.0
    %3848 = vmatmul.mubr.f32.gmra.mrb[0].mxu0 %v3778
    %v3849 = vpop.f32.mrb[0].mxu0
    %v3850 = vadd.f32 %v3772, %v3849
    %v3851 = vpop.f32.mrb[0].mxu0
    %3852 = vmatprep.mubr.f32.mxu0 0.0
    %3853 = vmatmul.mubr.f32.gmra.mrb[0].mxu0 %v3781
    %v3854 = vpop.f32.mrb[0].mxu0
    %v3855 = vadd.f32 %v3772, %v3854
    %v3856 = vpop.f32.mrb[0].mxu0
    %3857 = vdwg.mxu0
    %v3858 = vlaneseq
    %v3859 = vshrl.u32 %v3858, 7
    %v3860 = vsub.s32 5, %v3859
    %v3861 = vrot.slane %v81, %v3860
    %3866 = vrot.lane.b32.xlu0 %v54, 32
    %v3867 = vpop.permute.xlu0 %3866
    %3868 = vrot.lane.b32.xlu0 %v55, 32
    %v3869 = vpop.permute.xlu0 %3868
    %3870 = vrot.lane.b32.xlu0 %v59, 32
    %v3871 = vpop.permute.xlu0 %3870
    %3872 = vrot.lane.b32.xlu0 %v60, 32
    %v3873 = vpop.permute.xlu0 %3872
    %3874 = vrot.lane.b32.xlu0 %v64, 32
    %v3875 = vpop.permute.xlu0 %3874
    %3876 = vrot.lane.b32.xlu0 %v65, 32
    %v3877 = vpop.permute.xlu0 %3876
    %3878 = vrot.lane.b32.xlu0 %v69, 32
    %v3879 = vpop.permute.xlu0 %3878
    %3880 = vrot.lane.b32.xlu0 %v70, 32
    %v3881 = vpop.permute.xlu0 %3880
    %v3882 = vsel %vm225, %v3867, %v3869
    %v3883 = vsel %vm225, %v3871, %v3873
    %v3884 = vsel %vm225, %v3875, %v3877
    %v3885 = vsel %vm225, %v3879, %v3881
    %v3891 = vsel %vm225, %v2018, 0
    %v3894 = vsel %vm225, %v2019, 0
    %3896 = vmatprep.subr.mxu0 0.0
    %3897 = vmatpush1.msra.mxu0 %v3882
    %3898 = vmatprep.subr.mxu0 0.0
    %3899 = vmatpush1.msra.mxu0 %v3883
    %3900 = vmatprep.subr.mxu0 0.0
    %3901 = vmatpush1.msra.mxu0 %v3884
    %3902 = vmatprep.subr.mxu0 0.0
    %3903 = vmatpush1.msra.mxu0 %v3885
    %3904 = vmatprep.subr.mxu0 0.0
    %3905 = vmatpush1.msra.mxu0 0.0
    %3906 = vmatprep.subr.mxu0 0.0
    %3907 = vmatpush1.msra.mxu0 0.0
    %3908 = vmatprep.subr.mxu0 0.0
    %3909 = vmatpush1.msra.mxu0 0.0
    %3910 = vmatprep.subr.mxu0 0.0
    %3911 = vmatpush1.msra.mxu0 0.0
    %3912 = vmatprep.subr.mxu0 0.0
    %3913 = vmatpush1.msra.mxu0 0.0
    %3914 = vmatprep.subr.mxu0 0.0
    %3915 = vmatpush1.msra.mxu0 0.0
    %3916 = vmatprep.subr.mxu0 0.0
    %3917 = vmatpush1.msra.mxu0 0.0
    %3918 = vmatprep.subr.mxu0 0.0
    %3919 = vmatpush1.msra.mxu0 0.0
    %3920 = vmatprep.subr.mxu0 0.0
    %3921 = vmatpush1.msra.mxu0 0.0
    %3922 = vmatprep.subr.mxu0 0.0
    %3923 = vmatpush1.msra.mxu0 0.0
    %3924 = vmatprep.subr.mxu0 0.0
    %3925 = vmatpush1.msra.mxu0 0.0
    %3926 = vmatprep.subr.mxu0 0.0
    %3927 = vmatpush1.msra.mxu0 0.0
    %3928 = vmatprep.subr.mxu0 0.0
    %3929 = vmatpush1.msra.mxu0 0.0
    %3930 = vmatprep.subr.mxu0 0.0
    %3931 = vmatpush1.msra.mxu0 0.0
    %3932 = vmatprep.subr.mxu0 0.0
    %3933 = vmatpush1.msra.mxu0 0.0
    %3934 = vmatprep.subr.mxu0 0.0
    %3935 = vmatpush1.msra.mxu0 0.0
    %3936 = vmatprep.subr.mxu0 0.0
    %3937 = vmatpush1.msra.mxu0 0.0
    %3938 = vmatprep.subr.mxu0 0.0
    %3939 = vmatpush1.msra.mxu0 0.0
    %3940 = vmatprep.subr.mxu0 0.0
    %3941 = vmatpush1.msra.mxu0 0.0
    %3942 = vmatprep.subr.mxu0 0.0
    %3943 = vmatpush1.msra.mxu0 0.0
    %3944 = vmatprep.subr.mxu0 0.0
    %3945 = vmatpush1.msra.mxu0 0.0
    %3946 = vmatprep.subr.mxu0 0.0
    %3947 = vmatpush1.msra.mxu0 0.0
    %3948 = vmatprep.subr.mxu0 0.0
    %3949 = vmatpush1.msra.mxu0 0.0
    %3950 = vmatprep.subr.mxu0 0.0
    %3951 = vmatpush1.msra.mxu0 0.0
    %3952 = vmatprep.subr.mxu0 0.0
    %3953 = vmatpush1.msra.mxu0 0.0
    %3954 = vmatprep.subr.mxu0 0.0
    %3955 = vmatpush1.msra.mxu0 0.0
    %3956 = vmatprep.subr.mxu0 0.0
    %3957 = vmatpush1.msra.mxu0 0.0
    %3958 = vmatprep.subr.mxu0 0.0
    %3959 = vmatpush1.msra.mxu0 0.0
    %3960 = vmatprep.mubr.f32.mxu0 0.0
    %3961 = vmatmul.mubr.f32.gmra.mrb[0].mxu0 %v3891
    %v3962 = vpop.f32.mrb[0].mxu0
    %v3963 = vadd.f32 %v3861, %v3962
    %v3964 = vpop.f32.mrb[0].mxu0
    %3965 = vmatprep.mubr.f32.mxu0 0.0
    %3966 = vmatmul.mubr.f32.gmra.mrb[0].mxu0 %v3894
    %v3967 = vpop.f32.mrb[0].mxu0
    %v3968 = vadd.f32 %v3861, %v3967
    %v3969 = vpop.f32.mrb[0].mxu0
    %3970 = vdwg.mxu0
    %v3972 = vsel %vm310, %v3850, 0
    %v3975 = vsel %vm310, %v3963, 0
    %3977 = vmatprep.subr.mxu0 0.0
    %3978 = vmatpush1.xpose.msra.mxu0 %v3975
    %3979 = vmatprep.subr.mxu0 0.0
    %3980 = vmatpush1.xpose.msra.mxu0 0.0
    %3981 = vmatprep.subr.mxu0 0.0
    %3982 = vmatpush1.xpose.msra.mxu0 0.0
    %3983 = vmatprep.subr.mxu0 0.0
    %3984 = vmatpush1.xpose.msra.mxu0 0.0
    %3985 = vmatprep.subr.mxu0 0.0
    %3986 = vmatpush1.xpose.msra.mxu0 0.0
    %3987 = vmatprep.subr.mxu0 0.0
    %3988 = vmatpush1.xpose.msra.mxu0 0.0
    %3989 = vmatprep.subr.mxu0 0.0
    %3990 = vmatpush1.xpose.msra.mxu0 0.0
    %3991 = vmatprep.subr.mxu0 0.0
    %3992 = vmatpush1.xpose.msra.mxu0 0.0
    %3993 = vmatprep.subr.mxu0 0.0
    %3994 = vmatpush1.xpose.msra.mxu0 0.0
    %3995 = vmatprep.subr.mxu0 0.0
    %3996 = vmatpush1.xpose.msra.mxu0 0.0
    %3997 = vmatprep.subr.mxu0 0.0
    %3998 = vmatpush1.xpose.msra.mxu0 0.0
    %3999 = vmatprep.subr.mxu0 0.0
    %4000 = vmatpush1.xpose.msra.mxu0 0.0
    %4001 = vmatprep.subr.mxu0 0.0
    %4002 = vmatpush1.xpose.msra.mxu0 0.0
    %4003 = vmatprep.subr.mxu0 0.0
    %4004 = vmatpush1.xpose.msra.mxu0 0.0
    %4005 = vmatprep.subr.mxu0 0.0
    %4006 = vmatpush1.xpose.msra.mxu0 0.0
    %4007 = vmatprep.subr.mxu0 0.0
    %4008 = vmatpush1.xpose.msra.mxu0 0.0
    %4009 = vmatprep.subr.mxu0 0.0
    %4010 = vmatpush1.xpose.msra.mxu0 0.0
    %4011 = vmatprep.subr.mxu0 0.0
    %4012 = vmatpush1.xpose.msra.mxu0 0.0
    %4013 = vmatprep.subr.mxu0 0.0
    %4014 = vmatpush1.xpose.msra.mxu0 0.0
    %4015 = vmatprep.subr.mxu0 0.0
    %4016 = vmatpush1.xpose.msra.mxu0 0.0
    %4017 = vmatprep.subr.mxu0 0.0
    %4018 = vmatpush1.xpose.msra.mxu0 0.0
    %4019 = vmatprep.subr.mxu0 0.0
    %4020 = vmatpush1.xpose.msra.mxu0 0.0
    %4021 = vmatprep.subr.mxu0 0.0
    %4022 = vmatpush1.xpose.msra.mxu0 0.0
    %4023 = vmatprep.subr.mxu0 0.0
    %4024 = vmatpush1.xpose.msra.mxu0 0.0
    %4025 = vmatprep.subr.mxu0 0.0
    %4026 = vmatpush1.xpose.msra.mxu0 0.0
    %4027 = vmatprep.subr.mxu0 0.0
    %4028 = vmatpush1.xpose.msra.mxu0 0.0
    %4029 = vmatprep.subr.mxu0 0.0
    %4030 = vmatpush1.xpose.msra.mxu0 0.0
    %4031 = vmatprep.subr.mxu0 0.0
    %4032 = vmatpush1.xpose.msra.mxu0 0.0
    %4033 = vmatprep.subr.mxu0 0.0
    %4034 = vmatpush1.xpose.msra.mxu0 0.0
    %4035 = vmatprep.subr.mxu0 0.0
    %4036 = vmatpush1.xpose.msra.mxu0 0.0
    %4037 = vmatprep.subr.mxu0 0.0
    %4038 = vmatpush1.xpose.msra.mxu0 0.0
    %4039 = vmatprep.subr.mxu0 0.0
    %4040 = vmatpush1.xpose.msra.mxu0 0.0
    %4041 = vmatprep.mubr.f32.mxu0 0.0
    %4042 = vmatmul.mubr.f32.gmra.mrb[0].mxu0 %v3972
    %v4043 = vpop.f32.mrb[0].mxu0
    %v4044 = vadd.f32 0.0, %v4043
    %v4045 = vpop.f32.mrb[0].mxu0
    %4046 = vdwg.mxu0
    %v4048 = vsel %vm310, %v3855, 0
    %v4051 = vsel %vm310, %v3968, 0
    %4053 = vmatprep.subr.mxu0 0.0
    %4054 = vmatpush1.xpose.msra.mxu0 %v4051
    %4055 = vmatprep.subr.mxu0 0.0
    %4056 = vmatpush1.xpose.msra.mxu0 0.0
    %4057 = vmatprep.subr.mxu0 0.0
    %4058 = vmatpush1.xpose.msra.mxu0 0.0
    %4059 = vmatprep.subr.mxu0 0.0
    %4060 = vmatpush1.xpose.msra.mxu0 0.0
    %4061 = vmatprep.subr.mxu0 0.0
    %4062 = vmatpush1.xpose.msra.mxu0 0.0
    %4063 = vmatprep.subr.mxu0 0.0
    %4064 = vmatpush1.xpose.msra.mxu0 0.0
    %4065 = vmatprep.subr.mxu0 0.0
    %4066 = vmatpush1.xpose.msra.mxu0 0.0
    %4067 = vmatprep.subr.mxu0 0.0
    %4068 = vmatpush1.xpose.msra.mxu0 0.0
    %4069 = vmatprep.subr.mxu0 0.0
    %4070 = vmatpush1.xpose.msra.mxu0 0.0
    %4071 = vmatprep.subr.mxu0 0.0
    %4072 = vmatpush1.xpose.msra.mxu0 0.0
    %4073 = vmatprep.subr.mxu0 0.0
    %4074 = vmatpush1.xpose.msra.mxu0 0.0
    %4075 = vmatprep.subr.mxu0 0.0
    %4076 = vmatpush1.xpose.msra.mxu0 0.0
    %4077 = vmatprep.subr.mxu0 0.0
    %4078 = vmatpush1.xpose.msra.mxu0 0.0
    %4079 = vmatprep.subr.mxu0 0.0
    %4080 = vmatpush1.xpose.msra.mxu0 0.0
    %4081 = vmatprep.subr.mxu0 0.0
    %4082 = vmatpush1.xpose.msra.mxu0 0.0
    %4083 = vmatprep.subr.mxu0 0.0
    %4084 = vmatpush1.xpose.msra.mxu0 0.0
    %4085 = vmatprep.subr.mxu0 0.0
    %4086 = vmatpush1.xpose.msra.mxu0 0.0
    %4087 = vmatprep.subr.mxu0 0.0
    %4088 = vmatpush1.xpose.msra.mxu0 0.0
    %4089 = vmatprep.subr.mxu0 0.0
    %4090 = vmatpush1.xpose.msra.mxu0 0.0
    %4091 = vmatprep.subr.mxu0 0.0
    %4092 = vmatpush1.xpose.msra.mxu0 0.0
    %4093 = vmatprep.subr.mxu0 0.0
    %4094 = vmatpush1.xpose.msra.mxu0 0.0
    %4095 = vmatprep.subr.mxu0 0.0
    %4096 = vmatpush1.xpose.msra.mxu0 0.0
    %4097 = vmatprep.subr.mxu0 0.0
    %4098 = vmatpush1.xpose.msra.mxu0 0.0
    %4099 = vmatprep.subr.mxu0 0.0
    %4100 = vmatpush1.xpose.msra.mxu0 0.0
    %4101 = vmatprep.subr.mxu0 0.0
    %4102 = vmatpush1.xpose.msra.mxu0 0.0
    %4103 = vmatprep.subr.mxu0 0.0
    %4104 = vmatpush1.xpose.msra.mxu0 0.0
    %4105 = vmatprep.subr.mxu0 0.0
    %4106 = vmatpush1.xpose.msra.mxu0 0.0
    %4107 = vmatprep.subr.mxu0 0.0
    %4108 = vmatpush1.xpose.msra.mxu0 0.0
    %4109 = vmatprep.subr.mxu0 0.0
    %4110 = vmatpush1.xpose.msra.mxu0 0.0
    %4111 = vmatprep.subr.mxu0 0.0
    %4112 = vmatpush1.xpose.msra.mxu0 0.0
    %4113 = vmatprep.subr.mxu0 0.0
    %4114 = vmatpush1.xpose.msra.mxu0 0.0
    %4115 = vmatprep.subr.mxu0 0.0
    %4116 = vmatpush1.xpose.msra.mxu0 0.0
    %4117 = vmatprep.mubr.f32.mxu0 0.0
    %4118 = vmatmul.mubr.f32.gmra.mrb[0].mxu0 %v4048
    %v4119 = vpop.f32.mrb[0].mxu0
    %v4120 = vadd.f32 0.0, %v4119
    %v4121 = vpop.f32.mrb[0].mxu0
    %4122 = vdwg.mxu0
    %v4123 = vmul.f32 %v4044, 0.35355338
    %v4124 = vmul.f32 %v4120, 0.35355338
    %v4125 = vsel %vm310, %v4123, -inf
    %4126 = vmax.xlane.f32.xlu0 %v4125
    %v4127 = vpop.xlane.xlu0 %4126
    %v4128 = vsel %vm310, %v4124, -inf
    %4129 = vmax.xlane.f32.xlu0 %v4128
    %v4130 = vpop.xlane.xlu0 %4129
    %v4131 = vsub.f32 %v4123, %v4127
    %v4132 = vsub.f32 %v4124, %v4130
    %v4133 = vmul.f32 %v4131, 1.442695
    %v4134 = vpow.pop %v4133
    %v4135 = vmul.f32 %v4132, 1.442695
    %v4136 = vpow.pop %v4135
    %v4137 = vsel %vm310, %v4134, 0.0
    %4138 = vadd.xlane.f32.xlu0 %v4137
    %v4139 = vpop.xlane.xlu0 %4138
    %v4140 = vsel %vm310, %v4136, 0.0
    %4141 = vadd.xlane.f32.xlu0 %v4140
    %v4142 = vpop.xlane.xlu0 %4141
    %v4143 = vrcp.pop %v4139
    %v4144 = vmul.f32 %v4134, %v4143
    %v4145 = vrcp.pop %v4142
    %v4146 = vmul.f32 %v4136, %v4145
    %4147 = vrot.lane.b32.xlu0 %v3963, 96
    %v4148 = vpop.permute.xlu0 %4147
    %v4151 = vsel %vm310, %v4144, 0
    %4153 = vmatprep.subr.mxu0 0.0
    %4154 = vmatpush1.msra.mxu0 %v4148
    %4155 = vmatprep.subr.mxu0 0.0
    %4156 = vmatpush1.msra.mxu0 0.0
    %4157 = vmatprep.subr.mxu0 0.0
    %4158 = vmatpush1.msra.mxu0 0.0
    %4159 = vmatprep.subr.mxu0 0.0
    %4160 = vmatpush1.msra.mxu0 0.0
    %4161 = vmatprep.subr.mxu0 0.0
    %4162 = vmatpush1.msra.mxu0 0.0
    %4163 = vmatprep.subr.mxu0 0.0
    %4164 = vmatpush1.msra.mxu0 0.0
    %4165 = vmatprep.subr.mxu0 0.0
    %4166 = vmatpush1.msra.mxu0 0.0
    %4167 = vmatprep.subr.mxu0 0.0
    %4168 = vmatpush1.msra.mxu0 0.0
    %4169 = vmatprep.subr.mxu0 0.0
    %4170 = vmatpush1.msra.mxu0 0.0
    %4171 = vmatprep.subr.mxu0 0.0
    %4172 = vmatpush1.msra.mxu0 0.0
    %4173 = vmatprep.subr.mxu0 0.0
    %4174 = vmatpush1.msra.mxu0 0.0
    %4175 = vmatprep.subr.mxu0 0.0
    %4176 = vmatpush1.msra.mxu0 0.0
    %4177 = vmatprep.subr.mxu0 0.0
    %4178 = vmatpush1.msra.mxu0 0.0
    %4179 = vmatprep.subr.mxu0 0.0
    %4180 = vmatpush1.msra.mxu0 0.0
    %4181 = vmatprep.subr.mxu0 0.0
    %4182 = vmatpush1.msra.mxu0 0.0
    %4183 = vmatprep.subr.mxu0 0.0
    %4184 = vmatpush1.msra.mxu0 0.0
    %4185 = vmatprep.subr.mxu0 0.0
    %4186 = vmatpush1.msra.mxu0 0.0
    %4187 = vmatprep.subr.mxu0 0.0
    %4188 = vmatpush1.msra.mxu0 0.0
    %4189 = vmatprep.subr.mxu0 0.0
    %4190 = vmatpush1.msra.mxu0 0.0
    %4191 = vmatprep.subr.mxu0 0.0
    %4192 = vmatpush1.msra.mxu0 0.0
    %4193 = vmatprep.subr.mxu0 0.0
    %4194 = vmatpush1.msra.mxu0 0.0
    %4195 = vmatprep.subr.mxu0 0.0
    %4196 = vmatpush1.msra.mxu0 0.0
    %4197 = vmatprep.subr.mxu0 0.0
    %4198 = vmatpush1.msra.mxu0 0.0
    %4199 = vmatprep.subr.mxu0 0.0
    %4200 = vmatpush1.msra.mxu0 0.0
    %4201 = vmatprep.subr.mxu0 0.0
    %4202 = vmatpush1.msra.mxu0 0.0
    %4203 = vmatprep.subr.mxu0 0.0
    %4204 = vmatpush1.msra.mxu0 0.0
    %4205 = vmatprep.subr.mxu0 0.0
    %4206 = vmatpush1.msra.mxu0 0.0
    %4207 = vmatprep.subr.mxu0 0.0
    %4208 = vmatpush1.msra.mxu0 0.0
    %4209 = vmatprep.subr.mxu0 0.0
    %4210 = vmatpush1.msra.mxu0 0.0
    %4211 = vmatprep.subr.mxu0 0.0
    %4212 = vmatpush1.msra.mxu0 0.0
    %4213 = vmatprep.subr.mxu0 0.0
    %4214 = vmatpush1.msra.mxu0 0.0
    %4215 = vmatprep.subr.mxu0 0.0
    %4216 = vmatpush1.msra.mxu0 0.0
    %4217 = vmatprep.mubr.f32.mxu0 0.0
    %4218 = vmatmul.mubr.f32.gmra.mrb[0].mxu0 %v4151
    %v4219 = vpop.f32.mrb[0].mxu0
    %v4220 = vadd.f32 0.0, %v4219
    %v4221 = vpop.f32.mrb[0].mxu0
    %4222 = vdwg.mxu0
    %4223 = vrot.lane.b32.xlu0 %v3968, 96
    %v4224 = vpop.permute.xlu0 %4223
    %v4227 = vsel %vm310, %v4146, 0
    %4229 = vmatprep.subr.mxu0 0.0
    %4230 = vmatpush1.msra.mxu0 %v4224
    %4231 = vmatprep.subr.mxu0 0.0
    %4232 = vmatpush1.msra.mxu0 0.0
    %4233 = vmatprep.subr.mxu0 0.0
    %4234 = vmatpush1.msra.mxu0 0.0
    %4235 = vmatprep.subr.mxu0 0.0
    %4236 = vmatpush1.msra.mxu0 0.0
    %4237 = vmatprep.subr.mxu0 0.0
    %4238 = vmatpush1.msra.mxu0 0.0
    %4239 = vmatprep.subr.mxu0 0.0
    %4240 = vmatpush1.msra.mxu0 0.0
    %4241 = vmatprep.subr.mxu0 0.0
    %4242 = vmatpush1.msra.mxu0 0.0
    %4243 = vmatprep.subr.mxu0 0.0
    %4244 = vmatpush1.msra.mxu0 0.0
    %4245 = vmatprep.subr.mxu0 0.0
    %4246 = vmatpush1.msra.mxu0 0.0
    %4247 = vmatprep.subr.mxu0 0.0
    %4248 = vmatpush1.msra.mxu0 0.0
    %4249 = vmatprep.subr.mxu0 0.0
    %4250 = vmatpush1.msra.mxu0 0.0
    %4251 = vmatprep.subr.mxu0 0.0
    %4252 = vmatpush1.msra.mxu0 0.0
    %4253 = vmatprep.subr.mxu0 0.0
    %4254 = vmatpush1.msra.mxu0 0.0
    %4255 = vmatprep.subr.mxu0 0.0
    %4256 = vmatpush1.msra.mxu0 0.0
    %4257 = vmatprep.subr.mxu0 0.0
    %4258 = vmatpush1.msra.mxu0 0.0
    %4259 = vmatprep.subr.mxu0 0.0
    %4260 = vmatpush1.msra.mxu0 0.0
    %4261 = vmatprep.subr.mxu0 0.0
    %4262 = vmatpush1.msra.mxu0 0.0
    %4263 = vmatprep.subr.mxu0 0.0
    %4264 = vmatpush1.msra.mxu0 0.0
    %4265 = vmatprep.subr.mxu0 0.0
    %4266 = vmatpush1.msra.mxu0 0.0
    %4267 = vmatprep.subr.mxu0 0.0
    %4268 = vmatpush1.msra.mxu0 0.0
    %4269 = vmatprep.subr.mxu0 0.0
    %4270 = vmatpush1.msra.mxu0 0.0
    %4271 = vmatprep.subr.mxu0 0.0
    %4272 = vmatpush1.msra.mxu0 0.0
    %4273 = vmatprep.subr.mxu0 0.0
    %4274 = vmatpush1.msra.mxu0 0.0
    %4275 = vmatprep.subr.mxu0 0.0
    %4276 = vmatpush1.msra.mxu0 0.0
    %4277 = vmatprep.subr.mxu0 0.0
    %4278 = vmatpush1.msra.mxu0 0.0
    %4279 = vmatprep.subr.mxu0 0.0
    %4280 = vmatpush1.msra.mxu0 0.0
    %4281 = vmatprep.subr.mxu0 0.0
    %4282 = vmatpush1.msra.mxu0 0.0
    %4283 = vmatprep.subr.mxu0 0.0
    %4284 = vmatpush1.msra.mxu0 0.0
    %4285 = vmatprep.subr.mxu0 0.0
    %4286 = vmatpush1.msra.mxu0 0.0
    %4287 = vmatprep.subr.mxu0 0.0
    %4288 = vmatpush1.msra.mxu0 0.0
    %4289 = vmatprep.subr.mxu0 0.0
    %4290 = vmatpush1.msra.mxu0 0.0
    %4291 = vmatprep.subr.mxu0 0.0
    %4292 = vmatpush1.msra.mxu0 0.0
    %4293 = vmatprep.mubr.f32.mxu0 0.0
    %4294 = vmatmul.mubr.f32.gmra.mrb[0].mxu0 %v4227
    %v4295 = vpop.f32.mrb[0].mxu0
    %v4296 = vadd.f32 0.0, %v4295
    %v4297 = vpop.f32.mrb[0].mxu0
    %4298 = vdwg.mxu0
    %4299 = vrot.lane.b32.xlu0 %v3850, 120
    %v4300 = vpop.permute.xlu0 %4299
    %4301 = vrot.lane.b32.xlu0 %v3963, 120
    %v4302 = vpop.permute.xlu0 %4301
    %v4303 = vsel %vm310, %v4300, 0
    %v4305 = vsel %vm310, %v4302, 0
    %4307 = vmatprep.subr.mxu0 0.0
    %4308 = vmatpush1.xpose.msra.mxu0 %v4305
    %4309 = vmatprep.subr.mxu0 0.0
    %4310 = vmatpush1.xpose.msra.mxu0 0.0
    %4311 = vmatprep.subr.mxu0 0.0
    %4312 = vmatpush1.xpose.msra.mxu0 0.0
    %4313 = vmatprep.subr.mxu0 0.0
    %4314 = vmatpush1.xpose.msra.mxu0 0.0
    %4315 = vmatprep.subr.mxu0 0.0
    %4316 = vmatpush1.xpose.msra.mxu0 0.0
    %4317 = vmatprep.subr.mxu0 0.0
    %4318 = vmatpush1.xpose.msra.mxu0 0.0
    %4319 = vmatprep.subr.mxu0 0.0
    %4320 = vmatpush1.xpose.msra.mxu0 0.0
    %4321 = vmatprep.subr.mxu0 0.0
    %4322 = vmatpush1.xpose.msra.mxu0 0.0
    %4323 = vmatprep.subr.mxu0 0.0
    %4324 = vmatpush1.xpose.msra.mxu0 0.0
    %4325 = vmatprep.subr.mxu0 0.0
    %4326 = vmatpush1.xpose.msra.mxu0 0.0
    %4327 = vmatprep.subr.mxu0 0.0
    %4328 = vmatpush1.xpose.msra.mxu0 0.0
    %4329 = vmatprep.subr.mxu0 0.0
    %4330 = vmatpush1.xpose.msra.mxu0 0.0
    %4331 = vmatprep.subr.mxu0 0.0
    %4332 = vmatpush1.xpose.msra.mxu0 0.0
    %4333 = vmatprep.subr.mxu0 0.0
    %4334 = vmatpush1.xpose.msra.mxu0 0.0
    %4335 = vmatprep.subr.mxu0 0.0
    %4336 = vmatpush1.xpose.msra.mxu0 0.0
    %4337 = vmatprep.subr.mxu0 0.0
    %4338 = vmatpush1.xpose.msra.mxu0 0.0
    %4339 = vmatprep.subr.mxu0 0.0
    %4340 = vmatpush1.xpose.msra.mxu0 0.0
    %4341 = vmatprep.subr.mxu0 0.0
    %4342 = vmatpush1.xpose.msra.mxu0 0.0
    %4343 = vmatprep.subr.mxu0 0.0
    %4344 = vmatpush1.xpose.msra.mxu0 0.0
    %4345 = vmatprep.subr.mxu0 0.0
    %4346 = vmatpush1.xpose.msra.mxu0 0.0
    %4347 = vmatprep.subr.mxu0 0.0
    %4348 = vmatpush1.xpose.msra.mxu0 0.0
    %4349 = vmatprep.subr.mxu0 0.0
    %4350 = vmatpush1.xpose.msra.mxu0 0.0
    %4351 = vmatprep.subr.mxu0 0.0
    %4352 = vmatpush1.xpose.msra.mxu0 0.0
    %4353 = vmatprep.subr.mxu0 0.0
    %4354 = vmatpush1.xpose.msra.mxu0 0.0
    %4355 = vmatprep.subr.mxu0 0.0
    %4356 = vmatpush1.xpose.msra.mxu0 0.0
    %4357 = vmatprep.subr.mxu0 0.0
    %4358 = vmatpush1.xpose.msra.mxu0 0.0
    %4359 = vmatprep.subr.mxu0 0.0
    %4360 = vmatpush1.xpose.msra.mxu0 0.0
    %4361 = vmatprep.subr.mxu0 0.0
    %4362 = vmatpush1.xpose.msra.mxu0 0.0
    %4363 = vmatprep.subr.mxu0 0.0
    %4364 = vmatpush1.xpose.msra.mxu0 0.0
    %4365 = vmatprep.subr.mxu0 0.0
    %4366 = vmatpush1.xpose.msra.mxu0 0.0
    %4367 = vmatprep.subr.mxu0 0.0
    %4368 = vmatpush1.xpose.msra.mxu0 0.0
    %4369 = vmatprep.subr.mxu0 0.0
    %4370 = vmatpush1.xpose.msra.mxu0 0.0
    %4371 = vmatprep.mubr.f32.mxu0 0.0
    %4372 = vmatmul.mubr.f32.gmra.mrb[0].mxu0 %v4303
    %v4373 = vpop.f32.mrb[0].mxu0
    %v4374 = vadd.f32 0.0, %v4373
    %v4375 = vpop.f32.mrb[0].mxu0
    %4376 = vdwg.mxu0
    %4377 = vrot.lane.b32.xlu0 %v3855, 120
    %v4378 = vpop.permute.xlu0 %4377
    %4379 = vrot.lane.b32.xlu0 %v3968, 120
    %v4380 = vpop.permute.xlu0 %4379
    %v4381 = vsel %vm310, %v4378, 0
    %v4383 = vsel %vm310, %v4380, 0
    %4385 = vmatprep.subr.mxu0 0.0
    %4386 = vmatpush1.xpose.msra.mxu0 %v4383
    %4387 = vmatprep.subr.mxu0 0.0
    %4388 = vmatpush1.xpose.msra.mxu0 0.0
    %4389 = vmatprep.subr.mxu0 0.0
    %4390 = vmatpush1.xpose.msra.mxu0 0.0
    %4391 = vmatprep.subr.mxu0 0.0
    %4392 = vmatpush1.xpose.msra.mxu0 0.0
    %4393 = vmatprep.subr.mxu0 0.0
    %4394 = vmatpush1.xpose.msra.mxu0 0.0
    %4395 = vmatprep.subr.mxu0 0.0
    %4396 = vmatpush1.xpose.msra.mxu0 0.0
    %4397 = vmatprep.subr.mxu0 0.0
    %4398 = vmatpush1.xpose.msra.mxu0 0.0
    %4399 = vmatprep.subr.mxu0 0.0
    %4400 = vmatpush1.xpose.msra.mxu0 0.0
    %4401 = vmatprep.subr.mxu0 0.0
    %4402 = vmatpush1.xpose.msra.mxu0 0.0
    %4403 = vmatprep.subr.mxu0 0.0
    %4404 = vmatpush1.xpose.msra.mxu0 0.0
    %4405 = vmatprep.subr.mxu0 0.0
    %4406 = vmatpush1.xpose.msra.mxu0 0.0
    %4407 = vmatprep.subr.mxu0 0.0
    %4408 = vmatpush1.xpose.msra.mxu0 0.0
    %4409 = vmatprep.subr.mxu0 0.0
    %4410 = vmatpush1.xpose.msra.mxu0 0.0
    %4411 = vmatprep.subr.mxu0 0.0
    %4412 = vmatpush1.xpose.msra.mxu0 0.0
    %4413 = vmatprep.subr.mxu0 0.0
    %4414 = vmatpush1.xpose.msra.mxu0 0.0
    %4415 = vmatprep.subr.mxu0 0.0
    %4416 = vmatpush1.xpose.msra.mxu0 0.0
    %4417 = vmatprep.subr.mxu0 0.0
    %4418 = vmatpush1.xpose.msra.mxu0 0.0
    %4419 = vmatprep.subr.mxu0 0.0
    %4420 = vmatpush1.xpose.msra.mxu0 0.0
    %4421 = vmatprep.subr.mxu0 0.0
    %4422 = vmatpush1.xpose.msra.mxu0 0.0
    %4423 = vmatprep.subr.mxu0 0.0
    %4424 = vmatpush1.xpose.msra.mxu0 0.0
    %4425 = vmatprep.subr.mxu0 0.0
    %4426 = vmatpush1.xpose.msra.mxu0 0.0
    %4427 = vmatprep.subr.mxu0 0.0
    %4428 = vmatpush1.xpose.msra.mxu0 0.0
    %4429 = vmatprep.subr.mxu0 0.0
    %4430 = vmatpush1.xpose.msra.mxu0 0.0
    %4431 = vmatprep.subr.mxu0 0.0
    %4432 = vmatpush1.xpose.msra.mxu0 0.0
    %4433 = vmatprep.subr.mxu0 0.0
    %4434 = vmatpush1.xpose.msra.mxu0 0.0
    %4435 = vmatprep.subr.mxu0 0.0
    %4436 = vmatpush1.xpose.msra.mxu0 0.0
    %4437 = vmatprep.subr.mxu0 0.0
    %4438 = vmatpush1.xpose.msra.mxu0 0.0
    %4439 = vmatprep.subr.mxu0 0.0
    %4440 = vmatpush1.xpose.msra.mxu0 0.0
    %4441 = vmatprep.subr.mxu0 0.0
    %4442 = vmatpush1.xpose.msra.mxu0 0.0
    %4443 = vmatprep.subr.mxu0 0.0
    %4444 = vmatpush1.xpose.msra.mxu0 0.0
    %4445 = vmatprep.subr.mxu0 0.0
    %4446 = vmatpush1.xpose.msra.mxu0 0.0
    %4447 = vmatprep.subr.mxu0 0.0
    %4448 = vmatpush1.xpose.msra.mxu0 0.0
    %4449 = vmatprep.mubr.f32.mxu0 0.0
    %4450 = vmatmul.mubr.f32.gmra.mrb[0].mxu0 %v4381
    %v4451 = vpop.f32.mrb[0].mxu0
    %v4452 = vadd.f32 0.0, %v4451
    %v4453 = vpop.f32.mrb[0].mxu0
    %4454 = vdwg.mxu0
    %v4455 = vmul.f32 %v4374, 0.35355338
    %v4456 = vmul.f32 %v4452, 0.35355338
    %v4457 = vsel %vm310, %v4455, -inf
    %4458 = vmax.xlane.f32.xlu0 %v4457
    %v4459 = vpop.xlane.xlu0 %4458
    %v4460 = vsel %vm310, %v4456, -inf
    %4461 = vmax.xlane.f32.xlu0 %v4460
    %v4462 = vpop.xlane.xlu0 %4461
    %v4463 = vsub.f32 %v4455, %v4459
    %v4464 = vsub.f32 %v4456, %v4462
    %v4465 = vmul.f32 %v4463, 1.442695
    %v4466 = vpow.pop %v4465
    %v4467 = vmul.f32 %v4464, 1.442695
    %v4468 = vpow.pop %v4467
    %v4469 = vsel %vm310, %v4466, 0.0
    %4470 = vadd.xlane.f32.xlu0 %v4469
    %v4471 = vpop.xlane.xlu0 %4470
    %v4472 = vsel %vm310, %v4468, 0.0
    %4473 = vadd.xlane.f32.xlu0 %v4472
    %v4474 = vpop.xlane.xlu0 %4473
    %v4475 = vrcp.pop %v4471
    %v4476 = vmul.f32 %v4466, %v4475
    %v4477 = vrcp.pop %v4474
    %v4478 = vmul.f32 %v4468, %v4477
    %4479 = vrot.lane.b32.xlu0 %v3963, 88
    %v4480 = vpop.permute.xlu0 %4479
    %v4483 = vsel %vm310, %v4476, 0
    %4485 = vmatprep.subr.mxu0 0.0
    %4486 = vmatpush1.msra.mxu0 %v4480
    %4487 = vmatprep.subr.mxu0 0.0
    %4488 = vmatpush1.msra.mxu0 0.0
    %4489 = vmatprep.subr.mxu0 0.0
    %4490 = vmatpush1.msra.mxu0 0.0
    %4491 = vmatprep.subr.mxu0 0.0
    %4492 = vmatpush1.msra.mxu0 0.0
    %4493 = vmatprep.subr.mxu0 0.0
    %4494 = vmatpush1.msra.mxu0 0.0
    %4495 = vmatprep.subr.mxu0 0.0
    %4496 = vmatpush1.msra.mxu0 0.0
    %4497 = vmatprep.subr.mxu0 0.0
    %4498 = vmatpush1.msra.mxu0 0.0
    %4499 = vmatprep.subr.mxu0 0.0
    %4500 = vmatpush1.msra.mxu0 0.0
    %4501 = vmatprep.subr.mxu0 0.0
    %4502 = vmatpush1.msra.mxu0 0.0
    %4503 = vmatprep.subr.mxu0 0.0
    %4504 = vmatpush1.msra.mxu0 0.0
    %4505 = vmatprep.subr.mxu0 0.0
    %4506 = vmatpush1.msra.mxu0 0.0
    %4507 = vmatprep.subr.mxu0 0.0
    %4508 = vmatpush1.msra.mxu0 0.0
    %4509 = vmatprep.subr.mxu0 0.0
    %4510 = vmatpush1.msra.mxu0 0.0
    %4511 = vmatprep.subr.mxu0 0.0
    %4512 = vmatpush1.msra.mxu0 0.0
    %4513 = vmatprep.subr.mxu0 0.0
    %4514 = vmatpush1.msra.mxu0 0.0
    %4515 = vmatprep.subr.mxu0 0.0
    %4516 = vmatpush1.msra.mxu0 0.0
    %4517 = vmatprep.subr.mxu0 0.0
    %4518 = vmatpush1.msra.mxu0 0.0
    %4519 = vmatprep.subr.mxu0 0.0
    %4520 = vmatpush1.msra.mxu0 0.0
    %4521 = vmatprep.subr.mxu0 0.0
    %4522 = vmatpush1.msra.mxu0 0.0
    %4523 = vmatprep.subr.mxu0 0.0
    %4524 = vmatpush1.msra.mxu0 0.0
    %4525 = vmatprep.subr.mxu0 0.0
    %4526 = vmatpush1.msra.mxu0 0.0
    %4527 = vmatprep.subr.mxu0 0.0
    %4528 = vmatpush1.msra.mxu0 0.0
    %4529 = vmatprep.subr.mxu0 0.0
    %4530 = vmatpush1.msra.mxu0 0.0
    %4531 = vmatprep.subr.mxu0 0.0
    %4532 = vmatpush1.msra.mxu0 0.0
    %4533 = vmatprep.subr.mxu0 0.0
    %4534 = vmatpush1.msra.mxu0 0.0
    %4535 = vmatprep.subr.mxu0 0.0
    %4536 = vmatpush1.msra.mxu0 0.0
    %4537 = vmatprep.subr.mxu0 0.0
    %4538 = vmatpush1.msra.mxu0 0.0
    %4539 = vmatprep.subr.mxu0 0.0
    %4540 = vmatpush1.msra.mxu0 0.0
    %4541 = vmatprep.subr.mxu0 0.0
    %4542 = vmatpush1.msra.mxu0 0.0
    %4543 = vmatprep.subr.mxu0 0.0
    %4544 = vmatpush1.msra.mxu0 0.0
    %4545 = vmatprep.subr.mxu0 0.0
    %4546 = vmatpush1.msra.mxu0 0.0
    %4547 = vmatprep.subr.mxu0 0.0
    %4548 = vmatpush1.msra.mxu0 0.0
    %4549 = vmatprep.mubr.f32.mxu0 0.0
    %4550 = vmatmul.mubr.f32.gmra.mrb[0].mxu0 %v4483
    %v4551 = vpop.f32.mrb[0].mxu0
    %v4552 = vadd.f32 0.0, %v4551
    %v4553 = vpop.f32.mrb[0].mxu0
    %4554 = vdwg.mxu0
    %4555 = vrot.lane.b32.xlu0 %v3968, 88
    %v4556 = vpop.permute.xlu0 %4555
    %v4559 = vsel %vm310, %v4478, 0
    %4561 = vmatprep.subr.mxu0 0.0
    %4562 = vmatpush1.msra.mxu0 %v4556
    %4563 = vmatprep.subr.mxu0 0.0
    %4564 = vmatpush1.msra.mxu0 0.0
    %4565 = vmatprep.subr.mxu0 0.0
    %4566 = vmatpush1.msra.mxu0 0.0
    %4567 = vmatprep.subr.mxu0 0.0
    %4568 = vmatpush1.msra.mxu0 0.0
    %4569 = vmatprep.subr.mxu0 0.0
    %4570 = vmatpush1.msra.mxu0 0.0
    %4571 = vmatprep.subr.mxu0 0.0
    %4572 = vmatpush1.msra.mxu0 0.0
    %4573 = vmatprep.subr.mxu0 0.0
    %4574 = vmatpush1.msra.mxu0 0.0
    %4575 = vmatprep.subr.mxu0 0.0
    %4576 = vmatpush1.msra.mxu0 0.0
    %4577 = vmatprep.subr.mxu0 0.0
    %4578 = vmatpush1.msra.mxu0 0.0
    %4579 = vmatprep.subr.mxu0 0.0
    %4580 = vmatpush1.msra.mxu0 0.0
    %4581 = vmatprep.subr.mxu0 0.0
    %4582 = vmatpush1.msra.mxu0 0.0
    %4583 = vmatprep.subr.mxu0 0.0
    %4584 = vmatpush1.msra.mxu0 0.0
    %4585 = vmatprep.subr.mxu0 0.0
    %4586 = vmatpush1.msra.mxu0 0.0
    %4587 = vmatprep.subr.mxu0 0.0
    %4588 = vmatpush1.msra.mxu0 0.0
    %4589 = vmatprep.subr.mxu0 0.0
    %4590 = vmatpush1.msra.mxu0 0.0
    %4591 = vmatprep.subr.mxu0 0.0
    %4592 = vmatpush1.msra.mxu0 0.0
    %4593 = vmatprep.subr.mxu0 0.0
    %4594 = vmatpush1.msra.mxu0 0.0
    %4595 = vmatprep.subr.mxu0 0.0
    %4596 = vmatpush1.msra.mxu0 0.0
    %4597 = vmatprep.subr.mxu0 0.0
    %4598 = vmatpush1.msra.mxu0 0.0
    %4599 = vmatprep.subr.mxu0 0.0
    %4600 = vmatpush1.msra.mxu0 0.0
    %4601 = vmatprep.subr.mxu0 0.0
    %4602 = vmatpush1.msra.mxu0 0.0
    %4603 = vmatprep.subr.mxu0 0.0
    %4604 = vmatpush1.msra.mxu0 0.0
    %4605 = vmatprep.subr.mxu0 0.0
    %4606 = vmatpush1.msra.mxu0 0.0
    %4607 = vmatprep.subr.mxu0 0.0
    %4608 = vmatpush1.msra.mxu0 0.0
    %4609 = vmatprep.subr.mxu0 0.0
    %4610 = vmatpush1.msra.mxu0 0.0
    %4611 = vmatprep.subr.mxu0 0.0
    %4612 = vmatpush1.msra.mxu0 0.0
    %4613 = vmatprep.subr.mxu0 0.0
    %4614 = vmatpush1.msra.mxu0 0.0
    %4615 = vmatprep.subr.mxu0 0.0
    %4616 = vmatpush1.msra.mxu0 0.0
    %4617 = vmatprep.subr.mxu0 0.0
    %4618 = vmatpush1.msra.mxu0 0.0
    %4619 = vmatprep.subr.mxu0 0.0
    %4620 = vmatpush1.msra.mxu0 0.0
    %4621 = vmatprep.subr.mxu0 0.0
    %4622 = vmatpush1.msra.mxu0 0.0
    %4623 = vmatprep.subr.mxu0 0.0
    %4624 = vmatpush1.msra.mxu0 0.0
    %4625 = vmatprep.mubr.f32.mxu0 0.0
    %4626 = vmatmul.mubr.f32.gmra.mrb[0].mxu0 %v4559
    %v4627 = vpop.f32.mrb[0].mxu0
    %v4628 = vadd.f32 0.0, %v4627
    %v4629 = vpop.f32.mrb[0].mxu0
    %4630 = vdwg.mxu0
    %4631 = vrot.lane.b32.xlu0 %v3850, 112
    %v4632 = vpop.permute.xlu0 %4631
    %4633 = vrot.lane.b32.xlu0 %v3963, 112
    %v4634 = vpop.permute.xlu0 %4633
    %v4635 = vsel %vm310, %v4632, 0
    %v4637 = vsel %vm310, %v4634, 0
    %4639 = vmatprep.subr.mxu0 0.0
    %4640 = vmatpush1.xpose.msra.mxu0 %v4637
    %4641 = vmatprep.subr.mxu0 0.0
    %4642 = vmatpush1.xpose.msra.mxu0 0.0
    %4643 = vmatprep.subr.mxu0 0.0
    %4644 = vmatpush1.xpose.msra.mxu0 0.0
    %4645 = vmatprep.subr.mxu0 0.0
    %4646 = vmatpush1.xpose.msra.mxu0 0.0
    %4647 = vmatprep.subr.mxu0 0.0
    %4648 = vmatpush1.xpose.msra.mxu0 0.0
    %4649 = vmatprep.subr.mxu0 0.0
    %4650 = vmatpush1.xpose.msra.mxu0 0.0
    %4651 = vmatprep.subr.mxu0 0.0
    %4652 = vmatpush1.xpose.msra.mxu0 0.0
    %4653 = vmatprep.subr.mxu0 0.0
    %4654 = vmatpush1.xpose.msra.mxu0 0.0
    %4655 = vmatprep.subr.mxu0 0.0
    %4656 = vmatpush1.xpose.msra.mxu0 0.0
    %4657 = vmatprep.subr.mxu0 0.0
    %4658 = vmatpush1.xpose.msra.mxu0 0.0
    %4659 = vmatprep.subr.mxu0 0.0
    %4660 = vmatpush1.xpose.msra.mxu0 0.0
    %4661 = vmatprep.subr.mxu0 0.0
    %4662 = vmatpush1.xpose.msra.mxu0 0.0
    %4663 = vmatprep.subr.mxu0 0.0
    %4664 = vmatpush1.xpose.msra.mxu0 0.0
    %4665 = vmatprep.subr.mxu0 0.0
    %4666 = vmatpush1.xpose.msra.mxu0 0.0
    %4667 = vmatprep.subr.mxu0 0.0
    %4668 = vmatpush1.xpose.msra.mxu0 0.0
    %4669 = vmatprep.subr.mxu0 0.0
    %4670 = vmatpush1.xpose.msra.mxu0 0.0
    %4671 = vmatprep.subr.mxu0 0.0
    %4672 = vmatpush1.xpose.msra.mxu0 0.0
    %4673 = vmatprep.subr.mxu0 0.0
    %4674 = vmatpush1.xpose.msra.mxu0 0.0
    %4675 = vmatprep.subr.mxu0 0.0
    %4676 = vmatpush1.xpose.msra.mxu0 0.0
    %4677 = vmatprep.subr.mxu0 0.0
    %4678 = vmatpush1.xpose.msra.mxu0 0.0
    %4679 = vmatprep.subr.mxu0 0.0
    %4680 = vmatpush1.xpose.msra.mxu0 0.0
    %4681 = vmatprep.subr.mxu0 0.0
    %4682 = vmatpush1.xpose.msra.mxu0 0.0
    %4683 = vmatprep.subr.mxu0 0.0
    %4684 = vmatpush1.xpose.msra.mxu0 0.0
    %4685 = vmatprep.subr.mxu0 0.0
    %4686 = vmatpush1.xpose.msra.mxu0 0.0
    %4687 = vmatprep.subr.mxu0 0.0
    %4688 = vmatpush1.xpose.msra.mxu0 0.0
    %4689 = vmatprep.subr.mxu0 0.0
    %4690 = vmatpush1.xpose.msra.mxu0 0.0
    %4691 = vmatprep.subr.mxu0 0.0
    %4692 = vmatpush1.xpose.msra.mxu0 0.0
    %4693 = vmatprep.subr.mxu0 0.0
    %4694 = vmatpush1.xpose.msra.mxu0 0.0
    %4695 = vmatprep.subr.mxu0 0.0
    %4696 = vmatpush1.xpose.msra.mxu0 0.0
    %4697 = vmatprep.subr.mxu0 0.0
    %4698 = vmatpush1.xpose.msra.mxu0 0.0
    %4699 = vmatprep.subr.mxu0 0.0
    %4700 = vmatpush1.xpose.msra.mxu0 0.0
    %4701 = vmatprep.subr.mxu0 0.0
    %4702 = vmatpush1.xpose.msra.mxu0 0.0
    %4703 = vmatprep.mubr.f32.mxu0 0.0
    %4704 = vmatmul.mubr.f32.gmra.mrb[0].mxu0 %v4635
    %v4705 = vpop.f32.mrb[0].mxu0
    %v4706 = vadd.f32 0.0, %v4705
    %v4707 = vpop.f32.mrb[0].mxu0
    %4708 = vdwg.mxu0
    %4709 = vrot.lane.b32.xlu0 %v3855, 112
    %v4710 = vpop.permute.xlu0 %4709
    %4711 = vrot.lane.b32.xlu0 %v3968, 112
    %v4712 = vpop.permute.xlu0 %4711
    %v4713 = vsel %vm310, %v4710, 0
    %v4715 = vsel %vm310, %v4712, 0
    %4717 = vmatprep.subr.mxu0 0.0
    %4718 = vmatpush1.xpose.msra.mxu0 %v4715
    %4719 = vmatprep.subr.mxu0 0.0
    %4720 = vmatpush1.xpose.msra.mxu0 0.0
    %4721 = vmatprep.subr.mxu0 0.0
    %4722 = vmatpush1.xpose.msra.mxu0 0.0
    %4723 = vmatprep.subr.mxu0 0.0
    %4724 = vmatpush1.xpose.msra.mxu0 0.0
    %4725 = vmatprep.subr.mxu0 0.0
    %4726 = vmatpush1.xpose.msra.mxu0 0.0
    %4727 = vmatprep.subr.mxu0 0.0
    %4728 = vmatpush1.xpose.msra.mxu0 0.0
    %4729 = vmatprep.subr.mxu0 0.0
    %4730 = vmatpush1.xpose.msra.mxu0 0.0
    %4731 = vmatprep.subr.mxu0 0.0
    %4732 = vmatpush1.xpose.msra.mxu0 0.0
    %4733 = vmatprep.subr.mxu0 0.0
    %4734 = vmatpush1.xpose.msra.mxu0 0.0
    %4735 = vmatprep.subr.mxu0 0.0
    %4736 = vmatpush1.xpose.msra.mxu0 0.0
    %4737 = vmatprep.subr.mxu0 0.0
    %4738 = vmatpush1.xpose.msra.mxu0 0.0
    %4739 = vmatprep.subr.mxu0 0.0
    %4740 = vmatpush1.xpose.msra.mxu0 0.0
    %4741 = vmatprep.subr.mxu0 0.0
    %4742 = vmatpush1.xpose.msra.mxu0 0.0
    %4743 = vmatprep.subr.mxu0 0.0
    %4744 = vmatpush1.xpose.msra.mxu0 0.0
    %4745 = vmatprep.subr.mxu0 0.0
    %4746 = vmatpush1.xpose.msra.mxu0 0.0
    %4747 = vmatprep.subr.mxu0 0.0
    %4748 = vmatpush1.xpose.msra.mxu0 0.0
    %4749 = vmatprep.subr.mxu0 0.0
    %4750 = vmatpush1.xpose.msra.mxu0 0.0
    %4751 = vmatprep.subr.mxu0 0.0
    %4752 = vmatpush1.xpose.msra.mxu0 0.0
    %4753 = vmatprep.subr.mxu0 0.0
    %4754 = vmatpush1.xpose.msra.mxu0 0.0
    %4755 = vmatprep.subr.mxu0 0.0
    %4756 = vmatpush1.xpose.msra.mxu0 0.0
    %4757 = vmatprep.subr.mxu0 0.0
    %4758 = vmatpush1.xpose.msra.mxu0 0.0
    %4759 = vmatprep.subr.mxu0 0.0
    %4760 = vmatpush1.xpose.msra.mxu0 0.0
    %4761 = vmatprep.subr.mxu0 0.0
    %4762 = vmatpush1.xpose.msra.mxu0 0.0
    %4763 = vmatprep.subr.mxu0 0.0
    %4764 = vmatpush1.xpose.msra.mxu0 0.0
    %4765 = vmatprep.subr.mxu0 0.0
    %4766 = vmatpush1.xpose.msra.mxu0 0.0
    %4767 = vmatprep.subr.mxu0 0.0
    %4768 = vmatpush1.xpose.msra.mxu0 0.0
    %4769 = vmatprep.subr.mxu0 0.0
    %4770 = vmatpush1.xpose.msra.mxu0 0.0
    %4771 = vmatprep.subr.mxu0 0.0
    %4772 = vmatpush1.xpose.msra.mxu0 0.0
    %4773 = vmatprep.subr.mxu0 0.0
    %4774 = vmatpush1.xpose.msra.mxu0 0.0
    %4775 = vmatprep.subr.mxu0 0.0
    %4776 = vmatpush1.xpose.msra.mxu0 0.0
    %4777 = vmatprep.subr.mxu0 0.0
    %4778 = vmatpush1.xpose.msra.mxu0 0.0
    %4779 = vmatprep.subr.mxu0 0.0
    %4780 = vmatpush1.xpose.msra.mxu0 0.0
    %4781 = vmatprep.mubr.f32.mxu0 0.0
    %4782 = vmatmul.mubr.f32.gmra.mrb[0].mxu0 %v4713
    %v4783 = vpop.f32.mrb[0].mxu0
    %v4784 = vadd.f32 0.0, %v4783
    %v4785 = vpop.f32.mrb[0].mxu0
    %4786 = vdwg.mxu0
    %v4787 = vmul.f32 %v4706, 0.35355338
    %v4788 = vmul.f32 %v4784, 0.35355338
    %v4789 = vsel %vm310, %v4787, -inf
    %4790 = vmax.xlane.f32.xlu0 %v4789
    %v4791 = vpop.xlane.xlu0 %4790
    %v4792 = vsel %vm310, %v4788, -inf
    %4793 = vmax.xlane.f32.xlu0 %v4792
    %v4794 = vpop.xlane.xlu0 %4793
    %v4795 = vsub.f32 %v4787, %v4791
    %v4796 = vsub.f32 %v4788, %v4794
    %v4797 = vmul.f32 %v4795, 1.442695
    %v4798 = vpow.pop %v4797
    %v4799 = vmul.f32 %v4796, 1.442695
    %v4800 = vpow.pop %v4799
    %v4801 = vsel %vm310, %v4798, 0.0
    %4802 = vadd.xlane.f32.xlu0 %v4801
    %v4803 = vpop.xlane.xlu0 %4802
    %v4804 = vsel %vm310, %v4800, 0.0
    %4805 = vadd.xlane.f32.xlu0 %v4804
    %v4806 = vpop.xlane.xlu0 %4805
    %v4807 = vrcp.pop %v4803
    %v4808 = vmul.f32 %v4798, %v4807
    %v4809 = vrcp.pop %v4806
    %v4810 = vmul.f32 %v4800, %v4809
    %4811 = vrot.lane.b32.xlu0 %v3963, 80
    %v4812 = vpop.permute.xlu0 %4811
    %v4815 = vsel %vm310, %v4808, 0
    %4817 = vmatprep.subr.mxu0 0.0
    %4818 = vmatpush1.msra.mxu0 %v4812
    %4819 = vmatprep.subr.mxu0 0.0
    %4820 = vmatpush1.msra.mxu0 0.0
    %4821 = vmatprep.subr.mxu0 0.0
    %4822 = vmatpush1.msra.mxu0 0.0
    %4823 = vmatprep.subr.mxu0 0.0
    %4824 = vmatpush1.msra.mxu0 0.0
    %4825 = vmatprep.subr.mxu0 0.0
    %4826 = vmatpush1.msra.mxu0 0.0
    %4827 = vmatprep.subr.mxu0 0.0
    %4828 = vmatpush1.msra.mxu0 0.0
    %4829 = vmatprep.subr.mxu0 0.0
    %4830 = vmatpush1.msra.mxu0 0.0
    %4831 = vmatprep.subr.mxu0 0.0
    %4832 = vmatpush1.msra.mxu0 0.0
    %4833 = vmatprep.subr.mxu0 0.0
    %4834 = vmatpush1.msra.mxu0 0.0
    %4835 = vmatprep.subr.mxu0 0.0
    %4836 = vmatpush1.msra.mxu0 0.0
    %4837 = vmatprep.subr.mxu0 0.0
    %4838 = vmatpush1.msra.mxu0 0.0
    %4839 = vmatprep.subr.mxu0 0.0
    %4840 = vmatpush1.msra.mxu0 0.0
    %4841 = vmatprep.subr.mxu0 0.0
    %4842 = vmatpush1.msra.mxu0 0.0
    %4843 = vmatprep.subr.mxu0 0.0
    %4844 = vmatpush1.msra.mxu0 0.0
    %4845 = vmatprep.subr.mxu0 0.0
    %4846 = vmatpush1.msra.mxu0 0.0
    %4847 = vmatprep.subr.mxu0 0.0
    %4848 = vmatpush1.msra.mxu0 0.0
    %4849 = vmatprep.subr.mxu0 0.0
    %4850 = vmatpush1.msra.mxu0 0.0
    %4851 = vmatprep.subr.mxu0 0.0
    %4852 = vmatpush1.msra.mxu0 0.0
    %4853 = vmatprep.subr.mxu0 0.0
    %4854 = vmatpush1.msra.mxu0 0.0
    %4855 = vmatprep.subr.mxu0 0.0
    %4856 = vmatpush1.msra.mxu0 0.0
    %4857 = vmatprep.subr.mxu0 0.0
    %4858 = vmatpush1.msra.mxu0 0.0
    %4859 = vmatprep.subr.mxu0 0.0
    %4860 = vmatpush1.msra.mxu0 0.0
    %4861 = vmatprep.subr.mxu0 0.0
    %4862 = vmatpush1.msra.mxu0 0.0
    %4863 = vmatprep.subr.mxu0 0.0
    %4864 = vmatpush1.msra.mxu0 0.0
    %4865 = vmatprep.subr.mxu0 0.0
    %4866 = vmatpush1.msra.mxu0 0.0
    %4867 = vmatprep.subr.mxu0 0.0
    %4868 = vmatpush1.msra.mxu0 0.0
    %4869 = vmatprep.subr.mxu0 0.0
    %4870 = vmatpush1.msra.mxu0 0.0
    %4871 = vmatprep.subr.mxu0 0.0
    %4872 = vmatpush1.msra.mxu0 0.0
    %4873 = vmatprep.subr.mxu0 0.0
    %4874 = vmatpush1.msra.mxu0 0.0
    %4875 = vmatprep.subr.mxu0 0.0
    %4876 = vmatpush1.msra.mxu0 0.0
    %4877 = vmatprep.subr.mxu0 0.0
    %4878 = vmatpush1.msra.mxu0 0.0
    %4879 = vmatprep.subr.mxu0 0.0
    %4880 = vmatpush1.msra.mxu0 0.0
    %4881 = vmatprep.mubr.f32.mxu0 0.0
    %4882 = vmatmul.mubr.f32.gmra.mrb[0].mxu0 %v4815
    %v4883 = vpop.f32.mrb[0].mxu0
    %v4884 = vadd.f32 0.0, %v4883
    %v4885 = vpop.f32.mrb[0].mxu0
    %4886 = vdwg.mxu0
    %4887 = vrot.lane.b32.xlu0 %v3968, 80
    %v4888 = vpop.permute.xlu0 %4887
    %v4891 = vsel %vm310, %v4810, 0
    %4893 = vmatprep.subr.mxu0 0.0
    %4894 = vmatpush1.msra.mxu0 %v4888
    %4895 = vmatprep.subr.mxu0 0.0
    %4896 = vmatpush1.msra.mxu0 0.0
    %4897 = vmatprep.subr.mxu0 0.0
    %4898 = vmatpush1.msra.mxu0 0.0
    %4899 = vmatprep.subr.mxu0 0.0
    %4900 = vmatpush1.msra.mxu0 0.0
    %4901 = vmatprep.subr.mxu0 0.0
    %4902 = vmatpush1.msra.mxu0 0.0
    %4903 = vmatprep.subr.mxu0 0.0
    %4904 = vmatpush1.msra.mxu0 0.0
    %4905 = vmatprep.subr.mxu0 0.0
    %4906 = vmatpush1.msra.mxu0 0.0
    %4907 = vmatprep.subr.mxu0 0.0
    %4908 = vmatpush1.msra.mxu0 0.0
    %4909 = vmatprep.subr.mxu0 0.0
    %4910 = vmatpush1.msra.mxu0 0.0
    %4911 = vmatprep.subr.mxu0 0.0
    %4912 = vmatpush1.msra.mxu0 0.0
    %4913 = vmatprep.subr.mxu0 0.0
    %4914 = vmatpush1.msra.mxu0 0.0
    %4915 = vmatprep.subr.mxu0 0.0
    %4916 = vmatpush1.msra.mxu0 0.0
    %4917 = vmatprep.subr.mxu0 0.0
    %4918 = vmatpush1.msra.mxu0 0.0
    %4919 = vmatprep.subr.mxu0 0.0
    %4920 = vmatpush1.msra.mxu0 0.0
    %4921 = vmatprep.subr.mxu0 0.0
    %4922 = vmatpush1.msra.mxu0 0.0
    %4923 = vmatprep.subr.mxu0 0.0
    %4924 = vmatpush1.msra.mxu0 0.0
    %4925 = vmatprep.subr.mxu0 0.0
    %4926 = vmatpush1.msra.mxu0 0.0
    %4927 = vmatprep.subr.mxu0 0.0
    %4928 = vmatpush1.msra.mxu0 0.0
    %4929 = vmatprep.subr.mxu0 0.0
    %4930 = vmatpush1.msra.mxu0 0.0
    %4931 = vmatprep.subr.mxu0 0.0
    %4932 = vmatpush1.msra.mxu0 0.0
    %4933 = vmatprep.subr.mxu0 0.0
    %4934 = vmatpush1.msra.mxu0 0.0
    %4935 = vmatprep.subr.mxu0 0.0
    %4936 = vmatpush1.msra.mxu0 0.0
    %4937 = vmatprep.subr.mxu0 0.0
    %4938 = vmatpush1.msra.mxu0 0.0
    %4939 = vmatprep.subr.mxu0 0.0
    %4940 = vmatpush1.msra.mxu0 0.0
    %4941 = vmatprep.subr.mxu0 0.0
    %4942 = vmatpush1.msra.mxu0 0.0
    %4943 = vmatprep.subr.mxu0 0.0
    %4944 = vmatpush1.msra.mxu0 0.0
    %4945 = vmatprep.subr.mxu0 0.0
    %4946 = vmatpush1.msra.mxu0 0.0
    %4947 = vmatprep.subr.mxu0 0.0
    %4948 = vmatpush1.msra.mxu0 0.0
    %4949 = vmatprep.subr.mxu0 0.0
    %4950 = vmatpush1.msra.mxu0 0.0
    %4951 = vmatprep.subr.mxu0 0.0
    %4952 = vmatpush1.msra.mxu0 0.0
    %4953 = vmatprep.subr.mxu0 0.0
    %4954 = vmatpush1.msra.mxu0 0.0
    %4955 = vmatprep.subr.mxu0 0.0
    %4956 = vmatpush1.msra.mxu0 0.0
    %4957 = vmatprep.mubr.f32.mxu0 0.0
    %4958 = vmatmul.mubr.f32.gmra.mrb[0].mxu0 %v4891
    %v4959 = vpop.f32.mrb[0].mxu0
    %v4960 = vadd.f32 0.0, %v4959
    %v4961 = vpop.f32.mrb[0].mxu0
    %4962 = vdwg.mxu0
    %4963 = vrot.lane.b32.xlu0 %v3850, 104
    %v4964 = vpop.permute.xlu0 %4963
    %4965 = vrot.lane.b32.xlu0 %v3963, 104
    %v4966 = vpop.permute.xlu0 %4965
    %v4967 = vsel %vm310, %v4964, 0
    %v4969 = vsel %vm310, %v4966, 0
    %4971 = vmatprep.subr.mxu0 0.0
    %4972 = vmatpush1.xpose.msra.mxu0 %v4969
    %4973 = vmatprep.subr.mxu0 0.0
    %4974 = vmatpush1.xpose.msra.mxu0 0.0
    %4975 = vmatprep.subr.mxu0 0.0
    %4976 = vmatpush1.xpose.msra.mxu0 0.0
    %4977 = vmatprep.subr.mxu0 0.0
    %4978 = vmatpush1.xpose.msra.mxu0 0.0
    %4979 = vmatprep.subr.mxu0 0.0
    %4980 = vmatpush1.xpose.msra.mxu0 0.0
    %4981 = vmatprep.subr.mxu0 0.0
    %4982 = vmatpush1.xpose.msra.mxu0 0.0
    %4983 = vmatprep.subr.mxu0 0.0
    %4984 = vmatpush1.xpose.msra.mxu0 0.0
    %4985 = vmatprep.subr.mxu0 0.0
    %4986 = vmatpush1.xpose.msra.mxu0 0.0
    %4987 = vmatprep.subr.mxu0 0.0
    %4988 = vmatpush1.xpose.msra.mxu0 0.0
    %4989 = vmatprep.subr.mxu0 0.0
    %4990 = vmatpush1.xpose.msra.mxu0 0.0
    %4991 = vmatprep.subr.mxu0 0.0
    %4992 = vmatpush1.xpose.msra.mxu0 0.0
    %4993 = vmatprep.subr.mxu0 0.0
    %4994 = vmatpush1.xpose.msra.mxu0 0.0
    %4995 = vmatprep.subr.mxu0 0.0
    %4996 = vmatpush1.xpose.msra.mxu0 0.0
    %4997 = vmatprep.subr.mxu0 0.0
    %4998 = vmatpush1.xpose.msra.mxu0 0.0
    %4999 = vmatprep.subr.mxu0 0.0
    %5000 = vmatpush1.xpose.msra.mxu0 0.0
    %5001 = vmatprep.subr.mxu0 0.0
    %5002 = vmatpush1.xpose.msra.mxu0 0.0
    %5003 = vmatprep.subr.mxu0 0.0
    %5004 = vmatpush1.xpose.msra.mxu0 0.0
    %5005 = vmatprep.subr.mxu0 0.0
    %5006 = vmatpush1.xpose.msra.mxu0 0.0
    %5007 = vmatprep.subr.mxu0 0.0
    %5008 = vmatpush1.xpose.msra.mxu0 0.0
    %5009 = vmatprep.subr.mxu0 0.0
    %5010 = vmatpush1.xpose.msra.mxu0 0.0
    %5011 = vmatprep.subr.mxu0 0.0
    %5012 = vmatpush1.xpose.msra.mxu0 0.0
    %5013 = vmatprep.subr.mxu0 0.0
    %5014 = vmatpush1.xpose.msra.mxu0 0.0
    %5015 = vmatprep.subr.mxu0 0.0
    %5016 = vmatpush1.xpose.msra.mxu0 0.0
    %5017 = vmatprep.subr.mxu0 0.0
    %5018 = vmatpush1.xpose.msra.mxu0 0.0
    %5019 = vmatprep.subr.mxu0 0.0
    %5020 = vmatpush1.xpose.msra.mxu0 0.0
    %5021 = vmatprep.subr.mxu0 0.0
    %5022 = vmatpush1.xpose.msra.mxu0 0.0
    %5023 = vmatprep.subr.mxu0 0.0
    %5024 = vmatpush1.xpose.msra.mxu0 0.0
    %5025 = vmatprep.subr.mxu0 0.0
    %5026 = vmatpush1.xpose.msra.mxu0 0.0
    %5027 = vmatprep.subr.mxu0 0.0
    %5028 = vmatpush1.xpose.msra.mxu0 0.0
    %5029 = vmatprep.subr.mxu0 0.0
    %5030 = vmatpush1.xpose.msra.mxu0 0.0
    %5031 = vmatprep.subr.mxu0 0.0
    %5032 = vmatpush1.xpose.msra.mxu0 0.0
    %5033 = vmatprep.subr.mxu0 0.0
    %5034 = vmatpush1.xpose.msra.mxu0 0.0
    %5035 = vmatprep.mubr.f32.mxu0 0.0
    %5036 = vmatmul.mubr.f32.gmra.mrb[0].mxu0 %v4967
    %v5037 = vpop.f32.mrb[0].mxu0
    %v5038 = vadd.f32 0.0, %v5037
    %v5039 = vpop.f32.mrb[0].mxu0
    %5040 = vdwg.mxu0
    %5041 = vrot.lane.b32.xlu0 %v3855, 104
    %v5042 = vpop.permute.xlu0 %5041
    %5043 = vrot.lane.b32.xlu0 %v3968, 104
    %v5044 = vpop.permute.xlu0 %5043
    %v5045 = vsel %vm310, %v5042, 0
    %v5047 = vsel %vm310, %v5044, 0
    %5049 = vmatprep.subr.mxu0 0.0
    %5050 = vmatpush1.xpose.msra.mxu0 %v5047
    %5051 = vmatprep.subr.mxu0 0.0
    %5052 = vmatpush1.xpose.msra.mxu0 0.0
    %5053 = vmatprep.subr.mxu0 0.0
    %5054 = vmatpush1.xpose.msra.mxu0 0.0
    %5055 = vmatprep.subr.mxu0 0.0
    %5056 = vmatpush1.xpose.msra.mxu0 0.0
    %5057 = vmatprep.subr.mxu0 0.0
    %5058 = vmatpush1.xpose.msra.mxu0 0.0
    %5059 = vmatprep.subr.mxu0 0.0
    %5060 = vmatpush1.xpose.msra.mxu0 0.0
    %5061 = vmatprep.subr.mxu0 0.0
    %5062 = vmatpush1.xpose.msra.mxu0 0.0
    %5063 = vmatprep.subr.mxu0 0.0
    %5064 = vmatpush1.xpose.msra.mxu0 0.0
    %5065 = vmatprep.subr.mxu0 0.0
    %5066 = vmatpush1.xpose.msra.mxu0 0.0
    %5067 = vmatprep.subr.mxu0 0.0
    %5068 = vmatpush1.xpose.msra.mxu0 0.0
    %5069 = vmatprep.subr.mxu0 0.0
    %5070 = vmatpush1.xpose.msra.mxu0 0.0
    %5071 = vmatprep.subr.mxu0 0.0
    %5072 = vmatpush1.xpose.msra.mxu0 0.0
    %5073 = vmatprep.subr.mxu0 0.0
    %5074 = vmatpush1.xpose.msra.mxu0 0.0
    %5075 = vmatprep.subr.mxu0 0.0
    %5076 = vmatpush1.xpose.msra.mxu0 0.0
    %5077 = vmatprep.subr.mxu0 0.0
    %5078 = vmatpush1.xpose.msra.mxu0 0.0
    %5079 = vmatprep.subr.mxu0 0.0
    %5080 = vmatpush1.xpose.msra.mxu0 0.0
    %5081 = vmatprep.subr.mxu0 0.0
    %5082 = vmatpush1.xpose.msra.mxu0 0.0
    %5083 = vmatprep.subr.mxu0 0.0
    %5084 = vmatpush1.xpose.msra.mxu0 0.0
    %5085 = vmatprep.subr.mxu0 0.0
    %5086 = vmatpush1.xpose.msra.mxu0 0.0
    %5087 = vmatprep.subr.mxu0 0.0
    %5088 = vmatpush1.xpose.msra.mxu0 0.0
    %5089 = vmatprep.subr.mxu0 0.0
    %5090 = vmatpush1.xpose.msra.mxu0 0.0
    %5091 = vmatprep.subr.mxu0 0.0
    %5092 = vmatpush1.xpose.msra.mxu0 0.0
    %5093 = vmatprep.subr.mxu0 0.0
    %5094 = vmatpush1.xpose.msra.mxu0 0.0
    %5095 = vmatprep.subr.mxu0 0.0
    %5096 = vmatpush1.xpose.msra.mxu0 0.0
    %5097 = vmatprep.subr.mxu0 0.0
    %5098 = vmatpush1.xpose.msra.mxu0 0.0
    %5099 = vmatprep.subr.mxu0 0.0
    %5100 = vmatpush1.xpose.msra.mxu0 0.0
    %5101 = vmatprep.subr.mxu0 0.0
    %5102 = vmatpush1.xpose.msra.mxu0 0.0
    %5103 = vmatprep.subr.mxu0 0.0
    %5104 = vmatpush1.xpose.msra.mxu0 0.0
    %5105 = vmatprep.subr.mxu0 0.0
    %5106 = vmatpush1.xpose.msra.mxu0 0.0
    %5107 = vmatprep.subr.mxu0 0.0
    %5108 = vmatpush1.xpose.msra.mxu0 0.0
    %5109 = vmatprep.subr.mxu0 0.0
    %5110 = vmatpush1.xpose.msra.mxu0 0.0
    %5111 = vmatprep.subr.mxu0 0.0
    %5112 = vmatpush1.xpose.msra.mxu0 0.0
    %5113 = vmatprep.mubr.f32.mxu0 0.0
    %5114 = vmatmul.mubr.f32.gmra.mrb[0].mxu0 %v5045
    %v5115 = vpop.f32.mrb[0].mxu0
    %v5116 = vadd.f32 0.0, %v5115
    %v5117 = vpop.f32.mrb[0].mxu0
    %5118 = vdwg.mxu0
    %v5119 = vmul.f32 %v5038, 0.35355338
    %v5120 = vmul.f32 %v5116, 0.35355338
    %v5121 = vsel %vm310, %v5119, -inf
    %5122 = vmax.xlane.f32.xlu0 %v5121
    %v5123 = vpop.xlane.xlu0 %5122
    %v5124 = vsel %vm310, %v5120, -inf
    %5125 = vmax.xlane.f32.xlu0 %v5124
    %v5126 = vpop.xlane.xlu0 %5125
    %v5127 = vsub.f32 %v5119, %v5123
    %v5128 = vsub.f32 %v5120, %v5126
    %v5129 = vmul.f32 %v5127, 1.442695
    %v5130 = vpow.pop %v5129
    %v5131 = vmul.f32 %v5128, 1.442695
    %v5132 = vpow.pop %v5131
    %v5133 = vsel %vm310, %v5130, 0.0
    %5134 = vadd.xlane.f32.xlu0 %v5133
    %v5135 = vpop.xlane.xlu0 %5134
    %v5136 = vsel %vm310, %v5132, 0.0
    %5137 = vadd.xlane.f32.xlu0 %v5136
    %v5138 = vpop.xlane.xlu0 %5137
    %v5139 = vrcp.pop %v5135
    %v5140 = vmul.f32 %v5130, %v5139
    %v5141 = vrcp.pop %v5138
    %v5142 = vmul.f32 %v5132, %v5141
    %5143 = vrot.lane.b32.xlu0 %v3963, 72
    %v5144 = vpop.permute.xlu0 %5143
    %v5147 = vsel %vm310, %v5140, 0
    %5149 = vmatprep.subr.mxu0 0.0
    %5150 = vmatpush1.msra.mxu0 %v5144
    %5151 = vmatprep.subr.mxu0 0.0
    %5152 = vmatpush1.msra.mxu0 0.0
    %5153 = vmatprep.subr.mxu0 0.0
    %5154 = vmatpush1.msra.mxu0 0.0
    %5155 = vmatprep.subr.mxu0 0.0
    %5156 = vmatpush1.msra.mxu0 0.0
    %5157 = vmatprep.subr.mxu0 0.0
    %5158 = vmatpush1.msra.mxu0 0.0
    %5159 = vmatprep.subr.mxu0 0.0
    %5160 = vmatpush1.msra.mxu0 0.0
    %5161 = vmatprep.subr.mxu0 0.0
    %5162 = vmatpush1.msra.mxu0 0.0
    %5163 = vmatprep.subr.mxu0 0.0
    %5164 = vmatpush1.msra.mxu0 0.0
    %5165 = vmatprep.subr.mxu0 0.0
    %5166 = vmatpush1.msra.mxu0 0.0
    %5167 = vmatprep.subr.mxu0 0.0
    %5168 = vmatpush1.msra.mxu0 0.0
    %5169 = vmatprep.subr.mxu0 0.0
    %5170 = vmatpush1.msra.mxu0 0.0
    %5171 = vmatprep.subr.mxu0 0.0
    %5172 = vmatpush1.msra.mxu0 0.0
    %5173 = vmatprep.subr.mxu0 0.0
    %5174 = vmatpush1.msra.mxu0 0.0
    %5175 = vmatprep.subr.mxu0 0.0
    %5176 = vmatpush1.msra.mxu0 0.0
    %5177 = vmatprep.subr.mxu0 0.0
    %5178 = vmatpush1.msra.mxu0 0.0
    %5179 = vmatprep.subr.mxu0 0.0
    %5180 = vmatpush1.msra.mxu0 0.0
    %5181 = vmatprep.subr.mxu0 0.0
    %5182 = vmatpush1.msra.mxu0 0.0
    %5183 = vmatprep.subr.mxu0 0.0
    %5184 = vmatpush1.msra.mxu0 0.0
    %5185 = vmatprep.subr.mxu0 0.0
    %5186 = vmatpush1.msra.mxu0 0.0
    %5187 = vmatprep.subr.mxu0 0.0
    %5188 = vmatpush1.msra.mxu0 0.0
    %5189 = vmatprep.subr.mxu0 0.0
    %5190 = vmatpush1.msra.mxu0 0.0
    %5191 = vmatprep.subr.mxu0 0.0
    %5192 = vmatpush1.msra.mxu0 0.0
    %5193 = vmatprep.subr.mxu0 0.0
    %5194 = vmatpush1.msra.mxu0 0.0
    %5195 = vmatprep.subr.mxu0 0.0
    %5196 = vmatpush1.msra.mxu0 0.0
    %5197 = vmatprep.subr.mxu0 0.0
    %5198 = vmatpush1.msra.mxu0 0.0
    %5199 = vmatprep.subr.mxu0 0.0
    %5200 = vmatpush1.msra.mxu0 0.0
    %5201 = vmatprep.subr.mxu0 0.0
    %5202 = vmatpush1.msra.mxu0 0.0
    %5203 = vmatprep.subr.mxu0 0.0
    %5204 = vmatpush1.msra.mxu0 0.0
    %5205 = vmatprep.subr.mxu0 0.0
    %5206 = vmatpush1.msra.mxu0 0.0
    %5207 = vmatprep.subr.mxu0 0.0
    %5208 = vmatpush1.msra.mxu0 0.0
    %5209 = vmatprep.subr.mxu0 0.0
    %5210 = vmatpush1.msra.mxu0 0.0
    %5211 = vmatprep.subr.mxu0 0.0
    %5212 = vmatpush1.msra.mxu0 0.0
    %5213 = vmatprep.mubr.f32.mxu0 0.0
    %5214 = vmatmul.mubr.f32.gmra.mrb[0].mxu0 %v5147
    %v5215 = vpop.f32.mrb[0].mxu0
    %v5216 = vadd.f32 0.0, %v5215
    %v5217 = vpop.f32.mrb[0].mxu0
    %5218 = vdwg.mxu0
    %5219 = vrot.lane.b32.xlu0 %v3968, 72
    %v5220 = vpop.permute.xlu0 %5219
    %v5223 = vsel %vm310, %v5142, 0
    %5225 = vmatprep.subr.mxu0 0.0
    %5226 = vmatpush1.msra.mxu0 %v5220
    %5227 = vmatprep.subr.mxu0 0.0
    %5228 = vmatpush1.msra.mxu0 0.0
    %5229 = vmatprep.subr.mxu0 0.0
    %5230 = vmatpush1.msra.mxu0 0.0
    %5231 = vmatprep.subr.mxu0 0.0
    %5232 = vmatpush1.msra.mxu0 0.0
    %5233 = vmatprep.subr.mxu0 0.0
    %5234 = vmatpush1.msra.mxu0 0.0
    %5235 = vmatprep.subr.mxu0 0.0
    %5236 = vmatpush1.msra.mxu0 0.0
    %5237 = vmatprep.subr.mxu0 0.0
    %5238 = vmatpush1.msra.mxu0 0.0
    %5239 = vmatprep.subr.mxu0 0.0
    %5240 = vmatpush1.msra.mxu0 0.0
    %5241 = vmatprep.subr.mxu0 0.0
    %5242 = vmatpush1.msra.mxu0 0.0
    %5243 = vmatprep.subr.mxu0 0.0
    %5244 = vmatpush1.msra.mxu0 0.0
    %5245 = vmatprep.subr.mxu0 0.0
    %5246 = vmatpush1.msra.mxu0 0.0
    %5247 = vmatprep.subr.mxu0 0.0
    %5248 = vmatpush1.msra.mxu0 0.0
    %5249 = vmatprep.subr.mxu0 0.0
    %5250 = vmatpush1.msra.mxu0 0.0
    %5251 = vmatprep.subr.mxu0 0.0
    %5252 = vmatpush1.msra.mxu0 0.0
    %5253 = vmatprep.subr.mxu0 0.0
    %5254 = vmatpush1.msra.mxu0 0.0
    %5255 = vmatprep.subr.mxu0 0.0
    %5256 = vmatpush1.msra.mxu0 0.0
    %5257 = vmatprep.subr.mxu0 0.0
    %5258 = vmatpush1.msra.mxu0 0.0
    %5259 = vmatprep.subr.mxu0 0.0
    %5260 = vmatpush1.msra.mxu0 0.0
    %5261 = vmatprep.subr.mxu0 0.0
    %5262 = vmatpush1.msra.mxu0 0.0
    %5263 = vmatprep.subr.mxu0 0.0
    %5264 = vmatpush1.msra.mxu0 0.0
    %5265 = vmatprep.subr.mxu0 0.0
    %5266 = vmatpush1.msra.mxu0 0.0
    %5267 = vmatprep.subr.mxu0 0.0
    %5268 = vmatpush1.msra.mxu0 0.0
    %5269 = vmatprep.subr.mxu0 0.0
    %5270 = vmatpush1.msra.mxu0 0.0
    %5271 = vmatprep.subr.mxu0 0.0
    %5272 = vmatpush1.msra.mxu0 0.0
    %5273 = vmatprep.subr.mxu0 0.0
    %5274 = vmatpush1.msra.mxu0 0.0
    %5275 = vmatprep.subr.mxu0 0.0
    %5276 = vmatpush1.msra.mxu0 0.0
    %5277 = vmatprep.subr.mxu0 0.0
    %5278 = vmatpush1.msra.mxu0 0.0
    %5279 = vmatprep.subr.mxu0 0.0
    %5280 = vmatpush1.msra.mxu0 0.0
    %5281 = vmatprep.subr.mxu0 0.0
    %5282 = vmatpush1.msra.mxu0 0.0
    %5283 = vmatprep.subr.mxu0 0.0
    %5284 = vmatpush1.msra.mxu0 0.0
    %5285 = vmatprep.subr.mxu0 0.0
    %5286 = vmatpush1.msra.mxu0 0.0
    %5287 = vmatprep.subr.mxu0 0.0
    %5288 = vmatpush1.msra.mxu0 0.0
    %5289 = vmatprep.mubr.f32.mxu0 0.0
    %5290 = vmatmul.mubr.f32.gmra.mrb[0].mxu0 %v5223
    %v5291 = vpop.f32.mrb[0].mxu0
    %v5292 = vadd.f32 0.0, %v5291
    %v5293 = vpop.f32.mrb[0].mxu0
    %5294 = vdwg.mxu0
    %5297 = vrot.lane.b32.xlu0 %v4552, 8
    %v5298 = vpop.permute.xlu0 %5297
    %5299 = vrot.lane.b32.xlu0 %v4628, 8
    %v5300 = vpop.permute.xlu0 %5299
    %5305 = vrot.lane.b32.xlu0 %v4884, 16
    %v5306 = vpop.permute.xlu0 %5305
    %5307 = vrot.lane.b32.xlu0 %v4960, 16
    %v5308 = vpop.permute.xlu0 %5307
    %5313 = vrot.lane.b32.xlu0 %v5216, 24
    %v5314 = vpop.permute.xlu0 %5313
    %5315 = vrot.lane.b32.xlu0 %v5292, 24
    %v5316 = vpop.permute.xlu0 %5315
    %v5319 = vsel %vm310, %v4220, %v5298
    %v5320 = vsel %vm310, %v4296, %v5300
    %v5321 = vsel %vm1660, %v5319, %v5306
    %v5322 = vsel %vm1660, %v5320, %v5308
    %v5323 = vsel %vm1663, %v5321, %v5314
    %v5324 = vsel %vm1663, %v5322, %v5316
    %v5325 = vlaneseq
    %v5326 = vshrl.u32 %v5325, 7
    %v5327 = vsub.s32 6, %v5326
    %v5328 = vrot.slane %v81, %v5327
    %5329 = vrot.lane.b32.xlu0 %v55, 96
    %v5330 = vpop.permute.xlu0 %5329
    %5331 = vrot.lane.b32.xlu0 %v60, 96
    %v5332 = vpop.permute.xlu0 %5331
    %5333 = vrot.lane.b32.xlu0 %v65, 96
    %v5334 = vpop.permute.xlu0 %5333
    %5335 = vrot.lane.b32.xlu0 %v70, 96
    %v5336 = vpop.permute.xlu0 %5335
    %v5342 = vsel %vm225, %v5323, 0
    %v5345 = vsel %vm225, %v5324, 0
    %5347 = vmatprep.subr.mxu0 0.0
    %5348 = vmatpush1.msra.mxu0 %v5330
    %5349 = vmatprep.subr.mxu0 0.0
    %5350 = vmatpush1.msra.mxu0 %v5332
    %5351 = vmatprep.subr.mxu0 0.0
    %5352 = vmatpush1.msra.mxu0 %v5334
    %5353 = vmatprep.subr.mxu0 0.0
    %5354 = vmatpush1.msra.mxu0 %v5336
    %5355 = vmatprep.subr.mxu0 0.0
    %5356 = vmatpush1.msra.mxu0 0.0
    %5357 = vmatprep.subr.mxu0 0.0
    %5358 = vmatpush1.msra.mxu0 0.0
    %5359 = vmatprep.subr.mxu0 0.0
    %5360 = vmatpush1.msra.mxu0 0.0
    %5361 = vmatprep.subr.mxu0 0.0
    %5362 = vmatpush1.msra.mxu0 0.0
    %5363 = vmatprep.subr.mxu0 0.0
    %5364 = vmatpush1.msra.mxu0 0.0
    %5365 = vmatprep.subr.mxu0 0.0
    %5366 = vmatpush1.msra.mxu0 0.0
    %5367 = vmatprep.subr.mxu0 0.0
    %5368 = vmatpush1.msra.mxu0 0.0
    %5369 = vmatprep.subr.mxu0 0.0
    %5370 = vmatpush1.msra.mxu0 0.0
    %5371 = vmatprep.subr.mxu0 0.0
    %5372 = vmatpush1.msra.mxu0 0.0
    %5373 = vmatprep.subr.mxu0 0.0
    %5374 = vmatpush1.msra.mxu0 0.0
    %5375 = vmatprep.subr.mxu0 0.0
    %5376 = vmatpush1.msra.mxu0 0.0
    %5377 = vmatprep.subr.mxu0 0.0
    %5378 = vmatpush1.msra.mxu0 0.0
    %5379 = vmatprep.subr.mxu0 0.0
    %5380 = vmatpush1.msra.mxu0 0.0
    %5381 = vmatprep.subr.mxu0 0.0
    %5382 = vmatpush1.msra.mxu0 0.0
    %5383 = vmatprep.subr.mxu0 0.0
    %5384 = vmatpush1.msra.mxu0 0.0
    %5385 = vmatprep.subr.mxu0 0.0
    %5386 = vmatpush1.msra.mxu0 0.0
    %5387 = vmatprep.subr.mxu0 0.0
    %5388 = vmatpush1.msra.mxu0 0.0
    %5389 = vmatprep.subr.mxu0 0.0
    %5390 = vmatpush1.msra.mxu0 0.0
    %5391 = vmatprep.subr.mxu0 0.0
    %5392 = vmatpush1.msra.mxu0 0.0
    %5393 = vmatprep.subr.mxu0 0.0
    %5394 = vmatpush1.msra.mxu0 0.0
    %5395 = vmatprep.subr.mxu0 0.0
    %5396 = vmatpush1.msra.mxu0 0.0
    %5397 = vmatprep.subr.mxu0 0.0
    %5398 = vmatpush1.msra.mxu0 0.0
    %5399 = vmatprep.subr.mxu0 0.0
    %5400 = vmatpush1.msra.mxu0 0.0
    %5401 = vmatprep.subr.mxu0 0.0
    %5402 = vmatpush1.msra.mxu0 0.0
    %5403 = vmatprep.subr.mxu0 0.0
    %5404 = vmatpush1.msra.mxu0 0.0
    %5405 = vmatprep.subr.mxu0 0.0
    %5406 = vmatpush1.msra.mxu0 0.0
    %5407 = vmatprep.subr.mxu0 0.0
    %5408 = vmatpush1.msra.mxu0 0.0
    %5409 = vmatprep.subr.mxu0 0.0
    %5410 = vmatpush1.msra.mxu0 0.0
    %5411 = vmatprep.mubr.f32.mxu0 0.0
    %5412 = vmatmul.mubr.f32.gmra.mrb[0].mxu0 %v5342
    %v5413 = vpop.f32.mrb[0].mxu0
    %v5414 = vadd.f32 %v5328, %v5413
    %v5415 = vpop.f32.mrb[0].mxu0
    %5416 = vmatprep.mubr.f32.mxu0 0.0
    %5417 = vmatmul.mubr.f32.gmra.mrb[0].mxu0 %v5345
    %v5418 = vpop.f32.mrb[0].mxu0
    %v5419 = vadd.f32 %v5328, %v5418
    %v5420 = vpop.f32.mrb[0].mxu0
    %5421 = vdwg.mxu0
    %5422 = vst.msk [vmem:[#allocation8] sm:$0xff] %vm310, %v4144
    %5423 = vst.msk [vmem:[#allocation8 + $0x8] sm:$0xff] %vm310, %v4476
    %5424 = vst.msk [vmem:[#allocation8 + $0x10] sm:$0xff] %vm310, %v4808
    %5425 = vst.msk [vmem:[#allocation8 + $0x18] sm:$0xff] %vm310, %v5140
    %5426 = vst.msk [vmem:[#allocation8 + $0x20] sm:$0xff] %vm310, %v4146
    %5427 = vst.msk [vmem:[#allocation8 + $0x28] sm:$0xff] %vm310, %v4478
    %5428 = vst.msk [vmem:[#allocation8 + $0x30] sm:$0xff] %vm310, %v4810
    %5429 = vst.msk [vmem:[#allocation8 + $0x38] sm:$0xff] %vm310, %v5142
    %v5430 = vadd.f32 %v3767, %v5414
    %v5431 = vadd.f32 %v3768, %v5419
    %v5432 = vsel %vm225, %v5430, 0.0
    %5433 = vadd.xlane.f32.xlu0 %v5432
    %v5434 = vpop.xlane.xlu0 %5433
    %v5435 = vsel %vm225, %v5431, 0.0
    %5436 = vadd.xlane.f32.xlu0 %v5435
    %v5437 = vpop.xlane.xlu0 %5436
    %v5438 = vmul.f32 %v5434, %v1775
    %v5439 = vmul.f32 %v5437, %v1775
    %v5440 = vsub.f32 %v5430, %v5438
    %v5441 = vsub.f32 %v5431, %v5439
    %v5442 = vmul.f32 %v5440, %v5440
    %v5443 = vmul.f32 %v5441, %v5441
    %v5444 = vsel %vm225, %v5442, 0.0
    %5445 = vadd.xlane.f32.xlu0 %v5444
    %v5446 = vpop.xlane.xlu0 %5445
    %v5447 = vsel %vm225, %v5443, 0.0
    %5448 = vadd.xlane.f32.xlu0 %v5447
    %v5449 = vpop.xlane.xlu0 %5448
    %v5450 = vmul.f32 %v5446, %v1775
    %v5451 = vmul.f32 %v5449, %v1775
    %v5452 = vadd.f32 %v5450, 1e-05
    %v5453 = vadd.f32 %v5451, 1e-05
    %v5454 = vrsqrt.pop %v5452
    %v5455 = vrsqrt.pop %v5453
    %v5456 = vmul.f32 %v5440, %v5454
    %v5457 = vmul.f32 %v5441, %v5455
    %v5458 = vlaneseq
    %v5459 = vshrl.u32 %v5458, 7
    %v5460 = vsub.s32 7, %v5459
    %v5461 = vrot.slane %v81, %v5460
    %v5462 = vmul.f32 %v5456, %v5461
    %v5463 = vmul.f32 %v5457, %v5461
    %v5464 = vlaneseq
    %v5465 = vshrl.u32 %v5464, 7
    %v5466 = vsub.s32 0, %v5465
    %v5467 = vrot.slane %v82, %v5466
    %v5468 = vadd.f32 %v5462, %v5467
    %v5469 = vadd.f32 %v5463, %v5467
    %v5470 = vlaneseq
    %v5471 = vshrl.u32 %v5470, 7
    %v5472 = vsub.s32 1, %v5471
    %v5473 = vrot.slane %v82, %v5472
    %5474 = vrot.lane.b32.xlu0 %v55, 64
    %v5475 = vpop.permute.xlu0 %5474
    %5476 = vrot.lane.b32.xlu0 %v60, 64
    %v5477 = vpop.permute.xlu0 %5476
    %5478 = vrot.lane.b32.xlu0 %v65, 64
    %v5479 = vpop.permute.xlu0 %5478
    %5480 = vrot.lane.b32.xlu0 %v70, 64
    %v5481 = vpop.permute.xlu0 %5480
    %v5487 = vsel %vm225, %v5468, 0
    %v5490 = vsel %vm225, %v5469, 0
    %5492 = vmatprep.subr.mxu0 0.0
    %5493 = vmatpush1.msra.mxu0 %v5475
    %5494 = vmatprep.subr.mxu0 0.0
    %5495 = vmatpush1.msra.mxu0 %v5477
    %5496 = vmatprep.subr.mxu0 0.0
    %5497 = vmatpush1.msra.mxu0 %v5479
    %5498 = vmatprep.subr.mxu0 0.0
    %5499 = vmatpush1.msra.mxu0 %v5481
    %5500 = vmatprep.subr.mxu0 0.0
    %5501 = vmatpush1.msra.mxu0 0.0
    %5502 = vmatprep.subr.mxu0 0.0
    %5503 = vmatpush1.msra.mxu0 0.0
    %5504 = vmatprep.subr.mxu0 0.0
    %5505 = vmatpush1.msra.mxu0 0.0
    %5506 = vmatprep.subr.mxu0 0.0
    %5507 = vmatpush1.msra.mxu0 0.0
    %5508 = vmatprep.subr.mxu0 0.0
    %5509 = vmatpush1.msra.mxu0 0.0
    %5510 = vmatprep.subr.mxu0 0.0
    %5511 = vmatpush1.msra.mxu0 0.0
    %5512 = vmatprep.subr.mxu0 0.0
    %5513 = vmatpush1.msra.mxu0 0.0
    %5514 = vmatprep.subr.mxu0 0.0
    %5515 = vmatpush1.msra.mxu0 0.0
    %5516 = vmatprep.subr.mxu0 0.0
    %5517 = vmatpush1.msra.mxu0 0.0
    %5518 = vmatprep.subr.mxu0 0.0
    %5519 = vmatpush1.msra.mxu0 0.0
    %5520 = vmatprep.subr.mxu0 0.0
    %5521 = vmatpush1.msra.mxu0 0.0
    %5522 = vmatprep.subr.mxu0 0.0
    %5523 = vmatpush1.msra.mxu0 0.0
    %5524 = vmatprep.subr.mxu0 0.0
    %5525 = vmatpush1.msra.mxu0 0.0
    %5526 = vmatprep.subr.mxu0 0.0
    %5527 = vmatpush1.msra.mxu0 0.0
    %5528 = vmatprep.subr.mxu0 0.0
    %5529 = vmatpush1.msra.mxu0 0.0
    %5530 = vmatprep.subr.mxu0 0.0
    %5531 = vmatpush1.msra.mxu0 0.0
    %5532 = vmatprep.subr.mxu0 0.0
    %5533 = vmatpush1.msra.mxu0 0.0
    %5534 = vmatprep.subr.mxu0 0.0
    %5535 = vmatpush1.msra.mxu0 0.0
    %5536 = vmatprep.subr.mxu0 0.0
    %5537 = vmatpush1.msra.mxu0 0.0
    %5538 = vmatprep.subr.mxu0 0.0
    %5539 = vmatpush1.msra.mxu0 0.0
    %5540 = vmatprep.subr.mxu0 0.0
    %5541 = vmatpush1.msra.mxu0 0.0
    %5542 = vmatprep.subr.mxu0 0.0
    %5543 = vmatpush1.msra.mxu0 0.0
    %5544 = vmatprep.subr.mxu0 0.0
    %5545 = vmatpush1.msra.mxu0 0.0
    %5546 = vmatprep.subr.mxu0 0.0
    %5547 = vmatpush1.msra.mxu0 0.0
    %5548 = vmatprep.subr.mxu0 0.0
    %5549 = vmatpush1.msra.mxu0 0.0
    %5550 = vmatprep.subr.mxu0 0.0
    %5551 = vmatpush1.msra.mxu0 0.0
    %5552 = vmatprep.subr.mxu0 0.0
    %5553 = vmatpush1.msra.mxu0 0.0
    %5554 = vmatprep.subr.mxu0 0.0
    %5555 = vmatpush1.msra.mxu0 0.0
    %5556 = vmatprep.mubr.f32.mxu0 0.0
    %5557 = vmatmul.mubr.f32.gmra.mrb[0].mxu0 %v5487
    %v5558 = vpop.f32.mrb[0].mxu0
    %v5559 = vadd.f32 %v5473, %v5558
    %v5560 = vpop.f32.mrb[0].mxu0
    %5561 = vmatprep.mubr.f32.mxu0 0.0
    %5562 = vmatmul.mubr.f32.gmra.mrb[0].mxu0 %v5490
    %v5563 = vpop.f32.mrb[0].mxu0
    %v5564 = vadd.f32 %v5473, %v5563
    %v5565 = vpop.f32.mrb[0].mxu0
    %5566 = vdwg.mxu0
    %v5567 = vmax.f32 %v5559, 0.0
    %v5568 = vmax.f32 %v5564, 0.0
    %v5569 = vlaneseq
    %v5570 = vshrl.u32 %v5569, 7
    %v5571 = vsub.s32 2, %v5570
    %v5572 = vrot.slane %v82, %v5571
    %5573 = vrot.lane.b32.xlu0 %v72, 96
    %v5574 = vpop.permute.xlu0 %5573
    %5575 = vrot.lane.b32.xlu0 %v73, 96
    %v5576 = vpop.permute.xlu0 %5575
    %5577 = vrot.lane.b32.xlu0 %v74, 96
    %v5578 = vpop.permute.xlu0 %5577
    %5579 = vrot.lane.b32.xlu0 %v75, 96
    %v5580 = vpop.permute.xlu0 %5579
    %5581 = vrot.lane.b32.xlu0 %v76, 96
    %v5582 = vpop.permute.xlu0 %5581
    %5583 = vrot.lane.b32.xlu0 %v77, 96
    %v5584 = vpop.permute.xlu0 %5583
    %5585 = vrot.lane.b32.xlu0 %v78, 96
    %v5586 = vpop.permute.xlu0 %5585
    %5587 = vrot.lane.b32.xlu0 %v79, 96
    %v5588 = vpop.permute.xlu0 %5587
    %v5598 = vsel %vm131, %v5567, 0
    %v5601 = vsel %vm131, %v5568, 0
    %5603 = vmatprep.subr.mxu0 0.0
    %5604 = vmatpush1.msra.mxu0 %v5574
    %5605 = vmatprep.subr.mxu0 0.0
    %5606 = vmatpush1.msra.mxu0 %v5576
    %5607 = vmatprep.subr.mxu0 0.0
    %5608 = vmatpush1.msra.mxu0 %v5578
    %5609 = vmatprep.subr.mxu0 0.0
    %5610 = vmatpush1.msra.mxu0 %v5580
    %5611 = vmatprep.subr.mxu0 0.0
    %5612 = vmatpush1.msra.mxu0 %v5582
    %5613 = vmatprep.subr.mxu0 0.0
    %5614 = vmatpush1.msra.mxu0 %v5584
    %5615 = vmatprep.subr.mxu0 0.0
    %5616 = vmatpush1.msra.mxu0 %v5586
    %5617 = vmatprep.subr.mxu0 0.0
    %5618 = vmatpush1.msra.mxu0 %v5588
    %5619 = vmatprep.subr.mxu0 0.0
    %5620 = vmatpush1.msra.mxu0 0.0
    %5621 = vmatprep.subr.mxu0 0.0
    %5622 = vmatpush1.msra.mxu0 0.0
    %5623 = vmatprep.subr.mxu0 0.0
    %5624 = vmatpush1.msra.mxu0 0.0
    %5625 = vmatprep.subr.mxu0 0.0
    %5626 = vmatpush1.msra.mxu0 0.0
    %5627 = vmatprep.subr.mxu0 0.0
    %5628 = vmatpush1.msra.mxu0 0.0
    %5629 = vmatprep.subr.mxu0 0.0
    %5630 = vmatpush1.msra.mxu0 0.0
    %5631 = vmatprep.subr.mxu0 0.0
    %5632 = vmatpush1.msra.mxu0 0.0
    %5633 = vmatprep.subr.mxu0 0.0
    %5634 = vmatpush1.msra.mxu0 0.0
    %5635 = vmatprep.subr.mxu0 0.0
    %5636 = vmatpush1.msra.mxu0 0.0
    %5637 = vmatprep.subr.mxu0 0.0
    %5638 = vmatpush1.msra.mxu0 0.0
    %5639 = vmatprep.subr.mxu0 0.0
    %5640 = vmatpush1.msra.mxu0 0.0
    %5641 = vmatprep.subr.mxu0 0.0
    %5642 = vmatpush1.msra.mxu0 0.0
    %5643 = vmatprep.subr.mxu0 0.0
    %5644 = vmatpush1.msra.mxu0 0.0
    %5645 = vmatprep.subr.mxu0 0.0
    %5646 = vmatpush1.msra.mxu0 0.0
    %5647 = vmatprep.subr.mxu0 0.0
    %5648 = vmatpush1.msra.mxu0 0.0
    %5649 = vmatprep.subr.mxu0 0.0
    %5650 = vmatpush1.msra.mxu0 0.0
    %5651 = vmatprep.subr.mxu0 0.0
    %5652 = vmatpush1.msra.mxu0 0.0
    %5653 = vmatprep.subr.mxu0 0.0
    %5654 = vmatpush1.msra.mxu0 0.0
    %5655 = vmatprep.subr.mxu0 0.0
    %5656 = vmatpush1.msra.mxu0 0.0
    %5657 = vmatprep.subr.mxu0 0.0
    %5658 = vmatpush1.msra.mxu0 0.0
    %5659 = vmatprep.subr.mxu0 0.0
    %5660 = vmatpush1.msra.mxu0 0.0
    %5661 = vmatprep.subr.mxu0 0.0
    %5662 = vmatpush1.msra.mxu0 0.0
    %5663 = vmatprep.subr.mxu0 0.0
    %5664 = vmatpush1.msra.mxu0 0.0
    %5665 = vmatprep.subr.mxu0 0.0
    %5666 = vmatpush1.msra.mxu0 0.0
    %5667 = vmatprep.mubr.f32.mxu0 0.0
    %5668 = vmatmul.mubr.f32.gmra.mrb[0].mxu0 %v5598
    %v5669 = vpop.f32.mrb[0].mxu0
    %v5670 = vadd.f32 %v5572, %v5669
    %v5671 = vpop.f32.mrb[0].mxu0
    %5672 = vmatprep.mubr.f32.mxu0 0.0
    %5673 = vmatmul.mubr.f32.gmra.mrb[0].mxu0 %v5601
    %v5674 = vpop.f32.mrb[0].mxu0
    %v5675 = vadd.f32 %v5572, %v5674
    %v5676 = vpop.f32.mrb[0].mxu0
    %5677 = vdwg.mxu0
    %v5678 = vadd.f32 %v5468, %v5670
    %v5679 = vadd.f32 %v5469, %v5675
    %v5680 = vsel %vm225, %v5678, 0.0
    %5681 = vadd.xlane.f32.xlu0 %v5680
    %v5682 = vpop.xlane.xlu0 %5681
    %v5683 = vsel %vm225, %v5679, 0.0
    %5684 = vadd.xlane.f32.xlu0 %v5683
    %v5685 = vpop.xlane.xlu0 %5684
    %v5686 = vmul.f32 %v5682, %v1775
    %v5687 = vmul.f32 %v5685, %v1775
    %v5688 = vsub.f32 %v5678, %v5686
    %v5689 = vsub.f32 %v5679, %v5687
    %v5690 = vmul.f32 %v5688, %v5688
    %v5691 = vmul.f32 %v5689, %v5689
    %v5692 = vsel %vm225, %v5690, 0.0
    %5693 = vadd.xlane.f32.xlu0 %v5692
    %v5694 = vpop.xlane.xlu0 %5693
    %v5695 = vsel %vm225, %v5691, 0.0
    %5696 = vadd.xlane.f32.xlu0 %v5695
    %v5697 = vpop.xlane.xlu0 %5696
    %v5698 = vmul.f32 %v5694, %v1775
    %v5699 = vmul.f32 %v5697, %v1775
    %v5700 = vadd.f32 %v5698, 1e-05
    %v5701 = vadd.f32 %v5699, 1e-05
    %v5702 = vrsqrt.pop %v5700
    %v5703 = vrsqrt.pop %v5701
    %v5704 = vmul.f32 %v5688, %v5702
    %v5705 = vmul.f32 %v5689, %v5703
    %v5706 = vlaneseq
    %v5707 = vshrl.u32 %v5706, 7
    %v5708 = vsub.s32 3, %v5707
    %v5709 = vrot.slane %v82, %v5708
    %v5710 = vmul.f32 %v5704, %v5709
    %v5711 = vmul.f32 %v5705, %v5709
    %v5712 = vlaneseq
    %v5713 = vshrl.u32 %v5712, 7
    %v5714 = vsub.s32 4, %v5713
    %v5715 = vrot.slane %v82, %v5714
    %v5716 = vadd.f32 %v5710, %v5715
    %v5717 = vadd.f32 %v5711, %v5715
    %v5718 = vlaneseq
    %v5719 = vshrl.u32 %v5718, 7
    %v5720 = vsub.s32 5, %v5719
    %v5721 = vrot.slane %v82, %v5720
    %v5723 = vsel %vm225, %v5716, 0
    %v5726 = vsel %vm225, %v5717, 0
    %5728 = vmatprep.subr.mxu0 0.0
    %5729 = vmatpush1.msra.mxu0 %v56
    %5730 = vmatprep.subr.mxu0 0.0
    %5731 = vmatpush1.msra.mxu0 %v61
    %5732 = vmatprep.subr.mxu0 0.0
    %5733 = vmatpush1.msra.mxu0 %v66
    %5734 = vmatprep.subr.mxu0 0.0
    %5735 = vmatpush1.msra.mxu0 %v71
    %5736 = vmatprep.subr.mxu0 0.0
    %5737 = vmatpush1.msra.mxu0 0.0
    %5738 = vmatprep.subr.mxu0 0.0
    %5739 = vmatpush1.msra.mxu0 0.0
    %5740 = vmatprep.subr.mxu0 0.0
    %5741 = vmatpush1.msra.mxu0 0.0
    %5742 = vmatprep.subr.mxu0 0.0
    %5743 = vmatpush1.msra.mxu0 0.0
    %5744 = vmatprep.subr.mxu0 0.0
    %5745 = vmatpush1.msra.mxu0 0.0
    %5746 = vmatprep.subr.mxu0 0.0
    %5747 = vmatpush1.msra.mxu0 0.0
    %5748 = vmatprep.subr.mxu0 0.0
    %5749 = vmatpush1.msra.mxu0 0.0
    %5750 = vmatprep.subr.mxu0 0.0
    %5751 = vmatpush1.msra.mxu0 0.0
    %5752 = vmatprep.subr.mxu0 0.0
    %5753 = vmatpush1.msra.mxu0 0.0
    %5754 = vmatprep.subr.mxu0 0.0
    %5755 = vmatpush1.msra.mxu0 0.0
    %5756 = vmatprep.subr.mxu0 0.0
    %5757 = vmatpush1.msra.mxu0 0.0
    %5758 = vmatprep.subr.mxu0 0.0
    %5759 = vmatpush1.msra.mxu0 0.0
    %5760 = vmatprep.subr.mxu0 0.0
    %5761 = vmatpush1.msra.mxu0 0.0
    %5762 = vmatprep.subr.mxu0 0.0
    %5763 = vmatpush1.msra.mxu0 0.0
    %5764 = vmatprep.subr.mxu0 0.0
    %5765 = vmatpush1.msra.mxu0 0.0
    %5766 = vmatprep.subr.mxu0 0.0
    %5767 = vmatpush1.msra.mxu0 0.0
    %5768 = vmatprep.subr.mxu0 0.0
    %5769 = vmatpush1.msra.mxu0 0.0
    %5770 = vmatprep.subr.mxu0 0.0
    %5771 = vmatpush1.msra.mxu0 0.0
    %5772 = vmatprep.subr.mxu0 0.0
    %5773 = vmatpush1.msra.mxu0 0.0
    %5774 = vmatprep.subr.mxu0 0.0
    %5775 = vmatpush1.msra.mxu0 0.0
    %5776 = vmatprep.subr.mxu0 0.0
    %5777 = vmatpush1.msra.mxu0 0.0
    %5778 = vmatprep.subr.mxu0 0.0
    %5779 = vmatpush1.msra.mxu0 0.0
    %5780 = vmatprep.subr.mxu0 0.0
    %5781 = vmatpush1.msra.mxu0 0.0
    %5782 = vmatprep.subr.mxu0 0.0
    %5783 = vmatpush1.msra.mxu0 0.0
    %5784 = vmatprep.subr.mxu0 0.0
    %5785 = vmatpush1.msra.mxu0 0.0
    %5786 = vmatprep.subr.mxu0 0.0
    %5787 = vmatpush1.msra.mxu0 0.0
    %5788 = vmatprep.subr.mxu0 0.0
    %5789 = vmatpush1.msra.mxu0 0.0
    %5790 = vmatprep.subr.mxu0 0.0
    %5791 = vmatpush1.msra.mxu0 0.0
    %5792 = vmatprep.mubr.f32.mxu0 0.0
    %5793 = vmatmul.mubr.f32.gmra.mrb[0].mxu0 %v5723
    %v5794 = vpop.f32.mrb[0].mxu0
    %v5795 = vadd.f32 %v5721, %v5794
    %v5796 = vpop.f32.mrb[0].mxu0
    %5797 = vmatprep.mubr.f32.mxu0 0.0
    %5798 = vmatmul.mubr.f32.gmra.mrb[0].mxu0 %v5726
    %v5799 = vpop.f32.mrb[0].mxu0
    %v5800 = vadd.f32 %v5721, %v5799
    %v5801 = vpop.f32.mrb[0].mxu0
    %5802 = vdwg.mxu0
    %5803 = vst.msk [vmem:[#allocation7] sm:$0xff] %vm131, %v5795
    %5804 = vst.msk [vmem:[#allocation7 + $0x8] sm:$0xff] %vm131, %v5800
    // Predicated region
    $region30: #{transformer_forward.1} parent=1 // pred_check
      _
    $region31: #{transformer_forward.1} parent=1 // pred_check_branch
      %5806 = sbr.rel (0) target = $region33
    $region32: #{transformer_forward.1} parent=1 // pred_region
      %s5808 = ssub.s32 256, 256
      %5809 = vsyncadd [#allocation4], %s5808
      %s5810 = sshll.u32 [#allocation7], 4
      %s5811 = int_to_ptr.vmem [resolvable:$true] %s5810
      %5816 = dma.vmem_to_hbm [thread:$0]  %s5811, 256, %s5, [#allocation4], 128, 128, 8
    $region33: #{transformer_forward.1} parent=1 // pred_fallthru
      _
    // Predicated region
    $region34: #{transformer_forward.1} parent=1 // pred_check
      _
    $region35: #{transformer_forward.1} parent=1 // pred_check_branch
      %5818 = sbr.rel (0) target = $region37
    $region36: #{transformer_forward.1} parent=1 // pred_region
      %s5820 = ssub.s32 1024, 1024
      %5821 = vsyncadd [#allocation9], %s5820
      %s5822 = sshll.u32 [#allocation8], 4
      %s5823 = int_to_ptr.vmem [resolvable:$true] %s5822
      %5828 = dma.vmem_to_hbm [thread:$0]  %s5823, 1024, %s6, [#allocation9], 128, 128, 8
    $region37: #{transformer_forward.1} parent=1 // pred_fallthru
      _
    // Predicated region
    $region38: #{transformer_forward.1} parent=1 // pred_check
      _
    $region39: #{transformer_forward.1} parent=1 // pred_check_branch
      %5830 = sbr.rel (0) target = $region41
    $region40: #{transformer_forward.1} parent=1 // pred_region
      %5831 = dma.done [#allocation4], 256
    $region41: #{transformer_forward.1} parent=1 // pred_fallthru
      _
    // Predicated region
    $region42: #{transformer_forward.1} parent=1 // pred_check
      _
    $region43: #{transformer_forward.1} parent=1 // pred_check_branch
      %5833 = sbr.rel (0) target = $region45
    $region44: #{transformer_forward.1} parent=1 // pred_region
      %5834 = dma.done [#allocation9], 1024
    $region45: #{transformer_forward.1} parent=1 // pred_fallthru
      _
    %5835 = vsyncpa [#allocation3], 1
    %5836 = vsyncpa [#allocation6], 1
    %5837 = vsyncpa [#allocation4], 1
    %5838 = vsyncpa [#allocation9], 1

</llo_original>
